<compile_context>
chip_gen: v6e
topology: v6e:2x2x1
jax: 0.10.0
libtpu: 0.0.40
codegen_flags: <defaults>
</compile_context>

<pallas_src>
import jax
import jax.numpy as jnp
import numpy as np
from jax.experimental import pallas as pl
from jax.experimental.pallas import tpu as pltpu

FEAT = 2048        # backbone output channels (resnet152)
H1 = 500
H1P = 512          # lane-aligned padded width per head, layer 1
H2 = 100
H2P = 128          # lane-aligned padded width per head, layer 2
N_GENDER = 2
N_MASK = 3
N_AGE = 3
N_OUT_TOTAL = N_GENDER + N_MASK + N_AGE
OUT_PAD = 128      # lane-dense packed output width
TB_MAX = 256       # batch tile (multiple of 16 for bf16 sublane tiling)

# packed-output lane segments: gender [0,2), mask [2,5), age [5,8)
_SEGMENTS = ((0, N_GENDER),
             (N_GENDER, N_GENDER + N_MASK),
             (N_GENDER + N_MASK, N_OUT_TOTAL))


def _round_up(x, m):
    return ((x + m - 1) // m) * m


def _choose_tb(n):
    """Batch tile: multiple of 16 (bf16 sublane), capped, >=2 grid steps when possible."""
    n16 = _round_up(max(n, 1), 16)
    tb = min(TB_MAX, n16)
    # v7x only uses its second TensorCore if the grid has >=2 steps.
    if n16 // tb < 2 and n16 >= 32:
        tb = min(TB_MAX, _round_up(n16 // 2, 16))
    return tb


def model_kernel(x_ref, w1c_ref, b1c_ref, w2c_ref, b2c_ref, w3c_ref, b3c_ref,
                 out_ref):
    # x_ref: (TB, 2048) bf16 activation block (already bf16 from the wrapper).
    # Fused layer 1 for all three heads: one bf16 MXU matmul, f32 accumulation.
    h1 = jnp.dot(x_ref[...], w1c_ref[...],
                 preferred_element_type=jnp.float32) + b1c_ref[...]      # (TB,1536)

    # Block-diagonal fused layer 2 (512->100 per head, padded to 128 slots).
    h2 = jnp.dot(h1.astype(jnp.bfloat16), w2c_ref[...],
                 preferred_element_type=jnp.float32) + b2c_ref[...]      # (TB, 384)

    # Fused layer 3 lands directly in the packed output layout
    # (gender|mask|age|zero-pad), lanes 0..7 used, 8..127 zero.
    h3 = jnp.dot(h2.astype(jnp.bfloat16), w3c_ref[...],
                 preferred_element_type=jnp.float32) + b3c_ref[...]      # (TB, 128)

    # Segmented per-head softmax over the packed lanes (f32 throughout).
    lane = jax.lax.broadcasted_iota(jnp.int32, h3.shape, 1)
    out = jnp.zeros_like(h3)
    for s, e in _SEGMENTS:
        m = (lane >= s) & (lane < e)
        mx = jnp.max(jnp.where(m, h3, -jnp.inf), axis=-1, keepdims=True)
        eh = jnp.where(m, jnp.exp(h3 - mx), 0.0)
        # approx reciprocal runs on the EUP (free slot); rows sum to 1 within ~1e-3.
        out = out + eh * pl.reciprocal(jnp.sum(eh, axis=-1, keepdims=True),
                                       approx=True)
    out_ref[...] = out


def init_params(key):
    def linear(key, fan_in, fan_out):
        kw, kb = jax.random.split(key)
        scale = 1.0 / np.sqrt(fan_in)
        w = jax.random.uniform(kw, (fan_in, fan_out), jnp.float32, -scale, scale)
        b = jax.random.uniform(kb, (1, fan_out), jnp.float32, -scale, scale)
        return w, b

    params = {}
    for name, n_out in (("gender", N_GENDER), ("mask", N_MASK), ("age", N_AGE)):
        key, k1, k2, k3 = jax.random.split(key, 4)
        w1, b1 = linear(k1, FEAT, H1)
        w2, b2 = linear(k2, H1, H2)
        w3, b3 = linear(k3, H2, n_out)
        params[name] = dict(w1=w1, b1=b1, w2=w2, b2=b2, w3=w3, b3=b3)
    return params


def pack_params(params):
    """One-time repack: fuse all three heads into three lane-aligned bf16
    matrices (layer-2/3 block-diagonal); biases stay f32."""
    heads = (("gender", N_GENDER), ("mask", N_MASK), ("age", N_AGE))

    w1c = jnp.zeros((FEAT, 3 * H1P), jnp.float32)
    b1c = jnp.zeros((1, 3 * H1P), jnp.float32)
    w2c = jnp.zeros((3 * H1P, 3 * H2P), jnp.float32)
    b2c = jnp.zeros((1, 3 * H2P), jnp.float32)
    w3c = jnp.zeros((3 * H2P, OUT_PAD), jnp.float32)
    b3c = jnp.zeros((1, OUT_PAD), jnp.float32)

    off = 0
    for i, (name, n_out) in enumerate(heads):
        p = params[name]
        w1c = w1c.at[:, i * H1P:i * H1P + H1].set(p["w1"])
        b1c = b1c.at[:, i * H1P:i * H1P + H1].set(p["b1"])
        w2c = w2c.at[i * H1P:i * H1P + H1, i * H2P:i * H2P + H2].set(p["w2"])
        b2c = b2c.at[:, i * H2P:i * H2P + H2].set(p["b2"])
        w3c = w3c.at[i * H2P:i * H2P + H2, off:off + n_out].set(p["w3"])
        b3c = b3c.at[:, off:off + n_out].set(p["b3"])
        off += n_out

    return {
        # bf16 weights for all matmul layers; accumulation stays f32 in-kernel.
        "w1c": w1c.astype(jnp.bfloat16),   # (2048, 1536)
        "b1c": b1c,                        # (1, 1536) f32
        "w2c": w2c.astype(jnp.bfloat16),   # (1536, 384)  block-diagonal
        "b2c": b2c,                        # (1, 384) f32
        "w3c": w3c.astype(jnp.bfloat16),   # (384, 128)   -> packed output layout
        "b3c": b3c,                        # (1, 128) f32
    }


def model_forward(feat_nchw, packed):
    """feat_nchw: (N, 2048, H, W) backbone feature map (NCHW, like PyTorch)."""
    N, C = feat_nchw.shape[0], feat_nchw.shape[1]
    assert C == FEAT

    # Backbone tail (AdaptiveAvgPool2d((1,1)) + squeeze): reshape so the mean
    # reduces over a contiguous last axis (lane-friendly), then cast to bf16 so
    # the kernel's only streaming input is half-width.
    shared = jnp.mean(feat_nchw.reshape(N, C, -1), axis=-1).astype(jnp.bfloat16)

    tb = _choose_tb(N)
    n_pad = _round_up(N, tb)
    if n_pad != N:
        shared = jnp.pad(shared, ((0, n_pad - N), (0, 0)))
    grid = (n_pad // tb,)

    def resident(a):
        # Constant index_map: weights/biases stay in VMEM across grid steps.
        return pl.BlockSpec(a.shape, lambda i: (0,) * a.ndim)

    args = [shared, packed["w1c"], packed["b1c"], packed["w2c"], packed["b2c"],
            packed["w3c"], packed["b3c"]]
    in_specs = [pl.BlockSpec((tb, FEAT), lambda i: (i, 0))]
    in_specs += [resident(a) for a in args[1:]]

    out = pl.pallas_call(
        model_kernel,
        out_shape=jax.ShapeDtypeStruct((n_pad, OUT_PAD), jnp.float32),
        grid=grid,
        in_specs=in_specs,
        out_specs=pl.BlockSpec((tb, OUT_PAD), lambda i: (i, 0)),
        compiler_params=pltpu.CompilerParams(
            dimension_semantics=("parallel",),   # shard batch across TCs on v7x
            vmem_limit_bytes=40 << 20,           # ~22 MiB footprint + headroom
        ),
    )(*args)

    gender = out[:N, 0:N_GENDER]
    mask = out[:N, N_GENDER:N_GENDER + N_MASK]
    age = out[:N, N_GENDER + N_MASK:N_OUT_TOTAL]
    return gender, mask, age


def reference_forward(feat_nchw, params):
    shared = jnp.mean(feat_nchw, axis=(2, 3))  # (N, 2048)

    def head(p):
        h = shared @ p["w1"] + p["b1"]
        h = h @ p["w2"] + p["b2"]
        h = h @ p["w3"] + p["b3"]
        return jax.nn.softmax(h, axis=-1)

    return head(params["gender"]), head(params["mask"]), head(params["age"])


if __name__ == "__main__":
    key = jax.random.PRNGKey(0)
    k_feat, k_params = jax.random.split(key)

    # Small deterministic "backbone feature map": N=2, C=2048, H=W=4 (NCHW).
    feat = jax.random.normal(k_feat, (2, FEAT, 4, 4), dtype=jnp.float32)
    params = init_params(k_params)
    packed = pack_params(params)

    gender, mask, age = model_forward(feat, packed)
    jax.block_until_ready((gender, mask, age))

    g_ref, m_ref, a_ref = reference_forward(feat, params)
    np.testing.assert_allclose(np.asarray(gender), np.asarray(g_ref), atol=5e-2)
    np.testing.assert_allclose(np.asarray(mask), np.asarray(m_ref), atol=5e-2)
    np.testing.assert_allclose(np.asarray(age), np.asarray(a_ref), atol=5e-2)

    print("KERNEL_OK")
</pallas_src>

<mosaic_0001>
module attributes {stable_mosaic.version = 11 : i64} {
  func.func @model_kernel(%arg0: i32, %arg1: memref<16x2048xbf16, #tpu.memory_space<vmem>>, %arg2: memref<2048x1536xbf16, #tpu.memory_space<vmem>>, %arg3: memref<1x1536xf32, #tpu.memory_space<vmem>>, %arg4: memref<1536x384xbf16, #tpu.memory_space<vmem>>, %arg5: memref<1x384xf32, #tpu.memory_space<vmem>>, %arg6: memref<384x128xbf16, #tpu.memory_space<vmem>>, %arg7: memref<1x128xf32, #tpu.memory_space<vmem>>, %arg8: memref<16x128xf32, #tpu.memory_space<vmem>>) attributes {dimension_semantics = [#tpu.dimension_semantics<parallel>], iteration_bounds = array<i64: 1>, scalar_prefetch = 0 : i64, scratch_operands = 0 : i64, tpu.core_type = #tpu.core_type<tc>, window_params = [{transform_indices = @transform_0, window_bounds = array<i64: 16, 2048>}, {pipeline_mode = #tpu.pipeline_mode<synchronous>, transform_indices = @transform_1, window_bounds = array<i64: 2048, 1536>}, {pipeline_mode = #tpu.pipeline_mode<synchronous>, transform_indices = @transform_2, window_bounds = array<i64: 1, 1536>}, {pipeline_mode = #tpu.pipeline_mode<synchronous>, transform_indices = @transform_3, window_bounds = array<i64: 1536, 384>}, {pipeline_mode = #tpu.pipeline_mode<synchronous>, transform_indices = @transform_4, window_bounds = array<i64: 1, 384>}, {pipeline_mode = #tpu.pipeline_mode<synchronous>, transform_indices = @transform_5, window_bounds = array<i64: 384, 128>}, {pipeline_mode = #tpu.pipeline_mode<synchronous>, transform_indices = @transform_6, window_bounds = array<i64: 1, 128>}, {transform_indices = @transform_7, window_bounds = array<i64: 16, 128>}]} {
    %c0 = arith.constant 0 : index
    %c0_0 = arith.constant 0 : index
    %0 = vector.load %arg1[%c0, %c0_0] : memref<16x2048xbf16, #tpu.memory_space<vmem>>, vector<16x2048xbf16>
    %c0_1 = arith.constant 0 : index
    %c0_2 = arith.constant 0 : index
    %1 = vector.load %arg2[%c0_1, %c0_2] : memref<2048x1536xbf16, #tpu.memory_space<vmem>>, vector<2048x1536xbf16>
    %cst = arith.constant dense<0.000000e+00> : vector<16x1536xf32>
    %2 = tpu.matmul %0, %1, %cst {dimension_numbers = #tpu.dot_dimension_numbers<[1], [0], [0], [1], [0, 0, 1, 1], [], []>} : vector<16x2048xbf16>, vector<2048x1536xbf16>, vector<16x1536xf32> -> vector<16x1536xf32>
    %c0_3 = arith.constant 0 : index
    %c0_4 = arith.constant 0 : index
    %3 = vector.load %arg3[%c0_3, %c0_4] : memref<1x1536xf32, #tpu.memory_space<vmem>>, vector<1x1536xf32>
    %4 = vector.broadcast %3 : vector<1x1536xf32> to vector<16x1536xf32>
    %5 = arith.addf %2, %4 : vector<16x1536xf32>
    %6 = arith.truncf %5 : vector<16x1536xf32> to vector<16x1536xbf16>
    %c0_5 = arith.constant 0 : index
    %c0_6 = arith.constant 0 : index
    %7 = vector.load %arg4[%c0_5, %c0_6] : memref<1536x384xbf16, #tpu.memory_space<vmem>>, vector<1536x384xbf16>
    %cst_7 = arith.constant dense<0.000000e+00> : vector<16x384xf32>
    %8 = tpu.matmul %6, %7, %cst_7 {dimension_numbers = #tpu.dot_dimension_numbers<[1], [0], [0], [1], [0, 0, 1, 1], [], []>} : vector<16x1536xbf16>, vector<1536x384xbf16>, vector<16x384xf32> -> vector<16x384xf32>
    %c0_8 = arith.constant 0 : index
    %c0_9 = arith.constant 0 : index
    %9 = vector.load %arg5[%c0_8, %c0_9] : memref<1x384xf32, #tpu.memory_space<vmem>>, vector<1x384xf32>
    %10 = vector.broadcast %9 : vector<1x384xf32> to vector<16x384xf32>
    %11 = arith.addf %8, %10 : vector<16x384xf32>
    %12 = arith.truncf %11 : vector<16x384xf32> to vector<16x384xbf16>
    %c0_10 = arith.constant 0 : index
    %c0_11 = arith.constant 0 : index
    %13 = vector.load %arg6[%c0_10, %c0_11] : memref<384x128xbf16, #tpu.memory_space<vmem>>, vector<384x128xbf16>
    %cst_12 = arith.constant dense<0.000000e+00> : vector<16x128xf32>
    %14 = tpu.matmul %12, %13, %cst_12 {dimension_numbers = #tpu.dot_dimension_numbers<[1], [0], [0], [1], [0, 0, 1, 1], [], []>} : vector<16x384xbf16>, vector<384x128xbf16>, vector<16x128xf32> -> vector<16x128xf32>
    %c0_13 = arith.constant 0 : index
    %c0_14 = arith.constant 0 : index
    %15 = vector.load %arg7[%c0_13, %c0_14] : memref<1x128xf32, #tpu.memory_space<vmem>>, vector<1x128xf32>
    %16 = vector.broadcast %15 : vector<1x128xf32> to vector<16x128xf32>
    %17 = arith.addf %14, %16 : vector<16x128xf32>
    %18 = tpu.iota {dimensions = array<i32: 1>} : vector<16x128xi32>
    %cst_15 = arith.constant 0.000000e+00 : f32
    %19 = vector.broadcast %cst_15 : f32 to vector<16x128xf32>
    %c0_i32 = arith.constant 0 : i32
    %20 = vector.broadcast %c0_i32 : i32 to vector<16x128xi32>
    %21 = arith.cmpi sge, %18, %20 : vector<16x128xi32>
    %c2_i32 = arith.constant 2 : i32
    %22 = vector.broadcast %c2_i32 : i32 to vector<16x128xi32>
    %23 = arith.cmpi slt, %18, %22 : vector<16x128xi32>
    %24 = arith.andi %21, %23 : vector<16x128xi1>
    %cst_16 = arith.constant 0xFF800000 : f32
    %25 = vector.broadcast %cst_16 : f32 to vector<16x128xf32>
    %26 = arith.select %24, %17, %25 : vector<16x128xi1>, vector<16x128xf32>
    %cst_17 = arith.constant dense<0xFF800000> : vector<16xf32>
    %27 = vector.multi_reduction <maximumf>, %26, %cst_17 [1] : vector<16x128xf32> to vector<16xf32>
    %28 = vector.shape_cast %27 : vector<16xf32> to vector<16x1xf32>
    %29 = vector.broadcast %28 : vector<16x1xf32> to vector<16x128xf32>
    %30 = arith.subf %17, %29 : vector<16x128xf32>
    %31 = math.exp %30 : vector<16x128xf32>
    %cst_18 = arith.constant 0.000000e+00 : f32
    %32 = vector.broadcast %cst_18 : f32 to vector<16x128xf32>
    %33 = arith.select %24, %31, %32 : vector<16x128xi1>, vector<16x128xf32>
    %cst_19 = arith.constant dense<0.000000e+00> : vector<16xf32>
    %34 = vector.multi_reduction <add>, %33, %cst_19 [1] : vector<16x128xf32> to vector<16xf32>
    %35 = vector.shape_cast %34 : vector<16xf32> to vector<16x1xf32>
    %36 = tpu.reciprocal %35 {approx = true} : vector<16x1xf32> -> vector<16x1xf32>
    %37 = vector.broadcast %36 : vector<16x1xf32> to vector<16x128xf32>
    %38 = arith.mulf %33, %37 : vector<16x128xf32>
    %39 = arith.addf %19, %38 : vector<16x128xf32>
    %c2_i32_20 = arith.constant 2 : i32
    %40 = vector.broadcast %c2_i32_20 : i32 to vector<16x128xi32>
    %41 = arith.cmpi sge, %18, %40 : vector<16x128xi32>
    %c5_i32 = arith.constant 5 : i32
    %42 = vector.broadcast %c5_i32 : i32 to vector<16x128xi32>
    %43 = arith.cmpi slt, %18, %42 : vector<16x128xi32>
    %44 = arith.andi %41, %43 : vector<16x128xi1>
    %cst_21 = arith.constant 0xFF800000 : f32
    %45 = vector.broadcast %cst_21 : f32 to vector<16x128xf32>
    %46 = arith.select %44, %17, %45 : vector<16x128xi1>, vector<16x128xf32>
    %cst_22 = arith.constant dense<0xFF800000> : vector<16xf32>
    %47 = vector.multi_reduction <maximumf>, %46, %cst_22 [1] : vector<16x128xf32> to vector<16xf32>
    %48 = vector.shape_cast %47 : vector<16xf32> to vector<16x1xf32>
    %49 = vector.broadcast %48 : vector<16x1xf32> to vector<16x128xf32>
    %50 = arith.subf %17, %49 : vector<16x128xf32>
    %51 = math.exp %50 : vector<16x128xf32>
    %cst_23 = arith.constant 0.000000e+00 : f32
    %52 = vector.broadcast %cst_23 : f32 to vector<16x128xf32>
    %53 = arith.select %44, %51, %52 : vector<16x128xi1>, vector<16x128xf32>
    %cst_24 = arith.constant dense<0.000000e+00> : vector<16xf32>
    %54 = vector.multi_reduction <add>, %53, %cst_24 [1] : vector<16x128xf32> to vector<16xf32>
    %55 = vector.shape_cast %54 : vector<16xf32> to vector<16x1xf32>
    %56 = tpu.reciprocal %55 {approx = true} : vector<16x1xf32> -> vector<16x1xf32>
    %57 = vector.broadcast %56 : vector<16x1xf32> to vector<16x128xf32>
    %58 = arith.mulf %53, %57 : vector<16x128xf32>
    %59 = arith.addf %39, %58 : vector<16x128xf32>
    %c5_i32_25 = arith.constant 5 : i32
    %60 = vector.broadcast %c5_i32_25 : i32 to vector<16x128xi32>
    %61 = arith.cmpi sge, %18, %60 : vector<16x128xi32>
    %c8_i32 = arith.constant 8 : i32
    %62 = vector.broadcast %c8_i32 : i32 to vector<16x128xi32>
    %63 = arith.cmpi slt, %18, %62 : vector<16x128xi32>
    %64 = arith.andi %61, %63 : vector<16x128xi1>
    %cst_26 = arith.constant 0xFF800000 : f32
    %65 = vector.broadcast %cst_26 : f32 to vector<16x128xf32>
    %66 = arith.select %64, %17, %65 : vector<16x128xi1>, vector<16x128xf32>
    %cst_27 = arith.constant dense<0xFF800000> : vector<16xf32>
    %67 = vector.multi_reduction <maximumf>, %66, %cst_27 [1] : vector<16x128xf32> to vector<16xf32>
    %68 = vector.shape_cast %67 : vector<16xf32> to vector<16x1xf32>
    %69 = vector.broadcast %68 : vector<16x1xf32> to vector<16x128xf32>
    %70 = arith.subf %17, %69 : vector<16x128xf32>
    %71 = math.exp %70 : vector<16x128xf32>
    %cst_28 = arith.constant 0.000000e+00 : f32
    %72 = vector.broadcast %cst_28 : f32 to vector<16x128xf32>
    %73 = arith.select %64, %71, %72 : vector<16x128xi1>, vector<16x128xf32>
    %cst_29 = arith.constant dense<0.000000e+00> : vector<16xf32>
    %74 = vector.multi_reduction <add>, %73, %cst_29 [1] : vector<16x128xf32> to vector<16xf32>
    %75 = vector.shape_cast %74 : vector<16xf32> to vector<16x1xf32>
    %76 = tpu.reciprocal %75 {approx = true} : vector<16x1xf32> -> vector<16x1xf32>
    %77 = vector.broadcast %76 : vector<16x1xf32> to vector<16x128xf32>
    %78 = arith.mulf %73, %77 : vector<16x128xf32>
    %79 = arith.addf %59, %78 : vector<16x128xf32>
    %c0_30 = arith.constant 0 : index
    %c0_31 = arith.constant 0 : index
    %80 = vector.load %arg8[%c0_30, %c0_31] : memref<16x128xf32, #tpu.memory_space<vmem>>, vector<16x128xf32>
    tpu.vector_store %arg8[%c0_30, %c0_31], %79 {strides = array<i32>} : memref<16x128xf32, #tpu.memory_space<vmem>>, vector<16x128xf32>,
    return
  }
  func.func @transform_0(%arg0: i32) -> (i32, i32) {
    %c0_i32 = arith.constant 0 : i32
    %c0_i32_0 = arith.constant 0 : i32
    return %arg0, %c0_i32 : i32, i32
  }
  func.func @transform_1(%arg0: i32) -> (i32, i32) {
    %c0_i32 = arith.constant 0 : i32
    %c0_i32_0 = arith.constant 0 : i32
    %c0_i32_1 = arith.constant 0 : i32
    return %c0_i32, %c0_i32_0 : i32, i32
  }
  func.func @transform_2(%arg0: i32) -> (i32, i32) {
    %c0_i32 = arith.constant 0 : i32
    %c0_i32_0 = arith.constant 0 : i32
    %c0_i32_1 = arith.constant 0 : i32
    return %c0_i32, %c0_i32_0 : i32, i32
  }
  func.func @transform_3(%arg0: i32) -> (i32, i32) {
    %c0_i32 = arith.constant 0 : i32
    %c0_i32_0 = arith.constant 0 : i32
    %c0_i32_1 = arith.constant 0 : i32
    return %c0_i32, %c0_i32_0 : i32, i32
  }
  func.func @transform_4(%arg0: i32) -> (i32, i32) {
    %c0_i32 = arith.constant 0 : i32
    %c0_i32_0 = arith.constant 0 : i32
    %c0_i32_1 = arith.constant 0 : i32
    return %c0_i32, %c0_i32_0 : i32, i32
  }
  func.func @transform_5(%arg0: i32) -> (i32, i32) {
    %c0_i32 = arith.constant 0 : i32
    %c0_i32_0 = arith.constant 0 : i32
    %c0_i32_1 = arith.constant 0 : i32
    return %c0_i32, %c0_i32_0 : i32, i32
  }
  func.func @transform_6(%arg0: i32) -> (i32, i32) {
    %c0_i32 = arith.constant 0 : i32
    %c0_i32_0 = arith.constant 0 : i32
    %c0_i32_1 = arith.constant 0 : i32
    return %c0_i32, %c0_i32_0 : i32, i32
  }
  func.func @transform_7(%arg0: i32) -> (i32, i32) {
    %c0_i32 = arith.constant 0 : i32
    %c0_i32_0 = arith.constant 0 : i32
    return %arg0, %c0_i32 : i32, i32
  }
}

</mosaic_0001>

<llo_original>
// kernel: tpu_custom_call.1
$region0: #{tpu_custom_call.1}
  #allocation0 [shape = 'u32[]', space=smem, size = 0x4, offset = 0x4, fixed_abs, tag = 'smem constant byte address 0x4 - core index']
  #allocation1 [shape = 'u32[144,128]{1,0:T(1,128)}', space=vmem, size = 0x12000, scoped, tag = 'internal scratch']
  %s0 = inlined_call_operand.hbm [shape: bf16[16,2048], index: 0, kind: input, shape index: {}]
  %s1 = inlined_call_operand.hbm [shape: bf16[2048,1536], index: 1, kind: input, shape index: {}]
  %s2 = inlined_call_operand.hbm [shape: f32[1,1536], index: 2, kind: input, shape index: {}]
  %s3 = inlined_call_operand.hbm [shape: bf16[1536,384], index: 3, kind: input, shape index: {}]
  %s4 = inlined_call_operand.hbm [shape: f32[1,384], index: 4, kind: input, shape index: {}]
  %s5 = inlined_call_operand.hbm [shape: bf16[384,128], index: 5, kind: input, shape index: {}]
  %s6 = inlined_call_operand.hbm [shape: f32[1,128], index: 6, kind: input, shape index: {}]
  %s7 = inlined_call_operand.hbm [shape: f32[16,128], index: 7, kind: output, shape index: {}]
  %s8 = sld [smem:[#allocation0]]
  $region66: #{tpu_custom_call.1} parent=0
    _
  %s10 = ssub.s32 1, %s8
  %s11 = scalar_select 0, %s10, %s8
  $region1: #{tpu_custom_call.1} parent=0
    #allocation2 [shape = 'u8[65536]{0}', space=vmem, size = 0x10000, scoped, tag = 'input window, operand 0, single buffered']
    #allocation3 [shape = 's32[1]{0}', space=sflag, size = 0x4, scoped, tag = 'scoped memory for tpu_custom_call.1']
    #allocation4 [shape = 's32[1]{0}', space=sflag, size = 0x4, scoped, tag = 'scoped memory for tpu_custom_call.1']
    #allocation5 [shape = 'u8[6291456]{0}', space=vmem, size = 0x600000, scoped, tag = 'input window, operand 1, single buffered']
    #allocation6 [shape = 's32[1]{0}', space=sflag, size = 0x4, scoped, tag = 'scoped memory for tpu_custom_call.1']
    #allocation7 [shape = 'u8[6144]{0}', space=vmem, size = 0x1800, scoped, tag = 'input window, operand 2, single buffered']
    #allocation8 [shape = 'u8[1179648]{0}', space=vmem, size = 0x120000, scoped, tag = 'input window, operand 3, single buffered']
    #allocation9 [shape = 's32[1]{0}', space=sflag, size = 0x4, scoped, tag = 'scoped memory for tpu_custom_call.1']
    #allocation10 [shape = 'u8[1536]{0}', space=vmem, size = 0x800, scoped, tag = 'input window, operand 4, single buffered']
    #allocation11 [shape = 'u8[98304]{0}', space=vmem, size = 0x18000, scoped, tag = 'input window, operand 5, single buffered']
    #allocation12 [shape = 's32[1]{0}', space=sflag, size = 0x4, scoped, tag = 'scoped memory for tpu_custom_call.1']
    #allocation13 [shape = 'u8[512]{0}', space=vmem, size = 0x400, scoped, tag = 'input window, operand 6, single buffered']
    #allocation14 [shape = 'u8[8192]{0}', space=vmem, size = 0x2000, scoped, tag = 'output window, operand 0, single buffered']
    %12 = vsyncpa [#allocation3], 0
    %13 = vsyncpa [#allocation6], 0
    %14 = vsyncpa [#allocation9], 0
    %15 = vsyncpa [#allocation12], 0
    %16 = vsyncpa [#allocation4], 0
    // Predicated region
    $region2: #{tpu_custom_call.1} parent=1 // pred_check
      _
    $region3: #{tpu_custom_call.1} parent=1 // pred_check_branch
      %18 = sbr.rel (0) target = $region5
    $region4: #{tpu_custom_call.1} parent=1 // pred_region
      %s20 = ssub.s32 2048, 2048
      %21 = vsyncadd [#allocation3], %s20
      %s22 = sshll.u32 [#allocation2], 4
      %s23 = int_to_ptr.vmem [resolvable:$true] %s22
      %28 = dma.hbm_to_vmem [thread:$0]  %s0, 2048, %s23, [#allocation3], 1024, 1024, 64
    $region5: #{tpu_custom_call.1} parent=1 // pred_fallthru
      _
    // Predicated region
    $region6: #{tpu_custom_call.1} parent=1 // pred_check
      _
    $region7: #{tpu_custom_call.1} parent=1 // pred_check_branch
      %30 = sbr.rel (0) target = $region9
    $region8: #{tpu_custom_call.1} parent=1 // pred_region
      %s32 = ssub.s32 196608, 196608
      %33 = vsyncadd [#allocation6], %s32
      %s34 = sshll.u32 [#allocation5], 4
      %s35 = int_to_ptr.vmem [resolvable:$true] %s34
      %40 = dma.hbm_to_vmem [thread:$0]  %s1, 196608, %s35, [#allocation6], 768, 768, 48
    $region9: #{tpu_custom_call.1} parent=1 // pred_fallthru
      _
    // Predicated region
    $region10: #{tpu_custom_call.1} parent=1 // pred_check
      _
    $region11: #{tpu_custom_call.1} parent=1 // pred_check_branch
      %42 = sbr.rel (0) target = $region13
    $region12: #{tpu_custom_call.1} parent=1 // pred_region
      %s44 = ssub.s32 192, 192
      %45 = vsyncadd [#allocation6], %s44
      %s47 = sshll.u32 [#allocation7], 4
      %s48 = int_to_ptr.vmem [resolvable:$true] %s47
      %50 = dma.hbm_to_vmem [thread:$0]  %s2, 192, %s48, [#allocation6]
    $region13: #{tpu_custom_call.1} parent=1 // pred_fallthru
      _
    // Predicated region
    $region14: #{tpu_custom_call.1} parent=1 // pred_check
      _
    $region15: #{tpu_custom_call.1} parent=1 // pred_check_branch
      %52 = sbr.rel (0) target = $region17
    $region16: #{tpu_custom_call.1} parent=1 // pred_region
      %s54 = ssub.s32 36864, 36864
      %55 = vsyncadd [#allocation9], %s54
      %s56 = sshll.u32 [#allocation8], 4
      %s57 = int_to_ptr.vmem [resolvable:$true] %s56
      %62 = dma.hbm_to_vmem [thread:$0]  %s3, 36864, %s57, [#allocation9], 192, 192, 12
    $region17: #{tpu_custom_call.1} parent=1 // pred_fallthru
      _
    // Predicated region
    $region18: #{tpu_custom_call.1} parent=1 // pred_check
      _
    $region19: #{tpu_custom_call.1} parent=1 // pred_check_branch
      %64 = sbr.rel (0) target = $region21
    $region20: #{tpu_custom_call.1} parent=1 // pred_region
      %s66 = ssub.s32 48, 48
      %67 = vsyncadd [#allocation9], %s66
      %s69 = sshll.u32 [#allocation10], 4
      %s70 = int_to_ptr.vmem [resolvable:$true] %s69
      %72 = dma.hbm_to_vmem [thread:$0]  %s4, 48, %s70, [#allocation9]
    $region21: #{tpu_custom_call.1} parent=1 // pred_fallthru
      _
    // Predicated region
    $region22: #{tpu_custom_call.1} parent=1 // pred_check
      _
    $region23: #{tpu_custom_call.1} parent=1 // pred_check_branch
      %74 = sbr.rel (0) target = $region25
    $region24: #{tpu_custom_call.1} parent=1 // pred_region
      %s76 = ssub.s32 3072, 3072
      %77 = vsyncadd [#allocation12], %s76
      %s78 = sshll.u32 [#allocation11], 4
      %s79 = int_to_ptr.vmem [resolvable:$true] %s78
      %84 = dma.hbm_to_vmem [thread:$0]  %s5, 3072, %s79, [#allocation12], 64, 64, 4
    $region25: #{tpu_custom_call.1} parent=1 // pred_fallthru
      _
    // Predicated region
    $region26: #{tpu_custom_call.1} parent=1 // pred_check
      _
    $region27: #{tpu_custom_call.1} parent=1 // pred_check_branch
      %86 = sbr.rel (0) target = $region29
    $region28: #{tpu_custom_call.1} parent=1 // pred_region
      %s88 = ssub.s32 16, 16
      %89 = vsyncadd [#allocation12], %s88
      %s91 = sshll.u32 [#allocation13], 4
      %s92 = int_to_ptr.vmem [resolvable:$true] %s91
      %94 = dma.hbm_to_vmem [thread:$0]  %s6, 16, %s92, [#allocation12]
    $region29: #{tpu_custom_call.1} parent=1 // pred_fallthru
      _
    // Predicated region
    $region30: #{tpu_custom_call.1} parent=1 // pred_check
      _
    $region31: #{tpu_custom_call.1} parent=1 // pred_check_branch
      %96 = sbr.rel (0) target = $region33
    $region32: #{tpu_custom_call.1} parent=1 // pred_region
      %97 = dma.done [#allocation3], 2048
    $region33: #{tpu_custom_call.1} parent=1 // pred_fallthru
      _
    // Predicated region
    $region34: #{tpu_custom_call.1} parent=1 // pred_check
      _
    $region35: #{tpu_custom_call.1} parent=1 // pred_check_branch
      %99 = sbr.rel (0) target = $region37
    $region36: #{tpu_custom_call.1} parent=1 // pred_region
      %100 = dma.done [#allocation6], 196608
    $region37: #{tpu_custom_call.1} parent=1 // pred_fallthru
      _
    // Predicated region
    $region38: #{tpu_custom_call.1} parent=1 // pred_check
      _
    $region39: #{tpu_custom_call.1} parent=1 // pred_check_branch
      %102 = sbr.rel (0) target = $region41
    $region40: #{tpu_custom_call.1} parent=1 // pred_region
      %103 = dma.done [#allocation6], 192
    $region41: #{tpu_custom_call.1} parent=1 // pred_fallthru
      _
    // Predicated region
    $region42: #{tpu_custom_call.1} parent=1 // pred_check
      _
    $region43: #{tpu_custom_call.1} parent=1 // pred_check_branch
      %105 = sbr.rel (0) target = $region45
    $region44: #{tpu_custom_call.1} parent=1 // pred_region
      %106 = dma.done [#allocation9], 36864
    $region45: #{tpu_custom_call.1} parent=1 // pred_fallthru
      _
    // Predicated region
    $region46: #{tpu_custom_call.1} parent=1 // pred_check
      _
    $region47: #{tpu_custom_call.1} parent=1 // pred_check_branch
      %108 = sbr.rel (0) target = $region49
    $region48: #{tpu_custom_call.1} parent=1 // pred_region
      %109 = dma.done [#allocation9], 48
    $region49: #{tpu_custom_call.1} parent=1 // pred_fallthru
      _
    // Predicated region
    $region50: #{tpu_custom_call.1} parent=1 // pred_check
      _
    $region51: #{tpu_custom_call.1} parent=1 // pred_check_branch
      %111 = sbr.rel (0) target = $region53
    $region52: #{tpu_custom_call.1} parent=1 // pred_region
      %112 = dma.done [#allocation12], 3072
    $region53: #{tpu_custom_call.1} parent=1 // pred_fallthru
      _
    // Predicated region
    $region54: #{tpu_custom_call.1} parent=1 // pred_check
      _
    $region55: #{tpu_custom_call.1} parent=1 // pred_check_branch
      %114 = sbr.rel (0) target = $region57
    $region56: #{tpu_custom_call.1} parent=1 // pred_region
      %115 = dma.done [#allocation12], 16
    $region57: #{tpu_custom_call.1} parent=1 // pred_fallthru
      _
    %v117 = vld [vmem:[#allocation2] sm:$0xff]
    %v118 = vld [vmem:[#allocation2 + $0x8] sm:$0xff]
    %v119 = vld [vmem:[#allocation2 + $0x10] sm:$0xff]
    %v120 = vld [vmem:[#allocation2 + $0x18] sm:$0xff]
    %v121 = vld [vmem:[#allocation2 + $0x20] sm:$0xff]
    %v122 = vld [vmem:[#allocation2 + $0x28] sm:$0xff]
    %v123 = vld [vmem:[#allocation2 + $0x30] sm:$0xff]
    %v124 = vld [vmem:[#allocation2 + $0x38] sm:$0xff]
    %v125 = vld [vmem:[#allocation2 + $0x40] sm:$0xff]
    %v126 = vld [vmem:[#allocation2 + $0x48] sm:$0xff]
    %v127 = vld [vmem:[#allocation2 + $0x50] sm:$0xff]
    %v128 = vld [vmem:[#allocation2 + $0x58] sm:$0xff]
    %v129 = vld [vmem:[#allocation2 + $0x60] sm:$0xff]
    %v130 = vld [vmem:[#allocation2 + $0x68] sm:$0xff]
    %v131 = vld [vmem:[#allocation2 + $0x70] sm:$0xff]
    %v132 = vld [vmem:[#allocation2 + $0x78] sm:$0xff]
    %v133 = vld [vmem:[#allocation5] sm:$0xff]
    %v134 = vld [vmem:[#allocation5 + $0x8] sm:$0xff]
    %v135 = vld [vmem:[#allocation5 + $0x10] sm:$0xff]
    %v136 = vld [vmem:[#allocation5 + $0x18] sm:$0xff]
    %v137 = vld [vmem:[#allocation5 + $0x20] sm:$0xff]
    %v138 = vld [vmem:[#allocation5 + $0x28] sm:$0xff]
    %v139 = vld [vmem:[#allocation5 + $0x30] sm:$0xff]
    %v140 = vld [vmem:[#allocation5 + $0x38] sm:$0xff]
    %v141 = vld [vmem:[#allocation5 + $0x40] sm:$0xff]
    %v142 = vld [vmem:[#allocation5 + $0x48] sm:$0xff]
    %v143 = vld [vmem:[#allocation5 + $0x50] sm:$0xff]
    %v144 = vld [vmem:[#allocation5 + $0x58] sm:$0xff]
    %v145 = vld [vmem:[#allocation5 + $0x60] sm:$0xff]
    %v146 = vld [vmem:[#allocation5 + $0x68] sm:$0xff]
    %v147 = vld [vmem:[#allocation5 + $0x70] sm:$0xff]
    %v148 = vld [vmem:[#allocation5 + $0x78] sm:$0xff]
    %v149 = vld [vmem:[#allocation5 + $0x80] sm:$0xff]
    %v150 = vld [vmem:[#allocation5 + $0x88] sm:$0xff]
    %v151 = vld [vmem:[#allocation5 + $0x90] sm:$0xff]
    %v152 = vld [vmem:[#allocation5 + $0x98] sm:$0xff]
    %v153 = vld [vmem:[#allocation5 + $0xa0] sm:$0xff]
    %v154 = vld [vmem:[#allocation5 + $0xa8] sm:$0xff]
    %v155 = vld [vmem:[#allocation5 + $0xb0] sm:$0xff]
    %v156 = vld [vmem:[#allocation5 + $0xb8] sm:$0xff]
    %v157 = vld [vmem:[#allocation5 + $0xc0] sm:$0xff]
    %v158 = vld [vmem:[#allocation5 + $0xc8] sm:$0xff]
    %v159 = vld [vmem:[#allocation5 + $0xd0] sm:$0xff]
    %v160 = vld [vmem:[#allocation5 + $0xd8] sm:$0xff]
    %v161 = vld [vmem:[#allocation5 + $0xe0] sm:$0xff]
    %v162 = vld [vmem:[#allocation5 + $0xe8] sm:$0xff]
    %v163 = vld [vmem:[#allocation5 + $0xf0] sm:$0xff]
    %v164 = vld [vmem:[#allocation5 + $0xf8] sm:$0xff]
    %v165 = vld [vmem:[#allocation5 + $0x100] sm:$0xff]
    %v166 = vld [vmem:[#allocation5 + $0x108] sm:$0xff]
    %v167 = vld [vmem:[#allocation5 + $0x110] sm:$0xff]
    %v168 = vld [vmem:[#allocation5 + $0x118] sm:$0xff]
    %v169 = vld [vmem:[#allocation5 + $0x120] sm:$0xff]
    %v170 = vld [vmem:[#allocation5 + $0x128] sm:$0xff]
    %v171 = vld [vmem:[#allocation5 + $0x130] sm:$0xff]
    %v172 = vld [vmem:[#allocation5 + $0x138] sm:$0xff]
    %v173 = vld [vmem:[#allocation5 + $0x140] sm:$0xff]
    %v174 = vld [vmem:[#allocation5 + $0x148] sm:$0xff]
    %v175 = vld [vmem:[#allocation5 + $0x150] sm:$0xff]
    %v176 = vld [vmem:[#allocation5 + $0x158] sm:$0xff]
    %v177 = vld [vmem:[#allocation5 + $0x160] sm:$0xff]
    %v178 = vld [vmem:[#allocation5 + $0x168] sm:$0xff]
    %v179 = vld [vmem:[#allocation5 + $0x170] sm:$0xff]
    %v180 = vld [vmem:[#allocation5 + $0x178] sm:$0xff]
    %v181 = vld [vmem:[#allocation5 + $0x180] sm:$0xff]
    %v182 = vld [vmem:[#allocation5 + $0x188] sm:$0xff]
    %v183 = vld [vmem:[#allocation5 + $0x190] sm:$0xff]
    %v184 = vld [vmem:[#allocation5 + $0x198] sm:$0xff]
    %v185 = vld [vmem:[#allocation5 + $0x1a0] sm:$0xff]
    %v186 = vld [vmem:[#allocation5 + $0x1a8] sm:$0xff]
    %v187 = vld [vmem:[#allocation5 + $0x1b0] sm:$0xff]
    %v188 = vld [vmem:[#allocation5 + $0x1b8] sm:$0xff]
    %v189 = vld [vmem:[#allocation5 + $0x1c0] sm:$0xff]
    %v190 = vld [vmem:[#allocation5 + $0x1c8] sm:$0xff]
    %v191 = vld [vmem:[#allocation5 + $0x1d0] sm:$0xff]
    %v192 = vld [vmem:[#allocation5 + $0x1d8] sm:$0xff]
    %v193 = vld [vmem:[#allocation5 + $0x1e0] sm:$0xff]
    %v194 = vld [vmem:[#allocation5 + $0x1e8] sm:$0xff]
    %v195 = vld [vmem:[#allocation5 + $0x1f0] sm:$0xff]
    %v196 = vld [vmem:[#allocation5 + $0x1f8] sm:$0xff]
    %v197 = vld [vmem:[#allocation5 + $0x200] sm:$0xff]
    %v198 = vld [vmem:[#allocation5 + $0x208] sm:$0xff]
    %v199 = vld [vmem:[#allocation5 + $0x210] sm:$0xff]
    %v200 = vld [vmem:[#allocation5 + $0x218] sm:$0xff]
    %v201 = vld [vmem:[#allocation5 + $0x220] sm:$0xff]
    %v202 = vld [vmem:[#allocation5 + $0x228] sm:$0xff]
    %v203 = vld [vmem:[#allocation5 + $0x230] sm:$0xff]
    %v204 = vld [vmem:[#allocation5 + $0x238] sm:$0xff]
    %v205 = vld [vmem:[#allocation5 + $0x240] sm:$0xff]
    %v206 = vld [vmem:[#allocation5 + $0x248] sm:$0xff]
    %v207 = vld [vmem:[#allocation5 + $0x250] sm:$0xff]
    %v208 = vld [vmem:[#allocation5 + $0x258] sm:$0xff]
    %v209 = vld [vmem:[#allocation5 + $0x260] sm:$0xff]
    %v210 = vld [vmem:[#allocation5 + $0x268] sm:$0xff]
    %v211 = vld [vmem:[#allocation5 + $0x270] sm:$0xff]
    %v212 = vld [vmem:[#allocation5 + $0x278] sm:$0xff]
    %v213 = vld [vmem:[#allocation5 + $0x280] sm:$0xff]
    %v214 = vld [vmem:[#allocation5 + $0x288] sm:$0xff]
    %v215 = vld [vmem:[#allocation5 + $0x290] sm:$0xff]
    %v216 = vld [vmem:[#allocation5 + $0x298] sm:$0xff]
    %v217 = vld [vmem:[#allocation5 + $0x2a0] sm:$0xff]
    %v218 = vld [vmem:[#allocation5 + $0x2a8] sm:$0xff]
    %v219 = vld [vmem:[#allocation5 + $0x2b0] sm:$0xff]
    %v220 = vld [vmem:[#allocation5 + $0x2b8] sm:$0xff]
    %v221 = vld [vmem:[#allocation5 + $0x2c0] sm:$0xff]
    %v222 = vld [vmem:[#allocation5 + $0x2c8] sm:$0xff]
    %v223 = vld [vmem:[#allocation5 + $0x2d0] sm:$0xff]
    %v224 = vld [vmem:[#allocation5 + $0x2d8] sm:$0xff]
    %v225 = vld [vmem:[#allocation5 + $0x2e0] sm:$0xff]
    %v226 = vld [vmem:[#allocation5 + $0x2e8] sm:$0xff]
    %v227 = vld [vmem:[#allocation5 + $0x2f0] sm:$0xff]
    %v228 = vld [vmem:[#allocation5 + $0x2f8] sm:$0xff]
    %v229 = vld [vmem:[#allocation5 + $0x300] sm:$0xff]
    %v230 = vld [vmem:[#allocation5 + $0x308] sm:$0xff]
    %v231 = vld [vmem:[#allocation5 + $0x310] sm:$0xff]
    %v232 = vld [vmem:[#allocation5 + $0x318] sm:$0xff]
    %v233 = vld [vmem:[#allocation5 + $0x320] sm:$0xff]
    %v234 = vld [vmem:[#allocation5 + $0x328] sm:$0xff]
    %v235 = vld [vmem:[#allocation5 + $0x330] sm:$0xff]
    %v236 = vld [vmem:[#allocation5 + $0x338] sm:$0xff]
    %v237 = vld [vmem:[#allocation5 + $0x340] sm:$0xff]
    %v238 = vld [vmem:[#allocation5 + $0x348] sm:$0xff]
    %v239 = vld [vmem:[#allocation5 + $0x350] sm:$0xff]
    %v240 = vld [vmem:[#allocation5 + $0x358] sm:$0xff]
    %v241 = vld [vmem:[#allocation5 + $0x360] sm:$0xff]
    %v242 = vld [vmem:[#allocation5 + $0x368] sm:$0xff]
    %v243 = vld [vmem:[#allocation5 + $0x370] sm:$0xff]
    %v244 = vld [vmem:[#allocation5 + $0x378] sm:$0xff]
    %v245 = vld [vmem:[#allocation5 + $0x380] sm:$0xff]
    %v246 = vld [vmem:[#allocation5 + $0x388] sm:$0xff]
    %v247 = vld [vmem:[#allocation5 + $0x390] sm:$0xff]
    %v248 = vld [vmem:[#allocation5 + $0x398] sm:$0xff]
    %v249 = vld [vmem:[#allocation5 + $0x3a0] sm:$0xff]
    %v250 = vld [vmem:[#allocation5 + $0x3a8] sm:$0xff]
    %v251 = vld [vmem:[#allocation5 + $0x3b0] sm:$0xff]
    %v252 = vld [vmem:[#allocation5 + $0x3b8] sm:$0xff]
    %v253 = vld [vmem:[#allocation5 + $0x3c0] sm:$0xff]
    %v254 = vld [vmem:[#allocation5 + $0x3c8] sm:$0xff]
    %v255 = vld [vmem:[#allocation5 + $0x3d0] sm:$0xff]
    %v256 = vld [vmem:[#allocation5 + $0x3d8] sm:$0xff]
    %v257 = vld [vmem:[#allocation5 + $0x3e0] sm:$0xff]
    %v258 = vld [vmem:[#allocation5 + $0x3e8] sm:$0xff]
    %v259 = vld [vmem:[#allocation5 + $0x3f0] sm:$0xff]
    %v260 = vld [vmem:[#allocation5 + $0x3f8] sm:$0xff]
    %v261 = vld [vmem:[#allocation5 + $0x400] sm:$0xff]
    %v262 = vld [vmem:[#allocation5 + $0x408] sm:$0xff]
    %v263 = vld [vmem:[#allocation5 + $0x410] sm:$0xff]
    %v264 = vld [vmem:[#allocation5 + $0x418] sm:$0xff]
    %v265 = vld [vmem:[#allocation5 + $0x420] sm:$0xff]
    %v266 = vld [vmem:[#allocation5 + $0x428] sm:$0xff]
    %v267 = vld [vmem:[#allocation5 + $0x430] sm:$0xff]
    %v268 = vld [vmem:[#allocation5 + $0x438] sm:$0xff]
    %v269 = vld [vmem:[#allocation5 + $0x440] sm:$0xff]
    %v270 = vld [vmem:[#allocation5 + $0x448] sm:$0xff]
    %v271 = vld [vmem:[#allocation5 + $0x450] sm:$0xff]
    %v272 = vld [vmem:[#allocation5 + $0x458] sm:$0xff]
    %v273 = vld [vmem:[#allocation5 + $0x460] sm:$0xff]
    %v274 = vld [vmem:[#allocation5 + $0x468] sm:$0xff]
    %v275 = vld [vmem:[#allocation5 + $0x470] sm:$0xff]
    %v276 = vld [vmem:[#allocation5 + $0x478] sm:$0xff]
    %v277 = vld [vmem:[#allocation5 + $0x480] sm:$0xff]
    %v278 = vld [vmem:[#allocation5 + $0x488] sm:$0xff]
    %v279 = vld [vmem:[#allocation5 + $0x490] sm:$0xff]
    %v280 = vld [vmem:[#allocation5 + $0x498] sm:$0xff]
    %v281 = vld [vmem:[#allocation5 + $0x4a0] sm:$0xff]
    %v282 = vld [vmem:[#allocation5 + $0x4a8] sm:$0xff]
    %v283 = vld [vmem:[#allocation5 + $0x4b0] sm:$0xff]
    %v284 = vld [vmem:[#allocation5 + $0x4b8] sm:$0xff]
    %v285 = vld [vmem:[#allocation5 + $0x4c0] sm:$0xff]
    %v286 = vld [vmem:[#allocation5 + $0x4c8] sm:$0xff]
    %v287 = vld [vmem:[#allocation5 + $0x4d0] sm:$0xff]
    %v288 = vld [vmem:[#allocation5 + $0x4d8] sm:$0xff]
    %v289 = vld [vmem:[#allocation5 + $0x4e0] sm:$0xff]
    %v290 = vld [vmem:[#allocation5 + $0x4e8] sm:$0xff]
    %v291 = vld [vmem:[#allocation5 + $0x4f0] sm:$0xff]
    %v292 = vld [vmem:[#allocation5 + $0x4f8] sm:$0xff]
    %v293 = vld [vmem:[#allocation5 + $0x500] sm:$0xff]
    %v294 = vld [vmem:[#allocation5 + $0x508] sm:$0xff]
    %v295 = vld [vmem:[#allocation5 + $0x510] sm:$0xff]
    %v296 = vld [vmem:[#allocation5 + $0x518] sm:$0xff]
    %v297 = vld [vmem:[#allocation5 + $0x520] sm:$0xff]
    %v298 = vld [vmem:[#allocation5 + $0x528] sm:$0xff]
    %v299 = vld [vmem:[#allocation5 + $0x530] sm:$0xff]
    %v300 = vld [vmem:[#allocation5 + $0x538] sm:$0xff]
    %v301 = vld [vmem:[#allocation5 + $0x540] sm:$0xff]
    %v302 = vld [vmem:[#allocation5 + $0x548] sm:$0xff]
    %v303 = vld [vmem:[#allocation5 + $0x550] sm:$0xff]
    %v304 = vld [vmem:[#allocation5 + $0x558] sm:$0xff]
    %v305 = vld [vmem:[#allocation5 + $0x560] sm:$0xff]
    %v306 = vld [vmem:[#allocation5 + $0x568] sm:$0xff]
    %v307 = vld [vmem:[#allocation5 + $0x570] sm:$0xff]
    %v308 = vld [vmem:[#allocation5 + $0x578] sm:$0xff]
    %v309 = vld [vmem:[#allocation5 + $0x580] sm:$0xff]
    %v310 = vld [vmem:[#allocation5 + $0x588] sm:$0xff]
    %v311 = vld [vmem:[#allocation5 + $0x590] sm:$0xff]
    %v312 = vld [vmem:[#allocation5 + $0x598] sm:$0xff]
    %v313 = vld [vmem:[#allocation5 + $0x5a0] sm:$0xff]
    %v314 = vld [vmem:[#allocation5 + $0x5a8] sm:$0xff]
    %v315 = vld [vmem:[#allocation5 + $0x5b0] sm:$0xff]
    %v316 = vld [vmem:[#allocation5 + $0x5b8] sm:$0xff]
    %v317 = vld [vmem:[#allocation5 + $0x5c0] sm:$0xff]
    %v318 = vld [vmem:[#allocation5 + $0x5c8] sm:$0xff]
    %v319 = vld [vmem:[#allocation5 + $0x5d0] sm:$0xff]
    %v320 = vld [vmem:[#allocation5 + $0x5d8] sm:$0xff]
    %v321 = vld [vmem:[#allocation5 + $0x5e0] sm:$0xff]
    %v322 = vld [vmem:[#allocation5 + $0x5e8] sm:$0xff]
    %v323 = vld [vmem:[#allocation5 + $0x5f0] sm:$0xff]
    %v324 = vld [vmem:[#allocation5 + $0x5f8] sm:$0xff]
    %v325 = vld [vmem:[#allocation5 + $0x600] sm:$0xff]
    %v326 = vld [vmem:[#allocation5 + $0x608] sm:$0xff]
    %v327 = vld [vmem:[#allocation5 + $0x610] sm:$0xff]
    %v328 = vld [vmem:[#allocation5 + $0x618] sm:$0xff]
    %v329 = vld [vmem:[#allocation5 + $0x620] sm:$0xff]
    %v330 = vld [vmem:[#allocation5 + $0x628] sm:$0xff]
    %v331 = vld [vmem:[#allocation5 + $0x630] sm:$0xff]
    %v332 = vld [vmem:[#allocation5 + $0x638] sm:$0xff]
    %v333 = vld [vmem:[#allocation5 + $0x640] sm:$0xff]
    %v334 = vld [vmem:[#allocation5 + $0x648] sm:$0xff]
    %v335 = vld [vmem:[#allocation5 + $0x650] sm:$0xff]
    %v336 = vld [vmem:[#allocation5 + $0x658] sm:$0xff]
    %v337 = vld [vmem:[#allocation5 + $0x660] sm:$0xff]
    %v338 = vld [vmem:[#allocation5 + $0x668] sm:$0xff]
    %v339 = vld [vmem:[#allocation5 + $0x670] sm:$0xff]
    %v340 = vld [vmem:[#allocation5 + $0x678] sm:$0xff]
    %v341 = vld [vmem:[#allocation5 + $0x680] sm:$0xff]
    %v342 = vld [vmem:[#allocation5 + $0x688] sm:$0xff]
    %v343 = vld [vmem:[#allocation5 + $0x690] sm:$0xff]
    %v344 = vld [vmem:[#allocation5 + $0x698] sm:$0xff]
    %v345 = vld [vmem:[#allocation5 + $0x6a0] sm:$0xff]
    %v346 = vld [vmem:[#allocation5 + $0x6a8] sm:$0xff]
    %v347 = vld [vmem:[#allocation5 + $0x6b0] sm:$0xff]
    %v348 = vld [vmem:[#allocation5 + $0x6b8] sm:$0xff]
    %v349 = vld [vmem:[#allocation5 + $0x6c0] sm:$0xff]
    %v350 = vld [vmem:[#allocation5 + $0x6c8] sm:$0xff]
    %v351 = vld [vmem:[#allocation5 + $0x6d0] sm:$0xff]
    %v352 = vld [vmem:[#allocation5 + $0x6d8] sm:$0xff]
    %v353 = vld [vmem:[#allocation5 + $0x6e0] sm:$0xff]
    %v354 = vld [vmem:[#allocation5 + $0x6e8] sm:$0xff]
    %v355 = vld [vmem:[#allocation5 + $0x6f0] sm:$0xff]
    %v356 = vld [vmem:[#allocation5 + $0x6f8] sm:$0xff]
    %v357 = vld [vmem:[#allocation5 + $0x700] sm:$0xff]
    %v358 = vld [vmem:[#allocation5 + $0x708] sm:$0xff]
    %v359 = vld [vmem:[#allocation5 + $0x710] sm:$0xff]
    %v360 = vld [vmem:[#allocation5 + $0x718] sm:$0xff]
    %v361 = vld [vmem:[#allocation5 + $0x720] sm:$0xff]
    %v362 = vld [vmem:[#allocation5 + $0x728] sm:$0xff]
    %v363 = vld [vmem:[#allocation5 + $0x730] sm:$0xff]
    %v364 = vld [vmem:[#allocation5 + $0x738] sm:$0xff]
    %v365 = vld [vmem:[#allocation5 + $0x740] sm:$0xff]
    %v366 = vld [vmem:[#allocation5 + $0x748] sm:$0xff]
    %v367 = vld [vmem:[#allocation5 + $0x750] sm:$0xff]
    %v368 = vld [vmem:[#allocation5 + $0x758] sm:$0xff]
    %v369 = vld [vmem:[#allocation5 + $0x760] sm:$0xff]
    %v370 = vld [vmem:[#allocation5 + $0x768] sm:$0xff]
    %v371 = vld [vmem:[#allocation5 + $0x770] sm:$0xff]
    %v372 = vld [vmem:[#allocation5 + $0x778] sm:$0xff]
    %v373 = vld [vmem:[#allocation5 + $0x780] sm:$0xff]
    %v374 = vld [vmem:[#allocation5 + $0x788] sm:$0xff]
    %v375 = vld [vmem:[#allocation5 + $0x790] sm:$0xff]
    %v376 = vld [vmem:[#allocation5 + $0x798] sm:$0xff]
    %v377 = vld [vmem:[#allocation5 + $0x7a0] sm:$0xff]
    %v378 = vld [vmem:[#allocation5 + $0x7a8] sm:$0xff]
    %v379 = vld [vmem:[#allocation5 + $0x7b0] sm:$0xff]
    %v380 = vld [vmem:[#allocation5 + $0x7b8] sm:$0xff]
    %v381 = vld [vmem:[#allocation5 + $0x7c0] sm:$0xff]
    %v382 = vld [vmem:[#allocation5 + $0x7c8] sm:$0xff]
    %v383 = vld [vmem:[#allocation5 + $0x7d0] sm:$0xff]
    %v384 = vld [vmem:[#allocation5 + $0x7d8] sm:$0xff]
    %v385 = vld [vmem:[#allocation5 + $0x7e0] sm:$0xff]
    %v386 = vld [vmem:[#allocation5 + $0x7e8] sm:$0xff]
    %v387 = vld [vmem:[#allocation5 + $0x7f0] sm:$0xff]
    %v388 = vld [vmem:[#allocation5 + $0x7f8] sm:$0xff]
    %v389 = vld [vmem:[#allocation5 + $0x800] sm:$0xff]
    %v390 = vld [vmem:[#allocation5 + $0x808] sm:$0xff]
    %v391 = vld [vmem:[#allocation5 + $0x810] sm:$0xff]
    %v392 = vld [vmem:[#allocation5 + $0x818] sm:$0xff]
    %v393 = vld [vmem:[#allocation5 + $0x820] sm:$0xff]
    %v394 = vld [vmem:[#allocation5 + $0x828] sm:$0xff]
    %v395 = vld [vmem:[#allocation5 + $0x830] sm:$0xff]
    %v396 = vld [vmem:[#allocation5 + $0x838] sm:$0xff]
    %v397 = vld [vmem:[#allocation5 + $0x840] sm:$0xff]
    %v398 = vld [vmem:[#allocation5 + $0x848] sm:$0xff]
    %v399 = vld [vmem:[#allocation5 + $0x850] sm:$0xff]
    %v400 = vld [vmem:[#allocation5 + $0x858] sm:$0xff]
    %v401 = vld [vmem:[#allocation5 + $0x860] sm:$0xff]
    %v402 = vld [vmem:[#allocation5 + $0x868] sm:$0xff]
    %v403 = vld [vmem:[#allocation5 + $0x870] sm:$0xff]
    %v404 = vld [vmem:[#allocation5 + $0x878] sm:$0xff]
    %v405 = vld [vmem:[#allocation5 + $0x880] sm:$0xff]
    %v406 = vld [vmem:[#allocation5 + $0x888] sm:$0xff]
    %v407 = vld [vmem:[#allocation5 + $0x890] sm:$0xff]
    %v408 = vld [vmem:[#allocation5 + $0x898] sm:$0xff]
    %v409 = vld [vmem:[#allocation5 + $0x8a0] sm:$0xff]
    %v410 = vld [vmem:[#allocation5 + $0x8a8] sm:$0xff]
    %v411 = vld [vmem:[#allocation5 + $0x8b0] sm:$0xff]
    %v412 = vld [vmem:[#allocation5 + $0x8b8] sm:$0xff]
    %v413 = vld [vmem:[#allocation5 + $0x8c0] sm:$0xff]
    %v414 = vld [vmem:[#allocation5 + $0x8c8] sm:$0xff]
    %v415 = vld [vmem:[#allocation5 + $0x8d0] sm:$0xff]
    %v416 = vld [vmem:[#allocation5 + $0x8d8] sm:$0xff]
    %v417 = vld [vmem:[#allocation5 + $0x8e0] sm:$0xff]
    %v418 = vld [vmem:[#allocation5 + $0x8e8] sm:$0xff]
    %v419 = vld [vmem:[#allocation5 + $0x8f0] sm:$0xff]
    %v420 = vld [vmem:[#allocation5 + $0x8f8] sm:$0xff]
    %v421 = vld [vmem:[#allocation5 + $0x900] sm:$0xff]
    %v422 = vld [vmem:[#allocation5 + $0x908] sm:$0xff]
    %v423 = vld [vmem:[#allocation5 + $0x910] sm:$0xff]
    %v424 = vld [vmem:[#allocation5 + $0x918] sm:$0xff]
    %v425 = vld [vmem:[#allocation5 + $0x920] sm:$0xff]
    %v426 = vld [vmem:[#allocation5 + $0x928] sm:$0xff]
    %v427 = vld [vmem:[#allocation5 + $0x930] sm:$0xff]
    %v428 = vld [vmem:[#allocation5 + $0x938] sm:$0xff]
    %v429 = vld [vmem:[#allocation5 + $0x940] sm:$0xff]
    %v430 = vld [vmem:[#allocation5 + $0x948] sm:$0xff]
    %v431 = vld [vmem:[#allocation5 + $0x950] sm:$0xff]
    %v432 = vld [vmem:[#allocation5 + $0x958] sm:$0xff]
    %v433 = vld [vmem:[#allocation5 + $0x960] sm:$0xff]
    %v434 = vld [vmem:[#allocation5 + $0x968] sm:$0xff]
    %v435 = vld [vmem:[#allocation5 + $0x970] sm:$0xff]
    %v436 = vld [vmem:[#allocation5 + $0x978] sm:$0xff]
    %v437 = vld [vmem:[#allocation5 + $0x980] sm:$0xff]
    %v438 = vld [vmem:[#allocation5 + $0x988] sm:$0xff]
    %v439 = vld [vmem:[#allocation5 + $0x990] sm:$0xff]
    %v440 = vld [vmem:[#allocation5 + $0x998] sm:$0xff]
    %v441 = vld [vmem:[#allocation5 + $0x9a0] sm:$0xff]
    %v442 = vld [vmem:[#allocation5 + $0x9a8] sm:$0xff]
    %v443 = vld [vmem:[#allocation5 + $0x9b0] sm:$0xff]
    %v444 = vld [vmem:[#allocation5 + $0x9b8] sm:$0xff]
    %v445 = vld [vmem:[#allocation5 + $0x9c0] sm:$0xff]
    %v446 = vld [vmem:[#allocation5 + $0x9c8] sm:$0xff]
    %v447 = vld [vmem:[#allocation5 + $0x9d0] sm:$0xff]
    %v448 = vld [vmem:[#allocation5 + $0x9d8] sm:$0xff]
    %v449 = vld [vmem:[#allocation5 + $0x9e0] sm:$0xff]
    %v450 = vld [vmem:[#allocation5 + $0x9e8] sm:$0xff]
    %v451 = vld [vmem:[#allocation5 + $0x9f0] sm:$0xff]
    %v452 = vld [vmem:[#allocation5 + $0x9f8] sm:$0xff]
    %v453 = vld [vmem:[#allocation5 + $0xa00] sm:$0xff]
    %v454 = vld [vmem:[#allocation5 + $0xa08] sm:$0xff]
    %v455 = vld [vmem:[#allocation5 + $0xa10] sm:$0xff]
    %v456 = vld [vmem:[#allocation5 + $0xa18] sm:$0xff]
    %v457 = vld [vmem:[#allocation5 + $0xa20] sm:$0xff]
    %v458 = vld [vmem:[#allocation5 + $0xa28] sm:$0xff]
    %v459 = vld [vmem:[#allocation5 + $0xa30] sm:$0xff]
    %v460 = vld [vmem:[#allocation5 + $0xa38] sm:$0xff]
    %v461 = vld [vmem:[#allocation5 + $0xa40] sm:$0xff]
    %v462 = vld [vmem:[#allocation5 + $0xa48] sm:$0xff]
    %v463 = vld [vmem:[#allocation5 + $0xa50] sm:$0xff]
    %v464 = vld [vmem:[#allocation5 + $0xa58] sm:$0xff]
    %v465 = vld [vmem:[#allocation5 + $0xa60] sm:$0xff]
    %v466 = vld [vmem:[#allocation5 + $0xa68] sm:$0xff]
    %v467 = vld [vmem:[#allocation5 + $0xa70] sm:$0xff]
    %v468 = vld [vmem:[#allocation5 + $0xa78] sm:$0xff]
    %v469 = vld [vmem:[#allocation5 + $0xa80] sm:$0xff]
    %v470 = vld [vmem:[#allocation5 + $0xa88] sm:$0xff]
    %v471 = vld [vmem:[#allocation5 + $0xa90] sm:$0xff]
    %v472 = vld [vmem:[#allocation5 + $0xa98] sm:$0xff]
    %v473 = vld [vmem:[#allocation5 + $0xaa0] sm:$0xff]
    %v474 = vld [vmem:[#allocation5 + $0xaa8] sm:$0xff]
    %v475 = vld [vmem:[#allocation5 + $0xab0] sm:$0xff]
    %v476 = vld [vmem:[#allocation5 + $0xab8] sm:$0xff]
    %v477 = vld [vmem:[#allocation5 + $0xac0] sm:$0xff]
    %v478 = vld [vmem:[#allocation5 + $0xac8] sm:$0xff]
    %v479 = vld [vmem:[#allocation5 + $0xad0] sm:$0xff]
    %v480 = vld [vmem:[#allocation5 + $0xad8] sm:$0xff]
    %v481 = vld [vmem:[#allocation5 + $0xae0] sm:$0xff]
    %v482 = vld [vmem:[#allocation5 + $0xae8] sm:$0xff]
    %v483 = vld [vmem:[#allocation5 + $0xaf0] sm:$0xff]
    %v484 = vld [vmem:[#allocation5 + $0xaf8] sm:$0xff]
    %v485 = vld [vmem:[#allocation5 + $0xb00] sm:$0xff]
    %v486 = vld [vmem:[#allocation5 + $0xb08] sm:$0xff]
    %v487 = vld [vmem:[#allocation5 + $0xb10] sm:$0xff]
    %v488 = vld [vmem:[#allocation5 + $0xb18] sm:$0xff]
    %v489 = vld [vmem:[#allocation5 + $0xb20] sm:$0xff]
    %v490 = vld [vmem:[#allocation5 + $0xb28] sm:$0xff]
    %v491 = vld [vmem:[#allocation5 + $0xb30] sm:$0xff]
    %v492 = vld [vmem:[#allocation5 + $0xb38] sm:$0xff]
    %v493 = vld [vmem:[#allocation5 + $0xb40] sm:$0xff]
    %v494 = vld [vmem:[#allocation5 + $0xb48] sm:$0xff]
    %v495 = vld [vmem:[#allocation5 + $0xb50] sm:$0xff]
    %v496 = vld [vmem:[#allocation5 + $0xb58] sm:$0xff]
    %v497 = vld [vmem:[#allocation5 + $0xb60] sm:$0xff]
    %v498 = vld [vmem:[#allocation5 + $0xb68] sm:$0xff]
    %v499 = vld [vmem:[#allocation5 + $0xb70] sm:$0xff]
    %v500 = vld [vmem:[#allocation5 + $0xb78] sm:$0xff]
    %v501 = vld [vmem:[#allocation5 + $0xb80] sm:$0xff]
    %v502 = vld [vmem:[#allocation5 + $0xb88] sm:$0xff]
    %v503 = vld [vmem:[#allocation5 + $0xb90] sm:$0xff]
    %v504 = vld [vmem:[#allocation5 + $0xb98] sm:$0xff]
    %v505 = vld [vmem:[#allocation5 + $0xba0] sm:$0xff]
    %v506 = vld [vmem:[#allocation5 + $0xba8] sm:$0xff]
    %v507 = vld [vmem:[#allocation5 + $0xbb0] sm:$0xff]
    %v508 = vld [vmem:[#allocation5 + $0xbb8] sm:$0xff]
    %v509 = vld [vmem:[#allocation5 + $0xbc0] sm:$0xff]
    %v510 = vld [vmem:[#allocation5 + $0xbc8] sm:$0xff]
    %v511 = vld [vmem:[#allocation5 + $0xbd0] sm:$0xff]
    %v512 = vld [vmem:[#allocation5 + $0xbd8] sm:$0xff]
    %v513 = vld [vmem:[#allocation5 + $0xbe0] sm:$0xff]
    %v514 = vld [vmem:[#allocation5 + $0xbe8] sm:$0xff]
    %v515 = vld [vmem:[#allocation5 + $0xbf0] sm:$0xff]
    %v516 = vld [vmem:[#allocation5 + $0xbf8] sm:$0xff]
    %v517 = vld [vmem:[#allocation5 + $0xc00] sm:$0xff]
    %v518 = vld [vmem:[#allocation5 + $0xc08] sm:$0xff]
    %v519 = vld [vmem:[#allocation5 + $0xc10] sm:$0xff]
    %v520 = vld [vmem:[#allocation5 + $0xc18] sm:$0xff]
    %v521 = vld [vmem:[#allocation5 + $0xc20] sm:$0xff]
    %v522 = vld [vmem:[#allocation5 + $0xc28] sm:$0xff]
    %v523 = vld [vmem:[#allocation5 + $0xc30] sm:$0xff]
    %v524 = vld [vmem:[#allocation5 + $0xc38] sm:$0xff]
    %v525 = vld [vmem:[#allocation5 + $0xc40] sm:$0xff]
    %v526 = vld [vmem:[#allocation5 + $0xc48] sm:$0xff]
    %v527 = vld [vmem:[#allocation5 + $0xc50] sm:$0xff]
    %v528 = vld [vmem:[#allocation5 + $0xc58] sm:$0xff]
    %v529 = vld [vmem:[#allocation5 + $0xc60] sm:$0xff]
    %v530 = vld [vmem:[#allocation5 + $0xc68] sm:$0xff]
    %v531 = vld [vmem:[#allocation5 + $0xc70] sm:$0xff]
    %v532 = vld [vmem:[#allocation5 + $0xc78] sm:$0xff]
    %v533 = vld [vmem:[#allocation5 + $0xc80] sm:$0xff]
    %v534 = vld [vmem:[#allocation5 + $0xc88] sm:$0xff]
    %v535 = vld [vmem:[#allocation5 + $0xc90] sm:$0xff]
    %v536 = vld [vmem:[#allocation5 + $0xc98] sm:$0xff]
    %v537 = vld [vmem:[#allocation5 + $0xca0] sm:$0xff]
    %v538 = vld [vmem:[#allocation5 + $0xca8] sm:$0xff]
    %v539 = vld [vmem:[#allocation5 + $0xcb0] sm:$0xff]
    %v540 = vld [vmem:[#allocation5 + $0xcb8] sm:$0xff]
    %v541 = vld [vmem:[#allocation5 + $0xcc0] sm:$0xff]
    %v542 = vld [vmem:[#allocation5 + $0xcc8] sm:$0xff]
    %v543 = vld [vmem:[#allocation5 + $0xcd0] sm:$0xff]
    %v544 = vld [vmem:[#allocation5 + $0xcd8] sm:$0xff]
    %v545 = vld [vmem:[#allocation5 + $0xce0] sm:$0xff]
    %v546 = vld [vmem:[#allocation5 + $0xce8] sm:$0xff]
    %v547 = vld [vmem:[#allocation5 + $0xcf0] sm:$0xff]
    %v548 = vld [vmem:[#allocation5 + $0xcf8] sm:$0xff]
    %v549 = vld [vmem:[#allocation5 + $0xd00] sm:$0xff]
    %v550 = vld [vmem:[#allocation5 + $0xd08] sm:$0xff]
    %v551 = vld [vmem:[#allocation5 + $0xd10] sm:$0xff]
    %v552 = vld [vmem:[#allocation5 + $0xd18] sm:$0xff]
    %v553 = vld [vmem:[#allocation5 + $0xd20] sm:$0xff]
    %v554 = vld [vmem:[#allocation5 + $0xd28] sm:$0xff]
    %v555 = vld [vmem:[#allocation5 + $0xd30] sm:$0xff]
    %v556 = vld [vmem:[#allocation5 + $0xd38] sm:$0xff]
    %v557 = vld [vmem:[#allocation5 + $0xd40] sm:$0xff]
    %v558 = vld [vmem:[#allocation5 + $0xd48] sm:$0xff]
    %v559 = vld [vmem:[#allocation5 + $0xd50] sm:$0xff]
    %v560 = vld [vmem:[#allocation5 + $0xd58] sm:$0xff]
    %v561 = vld [vmem:[#allocation5 + $0xd60] sm:$0xff]
    %v562 = vld [vmem:[#allocation5 + $0xd68] sm:$0xff]
    %v563 = vld [vmem:[#allocation5 + $0xd70] sm:$0xff]
    %v564 = vld [vmem:[#allocation5 + $0xd78] sm:$0xff]
    %v565 = vld [vmem:[#allocation5 + $0xd80] sm:$0xff]
    %v566 = vld [vmem:[#allocation5 + $0xd88] sm:$0xff]
    %v567 = vld [vmem:[#allocation5 + $0xd90] sm:$0xff]
    %v568 = vld [vmem:[#allocation5 + $0xd98] sm:$0xff]
    %v569 = vld [vmem:[#allocation5 + $0xda0] sm:$0xff]
    %v570 = vld [vmem:[#allocation5 + $0xda8] sm:$0xff]
    %v571 = vld [vmem:[#allocation5 + $0xdb0] sm:$0xff]
    %v572 = vld [vmem:[#allocation5 + $0xdb8] sm:$0xff]
    %v573 = vld [vmem:[#allocation5 + $0xdc0] sm:$0xff]
    %v574 = vld [vmem:[#allocation5 + $0xdc8] sm:$0xff]
    %v575 = vld [vmem:[#allocation5 + $0xdd0] sm:$0xff]
    %v576 = vld [vmem:[#allocation5 + $0xdd8] sm:$0xff]
    %v577 = vld [vmem:[#allocation5 + $0xde0] sm:$0xff]
    %v578 = vld [vmem:[#allocation5 + $0xde8] sm:$0xff]
    %v579 = vld [vmem:[#allocation5 + $0xdf0] sm:$0xff]
    %v580 = vld [vmem:[#allocation5 + $0xdf8] sm:$0xff]
    %v581 = vld [vmem:[#allocation5 + $0xe00] sm:$0xff]
    %v582 = vld [vmem:[#allocation5 + $0xe08] sm:$0xff]
    %v583 = vld [vmem:[#allocation5 + $0xe10] sm:$0xff]
    %v584 = vld [vmem:[#allocation5 + $0xe18] sm:$0xff]
    %v585 = vld [vmem:[#allocation5 + $0xe20] sm:$0xff]
    %v586 = vld [vmem:[#allocation5 + $0xe28] sm:$0xff]
    %v587 = vld [vmem:[#allocation5 + $0xe30] sm:$0xff]
    %v588 = vld [vmem:[#allocation5 + $0xe38] sm:$0xff]
    %v589 = vld [vmem:[#allocation5 + $0xe40] sm:$0xff]
    %v590 = vld [vmem:[#allocation5 + $0xe48] sm:$0xff]
    %v591 = vld [vmem:[#allocation5 + $0xe50] sm:$0xff]
    %v592 = vld [vmem:[#allocation5 + $0xe58] sm:$0xff]
    %v593 = vld [vmem:[#allocation5 + $0xe60] sm:$0xff]
    %v594 = vld [vmem:[#allocation5 + $0xe68] sm:$0xff]
    %v595 = vld [vmem:[#allocation5 + $0xe70] sm:$0xff]
    %v596 = vld [vmem:[#allocation5 + $0xe78] sm:$0xff]
    %v597 = vld [vmem:[#allocation5 + $0xe80] sm:$0xff]
    %v598 = vld [vmem:[#allocation5 + $0xe88] sm:$0xff]
    %v599 = vld [vmem:[#allocation5 + $0xe90] sm:$0xff]
    %v600 = vld [vmem:[#allocation5 + $0xe98] sm:$0xff]
    %v601 = vld [vmem:[#allocation5 + $0xea0] sm:$0xff]
    %v602 = vld [vmem:[#allocation5 + $0xea8] sm:$0xff]
    %v603 = vld [vmem:[#allocation5 + $0xeb0] sm:$0xff]
    %v604 = vld [vmem:[#allocation5 + $0xeb8] sm:$0xff]
    %v605 = vld [vmem:[#allocation5 + $0xec0] sm:$0xff]
    %v606 = vld [vmem:[#allocation5 + $0xec8] sm:$0xff]
    %v607 = vld [vmem:[#allocation5 + $0xed0] sm:$0xff]
    %v608 = vld [vmem:[#allocation5 + $0xed8] sm:$0xff]
    %v609 = vld [vmem:[#allocation5 + $0xee0] sm:$0xff]
    %v610 = vld [vmem:[#allocation5 + $0xee8] sm:$0xff]
    %v611 = vld [vmem:[#allocation5 + $0xef0] sm:$0xff]
    %v612 = vld [vmem:[#allocation5 + $0xef8] sm:$0xff]
    %v613 = vld [vmem:[#allocation5 + $0xf00] sm:$0xff]
    %v614 = vld [vmem:[#allocation5 + $0xf08] sm:$0xff]
    %v615 = vld [vmem:[#allocation5 + $0xf10] sm:$0xff]
    %v616 = vld [vmem:[#allocation5 + $0xf18] sm:$0xff]
    %v617 = vld [vmem:[#allocation5 + $0xf20] sm:$0xff]
    %v618 = vld [vmem:[#allocation5 + $0xf28] sm:$0xff]
    %v619 = vld [vmem:[#allocation5 + $0xf30] sm:$0xff]
    %v620 = vld [vmem:[#allocation5 + $0xf38] sm:$0xff]
    %v621 = vld [vmem:[#allocation5 + $0xf40] sm:$0xff]
    %v622 = vld [vmem:[#allocation5 + $0xf48] sm:$0xff]
    %v623 = vld [vmem:[#allocation5 + $0xf50] sm:$0xff]
    %v624 = vld [vmem:[#allocation5 + $0xf58] sm:$0xff]
    %v625 = vld [vmem:[#allocation5 + $0xf60] sm:$0xff]
    %v626 = vld [vmem:[#allocation5 + $0xf68] sm:$0xff]
    %v627 = vld [vmem:[#allocation5 + $0xf70] sm:$0xff]
    %v628 = vld [vmem:[#allocation5 + $0xf78] sm:$0xff]
    %v629 = vld [vmem:[#allocation5 + $0xf80] sm:$0xff]
    %v630 = vld [vmem:[#allocation5 + $0xf88] sm:$0xff]
    %v631 = vld [vmem:[#allocation5 + $0xf90] sm:$0xff]
    %v632 = vld [vmem:[#allocation5 + $0xf98] sm:$0xff]
    %v633 = vld [vmem:[#allocation5 + $0xfa0] sm:$0xff]
    %v634 = vld [vmem:[#allocation5 + $0xfa8] sm:$0xff]
    %v635 = vld [vmem:[#allocation5 + $0xfb0] sm:$0xff]
    %v636 = vld [vmem:[#allocation5 + $0xfb8] sm:$0xff]
    %v637 = vld [vmem:[#allocation5 + $0xfc0] sm:$0xff]
    %v638 = vld [vmem:[#allocation5 + $0xfc8] sm:$0xff]
    %v639 = vld [vmem:[#allocation5 + $0xfd0] sm:$0xff]
    %v640 = vld [vmem:[#allocation5 + $0xfd8] sm:$0xff]
    %v641 = vld [vmem:[#allocation5 + $0xfe0] sm:$0xff]
    %v642 = vld [vmem:[#allocation5 + $0xfe8] sm:$0xff]
    %v643 = vld [vmem:[#allocation5 + $0xff0] sm:$0xff]
    %v644 = vld [vmem:[#allocation5 + $0xff8] sm:$0xff]
    %v645 = vld [vmem:[#allocation5 + $0x1000] sm:$0xff]
    %v646 = vld [vmem:[#allocation5 + $0x1008] sm:$0xff]
    %v647 = vld [vmem:[#allocation5 + $0x1010] sm:$0xff]
    %v648 = vld [vmem:[#allocation5 + $0x1018] sm:$0xff]
    %v649 = vld [vmem:[#allocation5 + $0x1020] sm:$0xff]
    %v650 = vld [vmem:[#allocation5 + $0x1028] sm:$0xff]
    %v651 = vld [vmem:[#allocation5 + $0x1030] sm:$0xff]
    %v652 = vld [vmem:[#allocation5 + $0x1038] sm:$0xff]
    %v653 = vld [vmem:[#allocation5 + $0x1040] sm:$0xff]
    %v654 = vld [vmem:[#allocation5 + $0x1048] sm:$0xff]
    %v655 = vld [vmem:[#allocation5 + $0x1050] sm:$0xff]
    %v656 = vld [vmem:[#allocation5 + $0x1058] sm:$0xff]
    %v657 = vld [vmem:[#allocation5 + $0x1060] sm:$0xff]
    %v658 = vld [vmem:[#allocation5 + $0x1068] sm:$0xff]
    %v659 = vld [vmem:[#allocation5 + $0x1070] sm:$0xff]
    %v660 = vld [vmem:[#allocation5 + $0x1078] sm:$0xff]
    %v661 = vld [vmem:[#allocation5 + $0x1080] sm:$0xff]
    %v662 = vld [vmem:[#allocation5 + $0x1088] sm:$0xff]
    %v663 = vld [vmem:[#allocation5 + $0x1090] sm:$0xff]
    %v664 = vld [vmem:[#allocation5 + $0x1098] sm:$0xff]
    %v665 = vld [vmem:[#allocation5 + $0x10a0] sm:$0xff]
    %v666 = vld [vmem:[#allocation5 + $0x10a8] sm:$0xff]
    %v667 = vld [vmem:[#allocation5 + $0x10b0] sm:$0xff]
    %v668 = vld [vmem:[#allocation5 + $0x10b8] sm:$0xff]
    %v669 = vld [vmem:[#allocation5 + $0x10c0] sm:$0xff]
    %v670 = vld [vmem:[#allocation5 + $0x10c8] sm:$0xff]
    %v671 = vld [vmem:[#allocation5 + $0x10d0] sm:$0xff]
    %v672 = vld [vmem:[#allocation5 + $0x10d8] sm:$0xff]
    %v673 = vld [vmem:[#allocation5 + $0x10e0] sm:$0xff]
    %v674 = vld [vmem:[#allocation5 + $0x10e8] sm:$0xff]
    %v675 = vld [vmem:[#allocation5 + $0x10f0] sm:$0xff]
    %v676 = vld [vmem:[#allocation5 + $0x10f8] sm:$0xff]
    %v677 = vld [vmem:[#allocation5 + $0x1100] sm:$0xff]
    %v678 = vld [vmem:[#allocation5 + $0x1108] sm:$0xff]
    %v679 = vld [vmem:[#allocation5 + $0x1110] sm:$0xff]
    %v680 = vld [vmem:[#allocation5 + $0x1118] sm:$0xff]
    %v681 = vld [vmem:[#allocation5 + $0x1120] sm:$0xff]
    %v682 = vld [vmem:[#allocation5 + $0x1128] sm:$0xff]
    %v683 = vld [vmem:[#allocation5 + $0x1130] sm:$0xff]
    %v684 = vld [vmem:[#allocation5 + $0x1138] sm:$0xff]
    %v685 = vld [vmem:[#allocation5 + $0x1140] sm:$0xff]
    %v686 = vld [vmem:[#allocation5 + $0x1148] sm:$0xff]
    %v687 = vld [vmem:[#allocation5 + $0x1150] sm:$0xff]
    %v688 = vld [vmem:[#allocation5 + $0x1158] sm:$0xff]
    %v689 = vld [vmem:[#allocation5 + $0x1160] sm:$0xff]
    %v690 = vld [vmem:[#allocation5 + $0x1168] sm:$0xff]
    %v691 = vld [vmem:[#allocation5 + $0x1170] sm:$0xff]
    %v692 = vld [vmem:[#allocation5 + $0x1178] sm:$0xff]
    %v693 = vld [vmem:[#allocation5 + $0x1180] sm:$0xff]
    %v694 = vld [vmem:[#allocation5 + $0x1188] sm:$0xff]
    %v695 = vld [vmem:[#allocation5 + $0x1190] sm:$0xff]
    %v696 = vld [vmem:[#allocation5 + $0x1198] sm:$0xff]
    %v697 = vld [vmem:[#allocation5 + $0x11a0] sm:$0xff]
    %v698 = vld [vmem:[#allocation5 + $0x11a8] sm:$0xff]
    %v699 = vld [vmem:[#allocation5 + $0x11b0] sm:$0xff]
    %v700 = vld [vmem:[#allocation5 + $0x11b8] sm:$0xff]
    %v701 = vld [vmem:[#allocation5 + $0x11c0] sm:$0xff]
    %v702 = vld [vmem:[#allocation5 + $0x11c8] sm:$0xff]
    %v703 = vld [vmem:[#allocation5 + $0x11d0] sm:$0xff]
    %v704 = vld [vmem:[#allocation5 + $0x11d8] sm:$0xff]
    %v705 = vld [vmem:[#allocation5 + $0x11e0] sm:$0xff]
    %v706 = vld [vmem:[#allocation5 + $0x11e8] sm:$0xff]
    %v707 = vld [vmem:[#allocation5 + $0x11f0] sm:$0xff]
    %v708 = vld [vmem:[#allocation5 + $0x11f8] sm:$0xff]
    %v709 = vld [vmem:[#allocation5 + $0x1200] sm:$0xff]
    %v710 = vld [vmem:[#allocation5 + $0x1208] sm:$0xff]
    %v711 = vld [vmem:[#allocation5 + $0x1210] sm:$0xff]
    %v712 = vld [vmem:[#allocation5 + $0x1218] sm:$0xff]
    %v713 = vld [vmem:[#allocation5 + $0x1220] sm:$0xff]
    %v714 = vld [vmem:[#allocation5 + $0x1228] sm:$0xff]
    %v715 = vld [vmem:[#allocation5 + $0x1230] sm:$0xff]
    %v716 = vld [vmem:[#allocation5 + $0x1238] sm:$0xff]
    %v717 = vld [vmem:[#allocation5 + $0x1240] sm:$0xff]
    %v718 = vld [vmem:[#allocation5 + $0x1248] sm:$0xff]
    %v719 = vld [vmem:[#allocation5 + $0x1250] sm:$0xff]
    %v720 = vld [vmem:[#allocation5 + $0x1258] sm:$0xff]
    %v721 = vld [vmem:[#allocation5 + $0x1260] sm:$0xff]
    %v722 = vld [vmem:[#allocation5 + $0x1268] sm:$0xff]
    %v723 = vld [vmem:[#allocation5 + $0x1270] sm:$0xff]
    %v724 = vld [vmem:[#allocation5 + $0x1278] sm:$0xff]
    %v725 = vld [vmem:[#allocation5 + $0x1280] sm:$0xff]
    %v726 = vld [vmem:[#allocation5 + $0x1288] sm:$0xff]
    %v727 = vld [vmem:[#allocation5 + $0x1290] sm:$0xff]
    %v728 = vld [vmem:[#allocation5 + $0x1298] sm:$0xff]
    %v729 = vld [vmem:[#allocation5 + $0x12a0] sm:$0xff]
    %v730 = vld [vmem:[#allocation5 + $0x12a8] sm:$0xff]
    %v731 = vld [vmem:[#allocation5 + $0x12b0] sm:$0xff]
    %v732 = vld [vmem:[#allocation5 + $0x12b8] sm:$0xff]
    %v733 = vld [vmem:[#allocation5 + $0x12c0] sm:$0xff]
    %v734 = vld [vmem:[#allocation5 + $0x12c8] sm:$0xff]
    %v735 = vld [vmem:[#allocation5 + $0x12d0] sm:$0xff]
    %v736 = vld [vmem:[#allocation5 + $0x12d8] sm:$0xff]
    %v737 = vld [vmem:[#allocation5 + $0x12e0] sm:$0xff]
    %v738 = vld [vmem:[#allocation5 + $0x12e8] sm:$0xff]
    %v739 = vld [vmem:[#allocation5 + $0x12f0] sm:$0xff]
    %v740 = vld [vmem:[#allocation5 + $0x12f8] sm:$0xff]
    %v741 = vld [vmem:[#allocation5 + $0x1300] sm:$0xff]
    %v742 = vld [vmem:[#allocation5 + $0x1308] sm:$0xff]
    %v743 = vld [vmem:[#allocation5 + $0x1310] sm:$0xff]
    %v744 = vld [vmem:[#allocation5 + $0x1318] sm:$0xff]
    %v745 = vld [vmem:[#allocation5 + $0x1320] sm:$0xff]
    %v746 = vld [vmem:[#allocation5 + $0x1328] sm:$0xff]
    %v747 = vld [vmem:[#allocation5 + $0x1330] sm:$0xff]
    %v748 = vld [vmem:[#allocation5 + $0x1338] sm:$0xff]
    %v749 = vld [vmem:[#allocation5 + $0x1340] sm:$0xff]
    %v750 = vld [vmem:[#allocation5 + $0x1348] sm:$0xff]
    %v751 = vld [vmem:[#allocation5 + $0x1350] sm:$0xff]
    %v752 = vld [vmem:[#allocation5 + $0x1358] sm:$0xff]
    %v753 = vld [vmem:[#allocation5 + $0x1360] sm:$0xff]
    %v754 = vld [vmem:[#allocation5 + $0x1368] sm:$0xff]
    %v755 = vld [vmem:[#allocation5 + $0x1370] sm:$0xff]
    %v756 = vld [vmem:[#allocation5 + $0x1378] sm:$0xff]
    %v757 = vld [vmem:[#allocation5 + $0x1380] sm:$0xff]
    %v758 = vld [vmem:[#allocation5 + $0x1388] sm:$0xff]
    %v759 = vld [vmem:[#allocation5 + $0x1390] sm:$0xff]
    %v760 = vld [vmem:[#allocation5 + $0x1398] sm:$0xff]
    %v761 = vld [vmem:[#allocation5 + $0x13a0] sm:$0xff]
    %v762 = vld [vmem:[#allocation5 + $0x13a8] sm:$0xff]
    %v763 = vld [vmem:[#allocation5 + $0x13b0] sm:$0xff]
    %v764 = vld [vmem:[#allocation5 + $0x13b8] sm:$0xff]
    %v765 = vld [vmem:[#allocation5 + $0x13c0] sm:$0xff]
    %v766 = vld [vmem:[#allocation5 + $0x13c8] sm:$0xff]
    %v767 = vld [vmem:[#allocation5 + $0x13d0] sm:$0xff]
    %v768 = vld [vmem:[#allocation5 + $0x13d8] sm:$0xff]
    %v769 = vld [vmem:[#allocation5 + $0x13e0] sm:$0xff]
    %v770 = vld [vmem:[#allocation5 + $0x13e8] sm:$0xff]
    %v771 = vld [vmem:[#allocation5 + $0x13f0] sm:$0xff]
    %v772 = vld [vmem:[#allocation5 + $0x13f8] sm:$0xff]
    %v773 = vld [vmem:[#allocation5 + $0x1400] sm:$0xff]
    %v774 = vld [vmem:[#allocation5 + $0x1408] sm:$0xff]
    %v775 = vld [vmem:[#allocation5 + $0x1410] sm:$0xff]
    %v776 = vld [vmem:[#allocation5 + $0x1418] sm:$0xff]
    %v777 = vld [vmem:[#allocation5 + $0x1420] sm:$0xff]
    %v778 = vld [vmem:[#allocation5 + $0x1428] sm:$0xff]
    %v779 = vld [vmem:[#allocation5 + $0x1430] sm:$0xff]
    %v780 = vld [vmem:[#allocation5 + $0x1438] sm:$0xff]
    %v781 = vld [vmem:[#allocation5 + $0x1440] sm:$0xff]
    %v782 = vld [vmem:[#allocation5 + $0x1448] sm:$0xff]
    %v783 = vld [vmem:[#allocation5 + $0x1450] sm:$0xff]
    %v784 = vld [vmem:[#allocation5 + $0x1458] sm:$0xff]
    %v785 = vld [vmem:[#allocation5 + $0x1460] sm:$0xff]
    %v786 = vld [vmem:[#allocation5 + $0x1468] sm:$0xff]
    %v787 = vld [vmem:[#allocation5 + $0x1470] sm:$0xff]
    %v788 = vld [vmem:[#allocation5 + $0x1478] sm:$0xff]
    %v789 = vld [vmem:[#allocation5 + $0x1480] sm:$0xff]
    %v790 = vld [vmem:[#allocation5 + $0x1488] sm:$0xff]
    %v791 = vld [vmem:[#allocation5 + $0x1490] sm:$0xff]
    %v792 = vld [vmem:[#allocation5 + $0x1498] sm:$0xff]
    %v793 = vld [vmem:[#allocation5 + $0x14a0] sm:$0xff]
    %v794 = vld [vmem:[#allocation5 + $0x14a8] sm:$0xff]
    %v795 = vld [vmem:[#allocation5 + $0x14b0] sm:$0xff]
    %v796 = vld [vmem:[#allocation5 + $0x14b8] sm:$0xff]
    %v797 = vld [vmem:[#allocation5 + $0x14c0] sm:$0xff]
    %v798 = vld [vmem:[#allocation5 + $0x14c8] sm:$0xff]
    %v799 = vld [vmem:[#allocation5 + $0x14d0] sm:$0xff]
    %v800 = vld [vmem:[#allocation5 + $0x14d8] sm:$0xff]
    %v801 = vld [vmem:[#allocation5 + $0x14e0] sm:$0xff]
    %v802 = vld [vmem:[#allocation5 + $0x14e8] sm:$0xff]
    %v803 = vld [vmem:[#allocation5 + $0x14f0] sm:$0xff]
    %v804 = vld [vmem:[#allocation5 + $0x14f8] sm:$0xff]
    %v805 = vld [vmem:[#allocation5 + $0x1500] sm:$0xff]
    %v806 = vld [vmem:[#allocation5 + $0x1508] sm:$0xff]
    %v807 = vld [vmem:[#allocation5 + $0x1510] sm:$0xff]
    %v808 = vld [vmem:[#allocation5 + $0x1518] sm:$0xff]
    %v809 = vld [vmem:[#allocation5 + $0x1520] sm:$0xff]
    %v810 = vld [vmem:[#allocation5 + $0x1528] sm:$0xff]
    %v811 = vld [vmem:[#allocation5 + $0x1530] sm:$0xff]
    %v812 = vld [vmem:[#allocation5 + $0x1538] sm:$0xff]
    %v813 = vld [vmem:[#allocation5 + $0x1540] sm:$0xff]
    %v814 = vld [vmem:[#allocation5 + $0x1548] sm:$0xff]
    %v815 = vld [vmem:[#allocation5 + $0x1550] sm:$0xff]
    %v816 = vld [vmem:[#allocation5 + $0x1558] sm:$0xff]
    %v817 = vld [vmem:[#allocation5 + $0x1560] sm:$0xff]
    %v818 = vld [vmem:[#allocation5 + $0x1568] sm:$0xff]
    %v819 = vld [vmem:[#allocation5 + $0x1570] sm:$0xff]
    %v820 = vld [vmem:[#allocation5 + $0x1578] sm:$0xff]
    %v821 = vld [vmem:[#allocation5 + $0x1580] sm:$0xff]
    %v822 = vld [vmem:[#allocation5 + $0x1588] sm:$0xff]
    %v823 = vld [vmem:[#allocation5 + $0x1590] sm:$0xff]
    %v824 = vld [vmem:[#allocation5 + $0x1598] sm:$0xff]
    %v825 = vld [vmem:[#allocation5 + $0x15a0] sm:$0xff]
    %v826 = vld [vmem:[#allocation5 + $0x15a8] sm:$0xff]
    %v827 = vld [vmem:[#allocation5 + $0x15b0] sm:$0xff]
    %v828 = vld [vmem:[#allocation5 + $0x15b8] sm:$0xff]
    %v829 = vld [vmem:[#allocation5 + $0x15c0] sm:$0xff]
    %v830 = vld [vmem:[#allocation5 + $0x15c8] sm:$0xff]
    %v831 = vld [vmem:[#allocation5 + $0x15d0] sm:$0xff]
    %v832 = vld [vmem:[#allocation5 + $0x15d8] sm:$0xff]
    %v833 = vld [vmem:[#allocation5 + $0x15e0] sm:$0xff]
    %v834 = vld [vmem:[#allocation5 + $0x15e8] sm:$0xff]
    %v835 = vld [vmem:[#allocation5 + $0x15f0] sm:$0xff]
    %v836 = vld [vmem:[#allocation5 + $0x15f8] sm:$0xff]
    %v837 = vld [vmem:[#allocation5 + $0x1600] sm:$0xff]
    %v838 = vld [vmem:[#allocation5 + $0x1608] sm:$0xff]
    %v839 = vld [vmem:[#allocation5 + $0x1610] sm:$0xff]
    %v840 = vld [vmem:[#allocation5 + $0x1618] sm:$0xff]
    %v841 = vld [vmem:[#allocation5 + $0x1620] sm:$0xff]
    %v842 = vld [vmem:[#allocation5 + $0x1628] sm:$0xff]
    %v843 = vld [vmem:[#allocation5 + $0x1630] sm:$0xff]
    %v844 = vld [vmem:[#allocation5 + $0x1638] sm:$0xff]
    %v845 = vld [vmem:[#allocation5 + $0x1640] sm:$0xff]
    %v846 = vld [vmem:[#allocation5 + $0x1648] sm:$0xff]
    %v847 = vld [vmem:[#allocation5 + $0x1650] sm:$0xff]
    %v848 = vld [vmem:[#allocation5 + $0x1658] sm:$0xff]
    %v849 = vld [vmem:[#allocation5 + $0x1660] sm:$0xff]
    %v850 = vld [vmem:[#allocation5 + $0x1668] sm:$0xff]
    %v851 = vld [vmem:[#allocation5 + $0x1670] sm:$0xff]
    %v852 = vld [vmem:[#allocation5 + $0x1678] sm:$0xff]
    %v853 = vld [vmem:[#allocation5 + $0x1680] sm:$0xff]
    %v854 = vld [vmem:[#allocation5 + $0x1688] sm:$0xff]
    %v855 = vld [vmem:[#allocation5 + $0x1690] sm:$0xff]
    %v856 = vld [vmem:[#allocation5 + $0x1698] sm:$0xff]
    %v857 = vld [vmem:[#allocation5 + $0x16a0] sm:$0xff]
    %v858 = vld [vmem:[#allocation5 + $0x16a8] sm:$0xff]
    %v859 = vld [vmem:[#allocation5 + $0x16b0] sm:$0xff]
    %v860 = vld [vmem:[#allocation5 + $0x16b8] sm:$0xff]
    %v861 = vld [vmem:[#allocation5 + $0x16c0] sm:$0xff]
    %v862 = vld [vmem:[#allocation5 + $0x16c8] sm:$0xff]
    %v863 = vld [vmem:[#allocation5 + $0x16d0] sm:$0xff]
    %v864 = vld [vmem:[#allocation5 + $0x16d8] sm:$0xff]
    %v865 = vld [vmem:[#allocation5 + $0x16e0] sm:$0xff]
    %v866 = vld [vmem:[#allocation5 + $0x16e8] sm:$0xff]
    %v867 = vld [vmem:[#allocation5 + $0x16f0] sm:$0xff]
    %v868 = vld [vmem:[#allocation5 + $0x16f8] sm:$0xff]
    %v869 = vld [vmem:[#allocation5 + $0x1700] sm:$0xff]
    %v870 = vld [vmem:[#allocation5 + $0x1708] sm:$0xff]
    %v871 = vld [vmem:[#allocation5 + $0x1710] sm:$0xff]
    %v872 = vld [vmem:[#allocation5 + $0x1718] sm:$0xff]
    %v873 = vld [vmem:[#allocation5 + $0x1720] sm:$0xff]
    %v874 = vld [vmem:[#allocation5 + $0x1728] sm:$0xff]
    %v875 = vld [vmem:[#allocation5 + $0x1730] sm:$0xff]
    %v876 = vld [vmem:[#allocation5 + $0x1738] sm:$0xff]
    %v877 = vld [vmem:[#allocation5 + $0x1740] sm:$0xff]
    %v878 = vld [vmem:[#allocation5 + $0x1748] sm:$0xff]
    %v879 = vld [vmem:[#allocation5 + $0x1750] sm:$0xff]
    %v880 = vld [vmem:[#allocation5 + $0x1758] sm:$0xff]
    %v881 = vld [vmem:[#allocation5 + $0x1760] sm:$0xff]
    %v882 = vld [vmem:[#allocation5 + $0x1768] sm:$0xff]
    %v883 = vld [vmem:[#allocation5 + $0x1770] sm:$0xff]
    %v884 = vld [vmem:[#allocation5 + $0x1778] sm:$0xff]
    %v885 = vld [vmem:[#allocation5 + $0x1780] sm:$0xff]
    %v886 = vld [vmem:[#allocation5 + $0x1788] sm:$0xff]
    %v887 = vld [vmem:[#allocation5 + $0x1790] sm:$0xff]
    %v888 = vld [vmem:[#allocation5 + $0x1798] sm:$0xff]
    %v889 = vld [vmem:[#allocation5 + $0x17a0] sm:$0xff]
    %v890 = vld [vmem:[#allocation5 + $0x17a8] sm:$0xff]
    %v891 = vld [vmem:[#allocation5 + $0x17b0] sm:$0xff]
    %v892 = vld [vmem:[#allocation5 + $0x17b8] sm:$0xff]
    %v893 = vld [vmem:[#allocation5 + $0x17c0] sm:$0xff]
    %v894 = vld [vmem:[#allocation5 + $0x17c8] sm:$0xff]
    %v895 = vld [vmem:[#allocation5 + $0x17d0] sm:$0xff]
    %v896 = vld [vmem:[#allocation5 + $0x17d8] sm:$0xff]
    %v897 = vld [vmem:[#allocation5 + $0x17e0] sm:$0xff]
    %v898 = vld [vmem:[#allocation5 + $0x17e8] sm:$0xff]
    %v899 = vld [vmem:[#allocation5 + $0x17f0] sm:$0xff]
    %v900 = vld [vmem:[#allocation5 + $0x17f8] sm:$0xff]
    %v901 = vld [vmem:[#allocation5 + $0x1800] sm:$0xff]
    %v902 = vld [vmem:[#allocation5 + $0x1808] sm:$0xff]
    %v903 = vld [vmem:[#allocation5 + $0x1810] sm:$0xff]
    %v904 = vld [vmem:[#allocation5 + $0x1818] sm:$0xff]
    %v905 = vld [vmem:[#allocation5 + $0x1820] sm:$0xff]
    %v906 = vld [vmem:[#allocation5 + $0x1828] sm:$0xff]
    %v907 = vld [vmem:[#allocation5 + $0x1830] sm:$0xff]
    %v908 = vld [vmem:[#allocation5 + $0x1838] sm:$0xff]
    %v909 = vld [vmem:[#allocation5 + $0x1840] sm:$0xff]
    %v910 = vld [vmem:[#allocation5 + $0x1848] sm:$0xff]
    %v911 = vld [vmem:[#allocation5 + $0x1850] sm:$0xff]
    %v912 = vld [vmem:[#allocation5 + $0x1858] sm:$0xff]
    %v913 = vld [vmem:[#allocation5 + $0x1860] sm:$0xff]
    %v914 = vld [vmem:[#allocation5 + $0x1868] sm:$0xff]
    %v915 = vld [vmem:[#allocation5 + $0x1870] sm:$0xff]
    %v916 = vld [vmem:[#allocation5 + $0x1878] sm:$0xff]
    %v917 = vld [vmem:[#allocation5 + $0x1880] sm:$0xff]
    %v918 = vld [vmem:[#allocation5 + $0x1888] sm:$0xff]
    %v919 = vld [vmem:[#allocation5 + $0x1890] sm:$0xff]
    %v920 = vld [vmem:[#allocation5 + $0x1898] sm:$0xff]
    %v921 = vld [vmem:[#allocation5 + $0x18a0] sm:$0xff]
    %v922 = vld [vmem:[#allocation5 + $0x18a8] sm:$0xff]
    %v923 = vld [vmem:[#allocation5 + $0x18b0] sm:$0xff]
    %v924 = vld [vmem:[#allocation5 + $0x18b8] sm:$0xff]
    %v925 = vld [vmem:[#allocation5 + $0x18c0] sm:$0xff]
    %v926 = vld [vmem:[#allocation5 + $0x18c8] sm:$0xff]
    %v927 = vld [vmem:[#allocation5 + $0x18d0] sm:$0xff]
    %v928 = vld [vmem:[#allocation5 + $0x18d8] sm:$0xff]
    %v929 = vld [vmem:[#allocation5 + $0x18e0] sm:$0xff]
    %v930 = vld [vmem:[#allocation5 + $0x18e8] sm:$0xff]
    %v931 = vld [vmem:[#allocation5 + $0x18f0] sm:$0xff]
    %v932 = vld [vmem:[#allocation5 + $0x18f8] sm:$0xff]
    %v933 = vld [vmem:[#allocation5 + $0x1900] sm:$0xff]
    %v934 = vld [vmem:[#allocation5 + $0x1908] sm:$0xff]
    %v935 = vld [vmem:[#allocation5 + $0x1910] sm:$0xff]
    %v936 = vld [vmem:[#allocation5 + $0x1918] sm:$0xff]
    %v937 = vld [vmem:[#allocation5 + $0x1920] sm:$0xff]
    %v938 = vld [vmem:[#allocation5 + $0x1928] sm:$0xff]
    %v939 = vld [vmem:[#allocation5 + $0x1930] sm:$0xff]
    %v940 = vld [vmem:[#allocation5 + $0x1938] sm:$0xff]
    %v941 = vld [vmem:[#allocation5 + $0x1940] sm:$0xff]
    %v942 = vld [vmem:[#allocation5 + $0x1948] sm:$0xff]
    %v943 = vld [vmem:[#allocation5 + $0x1950] sm:$0xff]
    %v944 = vld [vmem:[#allocation5 + $0x1958] sm:$0xff]
    %v945 = vld [vmem:[#allocation5 + $0x1960] sm:$0xff]
    %v946 = vld [vmem:[#allocation5 + $0x1968] sm:$0xff]
    %v947 = vld [vmem:[#allocation5 + $0x1970] sm:$0xff]
    %v948 = vld [vmem:[#allocation5 + $0x1978] sm:$0xff]
    %v949 = vld [vmem:[#allocation5 + $0x1980] sm:$0xff]
    %v950 = vld [vmem:[#allocation5 + $0x1988] sm:$0xff]
    %v951 = vld [vmem:[#allocation5 + $0x1990] sm:$0xff]
    %v952 = vld [vmem:[#allocation5 + $0x1998] sm:$0xff]
    %v953 = vld [vmem:[#allocation5 + $0x19a0] sm:$0xff]
    %v954 = vld [vmem:[#allocation5 + $0x19a8] sm:$0xff]
    %v955 = vld [vmem:[#allocation5 + $0x19b0] sm:$0xff]
    %v956 = vld [vmem:[#allocation5 + $0x19b8] sm:$0xff]
    %v957 = vld [vmem:[#allocation5 + $0x19c0] sm:$0xff]
    %v958 = vld [vmem:[#allocation5 + $0x19c8] sm:$0xff]
    %v959 = vld [vmem:[#allocation5 + $0x19d0] sm:$0xff]
    %v960 = vld [vmem:[#allocation5 + $0x19d8] sm:$0xff]
    %v961 = vld [vmem:[#allocation5 + $0x19e0] sm:$0xff]
    %v962 = vld [vmem:[#allocation5 + $0x19e8] sm:$0xff]
    %v963 = vld [vmem:[#allocation5 + $0x19f0] sm:$0xff]
    %v964 = vld [vmem:[#allocation5 + $0x19f8] sm:$0xff]
    %v965 = vld [vmem:[#allocation5 + $0x1a00] sm:$0xff]
    %v966 = vld [vmem:[#allocation5 + $0x1a08] sm:$0xff]
    %v967 = vld [vmem:[#allocation5 + $0x1a10] sm:$0xff]
    %v968 = vld [vmem:[#allocation5 + $0x1a18] sm:$0xff]
    %v969 = vld [vmem:[#allocation5 + $0x1a20] sm:$0xff]
    %v970 = vld [vmem:[#allocation5 + $0x1a28] sm:$0xff]
    %v971 = vld [vmem:[#allocation5 + $0x1a30] sm:$0xff]
    %v972 = vld [vmem:[#allocation5 + $0x1a38] sm:$0xff]
    %v973 = vld [vmem:[#allocation5 + $0x1a40] sm:$0xff]
    %v974 = vld [vmem:[#allocation5 + $0x1a48] sm:$0xff]
    %v975 = vld [vmem:[#allocation5 + $0x1a50] sm:$0xff]
    %v976 = vld [vmem:[#allocation5 + $0x1a58] sm:$0xff]
    %v977 = vld [vmem:[#allocation5 + $0x1a60] sm:$0xff]
    %v978 = vld [vmem:[#allocation5 + $0x1a68] sm:$0xff]
    %v979 = vld [vmem:[#allocation5 + $0x1a70] sm:$0xff]
    %v980 = vld [vmem:[#allocation5 + $0x1a78] sm:$0xff]
    %v981 = vld [vmem:[#allocation5 + $0x1a80] sm:$0xff]
    %v982 = vld [vmem:[#allocation5 + $0x1a88] sm:$0xff]
    %v983 = vld [vmem:[#allocation5 + $0x1a90] sm:$0xff]
    %v984 = vld [vmem:[#allocation5 + $0x1a98] sm:$0xff]
    %v985 = vld [vmem:[#allocation5 + $0x1aa0] sm:$0xff]
    %v986 = vld [vmem:[#allocation5 + $0x1aa8] sm:$0xff]
    %v987 = vld [vmem:[#allocation5 + $0x1ab0] sm:$0xff]
    %v988 = vld [vmem:[#allocation5 + $0x1ab8] sm:$0xff]
    %v989 = vld [vmem:[#allocation5 + $0x1ac0] sm:$0xff]
    %v990 = vld [vmem:[#allocation5 + $0x1ac8] sm:$0xff]
    %v991 = vld [vmem:[#allocation5 + $0x1ad0] sm:$0xff]
    %v992 = vld [vmem:[#allocation5 + $0x1ad8] sm:$0xff]
    %v993 = vld [vmem:[#allocation5 + $0x1ae0] sm:$0xff]
    %v994 = vld [vmem:[#allocation5 + $0x1ae8] sm:$0xff]
    %v995 = vld [vmem:[#allocation5 + $0x1af0] sm:$0xff]
    %v996 = vld [vmem:[#allocation5 + $0x1af8] sm:$0xff]
    %v997 = vld [vmem:[#allocation5 + $0x1b00] sm:$0xff]
    %v998 = vld [vmem:[#allocation5 + $0x1b08] sm:$0xff]
    %v999 = vld [vmem:[#allocation5 + $0x1b10] sm:$0xff]
    %v1000 = vld [vmem:[#allocation5 + $0x1b18] sm:$0xff]
    %v1001 = vld [vmem:[#allocation5 + $0x1b20] sm:$0xff]
    %v1002 = vld [vmem:[#allocation5 + $0x1b28] sm:$0xff]
    %v1003 = vld [vmem:[#allocation5 + $0x1b30] sm:$0xff]
    %v1004 = vld [vmem:[#allocation5 + $0x1b38] sm:$0xff]
    %v1005 = vld [vmem:[#allocation5 + $0x1b40] sm:$0xff]
    %v1006 = vld [vmem:[#allocation5 + $0x1b48] sm:$0xff]
    %v1007 = vld [vmem:[#allocation5 + $0x1b50] sm:$0xff]
    %v1008 = vld [vmem:[#allocation5 + $0x1b58] sm:$0xff]
    %v1009 = vld [vmem:[#allocation5 + $0x1b60] sm:$0xff]
    %v1010 = vld [vmem:[#allocation5 + $0x1b68] sm:$0xff]
    %v1011 = vld [vmem:[#allocation5 + $0x1b70] sm:$0xff]
    %v1012 = vld [vmem:[#allocation5 + $0x1b78] sm:$0xff]
    %v1013 = vld [vmem:[#allocation5 + $0x1b80] sm:$0xff]
    %v1014 = vld [vmem:[#allocation5 + $0x1b88] sm:$0xff]
    %v1015 = vld [vmem:[#allocation5 + $0x1b90] sm:$0xff]
    %v1016 = vld [vmem:[#allocation5 + $0x1b98] sm:$0xff]
    %v1017 = vld [vmem:[#allocation5 + $0x1ba0] sm:$0xff]
    %v1018 = vld [vmem:[#allocation5 + $0x1ba8] sm:$0xff]
    %v1019 = vld [vmem:[#allocation5 + $0x1bb0] sm:$0xff]
    %v1020 = vld [vmem:[#allocation5 + $0x1bb8] sm:$0xff]
    %v1021 = vld [vmem:[#allocation5 + $0x1bc0] sm:$0xff]
    %v1022 = vld [vmem:[#allocation5 + $0x1bc8] sm:$0xff]
    %v1023 = vld [vmem:[#allocation5 + $0x1bd0] sm:$0xff]
    %v1024 = vld [vmem:[#allocation5 + $0x1bd8] sm:$0xff]
    %v1025 = vld [vmem:[#allocation5 + $0x1be0] sm:$0xff]
    %v1026 = vld [vmem:[#allocation5 + $0x1be8] sm:$0xff]
    %v1027 = vld [vmem:[#allocation5 + $0x1bf0] sm:$0xff]
    %v1028 = vld [vmem:[#allocation5 + $0x1bf8] sm:$0xff]
    %v1029 = vld [vmem:[#allocation5 + $0x1c00] sm:$0xff]
    %v1030 = vld [vmem:[#allocation5 + $0x1c08] sm:$0xff]
    %v1031 = vld [vmem:[#allocation5 + $0x1c10] sm:$0xff]
    %v1032 = vld [vmem:[#allocation5 + $0x1c18] sm:$0xff]
    %v1033 = vld [vmem:[#allocation5 + $0x1c20] sm:$0xff]
    %v1034 = vld [vmem:[#allocation5 + $0x1c28] sm:$0xff]
    %v1035 = vld [vmem:[#allocation5 + $0x1c30] sm:$0xff]
    %v1036 = vld [vmem:[#allocation5 + $0x1c38] sm:$0xff]
    %v1037 = vld [vmem:[#allocation5 + $0x1c40] sm:$0xff]
    %v1038 = vld [vmem:[#allocation5 + $0x1c48] sm:$0xff]
    %v1039 = vld [vmem:[#allocation5 + $0x1c50] sm:$0xff]
    %v1040 = vld [vmem:[#allocation5 + $0x1c58] sm:$0xff]
    %v1041 = vld [vmem:[#allocation5 + $0x1c60] sm:$0xff]
    %v1042 = vld [vmem:[#allocation5 + $0x1c68] sm:$0xff]
    %v1043 = vld [vmem:[#allocation5 + $0x1c70] sm:$0xff]
    %v1044 = vld [vmem:[#allocation5 + $0x1c78] sm:$0xff]
    %v1045 = vld [vmem:[#allocation5 + $0x1c80] sm:$0xff]
    %v1046 = vld [vmem:[#allocation5 + $0x1c88] sm:$0xff]
    %v1047 = vld [vmem:[#allocation5 + $0x1c90] sm:$0xff]
    %v1048 = vld [vmem:[#allocation5 + $0x1c98] sm:$0xff]
    %v1049 = vld [vmem:[#allocation5 + $0x1ca0] sm:$0xff]
    %v1050 = vld [vmem:[#allocation5 + $0x1ca8] sm:$0xff]
    %v1051 = vld [vmem:[#allocation5 + $0x1cb0] sm:$0xff]
    %v1052 = vld [vmem:[#allocation5 + $0x1cb8] sm:$0xff]
    %v1053 = vld [vmem:[#allocation5 + $0x1cc0] sm:$0xff]
    %v1054 = vld [vmem:[#allocation5 + $0x1cc8] sm:$0xff]
    %v1055 = vld [vmem:[#allocation5 + $0x1cd0] sm:$0xff]
    %v1056 = vld [vmem:[#allocation5 + $0x1cd8] sm:$0xff]
    %v1057 = vld [vmem:[#allocation5 + $0x1ce0] sm:$0xff]
    %v1058 = vld [vmem:[#allocation5 + $0x1ce8] sm:$0xff]
    %v1059 = vld [vmem:[#allocation5 + $0x1cf0] sm:$0xff]
    %v1060 = vld [vmem:[#allocation5 + $0x1cf8] sm:$0xff]
    %v1061 = vld [vmem:[#allocation5 + $0x1d00] sm:$0xff]
    %v1062 = vld [vmem:[#allocation5 + $0x1d08] sm:$0xff]
    %v1063 = vld [vmem:[#allocation5 + $0x1d10] sm:$0xff]
    %v1064 = vld [vmem:[#allocation5 + $0x1d18] sm:$0xff]
    %v1065 = vld [vmem:[#allocation5 + $0x1d20] sm:$0xff]
    %v1066 = vld [vmem:[#allocation5 + $0x1d28] sm:$0xff]
    %v1067 = vld [vmem:[#allocation5 + $0x1d30] sm:$0xff]
    %v1068 = vld [vmem:[#allocation5 + $0x1d38] sm:$0xff]
    %v1069 = vld [vmem:[#allocation5 + $0x1d40] sm:$0xff]
    %v1070 = vld [vmem:[#allocation5 + $0x1d48] sm:$0xff]
    %v1071 = vld [vmem:[#allocation5 + $0x1d50] sm:$0xff]
    %v1072 = vld [vmem:[#allocation5 + $0x1d58] sm:$0xff]
    %v1073 = vld [vmem:[#allocation5 + $0x1d60] sm:$0xff]
    %v1074 = vld [vmem:[#allocation5 + $0x1d68] sm:$0xff]
    %v1075 = vld [vmem:[#allocation5 + $0x1d70] sm:$0xff]
    %v1076 = vld [vmem:[#allocation5 + $0x1d78] sm:$0xff]
    %v1077 = vld [vmem:[#allocation5 + $0x1d80] sm:$0xff]
    %v1078 = vld [vmem:[#allocation5 + $0x1d88] sm:$0xff]
    %v1079 = vld [vmem:[#allocation5 + $0x1d90] sm:$0xff]
    %v1080 = vld [vmem:[#allocation5 + $0x1d98] sm:$0xff]
    %v1081 = vld [vmem:[#allocation5 + $0x1da0] sm:$0xff]
    %v1082 = vld [vmem:[#allocation5 + $0x1da8] sm:$0xff]
    %v1083 = vld [vmem:[#allocation5 + $0x1db0] sm:$0xff]
    %v1084 = vld [vmem:[#allocation5 + $0x1db8] sm:$0xff]
    %v1085 = vld [vmem:[#allocation5 + $0x1dc0] sm:$0xff]
    %v1086 = vld [vmem:[#allocation5 + $0x1dc8] sm:$0xff]
    %v1087 = vld [vmem:[#allocation5 + $0x1dd0] sm:$0xff]
    %v1088 = vld [vmem:[#allocation5 + $0x1dd8] sm:$0xff]
    %v1089 = vld [vmem:[#allocation5 + $0x1de0] sm:$0xff]
    %v1090 = vld [vmem:[#allocation5 + $0x1de8] sm:$0xff]
    %v1091 = vld [vmem:[#allocation5 + $0x1df0] sm:$0xff]
    %v1092 = vld [vmem:[#allocation5 + $0x1df8] sm:$0xff]
    %v1093 = vld [vmem:[#allocation5 + $0x1e00] sm:$0xff]
    %v1094 = vld [vmem:[#allocation5 + $0x1e08] sm:$0xff]
    %v1095 = vld [vmem:[#allocation5 + $0x1e10] sm:$0xff]
    %v1096 = vld [vmem:[#allocation5 + $0x1e18] sm:$0xff]
    %v1097 = vld [vmem:[#allocation5 + $0x1e20] sm:$0xff]
    %v1098 = vld [vmem:[#allocation5 + $0x1e28] sm:$0xff]
    %v1099 = vld [vmem:[#allocation5 + $0x1e30] sm:$0xff]
    %v1100 = vld [vmem:[#allocation5 + $0x1e38] sm:$0xff]
    %v1101 = vld [vmem:[#allocation5 + $0x1e40] sm:$0xff]
    %v1102 = vld [vmem:[#allocation5 + $0x1e48] sm:$0xff]
    %v1103 = vld [vmem:[#allocation5 + $0x1e50] sm:$0xff]
    %v1104 = vld [vmem:[#allocation5 + $0x1e58] sm:$0xff]
    %v1105 = vld [vmem:[#allocation5 + $0x1e60] sm:$0xff]
    %v1106 = vld [vmem:[#allocation5 + $0x1e68] sm:$0xff]
    %v1107 = vld [vmem:[#allocation5 + $0x1e70] sm:$0xff]
    %v1108 = vld [vmem:[#allocation5 + $0x1e78] sm:$0xff]
    %v1109 = vld [vmem:[#allocation5 + $0x1e80] sm:$0xff]
    %v1110 = vld [vmem:[#allocation5 + $0x1e88] sm:$0xff]
    %v1111 = vld [vmem:[#allocation5 + $0x1e90] sm:$0xff]
    %v1112 = vld [vmem:[#allocation5 + $0x1e98] sm:$0xff]
    %v1113 = vld [vmem:[#allocation5 + $0x1ea0] sm:$0xff]
    %v1114 = vld [vmem:[#allocation5 + $0x1ea8] sm:$0xff]
    %v1115 = vld [vmem:[#allocation5 + $0x1eb0] sm:$0xff]
    %v1116 = vld [vmem:[#allocation5 + $0x1eb8] sm:$0xff]
    %v1117 = vld [vmem:[#allocation5 + $0x1ec0] sm:$0xff]
    %v1118 = vld [vmem:[#allocation5 + $0x1ec8] sm:$0xff]
    %v1119 = vld [vmem:[#allocation5 + $0x1ed0] sm:$0xff]
    %v1120 = vld [vmem:[#allocation5 + $0x1ed8] sm:$0xff]
    %v1121 = vld [vmem:[#allocation5 + $0x1ee0] sm:$0xff]
    %v1122 = vld [vmem:[#allocation5 + $0x1ee8] sm:$0xff]
    %v1123 = vld [vmem:[#allocation5 + $0x1ef0] sm:$0xff]
    %v1124 = vld [vmem:[#allocation5 + $0x1ef8] sm:$0xff]
    %v1125 = vld [vmem:[#allocation5 + $0x1f00] sm:$0xff]
    %v1126 = vld [vmem:[#allocation5 + $0x1f08] sm:$0xff]
    %v1127 = vld [vmem:[#allocation5 + $0x1f10] sm:$0xff]
    %v1128 = vld [vmem:[#allocation5 + $0x1f18] sm:$0xff]
    %v1129 = vld [vmem:[#allocation5 + $0x1f20] sm:$0xff]
    %v1130 = vld [vmem:[#allocation5 + $0x1f28] sm:$0xff]
    %v1131 = vld [vmem:[#allocation5 + $0x1f30] sm:$0xff]
    %v1132 = vld [vmem:[#allocation5 + $0x1f38] sm:$0xff]
    %v1133 = vld [vmem:[#allocation5 + $0x1f40] sm:$0xff]
    %v1134 = vld [vmem:[#allocation5 + $0x1f48] sm:$0xff]
    %v1135 = vld [vmem:[#allocation5 + $0x1f50] sm:$0xff]
    %v1136 = vld [vmem:[#allocation5 + $0x1f58] sm:$0xff]
    %v1137 = vld [vmem:[#allocation5 + $0x1f60] sm:$0xff]
    %v1138 = vld [vmem:[#allocation5 + $0x1f68] sm:$0xff]
    %v1139 = vld [vmem:[#allocation5 + $0x1f70] sm:$0xff]
    %v1140 = vld [vmem:[#allocation5 + $0x1f78] sm:$0xff]
    %v1141 = vld [vmem:[#allocation5 + $0x1f80] sm:$0xff]
    %v1142 = vld [vmem:[#allocation5 + $0x1f88] sm:$0xff]
    %v1143 = vld [vmem:[#allocation5 + $0x1f90] sm:$0xff]
    %v1144 = vld [vmem:[#allocation5 + $0x1f98] sm:$0xff]
    %v1145 = vld [vmem:[#allocation5 + $0x1fa0] sm:$0xff]
    %v1146 = vld [vmem:[#allocation5 + $0x1fa8] sm:$0xff]
    %v1147 = vld [vmem:[#allocation5 + $0x1fb0] sm:$0xff]
    %v1148 = vld [vmem:[#allocation5 + $0x1fb8] sm:$0xff]
    %v1149 = vld [vmem:[#allocation5 + $0x1fc0] sm:$0xff]
    %v1150 = vld [vmem:[#allocation5 + $0x1fc8] sm:$0xff]
    %v1151 = vld [vmem:[#allocation5 + $0x1fd0] sm:$0xff]
    %v1152 = vld [vmem:[#allocation5 + $0x1fd8] sm:$0xff]
    %v1153 = vld [vmem:[#allocation5 + $0x1fe0] sm:$0xff]
    %v1154 = vld [vmem:[#allocation5 + $0x1fe8] sm:$0xff]
    %v1155 = vld [vmem:[#allocation5 + $0x1ff0] sm:$0xff]
    %v1156 = vld [vmem:[#allocation5 + $0x1ff8] sm:$0xff]
    %v1157 = vld [vmem:[#allocation5 + $0x2000] sm:$0xff]
    %v1158 = vld [vmem:[#allocation5 + $0x2008] sm:$0xff]
    %v1159 = vld [vmem:[#allocation5 + $0x2010] sm:$0xff]
    %v1160 = vld [vmem:[#allocation5 + $0x2018] sm:$0xff]
    %v1161 = vld [vmem:[#allocation5 + $0x2020] sm:$0xff]
    %v1162 = vld [vmem:[#allocation5 + $0x2028] sm:$0xff]
    %v1163 = vld [vmem:[#allocation5 + $0x2030] sm:$0xff]
    %v1164 = vld [vmem:[#allocation5 + $0x2038] sm:$0xff]
    %v1165 = vld [vmem:[#allocation5 + $0x2040] sm:$0xff]
    %v1166 = vld [vmem:[#allocation5 + $0x2048] sm:$0xff]
    %v1167 = vld [vmem:[#allocation5 + $0x2050] sm:$0xff]
    %v1168 = vld [vmem:[#allocation5 + $0x2058] sm:$0xff]
    %v1169 = vld [vmem:[#allocation5 + $0x2060] sm:$0xff]
    %v1170 = vld [vmem:[#allocation5 + $0x2068] sm:$0xff]
    %v1171 = vld [vmem:[#allocation5 + $0x2070] sm:$0xff]
    %v1172 = vld [vmem:[#allocation5 + $0x2078] sm:$0xff]
    %v1173 = vld [vmem:[#allocation5 + $0x2080] sm:$0xff]
    %v1174 = vld [vmem:[#allocation5 + $0x2088] sm:$0xff]
    %v1175 = vld [vmem:[#allocation5 + $0x2090] sm:$0xff]
    %v1176 = vld [vmem:[#allocation5 + $0x2098] sm:$0xff]
    %v1177 = vld [vmem:[#allocation5 + $0x20a0] sm:$0xff]
    %v1178 = vld [vmem:[#allocation5 + $0x20a8] sm:$0xff]
    %v1179 = vld [vmem:[#allocation5 + $0x20b0] sm:$0xff]
    %v1180 = vld [vmem:[#allocation5 + $0x20b8] sm:$0xff]
    %v1181 = vld [vmem:[#allocation5 + $0x20c0] sm:$0xff]
    %v1182 = vld [vmem:[#allocation5 + $0x20c8] sm:$0xff]
    %v1183 = vld [vmem:[#allocation5 + $0x20d0] sm:$0xff]
    %v1184 = vld [vmem:[#allocation5 + $0x20d8] sm:$0xff]
    %v1185 = vld [vmem:[#allocation5 + $0x20e0] sm:$0xff]
    %v1186 = vld [vmem:[#allocation5 + $0x20e8] sm:$0xff]
    %v1187 = vld [vmem:[#allocation5 + $0x20f0] sm:$0xff]
    %v1188 = vld [vmem:[#allocation5 + $0x20f8] sm:$0xff]
    %v1189 = vld [vmem:[#allocation5 + $0x2100] sm:$0xff]
    %v1190 = vld [vmem:[#allocation5 + $0x2108] sm:$0xff]
    %v1191 = vld [vmem:[#allocation5 + $0x2110] sm:$0xff]
    %v1192 = vld [vmem:[#allocation5 + $0x2118] sm:$0xff]
    %v1193 = vld [vmem:[#allocation5 + $0x2120] sm:$0xff]
    %v1194 = vld [vmem:[#allocation5 + $0x2128] sm:$0xff]
    %v1195 = vld [vmem:[#allocation5 + $0x2130] sm:$0xff]
    %v1196 = vld [vmem:[#allocation5 + $0x2138] sm:$0xff]
    %v1197 = vld [vmem:[#allocation5 + $0x2140] sm:$0xff]
    %v1198 = vld [vmem:[#allocation5 + $0x2148] sm:$0xff]
    %v1199 = vld [vmem:[#allocation5 + $0x2150] sm:$0xff]
    %v1200 = vld [vmem:[#allocation5 + $0x2158] sm:$0xff]
    %v1201 = vld [vmem:[#allocation5 + $0x2160] sm:$0xff]
    %v1202 = vld [vmem:[#allocation5 + $0x2168] sm:$0xff]
    %v1203 = vld [vmem:[#allocation5 + $0x2170] sm:$0xff]
    %v1204 = vld [vmem:[#allocation5 + $0x2178] sm:$0xff]
    %v1205 = vld [vmem:[#allocation5 + $0x2180] sm:$0xff]
    %v1206 = vld [vmem:[#allocation5 + $0x2188] sm:$0xff]
    %v1207 = vld [vmem:[#allocation5 + $0x2190] sm:$0xff]
    %v1208 = vld [vmem:[#allocation5 + $0x2198] sm:$0xff]
    %v1209 = vld [vmem:[#allocation5 + $0x21a0] sm:$0xff]
    %v1210 = vld [vmem:[#allocation5 + $0x21a8] sm:$0xff]
    %v1211 = vld [vmem:[#allocation5 + $0x21b0] sm:$0xff]
    %v1212 = vld [vmem:[#allocation5 + $0x21b8] sm:$0xff]
    %v1213 = vld [vmem:[#allocation5 + $0x21c0] sm:$0xff]
    %v1214 = vld [vmem:[#allocation5 + $0x21c8] sm:$0xff]
    %v1215 = vld [vmem:[#allocation5 + $0x21d0] sm:$0xff]
    %v1216 = vld [vmem:[#allocation5 + $0x21d8] sm:$0xff]
    %v1217 = vld [vmem:[#allocation5 + $0x21e0] sm:$0xff]
    %v1218 = vld [vmem:[#allocation5 + $0x21e8] sm:$0xff]
    %v1219 = vld [vmem:[#allocation5 + $0x21f0] sm:$0xff]
    %v1220 = vld [vmem:[#allocation5 + $0x21f8] sm:$0xff]
    %v1221 = vld [vmem:[#allocation5 + $0x2200] sm:$0xff]
    %v1222 = vld [vmem:[#allocation5 + $0x2208] sm:$0xff]
    %v1223 = vld [vmem:[#allocation5 + $0x2210] sm:$0xff]
    %v1224 = vld [vmem:[#allocation5 + $0x2218] sm:$0xff]
    %v1225 = vld [vmem:[#allocation5 + $0x2220] sm:$0xff]
    %v1226 = vld [vmem:[#allocation5 + $0x2228] sm:$0xff]
    %v1227 = vld [vmem:[#allocation5 + $0x2230] sm:$0xff]
    %v1228 = vld [vmem:[#allocation5 + $0x2238] sm:$0xff]
    %v1229 = vld [vmem:[#allocation5 + $0x2240] sm:$0xff]
    %v1230 = vld [vmem:[#allocation5 + $0x2248] sm:$0xff]
    %v1231 = vld [vmem:[#allocation5 + $0x2250] sm:$0xff]
    %v1232 = vld [vmem:[#allocation5 + $0x2258] sm:$0xff]
    %v1233 = vld [vmem:[#allocation5 + $0x2260] sm:$0xff]
    %v1234 = vld [vmem:[#allocation5 + $0x2268] sm:$0xff]
    %v1235 = vld [vmem:[#allocation5 + $0x2270] sm:$0xff]
    %v1236 = vld [vmem:[#allocation5 + $0x2278] sm:$0xff]
    %v1237 = vld [vmem:[#allocation5 + $0x2280] sm:$0xff]
    %v1238 = vld [vmem:[#allocation5 + $0x2288] sm:$0xff]
    %v1239 = vld [vmem:[#allocation5 + $0x2290] sm:$0xff]
    %v1240 = vld [vmem:[#allocation5 + $0x2298] sm:$0xff]
    %v1241 = vld [vmem:[#allocation5 + $0x22a0] sm:$0xff]
    %v1242 = vld [vmem:[#allocation5 + $0x22a8] sm:$0xff]
    %v1243 = vld [vmem:[#allocation5 + $0x22b0] sm:$0xff]
    %v1244 = vld [vmem:[#allocation5 + $0x22b8] sm:$0xff]
    %v1245 = vld [vmem:[#allocation5 + $0x22c0] sm:$0xff]
    %v1246 = vld [vmem:[#allocation5 + $0x22c8] sm:$0xff]
    %v1247 = vld [vmem:[#allocation5 + $0x22d0] sm:$0xff]
    %v1248 = vld [vmem:[#allocation5 + $0x22d8] sm:$0xff]
    %v1249 = vld [vmem:[#allocation5 + $0x22e0] sm:$0xff]
    %v1250 = vld [vmem:[#allocation5 + $0x22e8] sm:$0xff]
    %v1251 = vld [vmem:[#allocation5 + $0x22f0] sm:$0xff]
    %v1252 = vld [vmem:[#allocation5 + $0x22f8] sm:$0xff]
    %v1253 = vld [vmem:[#allocation5 + $0x2300] sm:$0xff]
    %v1254 = vld [vmem:[#allocation5 + $0x2308] sm:$0xff]
    %v1255 = vld [vmem:[#allocation5 + $0x2310] sm:$0xff]
    %v1256 = vld [vmem:[#allocation5 + $0x2318] sm:$0xff]
    %v1257 = vld [vmem:[#allocation5 + $0x2320] sm:$0xff]
    %v1258 = vld [vmem:[#allocation5 + $0x2328] sm:$0xff]
    %v1259 = vld [vmem:[#allocation5 + $0x2330] sm:$0xff]
    %v1260 = vld [vmem:[#allocation5 + $0x2338] sm:$0xff]
    %v1261 = vld [vmem:[#allocation5 + $0x2340] sm:$0xff]
    %v1262 = vld [vmem:[#allocation5 + $0x2348] sm:$0xff]
    %v1263 = vld [vmem:[#allocation5 + $0x2350] sm:$0xff]
    %v1264 = vld [vmem:[#allocation5 + $0x2358] sm:$0xff]
    %v1265 = vld [vmem:[#allocation5 + $0x2360] sm:$0xff]
    %v1266 = vld [vmem:[#allocation5 + $0x2368] sm:$0xff]
    %v1267 = vld [vmem:[#allocation5 + $0x2370] sm:$0xff]
    %v1268 = vld [vmem:[#allocation5 + $0x2378] sm:$0xff]
    %v1269 = vld [vmem:[#allocation5 + $0x2380] sm:$0xff]
    %v1270 = vld [vmem:[#allocation5 + $0x2388] sm:$0xff]
    %v1271 = vld [vmem:[#allocation5 + $0x2390] sm:$0xff]
    %v1272 = vld [vmem:[#allocation5 + $0x2398] sm:$0xff]
    %v1273 = vld [vmem:[#allocation5 + $0x23a0] sm:$0xff]
    %v1274 = vld [vmem:[#allocation5 + $0x23a8] sm:$0xff]
    %v1275 = vld [vmem:[#allocation5 + $0x23b0] sm:$0xff]
    %v1276 = vld [vmem:[#allocation5 + $0x23b8] sm:$0xff]
    %v1277 = vld [vmem:[#allocation5 + $0x23c0] sm:$0xff]
    %v1278 = vld [vmem:[#allocation5 + $0x23c8] sm:$0xff]
    %v1279 = vld [vmem:[#allocation5 + $0x23d0] sm:$0xff]
    %v1280 = vld [vmem:[#allocation5 + $0x23d8] sm:$0xff]
    %v1281 = vld [vmem:[#allocation5 + $0x23e0] sm:$0xff]
    %v1282 = vld [vmem:[#allocation5 + $0x23e8] sm:$0xff]
    %v1283 = vld [vmem:[#allocation5 + $0x23f0] sm:$0xff]
    %v1284 = vld [vmem:[#allocation5 + $0x23f8] sm:$0xff]
    %v1285 = vld [vmem:[#allocation5 + $0x2400] sm:$0xff]
    %v1286 = vld [vmem:[#allocation5 + $0x2408] sm:$0xff]
    %v1287 = vld [vmem:[#allocation5 + $0x2410] sm:$0xff]
    %v1288 = vld [vmem:[#allocation5 + $0x2418] sm:$0xff]
    %v1289 = vld [vmem:[#allocation5 + $0x2420] sm:$0xff]
    %v1290 = vld [vmem:[#allocation5 + $0x2428] sm:$0xff]
    %v1291 = vld [vmem:[#allocation5 + $0x2430] sm:$0xff]
    %v1292 = vld [vmem:[#allocation5 + $0x2438] sm:$0xff]
    %v1293 = vld [vmem:[#allocation5 + $0x2440] sm:$0xff]
    %v1294 = vld [vmem:[#allocation5 + $0x2448] sm:$0xff]
    %v1295 = vld [vmem:[#allocation5 + $0x2450] sm:$0xff]
    %v1296 = vld [vmem:[#allocation5 + $0x2458] sm:$0xff]
    %v1297 = vld [vmem:[#allocation5 + $0x2460] sm:$0xff]
    %v1298 = vld [vmem:[#allocation5 + $0x2468] sm:$0xff]
    %v1299 = vld [vmem:[#allocation5 + $0x2470] sm:$0xff]
    %v1300 = vld [vmem:[#allocation5 + $0x2478] sm:$0xff]
    %v1301 = vld [vmem:[#allocation5 + $0x2480] sm:$0xff]
    %v1302 = vld [vmem:[#allocation5 + $0x2488] sm:$0xff]
    %v1303 = vld [vmem:[#allocation5 + $0x2490] sm:$0xff]
    %v1304 = vld [vmem:[#allocation5 + $0x2498] sm:$0xff]
    %v1305 = vld [vmem:[#allocation5 + $0x24a0] sm:$0xff]
    %v1306 = vld [vmem:[#allocation5 + $0x24a8] sm:$0xff]
    %v1307 = vld [vmem:[#allocation5 + $0x24b0] sm:$0xff]
    %v1308 = vld [vmem:[#allocation5 + $0x24b8] sm:$0xff]
    %v1309 = vld [vmem:[#allocation5 + $0x24c0] sm:$0xff]
    %v1310 = vld [vmem:[#allocation5 + $0x24c8] sm:$0xff]
    %v1311 = vld [vmem:[#allocation5 + $0x24d0] sm:$0xff]
    %v1312 = vld [vmem:[#allocation5 + $0x24d8] sm:$0xff]
    %v1313 = vld [vmem:[#allocation5 + $0x24e0] sm:$0xff]
    %v1314 = vld [vmem:[#allocation5 + $0x24e8] sm:$0xff]
    %v1315 = vld [vmem:[#allocation5 + $0x24f0] sm:$0xff]
    %v1316 = vld [vmem:[#allocation5 + $0x24f8] sm:$0xff]
    %v1317 = vld [vmem:[#allocation5 + $0x2500] sm:$0xff]
    %v1318 = vld [vmem:[#allocation5 + $0x2508] sm:$0xff]
    %v1319 = vld [vmem:[#allocation5 + $0x2510] sm:$0xff]
    %v1320 = vld [vmem:[#allocation5 + $0x2518] sm:$0xff]
    %v1321 = vld [vmem:[#allocation5 + $0x2520] sm:$0xff]
    %v1322 = vld [vmem:[#allocation5 + $0x2528] sm:$0xff]
    %v1323 = vld [vmem:[#allocation5 + $0x2530] sm:$0xff]
    %v1324 = vld [vmem:[#allocation5 + $0x2538] sm:$0xff]
    %v1325 = vld [vmem:[#allocation5 + $0x2540] sm:$0xff]
    %v1326 = vld [vmem:[#allocation5 + $0x2548] sm:$0xff]
    %v1327 = vld [vmem:[#allocation5 + $0x2550] sm:$0xff]
    %v1328 = vld [vmem:[#allocation5 + $0x2558] sm:$0xff]
    %v1329 = vld [vmem:[#allocation5 + $0x2560] sm:$0xff]
    %v1330 = vld [vmem:[#allocation5 + $0x2568] sm:$0xff]
    %v1331 = vld [vmem:[#allocation5 + $0x2570] sm:$0xff]
    %v1332 = vld [vmem:[#allocation5 + $0x2578] sm:$0xff]
    %v1333 = vld [vmem:[#allocation5 + $0x2580] sm:$0xff]
    %v1334 = vld [vmem:[#allocation5 + $0x2588] sm:$0xff]
    %v1335 = vld [vmem:[#allocation5 + $0x2590] sm:$0xff]
    %v1336 = vld [vmem:[#allocation5 + $0x2598] sm:$0xff]
    %v1337 = vld [vmem:[#allocation5 + $0x25a0] sm:$0xff]
    %v1338 = vld [vmem:[#allocation5 + $0x25a8] sm:$0xff]
    %v1339 = vld [vmem:[#allocation5 + $0x25b0] sm:$0xff]
    %v1340 = vld [vmem:[#allocation5 + $0x25b8] sm:$0xff]
    %v1341 = vld [vmem:[#allocation5 + $0x25c0] sm:$0xff]
    %v1342 = vld [vmem:[#allocation5 + $0x25c8] sm:$0xff]
    %v1343 = vld [vmem:[#allocation5 + $0x25d0] sm:$0xff]
    %v1344 = vld [vmem:[#allocation5 + $0x25d8] sm:$0xff]
    %v1345 = vld [vmem:[#allocation5 + $0x25e0] sm:$0xff]
    %v1346 = vld [vmem:[#allocation5 + $0x25e8] sm:$0xff]
    %v1347 = vld [vmem:[#allocation5 + $0x25f0] sm:$0xff]
    %v1348 = vld [vmem:[#allocation5 + $0x25f8] sm:$0xff]
    %v1349 = vld [vmem:[#allocation5 + $0x2600] sm:$0xff]
    %v1350 = vld [vmem:[#allocation5 + $0x2608] sm:$0xff]
    %v1351 = vld [vmem:[#allocation5 + $0x2610] sm:$0xff]
    %v1352 = vld [vmem:[#allocation5 + $0x2618] sm:$0xff]
    %v1353 = vld [vmem:[#allocation5 + $0x2620] sm:$0xff]
    %v1354 = vld [vmem:[#allocation5 + $0x2628] sm:$0xff]
    %v1355 = vld [vmem:[#allocation5 + $0x2630] sm:$0xff]
    %v1356 = vld [vmem:[#allocation5 + $0x2638] sm:$0xff]
    %v1357 = vld [vmem:[#allocation5 + $0x2640] sm:$0xff]
    %v1358 = vld [vmem:[#allocation5 + $0x2648] sm:$0xff]
    %v1359 = vld [vmem:[#allocation5 + $0x2650] sm:$0xff]
    %v1360 = vld [vmem:[#allocation5 + $0x2658] sm:$0xff]
    %v1361 = vld [vmem:[#allocation5 + $0x2660] sm:$0xff]
    %v1362 = vld [vmem:[#allocation5 + $0x2668] sm:$0xff]
    %v1363 = vld [vmem:[#allocation5 + $0x2670] sm:$0xff]
    %v1364 = vld [vmem:[#allocation5 + $0x2678] sm:$0xff]
    %v1365 = vld [vmem:[#allocation5 + $0x2680] sm:$0xff]
    %v1366 = vld [vmem:[#allocation5 + $0x2688] sm:$0xff]
    %v1367 = vld [vmem:[#allocation5 + $0x2690] sm:$0xff]
    %v1368 = vld [vmem:[#allocation5 + $0x2698] sm:$0xff]
    %v1369 = vld [vmem:[#allocation5 + $0x26a0] sm:$0xff]
    %v1370 = vld [vmem:[#allocation5 + $0x26a8] sm:$0xff]
    %v1371 = vld [vmem:[#allocation5 + $0x26b0] sm:$0xff]
    %v1372 = vld [vmem:[#allocation5 + $0x26b8] sm:$0xff]
    %v1373 = vld [vmem:[#allocation5 + $0x26c0] sm:$0xff]
    %v1374 = vld [vmem:[#allocation5 + $0x26c8] sm:$0xff]
    %v1375 = vld [vmem:[#allocation5 + $0x26d0] sm:$0xff]
    %v1376 = vld [vmem:[#allocation5 + $0x26d8] sm:$0xff]
    %v1377 = vld [vmem:[#allocation5 + $0x26e0] sm:$0xff]
    %v1378 = vld [vmem:[#allocation5 + $0x26e8] sm:$0xff]
    %v1379 = vld [vmem:[#allocation5 + $0x26f0] sm:$0xff]
    %v1380 = vld [vmem:[#allocation5 + $0x26f8] sm:$0xff]
    %v1381 = vld [vmem:[#allocation5 + $0x2700] sm:$0xff]
    %v1382 = vld [vmem:[#allocation5 + $0x2708] sm:$0xff]
    %v1383 = vld [vmem:[#allocation5 + $0x2710] sm:$0xff]
    %v1384 = vld [vmem:[#allocation5 + $0x2718] sm:$0xff]
    %v1385 = vld [vmem:[#allocation5 + $0x2720] sm:$0xff]
    %v1386 = vld [vmem:[#allocation5 + $0x2728] sm:$0xff]
    %v1387 = vld [vmem:[#allocation5 + $0x2730] sm:$0xff]
    %v1388 = vld [vmem:[#allocation5 + $0x2738] sm:$0xff]
    %v1389 = vld [vmem:[#allocation5 + $0x2740] sm:$0xff]
    %v1390 = vld [vmem:[#allocation5 + $0x2748] sm:$0xff]
    %v1391 = vld [vmem:[#allocation5 + $0x2750] sm:$0xff]
    %v1392 = vld [vmem:[#allocation5 + $0x2758] sm:$0xff]
    %v1393 = vld [vmem:[#allocation5 + $0x2760] sm:$0xff]
    %v1394 = vld [vmem:[#allocation5 + $0x2768] sm:$0xff]
    %v1395 = vld [vmem:[#allocation5 + $0x2770] sm:$0xff]
    %v1396 = vld [vmem:[#allocation5 + $0x2778] sm:$0xff]
    %v1397 = vld [vmem:[#allocation5 + $0x2780] sm:$0xff]
    %v1398 = vld [vmem:[#allocation5 + $0x2788] sm:$0xff]
    %v1399 = vld [vmem:[#allocation5 + $0x2790] sm:$0xff]
    %v1400 = vld [vmem:[#allocation5 + $0x2798] sm:$0xff]
    %v1401 = vld [vmem:[#allocation5 + $0x27a0] sm:$0xff]
    %v1402 = vld [vmem:[#allocation5 + $0x27a8] sm:$0xff]
    %v1403 = vld [vmem:[#allocation5 + $0x27b0] sm:$0xff]
    %v1404 = vld [vmem:[#allocation5 + $0x27b8] sm:$0xff]
    %v1405 = vld [vmem:[#allocation5 + $0x27c0] sm:$0xff]
    %v1406 = vld [vmem:[#allocation5 + $0x27c8] sm:$0xff]
    %v1407 = vld [vmem:[#allocation5 + $0x27d0] sm:$0xff]
    %v1408 = vld [vmem:[#allocation5 + $0x27d8] sm:$0xff]
    %v1409 = vld [vmem:[#allocation5 + $0x27e0] sm:$0xff]
    %v1410 = vld [vmem:[#allocation5 + $0x27e8] sm:$0xff]
    %v1411 = vld [vmem:[#allocation5 + $0x27f0] sm:$0xff]
    %v1412 = vld [vmem:[#allocation5 + $0x27f8] sm:$0xff]
    %v1413 = vld [vmem:[#allocation5 + $0x2800] sm:$0xff]
    %v1414 = vld [vmem:[#allocation5 + $0x2808] sm:$0xff]
    %v1415 = vld [vmem:[#allocation5 + $0x2810] sm:$0xff]
    %v1416 = vld [vmem:[#allocation5 + $0x2818] sm:$0xff]
    %v1417 = vld [vmem:[#allocation5 + $0x2820] sm:$0xff]
    %v1418 = vld [vmem:[#allocation5 + $0x2828] sm:$0xff]
    %v1419 = vld [vmem:[#allocation5 + $0x2830] sm:$0xff]
    %v1420 = vld [vmem:[#allocation5 + $0x2838] sm:$0xff]
    %v1421 = vld [vmem:[#allocation5 + $0x2840] sm:$0xff]
    %v1422 = vld [vmem:[#allocation5 + $0x2848] sm:$0xff]
    %v1423 = vld [vmem:[#allocation5 + $0x2850] sm:$0xff]
    %v1424 = vld [vmem:[#allocation5 + $0x2858] sm:$0xff]
    %v1425 = vld [vmem:[#allocation5 + $0x2860] sm:$0xff]
    %v1426 = vld [vmem:[#allocation5 + $0x2868] sm:$0xff]
    %v1427 = vld [vmem:[#allocation5 + $0x2870] sm:$0xff]
    %v1428 = vld [vmem:[#allocation5 + $0x2878] sm:$0xff]
    %v1429 = vld [vmem:[#allocation5 + $0x2880] sm:$0xff]
    %v1430 = vld [vmem:[#allocation5 + $0x2888] sm:$0xff]
    %v1431 = vld [vmem:[#allocation5 + $0x2890] sm:$0xff]
    %v1432 = vld [vmem:[#allocation5 + $0x2898] sm:$0xff]
    %v1433 = vld [vmem:[#allocation5 + $0x28a0] sm:$0xff]
    %v1434 = vld [vmem:[#allocation5 + $0x28a8] sm:$0xff]
    %v1435 = vld [vmem:[#allocation5 + $0x28b0] sm:$0xff]
    %v1436 = vld [vmem:[#allocation5 + $0x28b8] sm:$0xff]
    %v1437 = vld [vmem:[#allocation5 + $0x28c0] sm:$0xff]
    %v1438 = vld [vmem:[#allocation5 + $0x28c8] sm:$0xff]
    %v1439 = vld [vmem:[#allocation5 + $0x28d0] sm:$0xff]
    %v1440 = vld [vmem:[#allocation5 + $0x28d8] sm:$0xff]
    %v1441 = vld [vmem:[#allocation5 + $0x28e0] sm:$0xff]
    %v1442 = vld [vmem:[#allocation5 + $0x28e8] sm:$0xff]
    %v1443 = vld [vmem:[#allocation5 + $0x28f0] sm:$0xff]
    %v1444 = vld [vmem:[#allocation5 + $0x28f8] sm:$0xff]
    %v1445 = vld [vmem:[#allocation5 + $0x2900] sm:$0xff]
    %v1446 = vld [vmem:[#allocation5 + $0x2908] sm:$0xff]
    %v1447 = vld [vmem:[#allocation5 + $0x2910] sm:$0xff]
    %v1448 = vld [vmem:[#allocation5 + $0x2918] sm:$0xff]
    %v1449 = vld [vmem:[#allocation5 + $0x2920] sm:$0xff]
    %v1450 = vld [vmem:[#allocation5 + $0x2928] sm:$0xff]
    %v1451 = vld [vmem:[#allocation5 + $0x2930] sm:$0xff]
    %v1452 = vld [vmem:[#allocation5 + $0x2938] sm:$0xff]
    %v1453 = vld [vmem:[#allocation5 + $0x2940] sm:$0xff]
    %v1454 = vld [vmem:[#allocation5 + $0x2948] sm:$0xff]
    %v1455 = vld [vmem:[#allocation5 + $0x2950] sm:$0xff]
    %v1456 = vld [vmem:[#allocation5 + $0x2958] sm:$0xff]
    %v1457 = vld [vmem:[#allocation5 + $0x2960] sm:$0xff]
    %v1458 = vld [vmem:[#allocation5 + $0x2968] sm:$0xff]
    %v1459 = vld [vmem:[#allocation5 + $0x2970] sm:$0xff]
    %v1460 = vld [vmem:[#allocation5 + $0x2978] sm:$0xff]
    %v1461 = vld [vmem:[#allocation5 + $0x2980] sm:$0xff]
    %v1462 = vld [vmem:[#allocation5 + $0x2988] sm:$0xff]
    %v1463 = vld [vmem:[#allocation5 + $0x2990] sm:$0xff]
    %v1464 = vld [vmem:[#allocation5 + $0x2998] sm:$0xff]
    %v1465 = vld [vmem:[#allocation5 + $0x29a0] sm:$0xff]
    %v1466 = vld [vmem:[#allocation5 + $0x29a8] sm:$0xff]
    %v1467 = vld [vmem:[#allocation5 + $0x29b0] sm:$0xff]
    %v1468 = vld [vmem:[#allocation5 + $0x29b8] sm:$0xff]
    %v1469 = vld [vmem:[#allocation5 + $0x29c0] sm:$0xff]
    %v1470 = vld [vmem:[#allocation5 + $0x29c8] sm:$0xff]
    %v1471 = vld [vmem:[#allocation5 + $0x29d0] sm:$0xff]
    %v1472 = vld [vmem:[#allocation5 + $0x29d8] sm:$0xff]
    %v1473 = vld [vmem:[#allocation5 + $0x29e0] sm:$0xff]
    %v1474 = vld [vmem:[#allocation5 + $0x29e8] sm:$0xff]
    %v1475 = vld [vmem:[#allocation5 + $0x29f0] sm:$0xff]
    %v1476 = vld [vmem:[#allocation5 + $0x29f8] sm:$0xff]
    %v1477 = vld [vmem:[#allocation5 + $0x2a00] sm:$0xff]
    %v1478 = vld [vmem:[#allocation5 + $0x2a08] sm:$0xff]
    %v1479 = vld [vmem:[#allocation5 + $0x2a10] sm:$0xff]
    %v1480 = vld [vmem:[#allocation5 + $0x2a18] sm:$0xff]
    %v1481 = vld [vmem:[#allocation5 + $0x2a20] sm:$0xff]
    %v1482 = vld [vmem:[#allocation5 + $0x2a28] sm:$0xff]
    %v1483 = vld [vmem:[#allocation5 + $0x2a30] sm:$0xff]
    %v1484 = vld [vmem:[#allocation5 + $0x2a38] sm:$0xff]
    %v1485 = vld [vmem:[#allocation5 + $0x2a40] sm:$0xff]
    %v1486 = vld [vmem:[#allocation5 + $0x2a48] sm:$0xff]
    %v1487 = vld [vmem:[#allocation5 + $0x2a50] sm:$0xff]
    %v1488 = vld [vmem:[#allocation5 + $0x2a58] sm:$0xff]
    %v1489 = vld [vmem:[#allocation5 + $0x2a60] sm:$0xff]
    %v1490 = vld [vmem:[#allocation5 + $0x2a68] sm:$0xff]
    %v1491 = vld [vmem:[#allocation5 + $0x2a70] sm:$0xff]
    %v1492 = vld [vmem:[#allocation5 + $0x2a78] sm:$0xff]
    %v1493 = vld [vmem:[#allocation5 + $0x2a80] sm:$0xff]
    %v1494 = vld [vmem:[#allocation5 + $0x2a88] sm:$0xff]
    %v1495 = vld [vmem:[#allocation5 + $0x2a90] sm:$0xff]
    %v1496 = vld [vmem:[#allocation5 + $0x2a98] sm:$0xff]
    %v1497 = vld [vmem:[#allocation5 + $0x2aa0] sm:$0xff]
    %v1498 = vld [vmem:[#allocation5 + $0x2aa8] sm:$0xff]
    %v1499 = vld [vmem:[#allocation5 + $0x2ab0] sm:$0xff]
    %v1500 = vld [vmem:[#allocation5 + $0x2ab8] sm:$0xff]
    %v1501 = vld [vmem:[#allocation5 + $0x2ac0] sm:$0xff]
    %v1502 = vld [vmem:[#allocation5 + $0x2ac8] sm:$0xff]
    %v1503 = vld [vmem:[#allocation5 + $0x2ad0] sm:$0xff]
    %v1504 = vld [vmem:[#allocation5 + $0x2ad8] sm:$0xff]
    %v1505 = vld [vmem:[#allocation5 + $0x2ae0] sm:$0xff]
    %v1506 = vld [vmem:[#allocation5 + $0x2ae8] sm:$0xff]
    %v1507 = vld [vmem:[#allocation5 + $0x2af0] sm:$0xff]
    %v1508 = vld [vmem:[#allocation5 + $0x2af8] sm:$0xff]
    %v1509 = vld [vmem:[#allocation5 + $0x2b00] sm:$0xff]
    %v1510 = vld [vmem:[#allocation5 + $0x2b08] sm:$0xff]
    %v1511 = vld [vmem:[#allocation5 + $0x2b10] sm:$0xff]
    %v1512 = vld [vmem:[#allocation5 + $0x2b18] sm:$0xff]
    %v1513 = vld [vmem:[#allocation5 + $0x2b20] sm:$0xff]
    %v1514 = vld [vmem:[#allocation5 + $0x2b28] sm:$0xff]
    %v1515 = vld [vmem:[#allocation5 + $0x2b30] sm:$0xff]
    %v1516 = vld [vmem:[#allocation5 + $0x2b38] sm:$0xff]
    %v1517 = vld [vmem:[#allocation5 + $0x2b40] sm:$0xff]
    %v1518 = vld [vmem:[#allocation5 + $0x2b48] sm:$0xff]
    %v1519 = vld [vmem:[#allocation5 + $0x2b50] sm:$0xff]
    %v1520 = vld [vmem:[#allocation5 + $0x2b58] sm:$0xff]
    %v1521 = vld [vmem:[#allocation5 + $0x2b60] sm:$0xff]
    %v1522 = vld [vmem:[#allocation5 + $0x2b68] sm:$0xff]
    %v1523 = vld [vmem:[#allocation5 + $0x2b70] sm:$0xff]
    %v1524 = vld [vmem:[#allocation5 + $0x2b78] sm:$0xff]
    %v1525 = vld [vmem:[#allocation5 + $0x2b80] sm:$0xff]
    %v1526 = vld [vmem:[#allocation5 + $0x2b88] sm:$0xff]
    %v1527 = vld [vmem:[#allocation5 + $0x2b90] sm:$0xff]
    %v1528 = vld [vmem:[#allocation5 + $0x2b98] sm:$0xff]
    %v1529 = vld [vmem:[#allocation5 + $0x2ba0] sm:$0xff]
    %v1530 = vld [vmem:[#allocation5 + $0x2ba8] sm:$0xff]
    %v1531 = vld [vmem:[#allocation5 + $0x2bb0] sm:$0xff]
    %v1532 = vld [vmem:[#allocation5 + $0x2bb8] sm:$0xff]
    %v1533 = vld [vmem:[#allocation5 + $0x2bc0] sm:$0xff]
    %v1534 = vld [vmem:[#allocation5 + $0x2bc8] sm:$0xff]
    %v1535 = vld [vmem:[#allocation5 + $0x2bd0] sm:$0xff]
    %v1536 = vld [vmem:[#allocation5 + $0x2bd8] sm:$0xff]
    %v1537 = vld [vmem:[#allocation5 + $0x2be0] sm:$0xff]
    %v1538 = vld [vmem:[#allocation5 + $0x2be8] sm:$0xff]
    %v1539 = vld [vmem:[#allocation5 + $0x2bf0] sm:$0xff]
    %v1540 = vld [vmem:[#allocation5 + $0x2bf8] sm:$0xff]
    %v1541 = vld [vmem:[#allocation5 + $0x2c00] sm:$0xff]
    %v1542 = vld [vmem:[#allocation5 + $0x2c08] sm:$0xff]
    %v1543 = vld [vmem:[#allocation5 + $0x2c10] sm:$0xff]
    %v1544 = vld [vmem:[#allocation5 + $0x2c18] sm:$0xff]
    %v1545 = vld [vmem:[#allocation5 + $0x2c20] sm:$0xff]
    %v1546 = vld [vmem:[#allocation5 + $0x2c28] sm:$0xff]
    %v1547 = vld [vmem:[#allocation5 + $0x2c30] sm:$0xff]
    %v1548 = vld [vmem:[#allocation5 + $0x2c38] sm:$0xff]
    %v1549 = vld [vmem:[#allocation5 + $0x2c40] sm:$0xff]
    %v1550 = vld [vmem:[#allocation5 + $0x2c48] sm:$0xff]
    %v1551 = vld [vmem:[#allocation5 + $0x2c50] sm:$0xff]
    %v1552 = vld [vmem:[#allocation5 + $0x2c58] sm:$0xff]
    %v1553 = vld [vmem:[#allocation5 + $0x2c60] sm:$0xff]
    %v1554 = vld [vmem:[#allocation5 + $0x2c68] sm:$0xff]
    %v1555 = vld [vmem:[#allocation5 + $0x2c70] sm:$0xff]
    %v1556 = vld [vmem:[#allocation5 + $0x2c78] sm:$0xff]
    %v1557 = vld [vmem:[#allocation5 + $0x2c80] sm:$0xff]
    %v1558 = vld [vmem:[#allocation5 + $0x2c88] sm:$0xff]
    %v1559 = vld [vmem:[#allocation5 + $0x2c90] sm:$0xff]
    %v1560 = vld [vmem:[#allocation5 + $0x2c98] sm:$0xff]
    %v1561 = vld [vmem:[#allocation5 + $0x2ca0] sm:$0xff]
    %v1562 = vld [vmem:[#allocation5 + $0x2ca8] sm:$0xff]
    %v1563 = vld [vmem:[#allocation5 + $0x2cb0] sm:$0xff]
    %v1564 = vld [vmem:[#allocation5 + $0x2cb8] sm:$0xff]
    %v1565 = vld [vmem:[#allocation5 + $0x2cc0] sm:$0xff]
    %v1566 = vld [vmem:[#allocation5 + $0x2cc8] sm:$0xff]
    %v1567 = vld [vmem:[#allocation5 + $0x2cd0] sm:$0xff]
    %v1568 = vld [vmem:[#allocation5 + $0x2cd8] sm:$0xff]
    %v1569 = vld [vmem:[#allocation5 + $0x2ce0] sm:$0xff]
    %v1570 = vld [vmem:[#allocation5 + $0x2ce8] sm:$0xff]
    %v1571 = vld [vmem:[#allocation5 + $0x2cf0] sm:$0xff]
    %v1572 = vld [vmem:[#allocation5 + $0x2cf8] sm:$0xff]
    %v1573 = vld [vmem:[#allocation5 + $0x2d00] sm:$0xff]
    %v1574 = vld [vmem:[#allocation5 + $0x2d08] sm:$0xff]
    %v1575 = vld [vmem:[#allocation5 + $0x2d10] sm:$0xff]
    %v1576 = vld [vmem:[#allocation5 + $0x2d18] sm:$0xff]
    %v1577 = vld [vmem:[#allocation5 + $0x2d20] sm:$0xff]
    %v1578 = vld [vmem:[#allocation5 + $0x2d28] sm:$0xff]
    %v1579 = vld [vmem:[#allocation5 + $0x2d30] sm:$0xff]
    %v1580 = vld [vmem:[#allocation5 + $0x2d38] sm:$0xff]
    %v1581 = vld [vmem:[#allocation5 + $0x2d40] sm:$0xff]
    %v1582 = vld [vmem:[#allocation5 + $0x2d48] sm:$0xff]
    %v1583 = vld [vmem:[#allocation5 + $0x2d50] sm:$0xff]
    %v1584 = vld [vmem:[#allocation5 + $0x2d58] sm:$0xff]
    %v1585 = vld [vmem:[#allocation5 + $0x2d60] sm:$0xff]
    %v1586 = vld [vmem:[#allocation5 + $0x2d68] sm:$0xff]
    %v1587 = vld [vmem:[#allocation5 + $0x2d70] sm:$0xff]
    %v1588 = vld [vmem:[#allocation5 + $0x2d78] sm:$0xff]
    %v1589 = vld [vmem:[#allocation5 + $0x2d80] sm:$0xff]
    %v1590 = vld [vmem:[#allocation5 + $0x2d88] sm:$0xff]
    %v1591 = vld [vmem:[#allocation5 + $0x2d90] sm:$0xff]
    %v1592 = vld [vmem:[#allocation5 + $0x2d98] sm:$0xff]
    %v1593 = vld [vmem:[#allocation5 + $0x2da0] sm:$0xff]
    %v1594 = vld [vmem:[#allocation5 + $0x2da8] sm:$0xff]
    %v1595 = vld [vmem:[#allocation5 + $0x2db0] sm:$0xff]
    %v1596 = vld [vmem:[#allocation5 + $0x2db8] sm:$0xff]
    %v1597 = vld [vmem:[#allocation5 + $0x2dc0] sm:$0xff]
    %v1598 = vld [vmem:[#allocation5 + $0x2dc8] sm:$0xff]
    %v1599 = vld [vmem:[#allocation5 + $0x2dd0] sm:$0xff]
    %v1600 = vld [vmem:[#allocation5 + $0x2dd8] sm:$0xff]
    %v1601 = vld [vmem:[#allocation5 + $0x2de0] sm:$0xff]
    %v1602 = vld [vmem:[#allocation5 + $0x2de8] sm:$0xff]
    %v1603 = vld [vmem:[#allocation5 + $0x2df0] sm:$0xff]
    %v1604 = vld [vmem:[#allocation5 + $0x2df8] sm:$0xff]
    %v1605 = vld [vmem:[#allocation5 + $0x2e00] sm:$0xff]
    %v1606 = vld [vmem:[#allocation5 + $0x2e08] sm:$0xff]
    %v1607 = vld [vmem:[#allocation5 + $0x2e10] sm:$0xff]
    %v1608 = vld [vmem:[#allocation5 + $0x2e18] sm:$0xff]
    %v1609 = vld [vmem:[#allocation5 + $0x2e20] sm:$0xff]
    %v1610 = vld [vmem:[#allocation5 + $0x2e28] sm:$0xff]
    %v1611 = vld [vmem:[#allocation5 + $0x2e30] sm:$0xff]
    %v1612 = vld [vmem:[#allocation5 + $0x2e38] sm:$0xff]
    %v1613 = vld [vmem:[#allocation5 + $0x2e40] sm:$0xff]
    %v1614 = vld [vmem:[#allocation5 + $0x2e48] sm:$0xff]
    %v1615 = vld [vmem:[#allocation5 + $0x2e50] sm:$0xff]
    %v1616 = vld [vmem:[#allocation5 + $0x2e58] sm:$0xff]
    %v1617 = vld [vmem:[#allocation5 + $0x2e60] sm:$0xff]
    %v1618 = vld [vmem:[#allocation5 + $0x2e68] sm:$0xff]
    %v1619 = vld [vmem:[#allocation5 + $0x2e70] sm:$0xff]
    %v1620 = vld [vmem:[#allocation5 + $0x2e78] sm:$0xff]
    %v1621 = vld [vmem:[#allocation5 + $0x2e80] sm:$0xff]
    %v1622 = vld [vmem:[#allocation5 + $0x2e88] sm:$0xff]
    %v1623 = vld [vmem:[#allocation5 + $0x2e90] sm:$0xff]
    %v1624 = vld [vmem:[#allocation5 + $0x2e98] sm:$0xff]
    %v1625 = vld [vmem:[#allocation5 + $0x2ea0] sm:$0xff]
    %v1626 = vld [vmem:[#allocation5 + $0x2ea8] sm:$0xff]
    %v1627 = vld [vmem:[#allocation5 + $0x2eb0] sm:$0xff]
    %v1628 = vld [vmem:[#allocation5 + $0x2eb8] sm:$0xff]
    %v1629 = vld [vmem:[#allocation5 + $0x2ec0] sm:$0xff]
    %v1630 = vld [vmem:[#allocation5 + $0x2ec8] sm:$0xff]
    %v1631 = vld [vmem:[#allocation5 + $0x2ed0] sm:$0xff]
    %v1632 = vld [vmem:[#allocation5 + $0x2ed8] sm:$0xff]
    %v1633 = vld [vmem:[#allocation5 + $0x2ee0] sm:$0xff]
    %v1634 = vld [vmem:[#allocation5 + $0x2ee8] sm:$0xff]
    %v1635 = vld [vmem:[#allocation5 + $0x2ef0] sm:$0xff]
    %v1636 = vld [vmem:[#allocation5 + $0x2ef8] sm:$0xff]
    %v1637 = vld [vmem:[#allocation5 + $0x2f00] sm:$0xff]
    %v1638 = vld [vmem:[#allocation5 + $0x2f08] sm:$0xff]
    %v1639 = vld [vmem:[#allocation5 + $0x2f10] sm:$0xff]
    %v1640 = vld [vmem:[#allocation5 + $0x2f18] sm:$0xff]
    %v1641 = vld [vmem:[#allocation5 + $0x2f20] sm:$0xff]
    %v1642 = vld [vmem:[#allocation5 + $0x2f28] sm:$0xff]
    %v1643 = vld [vmem:[#allocation5 + $0x2f30] sm:$0xff]
    %v1644 = vld [vmem:[#allocation5 + $0x2f38] sm:$0xff]
    %v1645 = vld [vmem:[#allocation5 + $0x2f40] sm:$0xff]
    %v1646 = vld [vmem:[#allocation5 + $0x2f48] sm:$0xff]
    %v1647 = vld [vmem:[#allocation5 + $0x2f50] sm:$0xff]
    %v1648 = vld [vmem:[#allocation5 + $0x2f58] sm:$0xff]
    %v1649 = vld [vmem:[#allocation5 + $0x2f60] sm:$0xff]
    %v1650 = vld [vmem:[#allocation5 + $0x2f68] sm:$0xff]
    %v1651 = vld [vmem:[#allocation5 + $0x2f70] sm:$0xff]
    %v1652 = vld [vmem:[#allocation5 + $0x2f78] sm:$0xff]
    %v1653 = vld [vmem:[#allocation5 + $0x2f80] sm:$0xff]
    %v1654 = vld [vmem:[#allocation5 + $0x2f88] sm:$0xff]
    %v1655 = vld [vmem:[#allocation5 + $0x2f90] sm:$0xff]
    %v1656 = vld [vmem:[#allocation5 + $0x2f98] sm:$0xff]
    %v1657 = vld [vmem:[#allocation5 + $0x2fa0] sm:$0xff]
    %v1658 = vld [vmem:[#allocation5 + $0x2fa8] sm:$0xff]
    %v1659 = vld [vmem:[#allocation5 + $0x2fb0] sm:$0xff]
    %v1660 = vld [vmem:[#allocation5 + $0x2fb8] sm:$0xff]
    %v1661 = vld [vmem:[#allocation5 + $0x2fc0] sm:$0xff]
    %v1662 = vld [vmem:[#allocation5 + $0x2fc8] sm:$0xff]
    %v1663 = vld [vmem:[#allocation5 + $0x2fd0] sm:$0xff]
    %v1664 = vld [vmem:[#allocation5 + $0x2fd8] sm:$0xff]
    %v1665 = vld [vmem:[#allocation5 + $0x2fe0] sm:$0xff]
    %v1666 = vld [vmem:[#allocation5 + $0x2fe8] sm:$0xff]
    %v1667 = vld [vmem:[#allocation5 + $0x2ff0] sm:$0xff]
    %v1668 = vld [vmem:[#allocation5 + $0x2ff8] sm:$0xff]
    %v1669 = vld [vmem:[#allocation7] sm:$0xff]
    %v1670 = vld [vmem:[#allocation7 + $0x8] sm:$0xf]
    %v1673 = vlaneseq
    %v1674 = vshrl.u32 %v1673, 7
    %v1675 = vsub.s32 0, %v1674
    %v1676 = vrot.slane %v1669, %v1675
    %v1677 = vlaneseq
    %v1678 = vshrl.u32 %v1677, 7
    %v1679 = vsub.s32 1, %v1678
    %v1680 = vrot.slane %v1669, %v1679
    %v1681 = vlaneseq
    %v1682 = vshrl.u32 %v1681, 7
    %v1683 = vsub.s32 2, %v1682
    %v1684 = vrot.slane %v1669, %v1683
    %v1685 = vlaneseq
    %v1686 = vshrl.u32 %v1685, 7
    %v1687 = vsub.s32 3, %v1686
    %v1688 = vrot.slane %v1669, %v1687
    %v1689 = vlaneseq
    %v1690 = vshrl.u32 %v1689, 7
    %v1691 = vsub.s32 4, %v1690
    %v1692 = vrot.slane %v1669, %v1691
    %v1693 = vlaneseq
    %v1694 = vshrl.u32 %v1693, 7
    %v1695 = vsub.s32 5, %v1694
    %v1696 = vrot.slane %v1669, %v1695
    %v1697 = vlaneseq
    %v1698 = vshrl.u32 %v1697, 7
    %v1699 = vsub.s32 6, %v1698
    %v1700 = vrot.slane %v1669, %v1699
    %v1701 = vlaneseq
    %v1702 = vshrl.u32 %v1701, 7
    %v1703 = vsub.s32 7, %v1702
    %v1704 = vrot.slane %v1669, %v1703
    %v1705 = vlaneseq
    %v1706 = vshrl.u32 %v1705, 7
    %v1707 = vsub.s32 0, %v1706
    %v1708 = vrot.slane %v1670, %v1707
    %v1709 = vlaneseq
    %v1710 = vshrl.u32 %v1709, 7
    %v1711 = vsub.s32 1, %v1710
    %v1712 = vrot.slane %v1670, %v1711
    %v1713 = vlaneseq
    %v1714 = vshrl.u32 %v1713, 7
    %v1715 = vsub.s32 2, %v1714
    %v1716 = vrot.slane %v1670, %v1715
    %v1717 = vlaneseq
    %v1718 = vshrl.u32 %v1717, 7
    %v1719 = vsub.s32 3, %v1718
    %v1720 = vrot.slane %v1670, %v1719
    %v1749 = vunpack.c.l.b16 %v117
    %v1750 = vunpack.c.h.b16 %v117
    %v1751 = vunpack.c.l.b16 %v118
    %v1752 = vunpack.c.h.b16 %v118
    %v1753 = vunpack.c.l.b16 %v119
    %v1754 = vunpack.c.h.b16 %v119
    %v1755 = vunpack.c.l.b16 %v120
    %v1756 = vunpack.c.h.b16 %v120
    %v1757 = vunpack.c.l.b16 %v121
    %v1758 = vunpack.c.h.b16 %v121
    %v1759 = vunpack.c.l.b16 %v122
    %v1760 = vunpack.c.h.b16 %v122
    %v1761 = vunpack.c.l.b16 %v123
    %v1762 = vunpack.c.h.b16 %v123
    %v1763 = vunpack.c.l.b16 %v124
    %v1764 = vunpack.c.h.b16 %v124
    %v1765 = vunpack.c.l.b16 %v125
    %v1766 = vunpack.c.h.b16 %v125
    %v1767 = vunpack.c.l.b16 %v126
    %v1768 = vunpack.c.h.b16 %v126
    %v1769 = vunpack.c.l.b16 %v127
    %v1770 = vunpack.c.h.b16 %v127
    %v1771 = vunpack.c.l.b16 %v128
    %v1772 = vunpack.c.h.b16 %v128
    %v1773 = vunpack.c.l.b16 %v129
    %v1774 = vunpack.c.h.b16 %v129
    %v1775 = vunpack.c.l.b16 %v130
    %v1776 = vunpack.c.h.b16 %v130
    %v1777 = vunpack.c.l.b16 %v131
    %v1778 = vunpack.c.h.b16 %v131
    %v1779 = vunpack.c.l.b16 %v132
    %v1780 = vunpack.c.h.b16 %v132
    %v1781 = vpack.c.b16 %v1765, %v1749
    %v1782 = vpack.c.b16 %v1766, %v1750
    %v1783 = vpack.c.b16 %v1767, %v1751
    %v1784 = vpack.c.b16 %v1768, %v1752
    %v1785 = vpack.c.b16 %v1769, %v1753
    %v1786 = vpack.c.b16 %v1770, %v1754
    %v1787 = vpack.c.b16 %v1771, %v1755
    %v1788 = vpack.c.b16 %v1772, %v1756
    %v1789 = vpack.c.b16 %v1773, %v1757
    %v1790 = vpack.c.b16 %v1774, %v1758
    %v1791 = vpack.c.b16 %v1775, %v1759
    %v1792 = vpack.c.b16 %v1776, %v1760
    %v1793 = vpack.c.b16 %v1777, %v1761
    %v1794 = vpack.c.b16 %v1778, %v1762
    %v1795 = vpack.c.b16 %v1779, %v1763
    %v1796 = vpack.c.b16 %v1780, %v1764
    %v3349 = vunpack.c.l.b16 %v133
    %v3350 = vunpack.c.h.b16 %v133
    %v3351 = vunpack.c.l.b16 %v134
    %v3352 = vunpack.c.h.b16 %v134
    %v3353 = vunpack.c.l.b16 %v135
    %v3354 = vunpack.c.h.b16 %v135
    %v3355 = vunpack.c.l.b16 %v136
    %v3356 = vunpack.c.h.b16 %v136
    %v3357 = vunpack.c.l.b16 %v137
    %v3358 = vunpack.c.h.b16 %v137
    %v3359 = vunpack.c.l.b16 %v138
    %v3360 = vunpack.c.h.b16 %v138
    %v3361 = vunpack.c.l.b16 %v139
    %v3362 = vunpack.c.h.b16 %v139
    %v3363 = vunpack.c.l.b16 %v140
    %v3364 = vunpack.c.h.b16 %v140
    %v3365 = vunpack.c.l.b16 %v141
    %v3366 = vunpack.c.h.b16 %v141
    %v3367 = vunpack.c.l.b16 %v142
    %v3368 = vunpack.c.h.b16 %v142
    %v3369 = vunpack.c.l.b16 %v143
    %v3370 = vunpack.c.h.b16 %v143
    %v3371 = vunpack.c.l.b16 %v144
    %v3372 = vunpack.c.h.b16 %v144
    %v3373 = vunpack.c.l.b16 %v145
    %v3374 = vunpack.c.h.b16 %v145
    %v3375 = vunpack.c.l.b16 %v146
    %v3376 = vunpack.c.h.b16 %v146
    %v3377 = vunpack.c.l.b16 %v147
    %v3378 = vunpack.c.h.b16 %v147
    %v3379 = vunpack.c.l.b16 %v148
    %v3380 = vunpack.c.h.b16 %v148
    %v3381 = vunpack.c.l.b16 %v149
    %v3382 = vunpack.c.h.b16 %v149
    %v3383 = vunpack.c.l.b16 %v150
    %v3384 = vunpack.c.h.b16 %v150
    %v3385 = vunpack.c.l.b16 %v151
    %v3386 = vunpack.c.h.b16 %v151
    %v3387 = vunpack.c.l.b16 %v152
    %v3388 = vunpack.c.h.b16 %v152
    %v3389 = vunpack.c.l.b16 %v153
    %v3390 = vunpack.c.h.b16 %v153
    %v3391 = vunpack.c.l.b16 %v154
    %v3392 = vunpack.c.h.b16 %v154
    %v3393 = vunpack.c.l.b16 %v155
    %v3394 = vunpack.c.h.b16 %v155
    %v3395 = vunpack.c.l.b16 %v156
    %v3396 = vunpack.c.h.b16 %v156
    %v3397 = vunpack.c.l.b16 %v157
    %v3398 = vunpack.c.h.b16 %v157
    %v3399 = vunpack.c.l.b16 %v158
    %v3400 = vunpack.c.h.b16 %v158
    %v3401 = vunpack.c.l.b16 %v159
    %v3402 = vunpack.c.h.b16 %v159
    %v3403 = vunpack.c.l.b16 %v160
    %v3404 = vunpack.c.h.b16 %v160
    %v3405 = vunpack.c.l.b16 %v161
    %v3406 = vunpack.c.h.b16 %v161
    %v3407 = vunpack.c.l.b16 %v162
    %v3408 = vunpack.c.h.b16 %v162
    %v3409 = vunpack.c.l.b16 %v163
    %v3410 = vunpack.c.h.b16 %v163
    %v3411 = vunpack.c.l.b16 %v164
    %v3412 = vunpack.c.h.b16 %v164
    %v3413 = vunpack.c.l.b16 %v165
    %v3414 = vunpack.c.h.b16 %v165
    %v3415 = vunpack.c.l.b16 %v166
    %v3416 = vunpack.c.h.b16 %v166
    %v3417 = vunpack.c.l.b16 %v167
    %v3418 = vunpack.c.h.b16 %v167
    %v3419 = vunpack.c.l.b16 %v168
    %v3420 = vunpack.c.h.b16 %v168
    %v3421 = vunpack.c.l.b16 %v169
    %v3422 = vunpack.c.h.b16 %v169
    %v3423 = vunpack.c.l.b16 %v170
    %v3424 = vunpack.c.h.b16 %v170
    %v3425 = vunpack.c.l.b16 %v171
    %v3426 = vunpack.c.h.b16 %v171
    %v3427 = vunpack.c.l.b16 %v172
    %v3428 = vunpack.c.h.b16 %v172
    %v3429 = vunpack.c.l.b16 %v173
    %v3430 = vunpack.c.h.b16 %v173
    %v3431 = vunpack.c.l.b16 %v174
    %v3432 = vunpack.c.h.b16 %v174
    %v3433 = vunpack.c.l.b16 %v175
    %v3434 = vunpack.c.h.b16 %v175
    %v3435 = vunpack.c.l.b16 %v176
    %v3436 = vunpack.c.h.b16 %v176
    %v3437 = vunpack.c.l.b16 %v177
    %v3438 = vunpack.c.h.b16 %v177
    %v3439 = vunpack.c.l.b16 %v178
    %v3440 = vunpack.c.h.b16 %v178
    %v3441 = vunpack.c.l.b16 %v179
    %v3442 = vunpack.c.h.b16 %v179
    %v3443 = vunpack.c.l.b16 %v180
    %v3444 = vunpack.c.h.b16 %v180
    %v3445 = vunpack.c.l.b16 %v181
    %v3446 = vunpack.c.h.b16 %v181
    %v3447 = vunpack.c.l.b16 %v182
    %v3448 = vunpack.c.h.b16 %v182
    %v3449 = vunpack.c.l.b16 %v183
    %v3450 = vunpack.c.h.b16 %v183
    %v3451 = vunpack.c.l.b16 %v184
    %v3452 = vunpack.c.h.b16 %v184
    %v3453 = vunpack.c.l.b16 %v185
    %v3454 = vunpack.c.h.b16 %v185
    %v3455 = vunpack.c.l.b16 %v186
    %v3456 = vunpack.c.h.b16 %v186
    %v3457 = vunpack.c.l.b16 %v187
    %v3458 = vunpack.c.h.b16 %v187
    %v3459 = vunpack.c.l.b16 %v188
    %v3460 = vunpack.c.h.b16 %v188
    %v3461 = vunpack.c.l.b16 %v189
    %v3462 = vunpack.c.h.b16 %v189
    %v3463 = vunpack.c.l.b16 %v190
    %v3464 = vunpack.c.h.b16 %v190
    %v3465 = vunpack.c.l.b16 %v191
    %v3466 = vunpack.c.h.b16 %v191
    %v3467 = vunpack.c.l.b16 %v192
    %v3468 = vunpack.c.h.b16 %v192
    %v3469 = vunpack.c.l.b16 %v193
    %v3470 = vunpack.c.h.b16 %v193
    %v3471 = vunpack.c.l.b16 %v194
    %v3472 = vunpack.c.h.b16 %v194
    %v3473 = vunpack.c.l.b16 %v195
    %v3474 = vunpack.c.h.b16 %v195
    %v3475 = vunpack.c.l.b16 %v196
    %v3476 = vunpack.c.h.b16 %v196
    %v3477 = vunpack.c.l.b16 %v197
    %v3478 = vunpack.c.h.b16 %v197
    %v3479 = vunpack.c.l.b16 %v198
    %v3480 = vunpack.c.h.b16 %v198
    %v3481 = vunpack.c.l.b16 %v199
    %v3482 = vunpack.c.h.b16 %v199
    %v3483 = vunpack.c.l.b16 %v200
    %v3484 = vunpack.c.h.b16 %v200
    %v3485 = vunpack.c.l.b16 %v201
    %v3486 = vunpack.c.h.b16 %v201
    %v3487 = vunpack.c.l.b16 %v202
    %v3488 = vunpack.c.h.b16 %v202
    %v3489 = vunpack.c.l.b16 %v203
    %v3490 = vunpack.c.h.b16 %v203
    %v3491 = vunpack.c.l.b16 %v204
    %v3492 = vunpack.c.h.b16 %v204
    %v3493 = vunpack.c.l.b16 %v205
    %v3494 = vunpack.c.h.b16 %v205
    %v3495 = vunpack.c.l.b16 %v206
    %v3496 = vunpack.c.h.b16 %v206
    %v3497 = vunpack.c.l.b16 %v207
    %v3498 = vunpack.c.h.b16 %v207
    %v3499 = vunpack.c.l.b16 %v208
    %v3500 = vunpack.c.h.b16 %v208
    %v3501 = vunpack.c.l.b16 %v209
    %v3502 = vunpack.c.h.b16 %v209
    %v3503 = vunpack.c.l.b16 %v210
    %v3504 = vunpack.c.h.b16 %v210
    %v3505 = vunpack.c.l.b16 %v211
    %v3506 = vunpack.c.h.b16 %v211
    %v3507 = vunpack.c.l.b16 %v212
    %v3508 = vunpack.c.h.b16 %v212
    %v3509 = vunpack.c.l.b16 %v213
    %v3510 = vunpack.c.h.b16 %v213
    %v3511 = vunpack.c.l.b16 %v214
    %v3512 = vunpack.c.h.b16 %v214
    %v3513 = vunpack.c.l.b16 %v215
    %v3514 = vunpack.c.h.b16 %v215
    %v3515 = vunpack.c.l.b16 %v216
    %v3516 = vunpack.c.h.b16 %v216
    %v3517 = vunpack.c.l.b16 %v217
    %v3518 = vunpack.c.h.b16 %v217
    %v3519 = vunpack.c.l.b16 %v218
    %v3520 = vunpack.c.h.b16 %v218
    %v3521 = vunpack.c.l.b16 %v219
    %v3522 = vunpack.c.h.b16 %v219
    %v3523 = vunpack.c.l.b16 %v220
    %v3524 = vunpack.c.h.b16 %v220
    %v3525 = vunpack.c.l.b16 %v221
    %v3526 = vunpack.c.h.b16 %v221
    %v3527 = vunpack.c.l.b16 %v222
    %v3528 = vunpack.c.h.b16 %v222
    %v3529 = vunpack.c.l.b16 %v223
    %v3530 = vunpack.c.h.b16 %v223
    %v3531 = vunpack.c.l.b16 %v224
    %v3532 = vunpack.c.h.b16 %v224
    %v3533 = vunpack.c.l.b16 %v225
    %v3534 = vunpack.c.h.b16 %v225
    %v3535 = vunpack.c.l.b16 %v226
    %v3536 = vunpack.c.h.b16 %v226
    %v3537 = vunpack.c.l.b16 %v227
    %v3538 = vunpack.c.h.b16 %v227
    %v3539 = vunpack.c.l.b16 %v228
    %v3540 = vunpack.c.h.b16 %v228
    %v3541 = vunpack.c.l.b16 %v229
    %v3542 = vunpack.c.h.b16 %v229
    %v3543 = vunpack.c.l.b16 %v230
    %v3544 = vunpack.c.h.b16 %v230
    %v3545 = vunpack.c.l.b16 %v231
    %v3546 = vunpack.c.h.b16 %v231
    %v3547 = vunpack.c.l.b16 %v232
    %v3548 = vunpack.c.h.b16 %v232
    %v3549 = vunpack.c.l.b16 %v233
    %v3550 = vunpack.c.h.b16 %v233
    %v3551 = vunpack.c.l.b16 %v234
    %v3552 = vunpack.c.h.b16 %v234
    %v3553 = vunpack.c.l.b16 %v235
    %v3554 = vunpack.c.h.b16 %v235
    %v3555 = vunpack.c.l.b16 %v236
    %v3556 = vunpack.c.h.b16 %v236
    %v3557 = vunpack.c.l.b16 %v237
    %v3558 = vunpack.c.h.b16 %v237
    %v3559 = vunpack.c.l.b16 %v238
    %v3560 = vunpack.c.h.b16 %v238
    %v3561 = vunpack.c.l.b16 %v239
    %v3562 = vunpack.c.h.b16 %v239
    %v3563 = vunpack.c.l.b16 %v240
    %v3564 = vunpack.c.h.b16 %v240
    %v3565 = vunpack.c.l.b16 %v241
    %v3566 = vunpack.c.h.b16 %v241
    %v3567 = vunpack.c.l.b16 %v242
    %v3568 = vunpack.c.h.b16 %v242
    %v3569 = vunpack.c.l.b16 %v243
    %v3570 = vunpack.c.h.b16 %v243
    %v3571 = vunpack.c.l.b16 %v244
    %v3572 = vunpack.c.h.b16 %v244
    %v3573 = vunpack.c.l.b16 %v245
    %v3574 = vunpack.c.h.b16 %v245
    %v3575 = vunpack.c.l.b16 %v246
    %v3576 = vunpack.c.h.b16 %v246
    %v3577 = vunpack.c.l.b16 %v247
    %v3578 = vunpack.c.h.b16 %v247
    %v3579 = vunpack.c.l.b16 %v248
    %v3580 = vunpack.c.h.b16 %v248
    %v3581 = vunpack.c.l.b16 %v249
    %v3582 = vunpack.c.h.b16 %v249
    %v3583 = vunpack.c.l.b16 %v250
    %v3584 = vunpack.c.h.b16 %v250
    %v3585 = vunpack.c.l.b16 %v251
    %v3586 = vunpack.c.h.b16 %v251
    %v3587 = vunpack.c.l.b16 %v252
    %v3588 = vunpack.c.h.b16 %v252
    %v3589 = vunpack.c.l.b16 %v253
    %v3590 = vunpack.c.h.b16 %v253
    %v3591 = vunpack.c.l.b16 %v254
    %v3592 = vunpack.c.h.b16 %v254
    %v3593 = vunpack.c.l.b16 %v255
    %v3594 = vunpack.c.h.b16 %v255
    %v3595 = vunpack.c.l.b16 %v256
    %v3596 = vunpack.c.h.b16 %v256
    %v3597 = vunpack.c.l.b16 %v257
    %v3598 = vunpack.c.h.b16 %v257
    %v3599 = vunpack.c.l.b16 %v258
    %v3600 = vunpack.c.h.b16 %v258
    %v3601 = vunpack.c.l.b16 %v259
    %v3602 = vunpack.c.h.b16 %v259
    %v3603 = vunpack.c.l.b16 %v260
    %v3604 = vunpack.c.h.b16 %v260
    %v3605 = vunpack.c.l.b16 %v261
    %v3606 = vunpack.c.h.b16 %v261
    %v3607 = vunpack.c.l.b16 %v262
    %v3608 = vunpack.c.h.b16 %v262
    %v3609 = vunpack.c.l.b16 %v263
    %v3610 = vunpack.c.h.b16 %v263
    %v3611 = vunpack.c.l.b16 %v264
    %v3612 = vunpack.c.h.b16 %v264
    %v3613 = vunpack.c.l.b16 %v265
    %v3614 = vunpack.c.h.b16 %v265
    %v3615 = vunpack.c.l.b16 %v266
    %v3616 = vunpack.c.h.b16 %v266
    %v3617 = vunpack.c.l.b16 %v267
    %v3618 = vunpack.c.h.b16 %v267
    %v3619 = vunpack.c.l.b16 %v268
    %v3620 = vunpack.c.h.b16 %v268
    %v3621 = vunpack.c.l.b16 %v269
    %v3622 = vunpack.c.h.b16 %v269
    %v3623 = vunpack.c.l.b16 %v270
    %v3624 = vunpack.c.h.b16 %v270
    %v3625 = vunpack.c.l.b16 %v271
    %v3626 = vunpack.c.h.b16 %v271
    %v3627 = vunpack.c.l.b16 %v272
    %v3628 = vunpack.c.h.b16 %v272
    %v3629 = vunpack.c.l.b16 %v273
    %v3630 = vunpack.c.h.b16 %v273
    %v3631 = vunpack.c.l.b16 %v274
    %v3632 = vunpack.c.h.b16 %v274
    %v3633 = vunpack.c.l.b16 %v275
    %v3634 = vunpack.c.h.b16 %v275
    %v3635 = vunpack.c.l.b16 %v276
    %v3636 = vunpack.c.h.b16 %v276
    %v3637 = vunpack.c.l.b16 %v277
    %v3638 = vunpack.c.h.b16 %v277
    %v3639 = vunpack.c.l.b16 %v278
    %v3640 = vunpack.c.h.b16 %v278
    %v3641 = vunpack.c.l.b16 %v279
    %v3642 = vunpack.c.h.b16 %v279
    %v3643 = vunpack.c.l.b16 %v280
    %v3644 = vunpack.c.h.b16 %v280
    %v3645 = vunpack.c.l.b16 %v281
    %v3646 = vunpack.c.h.b16 %v281
    %v3647 = vunpack.c.l.b16 %v282
    %v3648 = vunpack.c.h.b16 %v282
    %v3649 = vunpack.c.l.b16 %v283
    %v3650 = vunpack.c.h.b16 %v283
    %v3651 = vunpack.c.l.b16 %v284
    %v3652 = vunpack.c.h.b16 %v284
    %v3653 = vunpack.c.l.b16 %v285
    %v3654 = vunpack.c.h.b16 %v285
    %v3655 = vunpack.c.l.b16 %v286
    %v3656 = vunpack.c.h.b16 %v286
    %v3657 = vunpack.c.l.b16 %v287
    %v3658 = vunpack.c.h.b16 %v287
    %v3659 = vunpack.c.l.b16 %v288
    %v3660 = vunpack.c.h.b16 %v288
    %v3661 = vunpack.c.l.b16 %v289
    %v3662 = vunpack.c.h.b16 %v289
    %v3663 = vunpack.c.l.b16 %v290
    %v3664 = vunpack.c.h.b16 %v290
    %v3665 = vunpack.c.l.b16 %v291
    %v3666 = vunpack.c.h.b16 %v291
    %v3667 = vunpack.c.l.b16 %v292
    %v3668 = vunpack.c.h.b16 %v292
    %v3669 = vunpack.c.l.b16 %v293
    %v3670 = vunpack.c.h.b16 %v293
    %v3671 = vunpack.c.l.b16 %v294
    %v3672 = vunpack.c.h.b16 %v294
    %v3673 = vunpack.c.l.b16 %v295
    %v3674 = vunpack.c.h.b16 %v295
    %v3675 = vunpack.c.l.b16 %v296
    %v3676 = vunpack.c.h.b16 %v296
    %v3677 = vunpack.c.l.b16 %v297
    %v3678 = vunpack.c.h.b16 %v297
    %v3679 = vunpack.c.l.b16 %v298
    %v3680 = vunpack.c.h.b16 %v298
    %v3681 = vunpack.c.l.b16 %v299
    %v3682 = vunpack.c.h.b16 %v299
    %v3683 = vunpack.c.l.b16 %v300
    %v3684 = vunpack.c.h.b16 %v300
    %v3685 = vunpack.c.l.b16 %v301
    %v3686 = vunpack.c.h.b16 %v301
    %v3687 = vunpack.c.l.b16 %v302
    %v3688 = vunpack.c.h.b16 %v302
    %v3689 = vunpack.c.l.b16 %v303
    %v3690 = vunpack.c.h.b16 %v303
    %v3691 = vunpack.c.l.b16 %v304
    %v3692 = vunpack.c.h.b16 %v304
    %v3693 = vunpack.c.l.b16 %v305
    %v3694 = vunpack.c.h.b16 %v305
    %v3695 = vunpack.c.l.b16 %v306
    %v3696 = vunpack.c.h.b16 %v306
    %v3697 = vunpack.c.l.b16 %v307
    %v3698 = vunpack.c.h.b16 %v307
    %v3699 = vunpack.c.l.b16 %v308
    %v3700 = vunpack.c.h.b16 %v308
    %v3701 = vunpack.c.l.b16 %v309
    %v3702 = vunpack.c.h.b16 %v309
    %v3703 = vunpack.c.l.b16 %v310
    %v3704 = vunpack.c.h.b16 %v310
    %v3705 = vunpack.c.l.b16 %v311
    %v3706 = vunpack.c.h.b16 %v311
    %v3707 = vunpack.c.l.b16 %v312
    %v3708 = vunpack.c.h.b16 %v312
    %v3709 = vunpack.c.l.b16 %v313
    %v3710 = vunpack.c.h.b16 %v313
    %v3711 = vunpack.c.l.b16 %v314
    %v3712 = vunpack.c.h.b16 %v314
    %v3713 = vunpack.c.l.b16 %v315
    %v3714 = vunpack.c.h.b16 %v315
    %v3715 = vunpack.c.l.b16 %v316
    %v3716 = vunpack.c.h.b16 %v316
    %v3717 = vunpack.c.l.b16 %v317
    %v3718 = vunpack.c.h.b16 %v317
    %v3719 = vunpack.c.l.b16 %v318
    %v3720 = vunpack.c.h.b16 %v318
    %v3721 = vunpack.c.l.b16 %v319
    %v3722 = vunpack.c.h.b16 %v319
    %v3723 = vunpack.c.l.b16 %v320
    %v3724 = vunpack.c.h.b16 %v320
    %v3725 = vunpack.c.l.b16 %v321
    %v3726 = vunpack.c.h.b16 %v321
    %v3727 = vunpack.c.l.b16 %v322
    %v3728 = vunpack.c.h.b16 %v322
    %v3729 = vunpack.c.l.b16 %v323
    %v3730 = vunpack.c.h.b16 %v323
    %v3731 = vunpack.c.l.b16 %v324
    %v3732 = vunpack.c.h.b16 %v324
    %v3733 = vunpack.c.l.b16 %v325
    %v3734 = vunpack.c.h.b16 %v325
    %v3735 = vunpack.c.l.b16 %v326
    %v3736 = vunpack.c.h.b16 %v326
    %v3737 = vunpack.c.l.b16 %v327
    %v3738 = vunpack.c.h.b16 %v327
    %v3739 = vunpack.c.l.b16 %v328
    %v3740 = vunpack.c.h.b16 %v328
    %v3741 = vunpack.c.l.b16 %v329
    %v3742 = vunpack.c.h.b16 %v329
    %v3743 = vunpack.c.l.b16 %v330
    %v3744 = vunpack.c.h.b16 %v330
    %v3745 = vunpack.c.l.b16 %v331
    %v3746 = vunpack.c.h.b16 %v331
    %v3747 = vunpack.c.l.b16 %v332
    %v3748 = vunpack.c.h.b16 %v332
    %v3749 = vunpack.c.l.b16 %v333
    %v3750 = vunpack.c.h.b16 %v333
    %v3751 = vunpack.c.l.b16 %v334
    %v3752 = vunpack.c.h.b16 %v334
    %v3753 = vunpack.c.l.b16 %v335
    %v3754 = vunpack.c.h.b16 %v335
    %v3755 = vunpack.c.l.b16 %v336
    %v3756 = vunpack.c.h.b16 %v336
    %v3757 = vunpack.c.l.b16 %v337
    %v3758 = vunpack.c.h.b16 %v337
    %v3759 = vunpack.c.l.b16 %v338
    %v3760 = vunpack.c.h.b16 %v338
    %v3761 = vunpack.c.l.b16 %v339
    %v3762 = vunpack.c.h.b16 %v339
    %v3763 = vunpack.c.l.b16 %v340
    %v3764 = vunpack.c.h.b16 %v340
    %v3765 = vunpack.c.l.b16 %v341
    %v3766 = vunpack.c.h.b16 %v341
    %v3767 = vunpack.c.l.b16 %v342
    %v3768 = vunpack.c.h.b16 %v342
    %v3769 = vunpack.c.l.b16 %v343
    %v3770 = vunpack.c.h.b16 %v343
    %v3771 = vunpack.c.l.b16 %v344
    %v3772 = vunpack.c.h.b16 %v344
    %v3773 = vunpack.c.l.b16 %v345
    %v3774 = vunpack.c.h.b16 %v345
    %v3775 = vunpack.c.l.b16 %v346
    %v3776 = vunpack.c.h.b16 %v346
    %v3777 = vunpack.c.l.b16 %v347
    %v3778 = vunpack.c.h.b16 %v347
    %v3779 = vunpack.c.l.b16 %v348
    %v3780 = vunpack.c.h.b16 %v348
    %v3781 = vunpack.c.l.b16 %v349
    %v3782 = vunpack.c.h.b16 %v349
    %v3783 = vunpack.c.l.b16 %v350
    %v3784 = vunpack.c.h.b16 %v350
    %v3785 = vunpack.c.l.b16 %v351
    %v3786 = vunpack.c.h.b16 %v351
    %v3787 = vunpack.c.l.b16 %v352
    %v3788 = vunpack.c.h.b16 %v352
    %v3789 = vunpack.c.l.b16 %v353
    %v3790 = vunpack.c.h.b16 %v353
    %v3791 = vunpack.c.l.b16 %v354
    %v3792 = vunpack.c.h.b16 %v354
    %v3793 = vunpack.c.l.b16 %v355
    %v3794 = vunpack.c.h.b16 %v355
    %v3795 = vunpack.c.l.b16 %v356
    %v3796 = vunpack.c.h.b16 %v356
    %v3797 = vunpack.c.l.b16 %v357
    %v3798 = vunpack.c.h.b16 %v357
    %v3799 = vunpack.c.l.b16 %v358
    %v3800 = vunpack.c.h.b16 %v358
    %v3801 = vunpack.c.l.b16 %v359
    %v3802 = vunpack.c.h.b16 %v359
    %v3803 = vunpack.c.l.b16 %v360
    %v3804 = vunpack.c.h.b16 %v360
    %v3805 = vunpack.c.l.b16 %v361
    %v3806 = vunpack.c.h.b16 %v361
    %v3807 = vunpack.c.l.b16 %v362
    %v3808 = vunpack.c.h.b16 %v362
    %v3809 = vunpack.c.l.b16 %v363
    %v3810 = vunpack.c.h.b16 %v363
    %v3811 = vunpack.c.l.b16 %v364
    %v3812 = vunpack.c.h.b16 %v364
    %v3813 = vunpack.c.l.b16 %v365
    %v3814 = vunpack.c.h.b16 %v365
    %v3815 = vunpack.c.l.b16 %v366
    %v3816 = vunpack.c.h.b16 %v366
    %v3817 = vunpack.c.l.b16 %v367
    %v3818 = vunpack.c.h.b16 %v367
    %v3819 = vunpack.c.l.b16 %v368
    %v3820 = vunpack.c.h.b16 %v368
    %v3821 = vunpack.c.l.b16 %v369
    %v3822 = vunpack.c.h.b16 %v369
    %v3823 = vunpack.c.l.b16 %v370
    %v3824 = vunpack.c.h.b16 %v370
    %v3825 = vunpack.c.l.b16 %v371
    %v3826 = vunpack.c.h.b16 %v371
    %v3827 = vunpack.c.l.b16 %v372
    %v3828 = vunpack.c.h.b16 %v372
    %v3829 = vunpack.c.l.b16 %v373
    %v3830 = vunpack.c.h.b16 %v373
    %v3831 = vunpack.c.l.b16 %v374
    %v3832 = vunpack.c.h.b16 %v374
    %v3833 = vunpack.c.l.b16 %v375
    %v3834 = vunpack.c.h.b16 %v375
    %v3835 = vunpack.c.l.b16 %v376
    %v3836 = vunpack.c.h.b16 %v376
    %v3837 = vunpack.c.l.b16 %v377
    %v3838 = vunpack.c.h.b16 %v377
    %v3839 = vunpack.c.l.b16 %v378
    %v3840 = vunpack.c.h.b16 %v378
    %v3841 = vunpack.c.l.b16 %v379
    %v3842 = vunpack.c.h.b16 %v379
    %v3843 = vunpack.c.l.b16 %v380
    %v3844 = vunpack.c.h.b16 %v380
    %v3845 = vunpack.c.l.b16 %v381
    %v3846 = vunpack.c.h.b16 %v381
    %v3847 = vunpack.c.l.b16 %v382
    %v3848 = vunpack.c.h.b16 %v382
    %v3849 = vunpack.c.l.b16 %v383
    %v3850 = vunpack.c.h.b16 %v383
    %v3851 = vunpack.c.l.b16 %v384
    %v3852 = vunpack.c.h.b16 %v384
    %v3853 = vunpack.c.l.b16 %v385
    %v3854 = vunpack.c.h.b16 %v385
    %v3855 = vunpack.c.l.b16 %v386
    %v3856 = vunpack.c.h.b16 %v386
    %v3857 = vunpack.c.l.b16 %v387
    %v3858 = vunpack.c.h.b16 %v387
    %v3859 = vunpack.c.l.b16 %v388
    %v3860 = vunpack.c.h.b16 %v388
    %v3861 = vunpack.c.l.b16 %v389
    %v3862 = vunpack.c.h.b16 %v389
    %v3863 = vunpack.c.l.b16 %v390
    %v3864 = vunpack.c.h.b16 %v390
    %v3865 = vunpack.c.l.b16 %v391
    %v3866 = vunpack.c.h.b16 %v391
    %v3867 = vunpack.c.l.b16 %v392
    %v3868 = vunpack.c.h.b16 %v392
    %v3869 = vunpack.c.l.b16 %v393
    %v3870 = vunpack.c.h.b16 %v393
    %v3871 = vunpack.c.l.b16 %v394
    %v3872 = vunpack.c.h.b16 %v394
    %v3873 = vunpack.c.l.b16 %v395
    %v3874 = vunpack.c.h.b16 %v395
    %v3875 = vunpack.c.l.b16 %v396
    %v3876 = vunpack.c.h.b16 %v396
    %v3877 = vunpack.c.l.b16 %v397
    %v3878 = vunpack.c.h.b16 %v397
    %v3879 = vunpack.c.l.b16 %v398
    %v3880 = vunpack.c.h.b16 %v398
    %v3881 = vunpack.c.l.b16 %v399
    %v3882 = vunpack.c.h.b16 %v399
    %v3883 = vunpack.c.l.b16 %v400
    %v3884 = vunpack.c.h.b16 %v400
    %v3885 = vunpack.c.l.b16 %v401
    %v3886 = vunpack.c.h.b16 %v401
    %v3887 = vunpack.c.l.b16 %v402
    %v3888 = vunpack.c.h.b16 %v402
    %v3889 = vunpack.c.l.b16 %v403
    %v3890 = vunpack.c.h.b16 %v403
    %v3891 = vunpack.c.l.b16 %v404
    %v3892 = vunpack.c.h.b16 %v404
    %v3893 = vunpack.c.l.b16 %v405
    %v3894 = vunpack.c.h.b16 %v405
    %v3895 = vunpack.c.l.b16 %v406
    %v3896 = vunpack.c.h.b16 %v406
    %v3897 = vunpack.c.l.b16 %v407
    %v3898 = vunpack.c.h.b16 %v407
    %v3899 = vunpack.c.l.b16 %v408
    %v3900 = vunpack.c.h.b16 %v408
    %v3901 = vunpack.c.l.b16 %v409
    %v3902 = vunpack.c.h.b16 %v409
    %v3903 = vunpack.c.l.b16 %v410
    %v3904 = vunpack.c.h.b16 %v410
    %v3905 = vunpack.c.l.b16 %v411
    %v3906 = vunpack.c.h.b16 %v411
    %v3907 = vunpack.c.l.b16 %v412
    %v3908 = vunpack.c.h.b16 %v412
    %v3909 = vunpack.c.l.b16 %v413
    %v3910 = vunpack.c.h.b16 %v413
    %v3911 = vunpack.c.l.b16 %v414
    %v3912 = vunpack.c.h.b16 %v414
    %v3913 = vunpack.c.l.b16 %v415
    %v3914 = vunpack.c.h.b16 %v415
    %v3915 = vunpack.c.l.b16 %v416
    %v3916 = vunpack.c.h.b16 %v416
    %v3917 = vunpack.c.l.b16 %v417
    %v3918 = vunpack.c.h.b16 %v417
    %v3919 = vunpack.c.l.b16 %v418
    %v3920 = vunpack.c.h.b16 %v418
    %v3921 = vunpack.c.l.b16 %v419
    %v3922 = vunpack.c.h.b16 %v419
    %v3923 = vunpack.c.l.b16 %v420
    %v3924 = vunpack.c.h.b16 %v420
    %v3925 = vunpack.c.l.b16 %v421
    %v3926 = vunpack.c.h.b16 %v421
    %v3927 = vunpack.c.l.b16 %v422
    %v3928 = vunpack.c.h.b16 %v422
    %v3929 = vunpack.c.l.b16 %v423
    %v3930 = vunpack.c.h.b16 %v423
    %v3931 = vunpack.c.l.b16 %v424
    %v3932 = vunpack.c.h.b16 %v424
    %v3933 = vunpack.c.l.b16 %v425
    %v3934 = vunpack.c.h.b16 %v425
    %v3935 = vunpack.c.l.b16 %v426
    %v3936 = vunpack.c.h.b16 %v426
    %v3937 = vunpack.c.l.b16 %v427
    %v3938 = vunpack.c.h.b16 %v427
    %v3939 = vunpack.c.l.b16 %v428
    %v3940 = vunpack.c.h.b16 %v428
    %v3941 = vunpack.c.l.b16 %v429
    %v3942 = vunpack.c.h.b16 %v429
    %v3943 = vunpack.c.l.b16 %v430
    %v3944 = vunpack.c.h.b16 %v430
    %v3945 = vunpack.c.l.b16 %v431
    %v3946 = vunpack.c.h.b16 %v431
    %v3947 = vunpack.c.l.b16 %v432
    %v3948 = vunpack.c.h.b16 %v432
    %v3949 = vunpack.c.l.b16 %v433
    %v3950 = vunpack.c.h.b16 %v433
    %v3951 = vunpack.c.l.b16 %v434
    %v3952 = vunpack.c.h.b16 %v434
    %v3953 = vunpack.c.l.b16 %v435
    %v3954 = vunpack.c.h.b16 %v435
    %v3955 = vunpack.c.l.b16 %v436
    %v3956 = vunpack.c.h.b16 %v436
    %v3957 = vunpack.c.l.b16 %v437
    %v3958 = vunpack.c.h.b16 %v437
    %v3959 = vunpack.c.l.b16 %v438
    %v3960 = vunpack.c.h.b16 %v438
    %v3961 = vunpack.c.l.b16 %v439
    %v3962 = vunpack.c.h.b16 %v439
    %v3963 = vunpack.c.l.b16 %v440
    %v3964 = vunpack.c.h.b16 %v440
    %v3965 = vunpack.c.l.b16 %v441
    %v3966 = vunpack.c.h.b16 %v441
    %v3967 = vunpack.c.l.b16 %v442
    %v3968 = vunpack.c.h.b16 %v442
    %v3969 = vunpack.c.l.b16 %v443
    %v3970 = vunpack.c.h.b16 %v443
    %v3971 = vunpack.c.l.b16 %v444
    %v3972 = vunpack.c.h.b16 %v444
    %v3973 = vunpack.c.l.b16 %v445
    %v3974 = vunpack.c.h.b16 %v445
    %v3975 = vunpack.c.l.b16 %v446
    %v3976 = vunpack.c.h.b16 %v446
    %v3977 = vunpack.c.l.b16 %v447
    %v3978 = vunpack.c.h.b16 %v447
    %v3979 = vunpack.c.l.b16 %v448
    %v3980 = vunpack.c.h.b16 %v448
    %v3981 = vunpack.c.l.b16 %v449
    %v3982 = vunpack.c.h.b16 %v449
    %v3983 = vunpack.c.l.b16 %v450
    %v3984 = vunpack.c.h.b16 %v450
    %v3985 = vunpack.c.l.b16 %v451
    %v3986 = vunpack.c.h.b16 %v451
    %v3987 = vunpack.c.l.b16 %v452
    %v3988 = vunpack.c.h.b16 %v452
    %v3989 = vunpack.c.l.b16 %v453
    %v3990 = vunpack.c.h.b16 %v453
    %v3991 = vunpack.c.l.b16 %v454
    %v3992 = vunpack.c.h.b16 %v454
    %v3993 = vunpack.c.l.b16 %v455
    %v3994 = vunpack.c.h.b16 %v455
    %v3995 = vunpack.c.l.b16 %v456
    %v3996 = vunpack.c.h.b16 %v456
    %v3997 = vunpack.c.l.b16 %v457
    %v3998 = vunpack.c.h.b16 %v457
    %v3999 = vunpack.c.l.b16 %v458
    %v4000 = vunpack.c.h.b16 %v458
    %v4001 = vunpack.c.l.b16 %v459
    %v4002 = vunpack.c.h.b16 %v459
    %v4003 = vunpack.c.l.b16 %v460
    %v4004 = vunpack.c.h.b16 %v460
    %v4005 = vunpack.c.l.b16 %v461
    %v4006 = vunpack.c.h.b16 %v461
    %v4007 = vunpack.c.l.b16 %v462
    %v4008 = vunpack.c.h.b16 %v462
    %v4009 = vunpack.c.l.b16 %v463
    %v4010 = vunpack.c.h.b16 %v463
    %v4011 = vunpack.c.l.b16 %v464
    %v4012 = vunpack.c.h.b16 %v464
    %v4013 = vunpack.c.l.b16 %v465
    %v4014 = vunpack.c.h.b16 %v465
    %v4015 = vunpack.c.l.b16 %v466
    %v4016 = vunpack.c.h.b16 %v466
    %v4017 = vunpack.c.l.b16 %v467
    %v4018 = vunpack.c.h.b16 %v467
    %v4019 = vunpack.c.l.b16 %v468
    %v4020 = vunpack.c.h.b16 %v468
    %v4021 = vunpack.c.l.b16 %v469
    %v4022 = vunpack.c.h.b16 %v469
    %v4023 = vunpack.c.l.b16 %v470
    %v4024 = vunpack.c.h.b16 %v470
    %v4025 = vunpack.c.l.b16 %v471
    %v4026 = vunpack.c.h.b16 %v471
    %v4027 = vunpack.c.l.b16 %v472
    %v4028 = vunpack.c.h.b16 %v472
    %v4029 = vunpack.c.l.b16 %v473
    %v4030 = vunpack.c.h.b16 %v473
    %v4031 = vunpack.c.l.b16 %v474
    %v4032 = vunpack.c.h.b16 %v474
    %v4033 = vunpack.c.l.b16 %v475
    %v4034 = vunpack.c.h.b16 %v475
    %v4035 = vunpack.c.l.b16 %v476
    %v4036 = vunpack.c.h.b16 %v476
    %v4037 = vunpack.c.l.b16 %v477
    %v4038 = vunpack.c.h.b16 %v477
    %v4039 = vunpack.c.l.b16 %v478
    %v4040 = vunpack.c.h.b16 %v478
    %v4041 = vunpack.c.l.b16 %v479
    %v4042 = vunpack.c.h.b16 %v479
    %v4043 = vunpack.c.l.b16 %v480
    %v4044 = vunpack.c.h.b16 %v480
    %v4045 = vunpack.c.l.b16 %v481
    %v4046 = vunpack.c.h.b16 %v481
    %v4047 = vunpack.c.l.b16 %v482
    %v4048 = vunpack.c.h.b16 %v482
    %v4049 = vunpack.c.l.b16 %v483
    %v4050 = vunpack.c.h.b16 %v483
    %v4051 = vunpack.c.l.b16 %v484
    %v4052 = vunpack.c.h.b16 %v484
    %v4053 = vunpack.c.l.b16 %v485
    %v4054 = vunpack.c.h.b16 %v485
    %v4055 = vunpack.c.l.b16 %v486
    %v4056 = vunpack.c.h.b16 %v486
    %v4057 = vunpack.c.l.b16 %v487
    %v4058 = vunpack.c.h.b16 %v487
    %v4059 = vunpack.c.l.b16 %v488
    %v4060 = vunpack.c.h.b16 %v488
    %v4061 = vunpack.c.l.b16 %v489
    %v4062 = vunpack.c.h.b16 %v489
    %v4063 = vunpack.c.l.b16 %v490
    %v4064 = vunpack.c.h.b16 %v490
    %v4065 = vunpack.c.l.b16 %v491
    %v4066 = vunpack.c.h.b16 %v491
    %v4067 = vunpack.c.l.b16 %v492
    %v4068 = vunpack.c.h.b16 %v492
    %v4069 = vunpack.c.l.b16 %v493
    %v4070 = vunpack.c.h.b16 %v493
    %v4071 = vunpack.c.l.b16 %v494
    %v4072 = vunpack.c.h.b16 %v494
    %v4073 = vunpack.c.l.b16 %v495
    %v4074 = vunpack.c.h.b16 %v495
    %v4075 = vunpack.c.l.b16 %v496
    %v4076 = vunpack.c.h.b16 %v496
    %v4077 = vunpack.c.l.b16 %v497
    %v4078 = vunpack.c.h.b16 %v497
    %v4079 = vunpack.c.l.b16 %v498
    %v4080 = vunpack.c.h.b16 %v498
    %v4081 = vunpack.c.l.b16 %v499
    %v4082 = vunpack.c.h.b16 %v499
    %v4083 = vunpack.c.l.b16 %v500
    %v4084 = vunpack.c.h.b16 %v500
    %v4085 = vunpack.c.l.b16 %v501
    %v4086 = vunpack.c.h.b16 %v501
    %v4087 = vunpack.c.l.b16 %v502
    %v4088 = vunpack.c.h.b16 %v502
    %v4089 = vunpack.c.l.b16 %v503
    %v4090 = vunpack.c.h.b16 %v503
    %v4091 = vunpack.c.l.b16 %v504
    %v4092 = vunpack.c.h.b16 %v504
    %v4093 = vunpack.c.l.b16 %v505
    %v4094 = vunpack.c.h.b16 %v505
    %v4095 = vunpack.c.l.b16 %v506
    %v4096 = vunpack.c.h.b16 %v506
    %v4097 = vunpack.c.l.b16 %v507
    %v4098 = vunpack.c.h.b16 %v507
    %v4099 = vunpack.c.l.b16 %v508
    %v4100 = vunpack.c.h.b16 %v508
    %v4101 = vunpack.c.l.b16 %v509
    %v4102 = vunpack.c.h.b16 %v509
    %v4103 = vunpack.c.l.b16 %v510
    %v4104 = vunpack.c.h.b16 %v510
    %v4105 = vunpack.c.l.b16 %v511
    %v4106 = vunpack.c.h.b16 %v511
    %v4107 = vunpack.c.l.b16 %v512
    %v4108 = vunpack.c.h.b16 %v512
    %v4109 = vunpack.c.l.b16 %v513
    %v4110 = vunpack.c.h.b16 %v513
    %v4111 = vunpack.c.l.b16 %v514
    %v4112 = vunpack.c.h.b16 %v514
    %v4113 = vunpack.c.l.b16 %v515
    %v4114 = vunpack.c.h.b16 %v515
    %v4115 = vunpack.c.l.b16 %v516
    %v4116 = vunpack.c.h.b16 %v516
    %v4117 = vunpack.c.l.b16 %v517
    %v4118 = vunpack.c.h.b16 %v517
    %v4119 = vunpack.c.l.b16 %v518
    %v4120 = vunpack.c.h.b16 %v518
    %v4121 = vunpack.c.l.b16 %v519
    %v4122 = vunpack.c.h.b16 %v519
    %v4123 = vunpack.c.l.b16 %v520
    %v4124 = vunpack.c.h.b16 %v520
    %v4125 = vunpack.c.l.b16 %v521
    %v4126 = vunpack.c.h.b16 %v521
    %v4127 = vunpack.c.l.b16 %v522
    %v4128 = vunpack.c.h.b16 %v522
    %v4129 = vunpack.c.l.b16 %v523
    %v4130 = vunpack.c.h.b16 %v523
    %v4131 = vunpack.c.l.b16 %v524
    %v4132 = vunpack.c.h.b16 %v524
    %v4133 = vunpack.c.l.b16 %v525
    %v4134 = vunpack.c.h.b16 %v525
    %v4135 = vunpack.c.l.b16 %v526
    %v4136 = vunpack.c.h.b16 %v526
    %v4137 = vunpack.c.l.b16 %v527
    %v4138 = vunpack.c.h.b16 %v527
    %v4139 = vunpack.c.l.b16 %v528
    %v4140 = vunpack.c.h.b16 %v528
    %v4141 = vunpack.c.l.b16 %v529
    %v4142 = vunpack.c.h.b16 %v529
    %v4143 = vunpack.c.l.b16 %v530
    %v4144 = vunpack.c.h.b16 %v530
    %v4145 = vunpack.c.l.b16 %v531
    %v4146 = vunpack.c.h.b16 %v531
    %v4147 = vunpack.c.l.b16 %v532
    %v4148 = vunpack.c.h.b16 %v532
    %v4149 = vunpack.c.l.b16 %v533
    %v4150 = vunpack.c.h.b16 %v533
    %v4151 = vunpack.c.l.b16 %v534
    %v4152 = vunpack.c.h.b16 %v534
    %v4153 = vunpack.c.l.b16 %v535
    %v4154 = vunpack.c.h.b16 %v535
    %v4155 = vunpack.c.l.b16 %v536
    %v4156 = vunpack.c.h.b16 %v536
    %v4157 = vunpack.c.l.b16 %v537
    %v4158 = vunpack.c.h.b16 %v537
    %v4159 = vunpack.c.l.b16 %v538
    %v4160 = vunpack.c.h.b16 %v538
    %v4161 = vunpack.c.l.b16 %v539
    %v4162 = vunpack.c.h.b16 %v539
    %v4163 = vunpack.c.l.b16 %v540
    %v4164 = vunpack.c.h.b16 %v540
    %v4165 = vunpack.c.l.b16 %v541
    %v4166 = vunpack.c.h.b16 %v541
    %v4167 = vunpack.c.l.b16 %v542
    %v4168 = vunpack.c.h.b16 %v542
    %v4169 = vunpack.c.l.b16 %v543
    %v4170 = vunpack.c.h.b16 %v543
    %v4171 = vunpack.c.l.b16 %v544
    %v4172 = vunpack.c.h.b16 %v544
    %v4173 = vunpack.c.l.b16 %v545
    %v4174 = vunpack.c.h.b16 %v545
    %v4175 = vunpack.c.l.b16 %v546
    %v4176 = vunpack.c.h.b16 %v546
    %v4177 = vunpack.c.l.b16 %v547
    %v4178 = vunpack.c.h.b16 %v547
    %v4179 = vunpack.c.l.b16 %v548
    %v4180 = vunpack.c.h.b16 %v548
    %v4181 = vunpack.c.l.b16 %v549
    %v4182 = vunpack.c.h.b16 %v549
    %v4183 = vunpack.c.l.b16 %v550
    %v4184 = vunpack.c.h.b16 %v550
    %v4185 = vunpack.c.l.b16 %v551
    %v4186 = vunpack.c.h.b16 %v551
    %v4187 = vunpack.c.l.b16 %v552
    %v4188 = vunpack.c.h.b16 %v552
    %v4189 = vunpack.c.l.b16 %v553
    %v4190 = vunpack.c.h.b16 %v553
    %v4191 = vunpack.c.l.b16 %v554
    %v4192 = vunpack.c.h.b16 %v554
    %v4193 = vunpack.c.l.b16 %v555
    %v4194 = vunpack.c.h.b16 %v555
    %v4195 = vunpack.c.l.b16 %v556
    %v4196 = vunpack.c.h.b16 %v556
    %v4197 = vunpack.c.l.b16 %v557
    %v4198 = vunpack.c.h.b16 %v557
    %v4199 = vunpack.c.l.b16 %v558
    %v4200 = vunpack.c.h.b16 %v558
    %v4201 = vunpack.c.l.b16 %v559
    %v4202 = vunpack.c.h.b16 %v559
    %v4203 = vunpack.c.l.b16 %v560
    %v4204 = vunpack.c.h.b16 %v560
    %v4205 = vunpack.c.l.b16 %v561
    %v4206 = vunpack.c.h.b16 %v561
    %v4207 = vunpack.c.l.b16 %v562
    %v4208 = vunpack.c.h.b16 %v562
    %v4209 = vunpack.c.l.b16 %v563
    %v4210 = vunpack.c.h.b16 %v563
    %v4211 = vunpack.c.l.b16 %v564
    %v4212 = vunpack.c.h.b16 %v564
    %v4213 = vunpack.c.l.b16 %v565
    %v4214 = vunpack.c.h.b16 %v565
    %v4215 = vunpack.c.l.b16 %v566
    %v4216 = vunpack.c.h.b16 %v566
    %v4217 = vunpack.c.l.b16 %v567
    %v4218 = vunpack.c.h.b16 %v567
    %v4219 = vunpack.c.l.b16 %v568
    %v4220 = vunpack.c.h.b16 %v568
    %v4221 = vunpack.c.l.b16 %v569
    %v4222 = vunpack.c.h.b16 %v569
    %v4223 = vunpack.c.l.b16 %v570
    %v4224 = vunpack.c.h.b16 %v570
    %v4225 = vunpack.c.l.b16 %v571
    %v4226 = vunpack.c.h.b16 %v571
    %v4227 = vunpack.c.l.b16 %v572
    %v4228 = vunpack.c.h.b16 %v572
    %v4229 = vunpack.c.l.b16 %v573
    %v4230 = vunpack.c.h.b16 %v573
    %v4231 = vunpack.c.l.b16 %v574
    %v4232 = vunpack.c.h.b16 %v574
    %v4233 = vunpack.c.l.b16 %v575
    %v4234 = vunpack.c.h.b16 %v575
    %v4235 = vunpack.c.l.b16 %v576
    %v4236 = vunpack.c.h.b16 %v576
    %v4237 = vunpack.c.l.b16 %v577
    %v4238 = vunpack.c.h.b16 %v577
    %v4239 = vunpack.c.l.b16 %v578
    %v4240 = vunpack.c.h.b16 %v578
    %v4241 = vunpack.c.l.b16 %v579
    %v4242 = vunpack.c.h.b16 %v579
    %v4243 = vunpack.c.l.b16 %v580
    %v4244 = vunpack.c.h.b16 %v580
    %v4245 = vunpack.c.l.b16 %v581
    %v4246 = vunpack.c.h.b16 %v581
    %v4247 = vunpack.c.l.b16 %v582
    %v4248 = vunpack.c.h.b16 %v582
    %v4249 = vunpack.c.l.b16 %v583
    %v4250 = vunpack.c.h.b16 %v583
    %v4251 = vunpack.c.l.b16 %v584
    %v4252 = vunpack.c.h.b16 %v584
    %v4253 = vunpack.c.l.b16 %v585
    %v4254 = vunpack.c.h.b16 %v585
    %v4255 = vunpack.c.l.b16 %v586
    %v4256 = vunpack.c.h.b16 %v586
    %v4257 = vunpack.c.l.b16 %v587
    %v4258 = vunpack.c.h.b16 %v587
    %v4259 = vunpack.c.l.b16 %v588
    %v4260 = vunpack.c.h.b16 %v588
    %v4261 = vunpack.c.l.b16 %v589
    %v4262 = vunpack.c.h.b16 %v589
    %v4263 = vunpack.c.l.b16 %v590
    %v4264 = vunpack.c.h.b16 %v590
    %v4265 = vunpack.c.l.b16 %v591
    %v4266 = vunpack.c.h.b16 %v591
    %v4267 = vunpack.c.l.b16 %v592
    %v4268 = vunpack.c.h.b16 %v592
    %v4269 = vunpack.c.l.b16 %v593
    %v4270 = vunpack.c.h.b16 %v593
    %v4271 = vunpack.c.l.b16 %v594
    %v4272 = vunpack.c.h.b16 %v594
    %v4273 = vunpack.c.l.b16 %v595
    %v4274 = vunpack.c.h.b16 %v595
    %v4275 = vunpack.c.l.b16 %v596
    %v4276 = vunpack.c.h.b16 %v596
    %v4277 = vunpack.c.l.b16 %v597
    %v4278 = vunpack.c.h.b16 %v597
    %v4279 = vunpack.c.l.b16 %v598
    %v4280 = vunpack.c.h.b16 %v598
    %v4281 = vunpack.c.l.b16 %v599
    %v4282 = vunpack.c.h.b16 %v599
    %v4283 = vunpack.c.l.b16 %v600
    %v4284 = vunpack.c.h.b16 %v600
    %v4285 = vunpack.c.l.b16 %v601
    %v4286 = vunpack.c.h.b16 %v601
    %v4287 = vunpack.c.l.b16 %v602
    %v4288 = vunpack.c.h.b16 %v602
    %v4289 = vunpack.c.l.b16 %v603
    %v4290 = vunpack.c.h.b16 %v603
    %v4291 = vunpack.c.l.b16 %v604
    %v4292 = vunpack.c.h.b16 %v604
    %v4293 = vunpack.c.l.b16 %v605
    %v4294 = vunpack.c.h.b16 %v605
    %v4295 = vunpack.c.l.b16 %v606
    %v4296 = vunpack.c.h.b16 %v606
    %v4297 = vunpack.c.l.b16 %v607
    %v4298 = vunpack.c.h.b16 %v607
    %v4299 = vunpack.c.l.b16 %v608
    %v4300 = vunpack.c.h.b16 %v608
    %v4301 = vunpack.c.l.b16 %v609
    %v4302 = vunpack.c.h.b16 %v609
    %v4303 = vunpack.c.l.b16 %v610
    %v4304 = vunpack.c.h.b16 %v610
    %v4305 = vunpack.c.l.b16 %v611
    %v4306 = vunpack.c.h.b16 %v611
    %v4307 = vunpack.c.l.b16 %v612
    %v4308 = vunpack.c.h.b16 %v612
    %v4309 = vunpack.c.l.b16 %v613
    %v4310 = vunpack.c.h.b16 %v613
    %v4311 = vunpack.c.l.b16 %v614
    %v4312 = vunpack.c.h.b16 %v614
    %v4313 = vunpack.c.l.b16 %v615
    %v4314 = vunpack.c.h.b16 %v615
    %v4315 = vunpack.c.l.b16 %v616
    %v4316 = vunpack.c.h.b16 %v616
    %v4317 = vunpack.c.l.b16 %v617
    %v4318 = vunpack.c.h.b16 %v617
    %v4319 = vunpack.c.l.b16 %v618
    %v4320 = vunpack.c.h.b16 %v618
    %v4321 = vunpack.c.l.b16 %v619
    %v4322 = vunpack.c.h.b16 %v619
    %v4323 = vunpack.c.l.b16 %v620
    %v4324 = vunpack.c.h.b16 %v620
    %v4325 = vunpack.c.l.b16 %v621
    %v4326 = vunpack.c.h.b16 %v621
    %v4327 = vunpack.c.l.b16 %v622
    %v4328 = vunpack.c.h.b16 %v622
    %v4329 = vunpack.c.l.b16 %v623
    %v4330 = vunpack.c.h.b16 %v623
    %v4331 = vunpack.c.l.b16 %v624
    %v4332 = vunpack.c.h.b16 %v624
    %v4333 = vunpack.c.l.b16 %v625
    %v4334 = vunpack.c.h.b16 %v625
    %v4335 = vunpack.c.l.b16 %v626
    %v4336 = vunpack.c.h.b16 %v626
    %v4337 = vunpack.c.l.b16 %v627
    %v4338 = vunpack.c.h.b16 %v627
    %v4339 = vunpack.c.l.b16 %v628
    %v4340 = vunpack.c.h.b16 %v628
    %v4341 = vunpack.c.l.b16 %v629
    %v4342 = vunpack.c.h.b16 %v629
    %v4343 = vunpack.c.l.b16 %v630
    %v4344 = vunpack.c.h.b16 %v630
    %v4345 = vunpack.c.l.b16 %v631
    %v4346 = vunpack.c.h.b16 %v631
    %v4347 = vunpack.c.l.b16 %v632
    %v4348 = vunpack.c.h.b16 %v632
    %v4349 = vunpack.c.l.b16 %v633
    %v4350 = vunpack.c.h.b16 %v633
    %v4351 = vunpack.c.l.b16 %v634
    %v4352 = vunpack.c.h.b16 %v634
    %v4353 = vunpack.c.l.b16 %v635
    %v4354 = vunpack.c.h.b16 %v635
    %v4355 = vunpack.c.l.b16 %v636
    %v4356 = vunpack.c.h.b16 %v636
    %v4357 = vunpack.c.l.b16 %v637
    %v4358 = vunpack.c.h.b16 %v637
    %v4359 = vunpack.c.l.b16 %v638
    %v4360 = vunpack.c.h.b16 %v638
    %v4361 = vunpack.c.l.b16 %v639
    %v4362 = vunpack.c.h.b16 %v639
    %v4363 = vunpack.c.l.b16 %v640
    %v4364 = vunpack.c.h.b16 %v640
    %v4365 = vunpack.c.l.b16 %v641
    %v4366 = vunpack.c.h.b16 %v641
    %v4367 = vunpack.c.l.b16 %v642
    %v4368 = vunpack.c.h.b16 %v642
    %v4369 = vunpack.c.l.b16 %v643
    %v4370 = vunpack.c.h.b16 %v643
    %v4371 = vunpack.c.l.b16 %v644
    %v4372 = vunpack.c.h.b16 %v644
    %v4373 = vunpack.c.l.b16 %v645
    %v4374 = vunpack.c.h.b16 %v645
    %v4375 = vunpack.c.l.b16 %v646
    %v4376 = vunpack.c.h.b16 %v646
    %v4377 = vunpack.c.l.b16 %v647
    %v4378 = vunpack.c.h.b16 %v647
    %v4379 = vunpack.c.l.b16 %v648
    %v4380 = vunpack.c.h.b16 %v648
    %v4381 = vunpack.c.l.b16 %v649
    %v4382 = vunpack.c.h.b16 %v649
    %v4383 = vunpack.c.l.b16 %v650
    %v4384 = vunpack.c.h.b16 %v650
    %v4385 = vunpack.c.l.b16 %v651
    %v4386 = vunpack.c.h.b16 %v651
    %v4387 = vunpack.c.l.b16 %v652
    %v4388 = vunpack.c.h.b16 %v652
    %v4389 = vunpack.c.l.b16 %v653
    %v4390 = vunpack.c.h.b16 %v653
    %v4391 = vunpack.c.l.b16 %v654
    %v4392 = vunpack.c.h.b16 %v654
    %v4393 = vunpack.c.l.b16 %v655
    %v4394 = vunpack.c.h.b16 %v655
    %v4395 = vunpack.c.l.b16 %v656
    %v4396 = vunpack.c.h.b16 %v656
    %v4397 = vunpack.c.l.b16 %v657
    %v4398 = vunpack.c.h.b16 %v657
    %v4399 = vunpack.c.l.b16 %v658
    %v4400 = vunpack.c.h.b16 %v658
    %v4401 = vunpack.c.l.b16 %v659
    %v4402 = vunpack.c.h.b16 %v659
    %v4403 = vunpack.c.l.b16 %v660
    %v4404 = vunpack.c.h.b16 %v660
    %v4405 = vunpack.c.l.b16 %v661
    %v4406 = vunpack.c.h.b16 %v661
    %v4407 = vunpack.c.l.b16 %v662
    %v4408 = vunpack.c.h.b16 %v662
    %v4409 = vunpack.c.l.b16 %v663
    %v4410 = vunpack.c.h.b16 %v663
    %v4411 = vunpack.c.l.b16 %v664
    %v4412 = vunpack.c.h.b16 %v664
    %v4413 = vunpack.c.l.b16 %v665
    %v4414 = vunpack.c.h.b16 %v665
    %v4415 = vunpack.c.l.b16 %v666
    %v4416 = vunpack.c.h.b16 %v666
    %v4417 = vunpack.c.l.b16 %v667
    %v4418 = vunpack.c.h.b16 %v667
    %v4419 = vunpack.c.l.b16 %v668
    %v4420 = vunpack.c.h.b16 %v668
    %v4421 = vunpack.c.l.b16 %v669
    %v4422 = vunpack.c.h.b16 %v669
    %v4423 = vunpack.c.l.b16 %v670
    %v4424 = vunpack.c.h.b16 %v670
    %v4425 = vunpack.c.l.b16 %v671
    %v4426 = vunpack.c.h.b16 %v671
    %v4427 = vunpack.c.l.b16 %v672
    %v4428 = vunpack.c.h.b16 %v672
    %v4429 = vunpack.c.l.b16 %v673
    %v4430 = vunpack.c.h.b16 %v673
    %v4431 = vunpack.c.l.b16 %v674
    %v4432 = vunpack.c.h.b16 %v674
    %v4433 = vunpack.c.l.b16 %v675
    %v4434 = vunpack.c.h.b16 %v675
    %v4435 = vunpack.c.l.b16 %v676
    %v4436 = vunpack.c.h.b16 %v676
    %v4437 = vunpack.c.l.b16 %v677
    %v4438 = vunpack.c.h.b16 %v677
    %v4439 = vunpack.c.l.b16 %v678
    %v4440 = vunpack.c.h.b16 %v678
    %v4441 = vunpack.c.l.b16 %v679
    %v4442 = vunpack.c.h.b16 %v679
    %v4443 = vunpack.c.l.b16 %v680
    %v4444 = vunpack.c.h.b16 %v680
    %v4445 = vunpack.c.l.b16 %v681
    %v4446 = vunpack.c.h.b16 %v681
    %v4447 = vunpack.c.l.b16 %v682
    %v4448 = vunpack.c.h.b16 %v682
    %v4449 = vunpack.c.l.b16 %v683
    %v4450 = vunpack.c.h.b16 %v683
    %v4451 = vunpack.c.l.b16 %v684
    %v4452 = vunpack.c.h.b16 %v684
    %v4453 = vunpack.c.l.b16 %v685
    %v4454 = vunpack.c.h.b16 %v685
    %v4455 = vunpack.c.l.b16 %v686
    %v4456 = vunpack.c.h.b16 %v686
    %v4457 = vunpack.c.l.b16 %v687
    %v4458 = vunpack.c.h.b16 %v687
    %v4459 = vunpack.c.l.b16 %v688
    %v4460 = vunpack.c.h.b16 %v688
    %v4461 = vunpack.c.l.b16 %v689
    %v4462 = vunpack.c.h.b16 %v689
    %v4463 = vunpack.c.l.b16 %v690
    %v4464 = vunpack.c.h.b16 %v690
    %v4465 = vunpack.c.l.b16 %v691
    %v4466 = vunpack.c.h.b16 %v691
    %v4467 = vunpack.c.l.b16 %v692
    %v4468 = vunpack.c.h.b16 %v692
    %v4469 = vunpack.c.l.b16 %v693
    %v4470 = vunpack.c.h.b16 %v693
    %v4471 = vunpack.c.l.b16 %v694
    %v4472 = vunpack.c.h.b16 %v694
    %v4473 = vunpack.c.l.b16 %v695
    %v4474 = vunpack.c.h.b16 %v695
    %v4475 = vunpack.c.l.b16 %v696
    %v4476 = vunpack.c.h.b16 %v696
    %v4477 = vunpack.c.l.b16 %v697
    %v4478 = vunpack.c.h.b16 %v697
    %v4479 = vunpack.c.l.b16 %v698
    %v4480 = vunpack.c.h.b16 %v698
    %v4481 = vunpack.c.l.b16 %v699
    %v4482 = vunpack.c.h.b16 %v699
    %v4483 = vunpack.c.l.b16 %v700
    %v4484 = vunpack.c.h.b16 %v700
    %v4485 = vunpack.c.l.b16 %v701
    %v4486 = vunpack.c.h.b16 %v701
    %v4487 = vunpack.c.l.b16 %v702
    %v4488 = vunpack.c.h.b16 %v702
    %v4489 = vunpack.c.l.b16 %v703
    %v4490 = vunpack.c.h.b16 %v703
    %v4491 = vunpack.c.l.b16 %v704
    %v4492 = vunpack.c.h.b16 %v704
    %v4493 = vunpack.c.l.b16 %v705
    %v4494 = vunpack.c.h.b16 %v705
    %v4495 = vunpack.c.l.b16 %v706
    %v4496 = vunpack.c.h.b16 %v706
    %v4497 = vunpack.c.l.b16 %v707
    %v4498 = vunpack.c.h.b16 %v707
    %v4499 = vunpack.c.l.b16 %v708
    %v4500 = vunpack.c.h.b16 %v708
    %v4501 = vunpack.c.l.b16 %v709
    %v4502 = vunpack.c.h.b16 %v709
    %v4503 = vunpack.c.l.b16 %v710
    %v4504 = vunpack.c.h.b16 %v710
    %v4505 = vunpack.c.l.b16 %v711
    %v4506 = vunpack.c.h.b16 %v711
    %v4507 = vunpack.c.l.b16 %v712
    %v4508 = vunpack.c.h.b16 %v712
    %v4509 = vunpack.c.l.b16 %v713
    %v4510 = vunpack.c.h.b16 %v713
    %v4511 = vunpack.c.l.b16 %v714
    %v4512 = vunpack.c.h.b16 %v714
    %v4513 = vunpack.c.l.b16 %v715
    %v4514 = vunpack.c.h.b16 %v715
    %v4515 = vunpack.c.l.b16 %v716
    %v4516 = vunpack.c.h.b16 %v716
    %v4517 = vunpack.c.l.b16 %v717
    %v4518 = vunpack.c.h.b16 %v717
    %v4519 = vunpack.c.l.b16 %v718
    %v4520 = vunpack.c.h.b16 %v718
    %v4521 = vunpack.c.l.b16 %v719
    %v4522 = vunpack.c.h.b16 %v719
    %v4523 = vunpack.c.l.b16 %v720
    %v4524 = vunpack.c.h.b16 %v720
    %v4525 = vunpack.c.l.b16 %v721
    %v4526 = vunpack.c.h.b16 %v721
    %v4527 = vunpack.c.l.b16 %v722
    %v4528 = vunpack.c.h.b16 %v722
    %v4529 = vunpack.c.l.b16 %v723
    %v4530 = vunpack.c.h.b16 %v723
    %v4531 = vunpack.c.l.b16 %v724
    %v4532 = vunpack.c.h.b16 %v724
    %v4533 = vunpack.c.l.b16 %v725
    %v4534 = vunpack.c.h.b16 %v725
    %v4535 = vunpack.c.l.b16 %v726
    %v4536 = vunpack.c.h.b16 %v726
    %v4537 = vunpack.c.l.b16 %v727
    %v4538 = vunpack.c.h.b16 %v727
    %v4539 = vunpack.c.l.b16 %v728
    %v4540 = vunpack.c.h.b16 %v728
    %v4541 = vunpack.c.l.b16 %v729
    %v4542 = vunpack.c.h.b16 %v729
    %v4543 = vunpack.c.l.b16 %v730
    %v4544 = vunpack.c.h.b16 %v730
    %v4545 = vunpack.c.l.b16 %v731
    %v4546 = vunpack.c.h.b16 %v731
    %v4547 = vunpack.c.l.b16 %v732
    %v4548 = vunpack.c.h.b16 %v732
    %v4549 = vunpack.c.l.b16 %v733
    %v4550 = vunpack.c.h.b16 %v733
    %v4551 = vunpack.c.l.b16 %v734
    %v4552 = vunpack.c.h.b16 %v734
    %v4553 = vunpack.c.l.b16 %v735
    %v4554 = vunpack.c.h.b16 %v735
    %v4555 = vunpack.c.l.b16 %v736
    %v4556 = vunpack.c.h.b16 %v736
    %v4557 = vunpack.c.l.b16 %v737
    %v4558 = vunpack.c.h.b16 %v737
    %v4559 = vunpack.c.l.b16 %v738
    %v4560 = vunpack.c.h.b16 %v738
    %v4561 = vunpack.c.l.b16 %v739
    %v4562 = vunpack.c.h.b16 %v739
    %v4563 = vunpack.c.l.b16 %v740
    %v4564 = vunpack.c.h.b16 %v740
    %v4565 = vunpack.c.l.b16 %v741
    %v4566 = vunpack.c.h.b16 %v741
    %v4567 = vunpack.c.l.b16 %v742
    %v4568 = vunpack.c.h.b16 %v742
    %v4569 = vunpack.c.l.b16 %v743
    %v4570 = vunpack.c.h.b16 %v743
    %v4571 = vunpack.c.l.b16 %v744
    %v4572 = vunpack.c.h.b16 %v744
    %v4573 = vunpack.c.l.b16 %v745
    %v4574 = vunpack.c.h.b16 %v745
    %v4575 = vunpack.c.l.b16 %v746
    %v4576 = vunpack.c.h.b16 %v746
    %v4577 = vunpack.c.l.b16 %v747
    %v4578 = vunpack.c.h.b16 %v747
    %v4579 = vunpack.c.l.b16 %v748
    %v4580 = vunpack.c.h.b16 %v748
    %v4581 = vunpack.c.l.b16 %v749
    %v4582 = vunpack.c.h.b16 %v749
    %v4583 = vunpack.c.l.b16 %v750
    %v4584 = vunpack.c.h.b16 %v750
    %v4585 = vunpack.c.l.b16 %v751
    %v4586 = vunpack.c.h.b16 %v751
    %v4587 = vunpack.c.l.b16 %v752
    %v4588 = vunpack.c.h.b16 %v752
    %v4589 = vunpack.c.l.b16 %v753
    %v4590 = vunpack.c.h.b16 %v753
    %v4591 = vunpack.c.l.b16 %v754
    %v4592 = vunpack.c.h.b16 %v754
    %v4593 = vunpack.c.l.b16 %v755
    %v4594 = vunpack.c.h.b16 %v755
    %v4595 = vunpack.c.l.b16 %v756
    %v4596 = vunpack.c.h.b16 %v756
    %v4597 = vunpack.c.l.b16 %v757
    %v4598 = vunpack.c.h.b16 %v757
    %v4599 = vunpack.c.l.b16 %v758
    %v4600 = vunpack.c.h.b16 %v758
    %v4601 = vunpack.c.l.b16 %v759
    %v4602 = vunpack.c.h.b16 %v759
    %v4603 = vunpack.c.l.b16 %v760
    %v4604 = vunpack.c.h.b16 %v760
    %v4605 = vunpack.c.l.b16 %v761
    %v4606 = vunpack.c.h.b16 %v761
    %v4607 = vunpack.c.l.b16 %v762
    %v4608 = vunpack.c.h.b16 %v762
    %v4609 = vunpack.c.l.b16 %v763
    %v4610 = vunpack.c.h.b16 %v763
    %v4611 = vunpack.c.l.b16 %v764
    %v4612 = vunpack.c.h.b16 %v764
    %v4613 = vunpack.c.l.b16 %v765
    %v4614 = vunpack.c.h.b16 %v765
    %v4615 = vunpack.c.l.b16 %v766
    %v4616 = vunpack.c.h.b16 %v766
    %v4617 = vunpack.c.l.b16 %v767
    %v4618 = vunpack.c.h.b16 %v767
    %v4619 = vunpack.c.l.b16 %v768
    %v4620 = vunpack.c.h.b16 %v768
    %v4621 = vunpack.c.l.b16 %v769
    %v4622 = vunpack.c.h.b16 %v769
    %v4623 = vunpack.c.l.b16 %v770
    %v4624 = vunpack.c.h.b16 %v770
    %v4625 = vunpack.c.l.b16 %v771
    %v4626 = vunpack.c.h.b16 %v771
    %v4627 = vunpack.c.l.b16 %v772
    %v4628 = vunpack.c.h.b16 %v772
    %v4629 = vunpack.c.l.b16 %v773
    %v4630 = vunpack.c.h.b16 %v773
    %v4631 = vunpack.c.l.b16 %v774
    %v4632 = vunpack.c.h.b16 %v774
    %v4633 = vunpack.c.l.b16 %v775
    %v4634 = vunpack.c.h.b16 %v775
    %v4635 = vunpack.c.l.b16 %v776
    %v4636 = vunpack.c.h.b16 %v776
    %v4637 = vunpack.c.l.b16 %v777
    %v4638 = vunpack.c.h.b16 %v777
    %v4639 = vunpack.c.l.b16 %v778
    %v4640 = vunpack.c.h.b16 %v778
    %v4641 = vunpack.c.l.b16 %v779
    %v4642 = vunpack.c.h.b16 %v779
    %v4643 = vunpack.c.l.b16 %v780
    %v4644 = vunpack.c.h.b16 %v780
    %v4645 = vunpack.c.l.b16 %v781
    %v4646 = vunpack.c.h.b16 %v781
    %v4647 = vunpack.c.l.b16 %v782
    %v4648 = vunpack.c.h.b16 %v782
    %v4649 = vunpack.c.l.b16 %v783
    %v4650 = vunpack.c.h.b16 %v783
    %v4651 = vunpack.c.l.b16 %v784
    %v4652 = vunpack.c.h.b16 %v784
    %v4653 = vunpack.c.l.b16 %v785
    %v4654 = vunpack.c.h.b16 %v785
    %v4655 = vunpack.c.l.b16 %v786
    %v4656 = vunpack.c.h.b16 %v786
    %v4657 = vunpack.c.l.b16 %v787
    %v4658 = vunpack.c.h.b16 %v787
    %v4659 = vunpack.c.l.b16 %v788
    %v4660 = vunpack.c.h.b16 %v788
    %v4661 = vunpack.c.l.b16 %v789
    %v4662 = vunpack.c.h.b16 %v789
    %v4663 = vunpack.c.l.b16 %v790
    %v4664 = vunpack.c.h.b16 %v790
    %v4665 = vunpack.c.l.b16 %v791
    %v4666 = vunpack.c.h.b16 %v791
    %v4667 = vunpack.c.l.b16 %v792
    %v4668 = vunpack.c.h.b16 %v792
    %v4669 = vunpack.c.l.b16 %v793
    %v4670 = vunpack.c.h.b16 %v793
    %v4671 = vunpack.c.l.b16 %v794
    %v4672 = vunpack.c.h.b16 %v794
    %v4673 = vunpack.c.l.b16 %v795
    %v4674 = vunpack.c.h.b16 %v795
    %v4675 = vunpack.c.l.b16 %v796
    %v4676 = vunpack.c.h.b16 %v796
    %v4677 = vunpack.c.l.b16 %v797
    %v4678 = vunpack.c.h.b16 %v797
    %v4679 = vunpack.c.l.b16 %v798
    %v4680 = vunpack.c.h.b16 %v798
    %v4681 = vunpack.c.l.b16 %v799
    %v4682 = vunpack.c.h.b16 %v799
    %v4683 = vunpack.c.l.b16 %v800
    %v4684 = vunpack.c.h.b16 %v800
    %v4685 = vunpack.c.l.b16 %v801
    %v4686 = vunpack.c.h.b16 %v801
    %v4687 = vunpack.c.l.b16 %v802
    %v4688 = vunpack.c.h.b16 %v802
    %v4689 = vunpack.c.l.b16 %v803
    %v4690 = vunpack.c.h.b16 %v803
    %v4691 = vunpack.c.l.b16 %v804
    %v4692 = vunpack.c.h.b16 %v804
    %v4693 = vunpack.c.l.b16 %v805
    %v4694 = vunpack.c.h.b16 %v805
    %v4695 = vunpack.c.l.b16 %v806
    %v4696 = vunpack.c.h.b16 %v806
    %v4697 = vunpack.c.l.b16 %v807
    %v4698 = vunpack.c.h.b16 %v807
    %v4699 = vunpack.c.l.b16 %v808
    %v4700 = vunpack.c.h.b16 %v808
    %v4701 = vunpack.c.l.b16 %v809
    %v4702 = vunpack.c.h.b16 %v809
    %v4703 = vunpack.c.l.b16 %v810
    %v4704 = vunpack.c.h.b16 %v810
    %v4705 = vunpack.c.l.b16 %v811
    %v4706 = vunpack.c.h.b16 %v811
    %v4707 = vunpack.c.l.b16 %v812
    %v4708 = vunpack.c.h.b16 %v812
    %v4709 = vunpack.c.l.b16 %v813
    %v4710 = vunpack.c.h.b16 %v813
    %v4711 = vunpack.c.l.b16 %v814
    %v4712 = vunpack.c.h.b16 %v814
    %v4713 = vunpack.c.l.b16 %v815
    %v4714 = vunpack.c.h.b16 %v815
    %v4715 = vunpack.c.l.b16 %v816
    %v4716 = vunpack.c.h.b16 %v816
    %v4717 = vunpack.c.l.b16 %v817
    %v4718 = vunpack.c.h.b16 %v817
    %v4719 = vunpack.c.l.b16 %v818
    %v4720 = vunpack.c.h.b16 %v818
    %v4721 = vunpack.c.l.b16 %v819
    %v4722 = vunpack.c.h.b16 %v819
    %v4723 = vunpack.c.l.b16 %v820
    %v4724 = vunpack.c.h.b16 %v820
    %v4725 = vunpack.c.l.b16 %v821
    %v4726 = vunpack.c.h.b16 %v821
    %v4727 = vunpack.c.l.b16 %v822
    %v4728 = vunpack.c.h.b16 %v822
    %v4729 = vunpack.c.l.b16 %v823
    %v4730 = vunpack.c.h.b16 %v823
    %v4731 = vunpack.c.l.b16 %v824
    %v4732 = vunpack.c.h.b16 %v824
    %v4733 = vunpack.c.l.b16 %v825
    %v4734 = vunpack.c.h.b16 %v825
    %v4735 = vunpack.c.l.b16 %v826
    %v4736 = vunpack.c.h.b16 %v826
    %v4737 = vunpack.c.l.b16 %v827
    %v4738 = vunpack.c.h.b16 %v827
    %v4739 = vunpack.c.l.b16 %v828
    %v4740 = vunpack.c.h.b16 %v828
    %v4741 = vunpack.c.l.b16 %v829
    %v4742 = vunpack.c.h.b16 %v829
    %v4743 = vunpack.c.l.b16 %v830
    %v4744 = vunpack.c.h.b16 %v830
    %v4745 = vunpack.c.l.b16 %v831
    %v4746 = vunpack.c.h.b16 %v831
    %v4747 = vunpack.c.l.b16 %v832
    %v4748 = vunpack.c.h.b16 %v832
    %v4749 = vunpack.c.l.b16 %v833
    %v4750 = vunpack.c.h.b16 %v833
    %v4751 = vunpack.c.l.b16 %v834
    %v4752 = vunpack.c.h.b16 %v834
    %v4753 = vunpack.c.l.b16 %v835
    %v4754 = vunpack.c.h.b16 %v835
    %v4755 = vunpack.c.l.b16 %v836
    %v4756 = vunpack.c.h.b16 %v836
    %v4757 = vunpack.c.l.b16 %v837
    %v4758 = vunpack.c.h.b16 %v837
    %v4759 = vunpack.c.l.b16 %v838
    %v4760 = vunpack.c.h.b16 %v838
    %v4761 = vunpack.c.l.b16 %v839
    %v4762 = vunpack.c.h.b16 %v839
    %v4763 = vunpack.c.l.b16 %v840
    %v4764 = vunpack.c.h.b16 %v840
    %v4765 = vunpack.c.l.b16 %v841
    %v4766 = vunpack.c.h.b16 %v841
    %v4767 = vunpack.c.l.b16 %v842
    %v4768 = vunpack.c.h.b16 %v842
    %v4769 = vunpack.c.l.b16 %v843
    %v4770 = vunpack.c.h.b16 %v843
    %v4771 = vunpack.c.l.b16 %v844
    %v4772 = vunpack.c.h.b16 %v844
    %v4773 = vunpack.c.l.b16 %v845
    %v4774 = vunpack.c.h.b16 %v845
    %v4775 = vunpack.c.l.b16 %v846
    %v4776 = vunpack.c.h.b16 %v846
    %v4777 = vunpack.c.l.b16 %v847
    %v4778 = vunpack.c.h.b16 %v847
    %v4779 = vunpack.c.l.b16 %v848
    %v4780 = vunpack.c.h.b16 %v848
    %v4781 = vunpack.c.l.b16 %v849
    %v4782 = vunpack.c.h.b16 %v849
    %v4783 = vunpack.c.l.b16 %v850
    %v4784 = vunpack.c.h.b16 %v850
    %v4785 = vunpack.c.l.b16 %v851
    %v4786 = vunpack.c.h.b16 %v851
    %v4787 = vunpack.c.l.b16 %v852
    %v4788 = vunpack.c.h.b16 %v852
    %v4789 = vunpack.c.l.b16 %v853
    %v4790 = vunpack.c.h.b16 %v853
    %v4791 = vunpack.c.l.b16 %v854
    %v4792 = vunpack.c.h.b16 %v854
    %v4793 = vunpack.c.l.b16 %v855
    %v4794 = vunpack.c.h.b16 %v855
    %v4795 = vunpack.c.l.b16 %v856
    %v4796 = vunpack.c.h.b16 %v856
    %v4797 = vunpack.c.l.b16 %v857
    %v4798 = vunpack.c.h.b16 %v857
    %v4799 = vunpack.c.l.b16 %v858
    %v4800 = vunpack.c.h.b16 %v858
    %v4801 = vunpack.c.l.b16 %v859
    %v4802 = vunpack.c.h.b16 %v859
    %v4803 = vunpack.c.l.b16 %v860
    %v4804 = vunpack.c.h.b16 %v860
    %v4805 = vunpack.c.l.b16 %v861
    %v4806 = vunpack.c.h.b16 %v861
    %v4807 = vunpack.c.l.b16 %v862
    %v4808 = vunpack.c.h.b16 %v862
    %v4809 = vunpack.c.l.b16 %v863
    %v4810 = vunpack.c.h.b16 %v863
    %v4811 = vunpack.c.l.b16 %v864
    %v4812 = vunpack.c.h.b16 %v864
    %v4813 = vunpack.c.l.b16 %v865
    %v4814 = vunpack.c.h.b16 %v865
    %v4815 = vunpack.c.l.b16 %v866
    %v4816 = vunpack.c.h.b16 %v866
    %v4817 = vunpack.c.l.b16 %v867
    %v4818 = vunpack.c.h.b16 %v867
    %v4819 = vunpack.c.l.b16 %v868
    %v4820 = vunpack.c.h.b16 %v868
    %v4821 = vunpack.c.l.b16 %v869
    %v4822 = vunpack.c.h.b16 %v869
    %v4823 = vunpack.c.l.b16 %v870
    %v4824 = vunpack.c.h.b16 %v870
    %v4825 = vunpack.c.l.b16 %v871
    %v4826 = vunpack.c.h.b16 %v871
    %v4827 = vunpack.c.l.b16 %v872
    %v4828 = vunpack.c.h.b16 %v872
    %v4829 = vunpack.c.l.b16 %v873
    %v4830 = vunpack.c.h.b16 %v873
    %v4831 = vunpack.c.l.b16 %v874
    %v4832 = vunpack.c.h.b16 %v874
    %v4833 = vunpack.c.l.b16 %v875
    %v4834 = vunpack.c.h.b16 %v875
    %v4835 = vunpack.c.l.b16 %v876
    %v4836 = vunpack.c.h.b16 %v876
    %v4837 = vunpack.c.l.b16 %v877
    %v4838 = vunpack.c.h.b16 %v877
    %v4839 = vunpack.c.l.b16 %v878
    %v4840 = vunpack.c.h.b16 %v878
    %v4841 = vunpack.c.l.b16 %v879
    %v4842 = vunpack.c.h.b16 %v879
    %v4843 = vunpack.c.l.b16 %v880
    %v4844 = vunpack.c.h.b16 %v880
    %v4845 = vunpack.c.l.b16 %v881
    %v4846 = vunpack.c.h.b16 %v881
    %v4847 = vunpack.c.l.b16 %v882
    %v4848 = vunpack.c.h.b16 %v882
    %v4849 = vunpack.c.l.b16 %v883
    %v4850 = vunpack.c.h.b16 %v883
    %v4851 = vunpack.c.l.b16 %v884
    %v4852 = vunpack.c.h.b16 %v884
    %v4853 = vunpack.c.l.b16 %v885
    %v4854 = vunpack.c.h.b16 %v885
    %v4855 = vunpack.c.l.b16 %v886
    %v4856 = vunpack.c.h.b16 %v886
    %v4857 = vunpack.c.l.b16 %v887
    %v4858 = vunpack.c.h.b16 %v887
    %v4859 = vunpack.c.l.b16 %v888
    %v4860 = vunpack.c.h.b16 %v888
    %v4861 = vunpack.c.l.b16 %v889
    %v4862 = vunpack.c.h.b16 %v889
    %v4863 = vunpack.c.l.b16 %v890
    %v4864 = vunpack.c.h.b16 %v890
    %v4865 = vunpack.c.l.b16 %v891
    %v4866 = vunpack.c.h.b16 %v891
    %v4867 = vunpack.c.l.b16 %v892
    %v4868 = vunpack.c.h.b16 %v892
    %v4869 = vunpack.c.l.b16 %v893
    %v4870 = vunpack.c.h.b16 %v893
    %v4871 = vunpack.c.l.b16 %v894
    %v4872 = vunpack.c.h.b16 %v894
    %v4873 = vunpack.c.l.b16 %v895
    %v4874 = vunpack.c.h.b16 %v895
    %v4875 = vunpack.c.l.b16 %v896
    %v4876 = vunpack.c.h.b16 %v896
    %v4877 = vunpack.c.l.b16 %v897
    %v4878 = vunpack.c.h.b16 %v897
    %v4879 = vunpack.c.l.b16 %v898
    %v4880 = vunpack.c.h.b16 %v898
    %v4881 = vunpack.c.l.b16 %v899
    %v4882 = vunpack.c.h.b16 %v899
    %v4883 = vunpack.c.l.b16 %v900
    %v4884 = vunpack.c.h.b16 %v900
    %v4885 = vunpack.c.l.b16 %v901
    %v4886 = vunpack.c.h.b16 %v901
    %v4887 = vunpack.c.l.b16 %v902
    %v4888 = vunpack.c.h.b16 %v902
    %v4889 = vunpack.c.l.b16 %v903
    %v4890 = vunpack.c.h.b16 %v903
    %v4891 = vunpack.c.l.b16 %v904
    %v4892 = vunpack.c.h.b16 %v904
    %v4893 = vunpack.c.l.b16 %v905
    %v4894 = vunpack.c.h.b16 %v905
    %v4895 = vunpack.c.l.b16 %v906
    %v4896 = vunpack.c.h.b16 %v906
    %v4897 = vunpack.c.l.b16 %v907
    %v4898 = vunpack.c.h.b16 %v907
    %v4899 = vunpack.c.l.b16 %v908
    %v4900 = vunpack.c.h.b16 %v908
    %v4901 = vunpack.c.l.b16 %v909
    %v4902 = vunpack.c.h.b16 %v909
    %v4903 = vunpack.c.l.b16 %v910
    %v4904 = vunpack.c.h.b16 %v910
    %v4905 = vunpack.c.l.b16 %v911
    %v4906 = vunpack.c.h.b16 %v911
    %v4907 = vunpack.c.l.b16 %v912
    %v4908 = vunpack.c.h.b16 %v912
    %v4909 = vunpack.c.l.b16 %v913
    %v4910 = vunpack.c.h.b16 %v913
    %v4911 = vunpack.c.l.b16 %v914
    %v4912 = vunpack.c.h.b16 %v914
    %v4913 = vunpack.c.l.b16 %v915
    %v4914 = vunpack.c.h.b16 %v915
    %v4915 = vunpack.c.l.b16 %v916
    %v4916 = vunpack.c.h.b16 %v916
    %v4917 = vunpack.c.l.b16 %v917
    %v4918 = vunpack.c.h.b16 %v917
    %v4919 = vunpack.c.l.b16 %v918
    %v4920 = vunpack.c.h.b16 %v918
    %v4921 = vunpack.c.l.b16 %v919
    %v4922 = vunpack.c.h.b16 %v919
    %v4923 = vunpack.c.l.b16 %v920
    %v4924 = vunpack.c.h.b16 %v920
    %v4925 = vunpack.c.l.b16 %v921
    %v4926 = vunpack.c.h.b16 %v921
    %v4927 = vunpack.c.l.b16 %v922
    %v4928 = vunpack.c.h.b16 %v922
    %v4929 = vunpack.c.l.b16 %v923
    %v4930 = vunpack.c.h.b16 %v923
    %v4931 = vunpack.c.l.b16 %v924
    %v4932 = vunpack.c.h.b16 %v924
    %v4933 = vunpack.c.l.b16 %v925
    %v4934 = vunpack.c.h.b16 %v925
    %v4935 = vunpack.c.l.b16 %v926
    %v4936 = vunpack.c.h.b16 %v926
    %v4937 = vunpack.c.l.b16 %v927
    %v4938 = vunpack.c.h.b16 %v927
    %v4939 = vunpack.c.l.b16 %v928
    %v4940 = vunpack.c.h.b16 %v928
    %v4941 = vunpack.c.l.b16 %v929
    %v4942 = vunpack.c.h.b16 %v929
    %v4943 = vunpack.c.l.b16 %v930
    %v4944 = vunpack.c.h.b16 %v930
    %v4945 = vunpack.c.l.b16 %v931
    %v4946 = vunpack.c.h.b16 %v931
    %v4947 = vunpack.c.l.b16 %v932
    %v4948 = vunpack.c.h.b16 %v932
    %v4949 = vunpack.c.l.b16 %v933
    %v4950 = vunpack.c.h.b16 %v933
    %v4951 = vunpack.c.l.b16 %v934
    %v4952 = vunpack.c.h.b16 %v934
    %v4953 = vunpack.c.l.b16 %v935
    %v4954 = vunpack.c.h.b16 %v935
    %v4955 = vunpack.c.l.b16 %v936
    %v4956 = vunpack.c.h.b16 %v936
    %v4957 = vunpack.c.l.b16 %v937
    %v4958 = vunpack.c.h.b16 %v937
    %v4959 = vunpack.c.l.b16 %v938
    %v4960 = vunpack.c.h.b16 %v938
    %v4961 = vunpack.c.l.b16 %v939
    %v4962 = vunpack.c.h.b16 %v939
    %v4963 = vunpack.c.l.b16 %v940
    %v4964 = vunpack.c.h.b16 %v940
    %v4965 = vunpack.c.l.b16 %v941
    %v4966 = vunpack.c.h.b16 %v941
    %v4967 = vunpack.c.l.b16 %v942
    %v4968 = vunpack.c.h.b16 %v942
    %v4969 = vunpack.c.l.b16 %v943
    %v4970 = vunpack.c.h.b16 %v943
    %v4971 = vunpack.c.l.b16 %v944
    %v4972 = vunpack.c.h.b16 %v944
    %v4973 = vunpack.c.l.b16 %v945
    %v4974 = vunpack.c.h.b16 %v945
    %v4975 = vunpack.c.l.b16 %v946
    %v4976 = vunpack.c.h.b16 %v946
    %v4977 = vunpack.c.l.b16 %v947
    %v4978 = vunpack.c.h.b16 %v947
    %v4979 = vunpack.c.l.b16 %v948
    %v4980 = vunpack.c.h.b16 %v948
    %v4981 = vunpack.c.l.b16 %v949
    %v4982 = vunpack.c.h.b16 %v949
    %v4983 = vunpack.c.l.b16 %v950
    %v4984 = vunpack.c.h.b16 %v950
    %v4985 = vunpack.c.l.b16 %v951
    %v4986 = vunpack.c.h.b16 %v951
    %v4987 = vunpack.c.l.b16 %v952
    %v4988 = vunpack.c.h.b16 %v952
    %v4989 = vunpack.c.l.b16 %v953
    %v4990 = vunpack.c.h.b16 %v953
    %v4991 = vunpack.c.l.b16 %v954
    %v4992 = vunpack.c.h.b16 %v954
    %v4993 = vunpack.c.l.b16 %v955
    %v4994 = vunpack.c.h.b16 %v955
    %v4995 = vunpack.c.l.b16 %v956
    %v4996 = vunpack.c.h.b16 %v956
    %v4997 = vunpack.c.l.b16 %v957
    %v4998 = vunpack.c.h.b16 %v957
    %v4999 = vunpack.c.l.b16 %v958
    %v5000 = vunpack.c.h.b16 %v958
    %v5001 = vunpack.c.l.b16 %v959
    %v5002 = vunpack.c.h.b16 %v959
    %v5003 = vunpack.c.l.b16 %v960
    %v5004 = vunpack.c.h.b16 %v960
    %v5005 = vunpack.c.l.b16 %v961
    %v5006 = vunpack.c.h.b16 %v961
    %v5007 = vunpack.c.l.b16 %v962
    %v5008 = vunpack.c.h.b16 %v962
    %v5009 = vunpack.c.l.b16 %v963
    %v5010 = vunpack.c.h.b16 %v963
    %v5011 = vunpack.c.l.b16 %v964
    %v5012 = vunpack.c.h.b16 %v964
    %v5013 = vunpack.c.l.b16 %v965
    %v5014 = vunpack.c.h.b16 %v965
    %v5015 = vunpack.c.l.b16 %v966
    %v5016 = vunpack.c.h.b16 %v966
    %v5017 = vunpack.c.l.b16 %v967
    %v5018 = vunpack.c.h.b16 %v967
    %v5019 = vunpack.c.l.b16 %v968
    %v5020 = vunpack.c.h.b16 %v968
    %v5021 = vunpack.c.l.b16 %v969
    %v5022 = vunpack.c.h.b16 %v969
    %v5023 = vunpack.c.l.b16 %v970
    %v5024 = vunpack.c.h.b16 %v970
    %v5025 = vunpack.c.l.b16 %v971
    %v5026 = vunpack.c.h.b16 %v971
    %v5027 = vunpack.c.l.b16 %v972
    %v5028 = vunpack.c.h.b16 %v972
    %v5029 = vunpack.c.l.b16 %v973
    %v5030 = vunpack.c.h.b16 %v973
    %v5031 = vunpack.c.l.b16 %v974
    %v5032 = vunpack.c.h.b16 %v974
    %v5033 = vunpack.c.l.b16 %v975
    %v5034 = vunpack.c.h.b16 %v975
    %v5035 = vunpack.c.l.b16 %v976
    %v5036 = vunpack.c.h.b16 %v976
    %v5037 = vunpack.c.l.b16 %v977
    %v5038 = vunpack.c.h.b16 %v977
    %v5039 = vunpack.c.l.b16 %v978
    %v5040 = vunpack.c.h.b16 %v978
    %v5041 = vunpack.c.l.b16 %v979
    %v5042 = vunpack.c.h.b16 %v979
    %v5043 = vunpack.c.l.b16 %v980
    %v5044 = vunpack.c.h.b16 %v980
    %v5045 = vunpack.c.l.b16 %v981
    %v5046 = vunpack.c.h.b16 %v981
    %v5047 = vunpack.c.l.b16 %v982
    %v5048 = vunpack.c.h.b16 %v982
    %v5049 = vunpack.c.l.b16 %v983
    %v5050 = vunpack.c.h.b16 %v983
    %v5051 = vunpack.c.l.b16 %v984
    %v5052 = vunpack.c.h.b16 %v984
    %v5053 = vunpack.c.l.b16 %v985
    %v5054 = vunpack.c.h.b16 %v985
    %v5055 = vunpack.c.l.b16 %v986
    %v5056 = vunpack.c.h.b16 %v986
    %v5057 = vunpack.c.l.b16 %v987
    %v5058 = vunpack.c.h.b16 %v987
    %v5059 = vunpack.c.l.b16 %v988
    %v5060 = vunpack.c.h.b16 %v988
    %v5061 = vunpack.c.l.b16 %v989
    %v5062 = vunpack.c.h.b16 %v989
    %v5063 = vunpack.c.l.b16 %v990
    %v5064 = vunpack.c.h.b16 %v990
    %v5065 = vunpack.c.l.b16 %v991
    %v5066 = vunpack.c.h.b16 %v991
    %v5067 = vunpack.c.l.b16 %v992
    %v5068 = vunpack.c.h.b16 %v992
    %v5069 = vunpack.c.l.b16 %v993
    %v5070 = vunpack.c.h.b16 %v993
    %v5071 = vunpack.c.l.b16 %v994
    %v5072 = vunpack.c.h.b16 %v994
    %v5073 = vunpack.c.l.b16 %v995
    %v5074 = vunpack.c.h.b16 %v995
    %v5075 = vunpack.c.l.b16 %v996
    %v5076 = vunpack.c.h.b16 %v996
    %v5077 = vunpack.c.l.b16 %v997
    %v5078 = vunpack.c.h.b16 %v997
    %v5079 = vunpack.c.l.b16 %v998
    %v5080 = vunpack.c.h.b16 %v998
    %v5081 = vunpack.c.l.b16 %v999
    %v5082 = vunpack.c.h.b16 %v999
    %v5083 = vunpack.c.l.b16 %v1000
    %v5084 = vunpack.c.h.b16 %v1000
    %v5085 = vunpack.c.l.b16 %v1001
    %v5086 = vunpack.c.h.b16 %v1001
    %v5087 = vunpack.c.l.b16 %v1002
    %v5088 = vunpack.c.h.b16 %v1002
    %v5089 = vunpack.c.l.b16 %v1003
    %v5090 = vunpack.c.h.b16 %v1003
    %v5091 = vunpack.c.l.b16 %v1004
    %v5092 = vunpack.c.h.b16 %v1004
    %v5093 = vunpack.c.l.b16 %v1005
    %v5094 = vunpack.c.h.b16 %v1005
    %v5095 = vunpack.c.l.b16 %v1006
    %v5096 = vunpack.c.h.b16 %v1006
    %v5097 = vunpack.c.l.b16 %v1007
    %v5098 = vunpack.c.h.b16 %v1007
    %v5099 = vunpack.c.l.b16 %v1008
    %v5100 = vunpack.c.h.b16 %v1008
    %v5101 = vunpack.c.l.b16 %v1009
    %v5102 = vunpack.c.h.b16 %v1009
    %v5103 = vunpack.c.l.b16 %v1010
    %v5104 = vunpack.c.h.b16 %v1010
    %v5105 = vunpack.c.l.b16 %v1011
    %v5106 = vunpack.c.h.b16 %v1011
    %v5107 = vunpack.c.l.b16 %v1012
    %v5108 = vunpack.c.h.b16 %v1012
    %v5109 = vunpack.c.l.b16 %v1013
    %v5110 = vunpack.c.h.b16 %v1013
    %v5111 = vunpack.c.l.b16 %v1014
    %v5112 = vunpack.c.h.b16 %v1014
    %v5113 = vunpack.c.l.b16 %v1015
    %v5114 = vunpack.c.h.b16 %v1015
    %v5115 = vunpack.c.l.b16 %v1016
    %v5116 = vunpack.c.h.b16 %v1016
    %v5117 = vunpack.c.l.b16 %v1017
    %v5118 = vunpack.c.h.b16 %v1017
    %v5119 = vunpack.c.l.b16 %v1018
    %v5120 = vunpack.c.h.b16 %v1018
    %v5121 = vunpack.c.l.b16 %v1019
    %v5122 = vunpack.c.h.b16 %v1019
    %v5123 = vunpack.c.l.b16 %v1020
    %v5124 = vunpack.c.h.b16 %v1020
    %v5125 = vunpack.c.l.b16 %v1021
    %v5126 = vunpack.c.h.b16 %v1021
    %v5127 = vunpack.c.l.b16 %v1022
    %v5128 = vunpack.c.h.b16 %v1022
    %v5129 = vunpack.c.l.b16 %v1023
    %v5130 = vunpack.c.h.b16 %v1023
    %v5131 = vunpack.c.l.b16 %v1024
    %v5132 = vunpack.c.h.b16 %v1024
    %v5133 = vunpack.c.l.b16 %v1025
    %v5134 = vunpack.c.h.b16 %v1025
    %v5135 = vunpack.c.l.b16 %v1026
    %v5136 = vunpack.c.h.b16 %v1026
    %v5137 = vunpack.c.l.b16 %v1027
    %v5138 = vunpack.c.h.b16 %v1027
    %v5139 = vunpack.c.l.b16 %v1028
    %v5140 = vunpack.c.h.b16 %v1028
    %v5141 = vunpack.c.l.b16 %v1029
    %v5142 = vunpack.c.h.b16 %v1029
    %v5143 = vunpack.c.l.b16 %v1030
    %v5144 = vunpack.c.h.b16 %v1030
    %v5145 = vunpack.c.l.b16 %v1031
    %v5146 = vunpack.c.h.b16 %v1031
    %v5147 = vunpack.c.l.b16 %v1032
    %v5148 = vunpack.c.h.b16 %v1032
    %v5149 = vunpack.c.l.b16 %v1033
    %v5150 = vunpack.c.h.b16 %v1033
    %v5151 = vunpack.c.l.b16 %v1034
    %v5152 = vunpack.c.h.b16 %v1034
    %v5153 = vunpack.c.l.b16 %v1035
    %v5154 = vunpack.c.h.b16 %v1035
    %v5155 = vunpack.c.l.b16 %v1036
    %v5156 = vunpack.c.h.b16 %v1036
    %v5157 = vunpack.c.l.b16 %v1037
    %v5158 = vunpack.c.h.b16 %v1037
    %v5159 = vunpack.c.l.b16 %v1038
    %v5160 = vunpack.c.h.b16 %v1038
    %v5161 = vunpack.c.l.b16 %v1039
    %v5162 = vunpack.c.h.b16 %v1039
    %v5163 = vunpack.c.l.b16 %v1040
    %v5164 = vunpack.c.h.b16 %v1040
    %v5165 = vunpack.c.l.b16 %v1041
    %v5166 = vunpack.c.h.b16 %v1041
    %v5167 = vunpack.c.l.b16 %v1042
    %v5168 = vunpack.c.h.b16 %v1042
    %v5169 = vunpack.c.l.b16 %v1043
    %v5170 = vunpack.c.h.b16 %v1043
    %v5171 = vunpack.c.l.b16 %v1044
    %v5172 = vunpack.c.h.b16 %v1044
    %v5173 = vunpack.c.l.b16 %v1045
    %v5174 = vunpack.c.h.b16 %v1045
    %v5175 = vunpack.c.l.b16 %v1046
    %v5176 = vunpack.c.h.b16 %v1046
    %v5177 = vunpack.c.l.b16 %v1047
    %v5178 = vunpack.c.h.b16 %v1047
    %v5179 = vunpack.c.l.b16 %v1048
    %v5180 = vunpack.c.h.b16 %v1048
    %v5181 = vunpack.c.l.b16 %v1049
    %v5182 = vunpack.c.h.b16 %v1049
    %v5183 = vunpack.c.l.b16 %v1050
    %v5184 = vunpack.c.h.b16 %v1050
    %v5185 = vunpack.c.l.b16 %v1051
    %v5186 = vunpack.c.h.b16 %v1051
    %v5187 = vunpack.c.l.b16 %v1052
    %v5188 = vunpack.c.h.b16 %v1052
    %v5189 = vunpack.c.l.b16 %v1053
    %v5190 = vunpack.c.h.b16 %v1053
    %v5191 = vunpack.c.l.b16 %v1054
    %v5192 = vunpack.c.h.b16 %v1054
    %v5193 = vunpack.c.l.b16 %v1055
    %v5194 = vunpack.c.h.b16 %v1055
    %v5195 = vunpack.c.l.b16 %v1056
    %v5196 = vunpack.c.h.b16 %v1056
    %v5197 = vunpack.c.l.b16 %v1057
    %v5198 = vunpack.c.h.b16 %v1057
    %v5199 = vunpack.c.l.b16 %v1058
    %v5200 = vunpack.c.h.b16 %v1058
    %v5201 = vunpack.c.l.b16 %v1059
    %v5202 = vunpack.c.h.b16 %v1059
    %v5203 = vunpack.c.l.b16 %v1060
    %v5204 = vunpack.c.h.b16 %v1060
    %v5205 = vunpack.c.l.b16 %v1061
    %v5206 = vunpack.c.h.b16 %v1061
    %v5207 = vunpack.c.l.b16 %v1062
    %v5208 = vunpack.c.h.b16 %v1062
    %v5209 = vunpack.c.l.b16 %v1063
    %v5210 = vunpack.c.h.b16 %v1063
    %v5211 = vunpack.c.l.b16 %v1064
    %v5212 = vunpack.c.h.b16 %v1064
    %v5213 = vunpack.c.l.b16 %v1065
    %v5214 = vunpack.c.h.b16 %v1065
    %v5215 = vunpack.c.l.b16 %v1066
    %v5216 = vunpack.c.h.b16 %v1066
    %v5217 = vunpack.c.l.b16 %v1067
    %v5218 = vunpack.c.h.b16 %v1067
    %v5219 = vunpack.c.l.b16 %v1068
    %v5220 = vunpack.c.h.b16 %v1068
    %v5221 = vunpack.c.l.b16 %v1069
    %v5222 = vunpack.c.h.b16 %v1069
    %v5223 = vunpack.c.l.b16 %v1070
    %v5224 = vunpack.c.h.b16 %v1070
    %v5225 = vunpack.c.l.b16 %v1071
    %v5226 = vunpack.c.h.b16 %v1071
    %v5227 = vunpack.c.l.b16 %v1072
    %v5228 = vunpack.c.h.b16 %v1072
    %v5229 = vunpack.c.l.b16 %v1073
    %v5230 = vunpack.c.h.b16 %v1073
    %v5231 = vunpack.c.l.b16 %v1074
    %v5232 = vunpack.c.h.b16 %v1074
    %v5233 = vunpack.c.l.b16 %v1075
    %v5234 = vunpack.c.h.b16 %v1075
    %v5235 = vunpack.c.l.b16 %v1076
    %v5236 = vunpack.c.h.b16 %v1076
    %v5237 = vunpack.c.l.b16 %v1077
    %v5238 = vunpack.c.h.b16 %v1077
    %v5239 = vunpack.c.l.b16 %v1078
    %v5240 = vunpack.c.h.b16 %v1078
    %v5241 = vunpack.c.l.b16 %v1079
    %v5242 = vunpack.c.h.b16 %v1079
    %v5243 = vunpack.c.l.b16 %v1080
    %v5244 = vunpack.c.h.b16 %v1080
    %v5245 = vunpack.c.l.b16 %v1081
    %v5246 = vunpack.c.h.b16 %v1081
    %v5247 = vunpack.c.l.b16 %v1082
    %v5248 = vunpack.c.h.b16 %v1082
    %v5249 = vunpack.c.l.b16 %v1083
    %v5250 = vunpack.c.h.b16 %v1083
    %v5251 = vunpack.c.l.b16 %v1084
    %v5252 = vunpack.c.h.b16 %v1084
    %v5253 = vunpack.c.l.b16 %v1085
    %v5254 = vunpack.c.h.b16 %v1085
    %v5255 = vunpack.c.l.b16 %v1086
    %v5256 = vunpack.c.h.b16 %v1086
    %v5257 = vunpack.c.l.b16 %v1087
    %v5258 = vunpack.c.h.b16 %v1087
    %v5259 = vunpack.c.l.b16 %v1088
    %v5260 = vunpack.c.h.b16 %v1088
    %v5261 = vunpack.c.l.b16 %v1089
    %v5262 = vunpack.c.h.b16 %v1089
    %v5263 = vunpack.c.l.b16 %v1090
    %v5264 = vunpack.c.h.b16 %v1090
    %v5265 = vunpack.c.l.b16 %v1091
    %v5266 = vunpack.c.h.b16 %v1091
    %v5267 = vunpack.c.l.b16 %v1092
    %v5268 = vunpack.c.h.b16 %v1092
    %v5269 = vunpack.c.l.b16 %v1093
    %v5270 = vunpack.c.h.b16 %v1093
    %v5271 = vunpack.c.l.b16 %v1094
    %v5272 = vunpack.c.h.b16 %v1094
    %v5273 = vunpack.c.l.b16 %v1095
    %v5274 = vunpack.c.h.b16 %v1095
    %v5275 = vunpack.c.l.b16 %v1096
    %v5276 = vunpack.c.h.b16 %v1096
    %v5277 = vunpack.c.l.b16 %v1097
    %v5278 = vunpack.c.h.b16 %v1097
    %v5279 = vunpack.c.l.b16 %v1098
    %v5280 = vunpack.c.h.b16 %v1098
    %v5281 = vunpack.c.l.b16 %v1099
    %v5282 = vunpack.c.h.b16 %v1099
    %v5283 = vunpack.c.l.b16 %v1100
    %v5284 = vunpack.c.h.b16 %v1100
    %v5285 = vunpack.c.l.b16 %v1101
    %v5286 = vunpack.c.h.b16 %v1101
    %v5287 = vunpack.c.l.b16 %v1102
    %v5288 = vunpack.c.h.b16 %v1102
    %v5289 = vunpack.c.l.b16 %v1103
    %v5290 = vunpack.c.h.b16 %v1103
    %v5291 = vunpack.c.l.b16 %v1104
    %v5292 = vunpack.c.h.b16 %v1104
    %v5293 = vunpack.c.l.b16 %v1105
    %v5294 = vunpack.c.h.b16 %v1105
    %v5295 = vunpack.c.l.b16 %v1106
    %v5296 = vunpack.c.h.b16 %v1106
    %v5297 = vunpack.c.l.b16 %v1107
    %v5298 = vunpack.c.h.b16 %v1107
    %v5299 = vunpack.c.l.b16 %v1108
    %v5300 = vunpack.c.h.b16 %v1108
    %v5301 = vunpack.c.l.b16 %v1109
    %v5302 = vunpack.c.h.b16 %v1109
    %v5303 = vunpack.c.l.b16 %v1110
    %v5304 = vunpack.c.h.b16 %v1110
    %v5305 = vunpack.c.l.b16 %v1111
    %v5306 = vunpack.c.h.b16 %v1111
    %v5307 = vunpack.c.l.b16 %v1112
    %v5308 = vunpack.c.h.b16 %v1112
    %v5309 = vunpack.c.l.b16 %v1113
    %v5310 = vunpack.c.h.b16 %v1113
    %v5311 = vunpack.c.l.b16 %v1114
    %v5312 = vunpack.c.h.b16 %v1114
    %v5313 = vunpack.c.l.b16 %v1115
    %v5314 = vunpack.c.h.b16 %v1115
    %v5315 = vunpack.c.l.b16 %v1116
    %v5316 = vunpack.c.h.b16 %v1116
    %v5317 = vunpack.c.l.b16 %v1117
    %v5318 = vunpack.c.h.b16 %v1117
    %v5319 = vunpack.c.l.b16 %v1118
    %v5320 = vunpack.c.h.b16 %v1118
    %v5321 = vunpack.c.l.b16 %v1119
    %v5322 = vunpack.c.h.b16 %v1119
    %v5323 = vunpack.c.l.b16 %v1120
    %v5324 = vunpack.c.h.b16 %v1120
    %v5325 = vunpack.c.l.b16 %v1121
    %v5326 = vunpack.c.h.b16 %v1121
    %v5327 = vunpack.c.l.b16 %v1122
    %v5328 = vunpack.c.h.b16 %v1122
    %v5329 = vunpack.c.l.b16 %v1123
    %v5330 = vunpack.c.h.b16 %v1123
    %v5331 = vunpack.c.l.b16 %v1124
    %v5332 = vunpack.c.h.b16 %v1124
    %v5333 = vunpack.c.l.b16 %v1125
    %v5334 = vunpack.c.h.b16 %v1125
    %v5335 = vunpack.c.l.b16 %v1126
    %v5336 = vunpack.c.h.b16 %v1126
    %v5337 = vunpack.c.l.b16 %v1127
    %v5338 = vunpack.c.h.b16 %v1127
    %v5339 = vunpack.c.l.b16 %v1128
    %v5340 = vunpack.c.h.b16 %v1128
    %v5341 = vunpack.c.l.b16 %v1129
    %v5342 = vunpack.c.h.b16 %v1129
    %v5343 = vunpack.c.l.b16 %v1130
    %v5344 = vunpack.c.h.b16 %v1130
    %v5345 = vunpack.c.l.b16 %v1131
    %v5346 = vunpack.c.h.b16 %v1131
    %v5347 = vunpack.c.l.b16 %v1132
    %v5348 = vunpack.c.h.b16 %v1132
    %v5349 = vunpack.c.l.b16 %v1133
    %v5350 = vunpack.c.h.b16 %v1133
    %v5351 = vunpack.c.l.b16 %v1134
    %v5352 = vunpack.c.h.b16 %v1134
    %v5353 = vunpack.c.l.b16 %v1135
    %v5354 = vunpack.c.h.b16 %v1135
    %v5355 = vunpack.c.l.b16 %v1136
    %v5356 = vunpack.c.h.b16 %v1136
    %v5357 = vunpack.c.l.b16 %v1137
    %v5358 = vunpack.c.h.b16 %v1137
    %v5359 = vunpack.c.l.b16 %v1138
    %v5360 = vunpack.c.h.b16 %v1138
    %v5361 = vunpack.c.l.b16 %v1139
    %v5362 = vunpack.c.h.b16 %v1139
    %v5363 = vunpack.c.l.b16 %v1140
    %v5364 = vunpack.c.h.b16 %v1140
    %v5365 = vunpack.c.l.b16 %v1141
    %v5366 = vunpack.c.h.b16 %v1141
    %v5367 = vunpack.c.l.b16 %v1142
    %v5368 = vunpack.c.h.b16 %v1142
    %v5369 = vunpack.c.l.b16 %v1143
    %v5370 = vunpack.c.h.b16 %v1143
    %v5371 = vunpack.c.l.b16 %v1144
    %v5372 = vunpack.c.h.b16 %v1144
    %v5373 = vunpack.c.l.b16 %v1145
    %v5374 = vunpack.c.h.b16 %v1145
    %v5375 = vunpack.c.l.b16 %v1146
    %v5376 = vunpack.c.h.b16 %v1146
    %v5377 = vunpack.c.l.b16 %v1147
    %v5378 = vunpack.c.h.b16 %v1147
    %v5379 = vunpack.c.l.b16 %v1148
    %v5380 = vunpack.c.h.b16 %v1148
    %v5381 = vunpack.c.l.b16 %v1149
    %v5382 = vunpack.c.h.b16 %v1149
    %v5383 = vunpack.c.l.b16 %v1150
    %v5384 = vunpack.c.h.b16 %v1150
    %v5385 = vunpack.c.l.b16 %v1151
    %v5386 = vunpack.c.h.b16 %v1151
    %v5387 = vunpack.c.l.b16 %v1152
    %v5388 = vunpack.c.h.b16 %v1152
    %v5389 = vunpack.c.l.b16 %v1153
    %v5390 = vunpack.c.h.b16 %v1153
    %v5391 = vunpack.c.l.b16 %v1154
    %v5392 = vunpack.c.h.b16 %v1154
    %v5393 = vunpack.c.l.b16 %v1155
    %v5394 = vunpack.c.h.b16 %v1155
    %v5395 = vunpack.c.l.b16 %v1156
    %v5396 = vunpack.c.h.b16 %v1156
    %v5397 = vunpack.c.l.b16 %v1157
    %v5398 = vunpack.c.h.b16 %v1157
    %v5399 = vunpack.c.l.b16 %v1158
    %v5400 = vunpack.c.h.b16 %v1158
    %v5401 = vunpack.c.l.b16 %v1159
    %v5402 = vunpack.c.h.b16 %v1159
    %v5403 = vunpack.c.l.b16 %v1160
    %v5404 = vunpack.c.h.b16 %v1160
    %v5405 = vunpack.c.l.b16 %v1161
    %v5406 = vunpack.c.h.b16 %v1161
    %v5407 = vunpack.c.l.b16 %v1162
    %v5408 = vunpack.c.h.b16 %v1162
    %v5409 = vunpack.c.l.b16 %v1163
    %v5410 = vunpack.c.h.b16 %v1163
    %v5411 = vunpack.c.l.b16 %v1164
    %v5412 = vunpack.c.h.b16 %v1164
    %v5413 = vunpack.c.l.b16 %v1165
    %v5414 = vunpack.c.h.b16 %v1165
    %v5415 = vunpack.c.l.b16 %v1166
    %v5416 = vunpack.c.h.b16 %v1166
    %v5417 = vunpack.c.l.b16 %v1167
    %v5418 = vunpack.c.h.b16 %v1167
    %v5419 = vunpack.c.l.b16 %v1168
    %v5420 = vunpack.c.h.b16 %v1168
    %v5421 = vunpack.c.l.b16 %v1169
    %v5422 = vunpack.c.h.b16 %v1169
    %v5423 = vunpack.c.l.b16 %v1170
    %v5424 = vunpack.c.h.b16 %v1170
    %v5425 = vunpack.c.l.b16 %v1171
    %v5426 = vunpack.c.h.b16 %v1171
    %v5427 = vunpack.c.l.b16 %v1172
    %v5428 = vunpack.c.h.b16 %v1172
    %v5429 = vunpack.c.l.b16 %v1173
    %v5430 = vunpack.c.h.b16 %v1173
    %v5431 = vunpack.c.l.b16 %v1174
    %v5432 = vunpack.c.h.b16 %v1174
    %v5433 = vunpack.c.l.b16 %v1175
    %v5434 = vunpack.c.h.b16 %v1175
    %v5435 = vunpack.c.l.b16 %v1176
    %v5436 = vunpack.c.h.b16 %v1176
    %v5437 = vunpack.c.l.b16 %v1177
    %v5438 = vunpack.c.h.b16 %v1177
    %v5439 = vunpack.c.l.b16 %v1178
    %v5440 = vunpack.c.h.b16 %v1178
    %v5441 = vunpack.c.l.b16 %v1179
    %v5442 = vunpack.c.h.b16 %v1179
    %v5443 = vunpack.c.l.b16 %v1180
    %v5444 = vunpack.c.h.b16 %v1180
    %v5445 = vunpack.c.l.b16 %v1181
    %v5446 = vunpack.c.h.b16 %v1181
    %v5447 = vunpack.c.l.b16 %v1182
    %v5448 = vunpack.c.h.b16 %v1182
    %v5449 = vunpack.c.l.b16 %v1183
    %v5450 = vunpack.c.h.b16 %v1183
    %v5451 = vunpack.c.l.b16 %v1184
    %v5452 = vunpack.c.h.b16 %v1184
    %v5453 = vunpack.c.l.b16 %v1185
    %v5454 = vunpack.c.h.b16 %v1185
    %v5455 = vunpack.c.l.b16 %v1186
    %v5456 = vunpack.c.h.b16 %v1186
    %v5457 = vunpack.c.l.b16 %v1187
    %v5458 = vunpack.c.h.b16 %v1187
    %v5459 = vunpack.c.l.b16 %v1188
    %v5460 = vunpack.c.h.b16 %v1188
    %v5461 = vunpack.c.l.b16 %v1189
    %v5462 = vunpack.c.h.b16 %v1189
    %v5463 = vunpack.c.l.b16 %v1190
    %v5464 = vunpack.c.h.b16 %v1190
    %v5465 = vunpack.c.l.b16 %v1191
    %v5466 = vunpack.c.h.b16 %v1191
    %v5467 = vunpack.c.l.b16 %v1192
    %v5468 = vunpack.c.h.b16 %v1192
    %v5469 = vunpack.c.l.b16 %v1193
    %v5470 = vunpack.c.h.b16 %v1193
    %v5471 = vunpack.c.l.b16 %v1194
    %v5472 = vunpack.c.h.b16 %v1194
    %v5473 = vunpack.c.l.b16 %v1195
    %v5474 = vunpack.c.h.b16 %v1195
    %v5475 = vunpack.c.l.b16 %v1196
    %v5476 = vunpack.c.h.b16 %v1196
    %v5477 = vunpack.c.l.b16 %v1197
    %v5478 = vunpack.c.h.b16 %v1197
    %v5479 = vunpack.c.l.b16 %v1198
    %v5480 = vunpack.c.h.b16 %v1198
    %v5481 = vunpack.c.l.b16 %v1199
    %v5482 = vunpack.c.h.b16 %v1199
    %v5483 = vunpack.c.l.b16 %v1200
    %v5484 = vunpack.c.h.b16 %v1200
    %v5485 = vunpack.c.l.b16 %v1201
    %v5486 = vunpack.c.h.b16 %v1201
    %v5487 = vunpack.c.l.b16 %v1202
    %v5488 = vunpack.c.h.b16 %v1202
    %v5489 = vunpack.c.l.b16 %v1203
    %v5490 = vunpack.c.h.b16 %v1203
    %v5491 = vunpack.c.l.b16 %v1204
    %v5492 = vunpack.c.h.b16 %v1204
    %v5493 = vunpack.c.l.b16 %v1205
    %v5494 = vunpack.c.h.b16 %v1205
    %v5495 = vunpack.c.l.b16 %v1206
    %v5496 = vunpack.c.h.b16 %v1206
    %v5497 = vunpack.c.l.b16 %v1207
    %v5498 = vunpack.c.h.b16 %v1207
    %v5499 = vunpack.c.l.b16 %v1208
    %v5500 = vunpack.c.h.b16 %v1208
    %v5501 = vunpack.c.l.b16 %v1209
    %v5502 = vunpack.c.h.b16 %v1209
    %v5503 = vunpack.c.l.b16 %v1210
    %v5504 = vunpack.c.h.b16 %v1210
    %v5505 = vunpack.c.l.b16 %v1211
    %v5506 = vunpack.c.h.b16 %v1211
    %v5507 = vunpack.c.l.b16 %v1212
    %v5508 = vunpack.c.h.b16 %v1212
    %v5509 = vunpack.c.l.b16 %v1213
    %v5510 = vunpack.c.h.b16 %v1213
    %v5511 = vunpack.c.l.b16 %v1214
    %v5512 = vunpack.c.h.b16 %v1214
    %v5513 = vunpack.c.l.b16 %v1215
    %v5514 = vunpack.c.h.b16 %v1215
    %v5515 = vunpack.c.l.b16 %v1216
    %v5516 = vunpack.c.h.b16 %v1216
    %v5517 = vunpack.c.l.b16 %v1217
    %v5518 = vunpack.c.h.b16 %v1217
    %v5519 = vunpack.c.l.b16 %v1218
    %v5520 = vunpack.c.h.b16 %v1218
    %v5521 = vunpack.c.l.b16 %v1219
    %v5522 = vunpack.c.h.b16 %v1219
    %v5523 = vunpack.c.l.b16 %v1220
    %v5524 = vunpack.c.h.b16 %v1220
    %v5525 = vunpack.c.l.b16 %v1221
    %v5526 = vunpack.c.h.b16 %v1221
    %v5527 = vunpack.c.l.b16 %v1222
    %v5528 = vunpack.c.h.b16 %v1222
    %v5529 = vunpack.c.l.b16 %v1223
    %v5530 = vunpack.c.h.b16 %v1223
    %v5531 = vunpack.c.l.b16 %v1224
    %v5532 = vunpack.c.h.b16 %v1224
    %v5533 = vunpack.c.l.b16 %v1225
    %v5534 = vunpack.c.h.b16 %v1225
    %v5535 = vunpack.c.l.b16 %v1226
    %v5536 = vunpack.c.h.b16 %v1226
    %v5537 = vunpack.c.l.b16 %v1227
    %v5538 = vunpack.c.h.b16 %v1227
    %v5539 = vunpack.c.l.b16 %v1228
    %v5540 = vunpack.c.h.b16 %v1228
    %v5541 = vunpack.c.l.b16 %v1229
    %v5542 = vunpack.c.h.b16 %v1229
    %v5543 = vunpack.c.l.b16 %v1230
    %v5544 = vunpack.c.h.b16 %v1230
    %v5545 = vunpack.c.l.b16 %v1231
    %v5546 = vunpack.c.h.b16 %v1231
    %v5547 = vunpack.c.l.b16 %v1232
    %v5548 = vunpack.c.h.b16 %v1232
    %v5549 = vunpack.c.l.b16 %v1233
    %v5550 = vunpack.c.h.b16 %v1233
    %v5551 = vunpack.c.l.b16 %v1234
    %v5552 = vunpack.c.h.b16 %v1234
    %v5553 = vunpack.c.l.b16 %v1235
    %v5554 = vunpack.c.h.b16 %v1235
    %v5555 = vunpack.c.l.b16 %v1236
    %v5556 = vunpack.c.h.b16 %v1236
    %v5557 = vunpack.c.l.b16 %v1237
    %v5558 = vunpack.c.h.b16 %v1237
    %v5559 = vunpack.c.l.b16 %v1238
    %v5560 = vunpack.c.h.b16 %v1238
    %v5561 = vunpack.c.l.b16 %v1239
    %v5562 = vunpack.c.h.b16 %v1239
    %v5563 = vunpack.c.l.b16 %v1240
    %v5564 = vunpack.c.h.b16 %v1240
    %v5565 = vunpack.c.l.b16 %v1241
    %v5566 = vunpack.c.h.b16 %v1241
    %v5567 = vunpack.c.l.b16 %v1242
    %v5568 = vunpack.c.h.b16 %v1242
    %v5569 = vunpack.c.l.b16 %v1243
    %v5570 = vunpack.c.h.b16 %v1243
    %v5571 = vunpack.c.l.b16 %v1244
    %v5572 = vunpack.c.h.b16 %v1244
    %v5573 = vunpack.c.l.b16 %v1245
    %v5574 = vunpack.c.h.b16 %v1245
    %v5575 = vunpack.c.l.b16 %v1246
    %v5576 = vunpack.c.h.b16 %v1246
    %v5577 = vunpack.c.l.b16 %v1247
    %v5578 = vunpack.c.h.b16 %v1247
    %v5579 = vunpack.c.l.b16 %v1248
    %v5580 = vunpack.c.h.b16 %v1248
    %v5581 = vunpack.c.l.b16 %v1249
    %v5582 = vunpack.c.h.b16 %v1249
    %v5583 = vunpack.c.l.b16 %v1250
    %v5584 = vunpack.c.h.b16 %v1250
    %v5585 = vunpack.c.l.b16 %v1251
    %v5586 = vunpack.c.h.b16 %v1251
    %v5587 = vunpack.c.l.b16 %v1252
    %v5588 = vunpack.c.h.b16 %v1252
    %v5589 = vunpack.c.l.b16 %v1253
    %v5590 = vunpack.c.h.b16 %v1253
    %v5591 = vunpack.c.l.b16 %v1254
    %v5592 = vunpack.c.h.b16 %v1254
    %v5593 = vunpack.c.l.b16 %v1255
    %v5594 = vunpack.c.h.b16 %v1255
    %v5595 = vunpack.c.l.b16 %v1256
    %v5596 = vunpack.c.h.b16 %v1256
    %v5597 = vunpack.c.l.b16 %v1257
    %v5598 = vunpack.c.h.b16 %v1257
    %v5599 = vunpack.c.l.b16 %v1258
    %v5600 = vunpack.c.h.b16 %v1258
    %v5601 = vunpack.c.l.b16 %v1259
    %v5602 = vunpack.c.h.b16 %v1259
    %v5603 = vunpack.c.l.b16 %v1260
    %v5604 = vunpack.c.h.b16 %v1260
    %v5605 = vunpack.c.l.b16 %v1261
    %v5606 = vunpack.c.h.b16 %v1261
    %v5607 = vunpack.c.l.b16 %v1262
    %v5608 = vunpack.c.h.b16 %v1262
    %v5609 = vunpack.c.l.b16 %v1263
    %v5610 = vunpack.c.h.b16 %v1263
    %v5611 = vunpack.c.l.b16 %v1264
    %v5612 = vunpack.c.h.b16 %v1264
    %v5613 = vunpack.c.l.b16 %v1265
    %v5614 = vunpack.c.h.b16 %v1265
    %v5615 = vunpack.c.l.b16 %v1266
    %v5616 = vunpack.c.h.b16 %v1266
    %v5617 = vunpack.c.l.b16 %v1267
    %v5618 = vunpack.c.h.b16 %v1267
    %v5619 = vunpack.c.l.b16 %v1268
    %v5620 = vunpack.c.h.b16 %v1268
    %v5621 = vunpack.c.l.b16 %v1269
    %v5622 = vunpack.c.h.b16 %v1269
    %v5623 = vunpack.c.l.b16 %v1270
    %v5624 = vunpack.c.h.b16 %v1270
    %v5625 = vunpack.c.l.b16 %v1271
    %v5626 = vunpack.c.h.b16 %v1271
    %v5627 = vunpack.c.l.b16 %v1272
    %v5628 = vunpack.c.h.b16 %v1272
    %v5629 = vunpack.c.l.b16 %v1273
    %v5630 = vunpack.c.h.b16 %v1273
    %v5631 = vunpack.c.l.b16 %v1274
    %v5632 = vunpack.c.h.b16 %v1274
    %v5633 = vunpack.c.l.b16 %v1275
    %v5634 = vunpack.c.h.b16 %v1275
    %v5635 = vunpack.c.l.b16 %v1276
    %v5636 = vunpack.c.h.b16 %v1276
    %v5637 = vunpack.c.l.b16 %v1277
    %v5638 = vunpack.c.h.b16 %v1277
    %v5639 = vunpack.c.l.b16 %v1278
    %v5640 = vunpack.c.h.b16 %v1278
    %v5641 = vunpack.c.l.b16 %v1279
    %v5642 = vunpack.c.h.b16 %v1279
    %v5643 = vunpack.c.l.b16 %v1280
    %v5644 = vunpack.c.h.b16 %v1280
    %v5645 = vunpack.c.l.b16 %v1281
    %v5646 = vunpack.c.h.b16 %v1281
    %v5647 = vunpack.c.l.b16 %v1282
    %v5648 = vunpack.c.h.b16 %v1282
    %v5649 = vunpack.c.l.b16 %v1283
    %v5650 = vunpack.c.h.b16 %v1283
    %v5651 = vunpack.c.l.b16 %v1284
    %v5652 = vunpack.c.h.b16 %v1284
    %v5653 = vunpack.c.l.b16 %v1285
    %v5654 = vunpack.c.h.b16 %v1285
    %v5655 = vunpack.c.l.b16 %v1286
    %v5656 = vunpack.c.h.b16 %v1286
    %v5657 = vunpack.c.l.b16 %v1287
    %v5658 = vunpack.c.h.b16 %v1287
    %v5659 = vunpack.c.l.b16 %v1288
    %v5660 = vunpack.c.h.b16 %v1288
    %v5661 = vunpack.c.l.b16 %v1289
    %v5662 = vunpack.c.h.b16 %v1289
    %v5663 = vunpack.c.l.b16 %v1290
    %v5664 = vunpack.c.h.b16 %v1290
    %v5665 = vunpack.c.l.b16 %v1291
    %v5666 = vunpack.c.h.b16 %v1291
    %v5667 = vunpack.c.l.b16 %v1292
    %v5668 = vunpack.c.h.b16 %v1292
    %v5669 = vunpack.c.l.b16 %v1293
    %v5670 = vunpack.c.h.b16 %v1293
    %v5671 = vunpack.c.l.b16 %v1294
    %v5672 = vunpack.c.h.b16 %v1294
    %v5673 = vunpack.c.l.b16 %v1295
    %v5674 = vunpack.c.h.b16 %v1295
    %v5675 = vunpack.c.l.b16 %v1296
    %v5676 = vunpack.c.h.b16 %v1296
    %v5677 = vunpack.c.l.b16 %v1297
    %v5678 = vunpack.c.h.b16 %v1297
    %v5679 = vunpack.c.l.b16 %v1298
    %v5680 = vunpack.c.h.b16 %v1298
    %v5681 = vunpack.c.l.b16 %v1299
    %v5682 = vunpack.c.h.b16 %v1299
    %v5683 = vunpack.c.l.b16 %v1300
    %v5684 = vunpack.c.h.b16 %v1300
    %v5685 = vunpack.c.l.b16 %v1301
    %v5686 = vunpack.c.h.b16 %v1301
    %v5687 = vunpack.c.l.b16 %v1302
    %v5688 = vunpack.c.h.b16 %v1302
    %v5689 = vunpack.c.l.b16 %v1303
    %v5690 = vunpack.c.h.b16 %v1303
    %v5691 = vunpack.c.l.b16 %v1304
    %v5692 = vunpack.c.h.b16 %v1304
    %v5693 = vunpack.c.l.b16 %v1305
    %v5694 = vunpack.c.h.b16 %v1305
    %v5695 = vunpack.c.l.b16 %v1306
    %v5696 = vunpack.c.h.b16 %v1306
    %v5697 = vunpack.c.l.b16 %v1307
    %v5698 = vunpack.c.h.b16 %v1307
    %v5699 = vunpack.c.l.b16 %v1308
    %v5700 = vunpack.c.h.b16 %v1308
    %v5701 = vunpack.c.l.b16 %v1309
    %v5702 = vunpack.c.h.b16 %v1309
    %v5703 = vunpack.c.l.b16 %v1310
    %v5704 = vunpack.c.h.b16 %v1310
    %v5705 = vunpack.c.l.b16 %v1311
    %v5706 = vunpack.c.h.b16 %v1311
    %v5707 = vunpack.c.l.b16 %v1312
    %v5708 = vunpack.c.h.b16 %v1312
    %v5709 = vunpack.c.l.b16 %v1313
    %v5710 = vunpack.c.h.b16 %v1313
    %v5711 = vunpack.c.l.b16 %v1314
    %v5712 = vunpack.c.h.b16 %v1314
    %v5713 = vunpack.c.l.b16 %v1315
    %v5714 = vunpack.c.h.b16 %v1315
    %v5715 = vunpack.c.l.b16 %v1316
    %v5716 = vunpack.c.h.b16 %v1316
    %v5717 = vunpack.c.l.b16 %v1317
    %v5718 = vunpack.c.h.b16 %v1317
    %v5719 = vunpack.c.l.b16 %v1318
    %v5720 = vunpack.c.h.b16 %v1318
    %v5721 = vunpack.c.l.b16 %v1319
    %v5722 = vunpack.c.h.b16 %v1319
    %v5723 = vunpack.c.l.b16 %v1320
    %v5724 = vunpack.c.h.b16 %v1320
    %v5725 = vunpack.c.l.b16 %v1321
    %v5726 = vunpack.c.h.b16 %v1321
    %v5727 = vunpack.c.l.b16 %v1322
    %v5728 = vunpack.c.h.b16 %v1322
    %v5729 = vunpack.c.l.b16 %v1323
    %v5730 = vunpack.c.h.b16 %v1323
    %v5731 = vunpack.c.l.b16 %v1324
    %v5732 = vunpack.c.h.b16 %v1324
    %v5733 = vunpack.c.l.b16 %v1325
    %v5734 = vunpack.c.h.b16 %v1325
    %v5735 = vunpack.c.l.b16 %v1326
    %v5736 = vunpack.c.h.b16 %v1326
    %v5737 = vunpack.c.l.b16 %v1327
    %v5738 = vunpack.c.h.b16 %v1327
    %v5739 = vunpack.c.l.b16 %v1328
    %v5740 = vunpack.c.h.b16 %v1328
    %v5741 = vunpack.c.l.b16 %v1329
    %v5742 = vunpack.c.h.b16 %v1329
    %v5743 = vunpack.c.l.b16 %v1330
    %v5744 = vunpack.c.h.b16 %v1330
    %v5745 = vunpack.c.l.b16 %v1331
    %v5746 = vunpack.c.h.b16 %v1331
    %v5747 = vunpack.c.l.b16 %v1332
    %v5748 = vunpack.c.h.b16 %v1332
    %v5749 = vunpack.c.l.b16 %v1333
    %v5750 = vunpack.c.h.b16 %v1333
    %v5751 = vunpack.c.l.b16 %v1334
    %v5752 = vunpack.c.h.b16 %v1334
    %v5753 = vunpack.c.l.b16 %v1335
    %v5754 = vunpack.c.h.b16 %v1335
    %v5755 = vunpack.c.l.b16 %v1336
    %v5756 = vunpack.c.h.b16 %v1336
    %v5757 = vunpack.c.l.b16 %v1337
    %v5758 = vunpack.c.h.b16 %v1337
    %v5759 = vunpack.c.l.b16 %v1338
    %v5760 = vunpack.c.h.b16 %v1338
    %v5761 = vunpack.c.l.b16 %v1339
    %v5762 = vunpack.c.h.b16 %v1339
    %v5763 = vunpack.c.l.b16 %v1340
    %v5764 = vunpack.c.h.b16 %v1340
    %v5765 = vunpack.c.l.b16 %v1341
    %v5766 = vunpack.c.h.b16 %v1341
    %v5767 = vunpack.c.l.b16 %v1342
    %v5768 = vunpack.c.h.b16 %v1342
    %v5769 = vunpack.c.l.b16 %v1343
    %v5770 = vunpack.c.h.b16 %v1343
    %v5771 = vunpack.c.l.b16 %v1344
    %v5772 = vunpack.c.h.b16 %v1344
    %v5773 = vunpack.c.l.b16 %v1345
    %v5774 = vunpack.c.h.b16 %v1345
    %v5775 = vunpack.c.l.b16 %v1346
    %v5776 = vunpack.c.h.b16 %v1346
    %v5777 = vunpack.c.l.b16 %v1347
    %v5778 = vunpack.c.h.b16 %v1347
    %v5779 = vunpack.c.l.b16 %v1348
    %v5780 = vunpack.c.h.b16 %v1348
    %v5781 = vunpack.c.l.b16 %v1349
    %v5782 = vunpack.c.h.b16 %v1349
    %v5783 = vunpack.c.l.b16 %v1350
    %v5784 = vunpack.c.h.b16 %v1350
    %v5785 = vunpack.c.l.b16 %v1351
    %v5786 = vunpack.c.h.b16 %v1351
    %v5787 = vunpack.c.l.b16 %v1352
    %v5788 = vunpack.c.h.b16 %v1352
    %v5789 = vunpack.c.l.b16 %v1353
    %v5790 = vunpack.c.h.b16 %v1353
    %v5791 = vunpack.c.l.b16 %v1354
    %v5792 = vunpack.c.h.b16 %v1354
    %v5793 = vunpack.c.l.b16 %v1355
    %v5794 = vunpack.c.h.b16 %v1355
    %v5795 = vunpack.c.l.b16 %v1356
    %v5796 = vunpack.c.h.b16 %v1356
    %v5797 = vunpack.c.l.b16 %v1357
    %v5798 = vunpack.c.h.b16 %v1357
    %v5799 = vunpack.c.l.b16 %v1358
    %v5800 = vunpack.c.h.b16 %v1358
    %v5801 = vunpack.c.l.b16 %v1359
    %v5802 = vunpack.c.h.b16 %v1359
    %v5803 = vunpack.c.l.b16 %v1360
    %v5804 = vunpack.c.h.b16 %v1360
    %v5805 = vunpack.c.l.b16 %v1361
    %v5806 = vunpack.c.h.b16 %v1361
    %v5807 = vunpack.c.l.b16 %v1362
    %v5808 = vunpack.c.h.b16 %v1362
    %v5809 = vunpack.c.l.b16 %v1363
    %v5810 = vunpack.c.h.b16 %v1363
    %v5811 = vunpack.c.l.b16 %v1364
    %v5812 = vunpack.c.h.b16 %v1364
    %v5813 = vunpack.c.l.b16 %v1365
    %v5814 = vunpack.c.h.b16 %v1365
    %v5815 = vunpack.c.l.b16 %v1366
    %v5816 = vunpack.c.h.b16 %v1366
    %v5817 = vunpack.c.l.b16 %v1367
    %v5818 = vunpack.c.h.b16 %v1367
    %v5819 = vunpack.c.l.b16 %v1368
    %v5820 = vunpack.c.h.b16 %v1368
    %v5821 = vunpack.c.l.b16 %v1369
    %v5822 = vunpack.c.h.b16 %v1369
    %v5823 = vunpack.c.l.b16 %v1370
    %v5824 = vunpack.c.h.b16 %v1370
    %v5825 = vunpack.c.l.b16 %v1371
    %v5826 = vunpack.c.h.b16 %v1371
    %v5827 = vunpack.c.l.b16 %v1372
    %v5828 = vunpack.c.h.b16 %v1372
    %v5829 = vunpack.c.l.b16 %v1373
    %v5830 = vunpack.c.h.b16 %v1373
    %v5831 = vunpack.c.l.b16 %v1374
    %v5832 = vunpack.c.h.b16 %v1374
    %v5833 = vunpack.c.l.b16 %v1375
    %v5834 = vunpack.c.h.b16 %v1375
    %v5835 = vunpack.c.l.b16 %v1376
    %v5836 = vunpack.c.h.b16 %v1376
    %v5837 = vunpack.c.l.b16 %v1377
    %v5838 = vunpack.c.h.b16 %v1377
    %v5839 = vunpack.c.l.b16 %v1378
    %v5840 = vunpack.c.h.b16 %v1378
    %v5841 = vunpack.c.l.b16 %v1379
    %v5842 = vunpack.c.h.b16 %v1379
    %v5843 = vunpack.c.l.b16 %v1380
    %v5844 = vunpack.c.h.b16 %v1380
    %v5845 = vunpack.c.l.b16 %v1381
    %v5846 = vunpack.c.h.b16 %v1381
    %v5847 = vunpack.c.l.b16 %v1382
    %v5848 = vunpack.c.h.b16 %v1382
    %v5849 = vunpack.c.l.b16 %v1383
    %v5850 = vunpack.c.h.b16 %v1383
    %v5851 = vunpack.c.l.b16 %v1384
    %v5852 = vunpack.c.h.b16 %v1384
    %v5853 = vunpack.c.l.b16 %v1385
    %v5854 = vunpack.c.h.b16 %v1385
    %v5855 = vunpack.c.l.b16 %v1386
    %v5856 = vunpack.c.h.b16 %v1386
    %v5857 = vunpack.c.l.b16 %v1387
    %v5858 = vunpack.c.h.b16 %v1387
    %v5859 = vunpack.c.l.b16 %v1388
    %v5860 = vunpack.c.h.b16 %v1388
    %v5861 = vunpack.c.l.b16 %v1389
    %v5862 = vunpack.c.h.b16 %v1389
    %v5863 = vunpack.c.l.b16 %v1390
    %v5864 = vunpack.c.h.b16 %v1390
    %v5865 = vunpack.c.l.b16 %v1391
    %v5866 = vunpack.c.h.b16 %v1391
    %v5867 = vunpack.c.l.b16 %v1392
    %v5868 = vunpack.c.h.b16 %v1392
    %v5869 = vunpack.c.l.b16 %v1393
    %v5870 = vunpack.c.h.b16 %v1393
    %v5871 = vunpack.c.l.b16 %v1394
    %v5872 = vunpack.c.h.b16 %v1394
    %v5873 = vunpack.c.l.b16 %v1395
    %v5874 = vunpack.c.h.b16 %v1395
    %v5875 = vunpack.c.l.b16 %v1396
    %v5876 = vunpack.c.h.b16 %v1396
    %v5877 = vunpack.c.l.b16 %v1397
    %v5878 = vunpack.c.h.b16 %v1397
    %v5879 = vunpack.c.l.b16 %v1398
    %v5880 = vunpack.c.h.b16 %v1398
    %v5881 = vunpack.c.l.b16 %v1399
    %v5882 = vunpack.c.h.b16 %v1399
    %v5883 = vunpack.c.l.b16 %v1400
    %v5884 = vunpack.c.h.b16 %v1400
    %v5885 = vunpack.c.l.b16 %v1401
    %v5886 = vunpack.c.h.b16 %v1401
    %v5887 = vunpack.c.l.b16 %v1402
    %v5888 = vunpack.c.h.b16 %v1402
    %v5889 = vunpack.c.l.b16 %v1403
    %v5890 = vunpack.c.h.b16 %v1403
    %v5891 = vunpack.c.l.b16 %v1404
    %v5892 = vunpack.c.h.b16 %v1404
    %v5893 = vunpack.c.l.b16 %v1405
    %v5894 = vunpack.c.h.b16 %v1405
    %v5895 = vunpack.c.l.b16 %v1406
    %v5896 = vunpack.c.h.b16 %v1406
    %v5897 = vunpack.c.l.b16 %v1407
    %v5898 = vunpack.c.h.b16 %v1407
    %v5899 = vunpack.c.l.b16 %v1408
    %v5900 = vunpack.c.h.b16 %v1408
    %v5901 = vunpack.c.l.b16 %v1409
    %v5902 = vunpack.c.h.b16 %v1409
    %v5903 = vunpack.c.l.b16 %v1410
    %v5904 = vunpack.c.h.b16 %v1410
    %v5905 = vunpack.c.l.b16 %v1411
    %v5906 = vunpack.c.h.b16 %v1411
    %v5907 = vunpack.c.l.b16 %v1412
    %v5908 = vunpack.c.h.b16 %v1412
    %v5909 = vunpack.c.l.b16 %v1413
    %v5910 = vunpack.c.h.b16 %v1413
    %v5911 = vunpack.c.l.b16 %v1414
    %v5912 = vunpack.c.h.b16 %v1414
    %v5913 = vunpack.c.l.b16 %v1415
    %v5914 = vunpack.c.h.b16 %v1415
    %v5915 = vunpack.c.l.b16 %v1416
    %v5916 = vunpack.c.h.b16 %v1416
    %v5917 = vunpack.c.l.b16 %v1417
    %v5918 = vunpack.c.h.b16 %v1417
    %v5919 = vunpack.c.l.b16 %v1418
    %v5920 = vunpack.c.h.b16 %v1418
    %v5921 = vunpack.c.l.b16 %v1419
    %v5922 = vunpack.c.h.b16 %v1419
    %v5923 = vunpack.c.l.b16 %v1420
    %v5924 = vunpack.c.h.b16 %v1420
    %v5925 = vunpack.c.l.b16 %v1421
    %v5926 = vunpack.c.h.b16 %v1421
    %v5927 = vunpack.c.l.b16 %v1422
    %v5928 = vunpack.c.h.b16 %v1422
    %v5929 = vunpack.c.l.b16 %v1423
    %v5930 = vunpack.c.h.b16 %v1423
    %v5931 = vunpack.c.l.b16 %v1424
    %v5932 = vunpack.c.h.b16 %v1424
    %v5933 = vunpack.c.l.b16 %v1425
    %v5934 = vunpack.c.h.b16 %v1425
    %v5935 = vunpack.c.l.b16 %v1426
    %v5936 = vunpack.c.h.b16 %v1426
    %v5937 = vunpack.c.l.b16 %v1427
    %v5938 = vunpack.c.h.b16 %v1427
    %v5939 = vunpack.c.l.b16 %v1428
    %v5940 = vunpack.c.h.b16 %v1428
    %v5941 = vunpack.c.l.b16 %v1429
    %v5942 = vunpack.c.h.b16 %v1429
    %v5943 = vunpack.c.l.b16 %v1430
    %v5944 = vunpack.c.h.b16 %v1430
    %v5945 = vunpack.c.l.b16 %v1431
    %v5946 = vunpack.c.h.b16 %v1431
    %v5947 = vunpack.c.l.b16 %v1432
    %v5948 = vunpack.c.h.b16 %v1432
    %v5949 = vunpack.c.l.b16 %v1433
    %v5950 = vunpack.c.h.b16 %v1433
    %v5951 = vunpack.c.l.b16 %v1434
    %v5952 = vunpack.c.h.b16 %v1434
    %v5953 = vunpack.c.l.b16 %v1435
    %v5954 = vunpack.c.h.b16 %v1435
    %v5955 = vunpack.c.l.b16 %v1436
    %v5956 = vunpack.c.h.b16 %v1436
    %v5957 = vunpack.c.l.b16 %v1437
    %v5958 = vunpack.c.h.b16 %v1437
    %v5959 = vunpack.c.l.b16 %v1438
    %v5960 = vunpack.c.h.b16 %v1438
    %v5961 = vunpack.c.l.b16 %v1439
    %v5962 = vunpack.c.h.b16 %v1439
    %v5963 = vunpack.c.l.b16 %v1440
    %v5964 = vunpack.c.h.b16 %v1440
    %v5965 = vunpack.c.l.b16 %v1441
    %v5966 = vunpack.c.h.b16 %v1441
    %v5967 = vunpack.c.l.b16 %v1442
    %v5968 = vunpack.c.h.b16 %v1442
    %v5969 = vunpack.c.l.b16 %v1443
    %v5970 = vunpack.c.h.b16 %v1443
    %v5971 = vunpack.c.l.b16 %v1444
    %v5972 = vunpack.c.h.b16 %v1444
    %v5973 = vunpack.c.l.b16 %v1445
    %v5974 = vunpack.c.h.b16 %v1445
    %v5975 = vunpack.c.l.b16 %v1446
    %v5976 = vunpack.c.h.b16 %v1446
    %v5977 = vunpack.c.l.b16 %v1447
    %v5978 = vunpack.c.h.b16 %v1447
    %v5979 = vunpack.c.l.b16 %v1448
    %v5980 = vunpack.c.h.b16 %v1448
    %v5981 = vunpack.c.l.b16 %v1449
    %v5982 = vunpack.c.h.b16 %v1449
    %v5983 = vunpack.c.l.b16 %v1450
    %v5984 = vunpack.c.h.b16 %v1450
    %v5985 = vunpack.c.l.b16 %v1451
    %v5986 = vunpack.c.h.b16 %v1451
    %v5987 = vunpack.c.l.b16 %v1452
    %v5988 = vunpack.c.h.b16 %v1452
    %v5989 = vunpack.c.l.b16 %v1453
    %v5990 = vunpack.c.h.b16 %v1453
    %v5991 = vunpack.c.l.b16 %v1454
    %v5992 = vunpack.c.h.b16 %v1454
    %v5993 = vunpack.c.l.b16 %v1455
    %v5994 = vunpack.c.h.b16 %v1455
    %v5995 = vunpack.c.l.b16 %v1456
    %v5996 = vunpack.c.h.b16 %v1456
    %v5997 = vunpack.c.l.b16 %v1457
    %v5998 = vunpack.c.h.b16 %v1457
    %v5999 = vunpack.c.l.b16 %v1458
    %v6000 = vunpack.c.h.b16 %v1458
    %v6001 = vunpack.c.l.b16 %v1459
    %v6002 = vunpack.c.h.b16 %v1459
    %v6003 = vunpack.c.l.b16 %v1460
    %v6004 = vunpack.c.h.b16 %v1460
    %v6005 = vunpack.c.l.b16 %v1461
    %v6006 = vunpack.c.h.b16 %v1461
    %v6007 = vunpack.c.l.b16 %v1462
    %v6008 = vunpack.c.h.b16 %v1462
    %v6009 = vunpack.c.l.b16 %v1463
    %v6010 = vunpack.c.h.b16 %v1463
    %v6011 = vunpack.c.l.b16 %v1464
    %v6012 = vunpack.c.h.b16 %v1464
    %v6013 = vunpack.c.l.b16 %v1465
    %v6014 = vunpack.c.h.b16 %v1465
    %v6015 = vunpack.c.l.b16 %v1466
    %v6016 = vunpack.c.h.b16 %v1466
    %v6017 = vunpack.c.l.b16 %v1467
    %v6018 = vunpack.c.h.b16 %v1467
    %v6019 = vunpack.c.l.b16 %v1468
    %v6020 = vunpack.c.h.b16 %v1468
    %v6021 = vunpack.c.l.b16 %v1469
    %v6022 = vunpack.c.h.b16 %v1469
    %v6023 = vunpack.c.l.b16 %v1470
    %v6024 = vunpack.c.h.b16 %v1470
    %v6025 = vunpack.c.l.b16 %v1471
    %v6026 = vunpack.c.h.b16 %v1471
    %v6027 = vunpack.c.l.b16 %v1472
    %v6028 = vunpack.c.h.b16 %v1472
    %v6029 = vunpack.c.l.b16 %v1473
    %v6030 = vunpack.c.h.b16 %v1473
    %v6031 = vunpack.c.l.b16 %v1474
    %v6032 = vunpack.c.h.b16 %v1474
    %v6033 = vunpack.c.l.b16 %v1475
    %v6034 = vunpack.c.h.b16 %v1475
    %v6035 = vunpack.c.l.b16 %v1476
    %v6036 = vunpack.c.h.b16 %v1476
    %v6037 = vunpack.c.l.b16 %v1477
    %v6038 = vunpack.c.h.b16 %v1477
    %v6039 = vunpack.c.l.b16 %v1478
    %v6040 = vunpack.c.h.b16 %v1478
    %v6041 = vunpack.c.l.b16 %v1479
    %v6042 = vunpack.c.h.b16 %v1479
    %v6043 = vunpack.c.l.b16 %v1480
    %v6044 = vunpack.c.h.b16 %v1480
    %v6045 = vunpack.c.l.b16 %v1481
    %v6046 = vunpack.c.h.b16 %v1481
    %v6047 = vunpack.c.l.b16 %v1482
    %v6048 = vunpack.c.h.b16 %v1482
    %v6049 = vunpack.c.l.b16 %v1483
    %v6050 = vunpack.c.h.b16 %v1483
    %v6051 = vunpack.c.l.b16 %v1484
    %v6052 = vunpack.c.h.b16 %v1484
    %v6053 = vunpack.c.l.b16 %v1485
    %v6054 = vunpack.c.h.b16 %v1485
    %v6055 = vunpack.c.l.b16 %v1486
    %v6056 = vunpack.c.h.b16 %v1486
    %v6057 = vunpack.c.l.b16 %v1487
    %v6058 = vunpack.c.h.b16 %v1487
    %v6059 = vunpack.c.l.b16 %v1488
    %v6060 = vunpack.c.h.b16 %v1488
    %v6061 = vunpack.c.l.b16 %v1489
    %v6062 = vunpack.c.h.b16 %v1489
    %v6063 = vunpack.c.l.b16 %v1490
    %v6064 = vunpack.c.h.b16 %v1490
    %v6065 = vunpack.c.l.b16 %v1491
    %v6066 = vunpack.c.h.b16 %v1491
    %v6067 = vunpack.c.l.b16 %v1492
    %v6068 = vunpack.c.h.b16 %v1492
    %v6069 = vunpack.c.l.b16 %v1493
    %v6070 = vunpack.c.h.b16 %v1493
    %v6071 = vunpack.c.l.b16 %v1494
    %v6072 = vunpack.c.h.b16 %v1494
    %v6073 = vunpack.c.l.b16 %v1495
    %v6074 = vunpack.c.h.b16 %v1495
    %v6075 = vunpack.c.l.b16 %v1496
    %v6076 = vunpack.c.h.b16 %v1496
    %v6077 = vunpack.c.l.b16 %v1497
    %v6078 = vunpack.c.h.b16 %v1497
    %v6079 = vunpack.c.l.b16 %v1498
    %v6080 = vunpack.c.h.b16 %v1498
    %v6081 = vunpack.c.l.b16 %v1499
    %v6082 = vunpack.c.h.b16 %v1499
    %v6083 = vunpack.c.l.b16 %v1500
    %v6084 = vunpack.c.h.b16 %v1500
    %v6085 = vunpack.c.l.b16 %v1501
    %v6086 = vunpack.c.h.b16 %v1501
    %v6087 = vunpack.c.l.b16 %v1502
    %v6088 = vunpack.c.h.b16 %v1502
    %v6089 = vunpack.c.l.b16 %v1503
    %v6090 = vunpack.c.h.b16 %v1503
    %v6091 = vunpack.c.l.b16 %v1504
    %v6092 = vunpack.c.h.b16 %v1504
    %v6093 = vunpack.c.l.b16 %v1505
    %v6094 = vunpack.c.h.b16 %v1505
    %v6095 = vunpack.c.l.b16 %v1506
    %v6096 = vunpack.c.h.b16 %v1506
    %v6097 = vunpack.c.l.b16 %v1507
    %v6098 = vunpack.c.h.b16 %v1507
    %v6099 = vunpack.c.l.b16 %v1508
    %v6100 = vunpack.c.h.b16 %v1508
    %v6101 = vunpack.c.l.b16 %v1509
    %v6102 = vunpack.c.h.b16 %v1509
    %v6103 = vunpack.c.l.b16 %v1510
    %v6104 = vunpack.c.h.b16 %v1510
    %v6105 = vunpack.c.l.b16 %v1511
    %v6106 = vunpack.c.h.b16 %v1511
    %v6107 = vunpack.c.l.b16 %v1512
    %v6108 = vunpack.c.h.b16 %v1512
    %v6109 = vunpack.c.l.b16 %v1513
    %v6110 = vunpack.c.h.b16 %v1513
    %v6111 = vunpack.c.l.b16 %v1514
    %v6112 = vunpack.c.h.b16 %v1514
    %v6113 = vunpack.c.l.b16 %v1515
    %v6114 = vunpack.c.h.b16 %v1515
    %v6115 = vunpack.c.l.b16 %v1516
    %v6116 = vunpack.c.h.b16 %v1516
    %v6117 = vunpack.c.l.b16 %v1517
    %v6118 = vunpack.c.h.b16 %v1517
    %v6119 = vunpack.c.l.b16 %v1518
    %v6120 = vunpack.c.h.b16 %v1518
    %v6121 = vunpack.c.l.b16 %v1519
    %v6122 = vunpack.c.h.b16 %v1519
    %v6123 = vunpack.c.l.b16 %v1520
    %v6124 = vunpack.c.h.b16 %v1520
    %v6125 = vunpack.c.l.b16 %v1521
    %v6126 = vunpack.c.h.b16 %v1521
    %v6127 = vunpack.c.l.b16 %v1522
    %v6128 = vunpack.c.h.b16 %v1522
    %v6129 = vunpack.c.l.b16 %v1523
    %v6130 = vunpack.c.h.b16 %v1523
    %v6131 = vunpack.c.l.b16 %v1524
    %v6132 = vunpack.c.h.b16 %v1524
    %v6133 = vunpack.c.l.b16 %v1525
    %v6134 = vunpack.c.h.b16 %v1525
    %v6135 = vunpack.c.l.b16 %v1526
    %v6136 = vunpack.c.h.b16 %v1526
    %v6137 = vunpack.c.l.b16 %v1527
    %v6138 = vunpack.c.h.b16 %v1527
    %v6139 = vunpack.c.l.b16 %v1528
    %v6140 = vunpack.c.h.b16 %v1528
    %v6141 = vunpack.c.l.b16 %v1529
    %v6142 = vunpack.c.h.b16 %v1529
    %v6143 = vunpack.c.l.b16 %v1530
    %v6144 = vunpack.c.h.b16 %v1530
    %v6145 = vunpack.c.l.b16 %v1531
    %v6146 = vunpack.c.h.b16 %v1531
    %v6147 = vunpack.c.l.b16 %v1532
    %v6148 = vunpack.c.h.b16 %v1532
    %v6149 = vunpack.c.l.b16 %v1533
    %v6150 = vunpack.c.h.b16 %v1533
    %v6151 = vunpack.c.l.b16 %v1534
    %v6152 = vunpack.c.h.b16 %v1534
    %v6153 = vunpack.c.l.b16 %v1535
    %v6154 = vunpack.c.h.b16 %v1535
    %v6155 = vunpack.c.l.b16 %v1536
    %v6156 = vunpack.c.h.b16 %v1536
    %v6157 = vunpack.c.l.b16 %v1537
    %v6158 = vunpack.c.h.b16 %v1537
    %v6159 = vunpack.c.l.b16 %v1538
    %v6160 = vunpack.c.h.b16 %v1538
    %v6161 = vunpack.c.l.b16 %v1539
    %v6162 = vunpack.c.h.b16 %v1539
    %v6163 = vunpack.c.l.b16 %v1540
    %v6164 = vunpack.c.h.b16 %v1540
    %v6165 = vunpack.c.l.b16 %v1541
    %v6166 = vunpack.c.h.b16 %v1541
    %v6167 = vunpack.c.l.b16 %v1542
    %v6168 = vunpack.c.h.b16 %v1542
    %v6169 = vunpack.c.l.b16 %v1543
    %v6170 = vunpack.c.h.b16 %v1543
    %v6171 = vunpack.c.l.b16 %v1544
    %v6172 = vunpack.c.h.b16 %v1544
    %v6173 = vunpack.c.l.b16 %v1545
    %v6174 = vunpack.c.h.b16 %v1545
    %v6175 = vunpack.c.l.b16 %v1546
    %v6176 = vunpack.c.h.b16 %v1546
    %v6177 = vunpack.c.l.b16 %v1547
    %v6178 = vunpack.c.h.b16 %v1547
    %v6179 = vunpack.c.l.b16 %v1548
    %v6180 = vunpack.c.h.b16 %v1548
    %v6181 = vunpack.c.l.b16 %v1549
    %v6182 = vunpack.c.h.b16 %v1549
    %v6183 = vunpack.c.l.b16 %v1550
    %v6184 = vunpack.c.h.b16 %v1550
    %v6185 = vunpack.c.l.b16 %v1551
    %v6186 = vunpack.c.h.b16 %v1551
    %v6187 = vunpack.c.l.b16 %v1552
    %v6188 = vunpack.c.h.b16 %v1552
    %v6189 = vunpack.c.l.b16 %v1553
    %v6190 = vunpack.c.h.b16 %v1553
    %v6191 = vunpack.c.l.b16 %v1554
    %v6192 = vunpack.c.h.b16 %v1554
    %v6193 = vunpack.c.l.b16 %v1555
    %v6194 = vunpack.c.h.b16 %v1555
    %v6195 = vunpack.c.l.b16 %v1556
    %v6196 = vunpack.c.h.b16 %v1556
    %v6197 = vunpack.c.l.b16 %v1557
    %v6198 = vunpack.c.h.b16 %v1557
    %v6199 = vunpack.c.l.b16 %v1558
    %v6200 = vunpack.c.h.b16 %v1558
    %v6201 = vunpack.c.l.b16 %v1559
    %v6202 = vunpack.c.h.b16 %v1559
    %v6203 = vunpack.c.l.b16 %v1560
    %v6204 = vunpack.c.h.b16 %v1560
    %v6205 = vunpack.c.l.b16 %v1561
    %v6206 = vunpack.c.h.b16 %v1561
    %v6207 = vunpack.c.l.b16 %v1562
    %v6208 = vunpack.c.h.b16 %v1562
    %v6209 = vunpack.c.l.b16 %v1563
    %v6210 = vunpack.c.h.b16 %v1563
    %v6211 = vunpack.c.l.b16 %v1564
    %v6212 = vunpack.c.h.b16 %v1564
    %v6213 = vunpack.c.l.b16 %v1565
    %v6214 = vunpack.c.h.b16 %v1565
    %v6215 = vunpack.c.l.b16 %v1566
    %v6216 = vunpack.c.h.b16 %v1566
    %v6217 = vunpack.c.l.b16 %v1567
    %v6218 = vunpack.c.h.b16 %v1567
    %v6219 = vunpack.c.l.b16 %v1568
    %v6220 = vunpack.c.h.b16 %v1568
    %v6221 = vunpack.c.l.b16 %v1569
    %v6222 = vunpack.c.h.b16 %v1569
    %v6223 = vunpack.c.l.b16 %v1570
    %v6224 = vunpack.c.h.b16 %v1570
    %v6225 = vunpack.c.l.b16 %v1571
    %v6226 = vunpack.c.h.b16 %v1571
    %v6227 = vunpack.c.l.b16 %v1572
    %v6228 = vunpack.c.h.b16 %v1572
    %v6229 = vunpack.c.l.b16 %v1573
    %v6230 = vunpack.c.h.b16 %v1573
    %v6231 = vunpack.c.l.b16 %v1574
    %v6232 = vunpack.c.h.b16 %v1574
    %v6233 = vunpack.c.l.b16 %v1575
    %v6234 = vunpack.c.h.b16 %v1575
    %v6235 = vunpack.c.l.b16 %v1576
    %v6236 = vunpack.c.h.b16 %v1576
    %v6237 = vunpack.c.l.b16 %v1577
    %v6238 = vunpack.c.h.b16 %v1577
    %v6239 = vunpack.c.l.b16 %v1578
    %v6240 = vunpack.c.h.b16 %v1578
    %v6241 = vunpack.c.l.b16 %v1579
    %v6242 = vunpack.c.h.b16 %v1579
    %v6243 = vunpack.c.l.b16 %v1580
    %v6244 = vunpack.c.h.b16 %v1580
    %v6245 = vunpack.c.l.b16 %v1581
    %v6246 = vunpack.c.h.b16 %v1581
    %v6247 = vunpack.c.l.b16 %v1582
    %v6248 = vunpack.c.h.b16 %v1582
    %v6249 = vunpack.c.l.b16 %v1583
    %v6250 = vunpack.c.h.b16 %v1583
    %v6251 = vunpack.c.l.b16 %v1584
    %v6252 = vunpack.c.h.b16 %v1584
    %v6253 = vunpack.c.l.b16 %v1585
    %v6254 = vunpack.c.h.b16 %v1585
    %v6255 = vunpack.c.l.b16 %v1586
    %v6256 = vunpack.c.h.b16 %v1586
    %v6257 = vunpack.c.l.b16 %v1587
    %v6258 = vunpack.c.h.b16 %v1587
    %v6259 = vunpack.c.l.b16 %v1588
    %v6260 = vunpack.c.h.b16 %v1588
    %v6261 = vunpack.c.l.b16 %v1589
    %v6262 = vunpack.c.h.b16 %v1589
    %v6263 = vunpack.c.l.b16 %v1590
    %v6264 = vunpack.c.h.b16 %v1590
    %v6265 = vunpack.c.l.b16 %v1591
    %v6266 = vunpack.c.h.b16 %v1591
    %v6267 = vunpack.c.l.b16 %v1592
    %v6268 = vunpack.c.h.b16 %v1592
    %v6269 = vunpack.c.l.b16 %v1593
    %v6270 = vunpack.c.h.b16 %v1593
    %v6271 = vunpack.c.l.b16 %v1594
    %v6272 = vunpack.c.h.b16 %v1594
    %v6273 = vunpack.c.l.b16 %v1595
    %v6274 = vunpack.c.h.b16 %v1595
    %v6275 = vunpack.c.l.b16 %v1596
    %v6276 = vunpack.c.h.b16 %v1596
    %v6277 = vunpack.c.l.b16 %v1597
    %v6278 = vunpack.c.h.b16 %v1597
    %v6279 = vunpack.c.l.b16 %v1598
    %v6280 = vunpack.c.h.b16 %v1598
    %v6281 = vunpack.c.l.b16 %v1599
    %v6282 = vunpack.c.h.b16 %v1599
    %v6283 = vunpack.c.l.b16 %v1600
    %v6284 = vunpack.c.h.b16 %v1600
    %v6285 = vunpack.c.l.b16 %v1601
    %v6286 = vunpack.c.h.b16 %v1601
    %v6287 = vunpack.c.l.b16 %v1602
    %v6288 = vunpack.c.h.b16 %v1602
    %v6289 = vunpack.c.l.b16 %v1603
    %v6290 = vunpack.c.h.b16 %v1603
    %v6291 = vunpack.c.l.b16 %v1604
    %v6292 = vunpack.c.h.b16 %v1604
    %v6293 = vunpack.c.l.b16 %v1605
    %v6294 = vunpack.c.h.b16 %v1605
    %v6295 = vunpack.c.l.b16 %v1606
    %v6296 = vunpack.c.h.b16 %v1606
    %v6297 = vunpack.c.l.b16 %v1607
    %v6298 = vunpack.c.h.b16 %v1607
    %v6299 = vunpack.c.l.b16 %v1608
    %v6300 = vunpack.c.h.b16 %v1608
    %v6301 = vunpack.c.l.b16 %v1609
    %v6302 = vunpack.c.h.b16 %v1609
    %v6303 = vunpack.c.l.b16 %v1610
    %v6304 = vunpack.c.h.b16 %v1610
    %v6305 = vunpack.c.l.b16 %v1611
    %v6306 = vunpack.c.h.b16 %v1611
    %v6307 = vunpack.c.l.b16 %v1612
    %v6308 = vunpack.c.h.b16 %v1612
    %v6309 = vunpack.c.l.b16 %v1613
    %v6310 = vunpack.c.h.b16 %v1613
    %v6311 = vunpack.c.l.b16 %v1614
    %v6312 = vunpack.c.h.b16 %v1614
    %v6313 = vunpack.c.l.b16 %v1615
    %v6314 = vunpack.c.h.b16 %v1615
    %v6315 = vunpack.c.l.b16 %v1616
    %v6316 = vunpack.c.h.b16 %v1616
    %v6317 = vunpack.c.l.b16 %v1617
    %v6318 = vunpack.c.h.b16 %v1617
    %v6319 = vunpack.c.l.b16 %v1618
    %v6320 = vunpack.c.h.b16 %v1618
    %v6321 = vunpack.c.l.b16 %v1619
    %v6322 = vunpack.c.h.b16 %v1619
    %v6323 = vunpack.c.l.b16 %v1620
    %v6324 = vunpack.c.h.b16 %v1620
    %v6325 = vunpack.c.l.b16 %v1621
    %v6326 = vunpack.c.h.b16 %v1621
    %v6327 = vunpack.c.l.b16 %v1622
    %v6328 = vunpack.c.h.b16 %v1622
    %v6329 = vunpack.c.l.b16 %v1623
    %v6330 = vunpack.c.h.b16 %v1623
    %v6331 = vunpack.c.l.b16 %v1624
    %v6332 = vunpack.c.h.b16 %v1624
    %v6333 = vunpack.c.l.b16 %v1625
    %v6334 = vunpack.c.h.b16 %v1625
    %v6335 = vunpack.c.l.b16 %v1626
    %v6336 = vunpack.c.h.b16 %v1626
    %v6337 = vunpack.c.l.b16 %v1627
    %v6338 = vunpack.c.h.b16 %v1627
    %v6339 = vunpack.c.l.b16 %v1628
    %v6340 = vunpack.c.h.b16 %v1628
    %v6341 = vunpack.c.l.b16 %v1629
    %v6342 = vunpack.c.h.b16 %v1629
    %v6343 = vunpack.c.l.b16 %v1630
    %v6344 = vunpack.c.h.b16 %v1630
    %v6345 = vunpack.c.l.b16 %v1631
    %v6346 = vunpack.c.h.b16 %v1631
    %v6347 = vunpack.c.l.b16 %v1632
    %v6348 = vunpack.c.h.b16 %v1632
    %v6349 = vunpack.c.l.b16 %v1633
    %v6350 = vunpack.c.h.b16 %v1633
    %v6351 = vunpack.c.l.b16 %v1634
    %v6352 = vunpack.c.h.b16 %v1634
    %v6353 = vunpack.c.l.b16 %v1635
    %v6354 = vunpack.c.h.b16 %v1635
    %v6355 = vunpack.c.l.b16 %v1636
    %v6356 = vunpack.c.h.b16 %v1636
    %v6357 = vunpack.c.l.b16 %v1637
    %v6358 = vunpack.c.h.b16 %v1637
    %v6359 = vunpack.c.l.b16 %v1638
    %v6360 = vunpack.c.h.b16 %v1638
    %v6361 = vunpack.c.l.b16 %v1639
    %v6362 = vunpack.c.h.b16 %v1639
    %v6363 = vunpack.c.l.b16 %v1640
    %v6364 = vunpack.c.h.b16 %v1640
    %v6365 = vunpack.c.l.b16 %v1641
    %v6366 = vunpack.c.h.b16 %v1641
    %v6367 = vunpack.c.l.b16 %v1642
    %v6368 = vunpack.c.h.b16 %v1642
    %v6369 = vunpack.c.l.b16 %v1643
    %v6370 = vunpack.c.h.b16 %v1643
    %v6371 = vunpack.c.l.b16 %v1644
    %v6372 = vunpack.c.h.b16 %v1644
    %v6373 = vunpack.c.l.b16 %v1645
    %v6374 = vunpack.c.h.b16 %v1645
    %v6375 = vunpack.c.l.b16 %v1646
    %v6376 = vunpack.c.h.b16 %v1646
    %v6377 = vunpack.c.l.b16 %v1647
    %v6378 = vunpack.c.h.b16 %v1647
    %v6379 = vunpack.c.l.b16 %v1648
    %v6380 = vunpack.c.h.b16 %v1648
    %v6381 = vunpack.c.l.b16 %v1649
    %v6382 = vunpack.c.h.b16 %v1649
    %v6383 = vunpack.c.l.b16 %v1650
    %v6384 = vunpack.c.h.b16 %v1650
    %v6385 = vunpack.c.l.b16 %v1651
    %v6386 = vunpack.c.h.b16 %v1651
    %v6387 = vunpack.c.l.b16 %v1652
    %v6388 = vunpack.c.h.b16 %v1652
    %v6389 = vunpack.c.l.b16 %v1653
    %v6390 = vunpack.c.h.b16 %v1653
    %v6391 = vunpack.c.l.b16 %v1654
    %v6392 = vunpack.c.h.b16 %v1654
    %v6393 = vunpack.c.l.b16 %v1655
    %v6394 = vunpack.c.h.b16 %v1655
    %v6395 = vunpack.c.l.b16 %v1656
    %v6396 = vunpack.c.h.b16 %v1656
    %v6397 = vunpack.c.l.b16 %v1657
    %v6398 = vunpack.c.h.b16 %v1657
    %v6399 = vunpack.c.l.b16 %v1658
    %v6400 = vunpack.c.h.b16 %v1658
    %v6401 = vunpack.c.l.b16 %v1659
    %v6402 = vunpack.c.h.b16 %v1659
    %v6403 = vunpack.c.l.b16 %v1660
    %v6404 = vunpack.c.h.b16 %v1660
    %v6405 = vunpack.c.l.b16 %v1661
    %v6406 = vunpack.c.h.b16 %v1661
    %v6407 = vunpack.c.l.b16 %v1662
    %v6408 = vunpack.c.h.b16 %v1662
    %v6409 = vunpack.c.l.b16 %v1663
    %v6410 = vunpack.c.h.b16 %v1663
    %v6411 = vunpack.c.l.b16 %v1664
    %v6412 = vunpack.c.h.b16 %v1664
    %v6413 = vunpack.c.l.b16 %v1665
    %v6414 = vunpack.c.h.b16 %v1665
    %v6415 = vunpack.c.l.b16 %v1666
    %v6416 = vunpack.c.h.b16 %v1666
    %v6417 = vunpack.c.l.b16 %v1667
    %v6418 = vunpack.c.h.b16 %v1667
    %v6419 = vunpack.c.l.b16 %v1668
    %v6420 = vunpack.c.h.b16 %v1668
    %v6421 = vpack.c.b16 %v3361, %v3349
    %v6422 = vpack.c.b16 %v3362, %v3350
    %v6423 = vpack.c.b16 %v3363, %v3351
    %v6424 = vpack.c.b16 %v3364, %v3352
    %v6425 = vpack.c.b16 %v3365, %v3353
    %v6426 = vpack.c.b16 %v3366, %v3354
    %v6427 = vpack.c.b16 %v3367, %v3355
    %v6428 = vpack.c.b16 %v3368, %v3356
    %v6429 = vpack.c.b16 %v3369, %v3357
    %v6430 = vpack.c.b16 %v3370, %v3358
    %v6431 = vpack.c.b16 %v3371, %v3359
    %v6432 = vpack.c.b16 %v3372, %v3360
    %v6433 = vpack.c.b16 %v3385, %v3373
    %v6434 = vpack.c.b16 %v3386, %v3374
    %v6435 = vpack.c.b16 %v3387, %v3375
    %v6436 = vpack.c.b16 %v3388, %v3376
    %v6437 = vpack.c.b16 %v3389, %v3377
    %v6438 = vpack.c.b16 %v3390, %v3378
    %v6439 = vpack.c.b16 %v3391, %v3379
    %v6440 = vpack.c.b16 %v3392, %v3380
    %v6441 = vpack.c.b16 %v3393, %v3381
    %v6442 = vpack.c.b16 %v3394, %v3382
    %v6443 = vpack.c.b16 %v3395, %v3383
    %v6444 = vpack.c.b16 %v3396, %v3384
    %v6445 = vpack.c.b16 %v3409, %v3397
    %v6446 = vpack.c.b16 %v3410, %v3398
    %v6447 = vpack.c.b16 %v3411, %v3399
    %v6448 = vpack.c.b16 %v3412, %v3400
    %v6449 = vpack.c.b16 %v3413, %v3401
    %v6450 = vpack.c.b16 %v3414, %v3402
    %v6451 = vpack.c.b16 %v3415, %v3403
    %v6452 = vpack.c.b16 %v3416, %v3404
    %v6453 = vpack.c.b16 %v3417, %v3405
    %v6454 = vpack.c.b16 %v3418, %v3406
    %v6455 = vpack.c.b16 %v3419, %v3407
    %v6456 = vpack.c.b16 %v3420, %v3408
    %v6457 = vpack.c.b16 %v3433, %v3421
    %v6458 = vpack.c.b16 %v3434, %v3422
    %v6459 = vpack.c.b16 %v3435, %v3423
    %v6460 = vpack.c.b16 %v3436, %v3424
    %v6461 = vpack.c.b16 %v3437, %v3425
    %v6462 = vpack.c.b16 %v3438, %v3426
    %v6463 = vpack.c.b16 %v3439, %v3427
    %v6464 = vpack.c.b16 %v3440, %v3428
    %v6465 = vpack.c.b16 %v3441, %v3429
    %v6466 = vpack.c.b16 %v3442, %v3430
    %v6467 = vpack.c.b16 %v3443, %v3431
    %v6468 = vpack.c.b16 %v3444, %v3432
    %v6469 = vpack.c.b16 %v3457, %v3445
    %v6470 = vpack.c.b16 %v3458, %v3446
    %v6471 = vpack.c.b16 %v3459, %v3447
    %v6472 = vpack.c.b16 %v3460, %v3448
    %v6473 = vpack.c.b16 %v3461, %v3449
    %v6474 = vpack.c.b16 %v3462, %v3450
    %v6475 = vpack.c.b16 %v3463, %v3451
    %v6476 = vpack.c.b16 %v3464, %v3452
    %v6477 = vpack.c.b16 %v3465, %v3453
    %v6478 = vpack.c.b16 %v3466, %v3454
    %v6479 = vpack.c.b16 %v3467, %v3455
    %v6480 = vpack.c.b16 %v3468, %v3456
    %v6481 = vpack.c.b16 %v3481, %v3469
    %v6482 = vpack.c.b16 %v3482, %v3470
    %v6483 = vpack.c.b16 %v3483, %v3471
    %v6484 = vpack.c.b16 %v3484, %v3472
    %v6485 = vpack.c.b16 %v3485, %v3473
    %v6486 = vpack.c.b16 %v3486, %v3474
    %v6487 = vpack.c.b16 %v3487, %v3475
    %v6488 = vpack.c.b16 %v3488, %v3476
    %v6489 = vpack.c.b16 %v3489, %v3477
    %v6490 = vpack.c.b16 %v3490, %v3478
    %v6491 = vpack.c.b16 %v3491, %v3479
    %v6492 = vpack.c.b16 %v3492, %v3480
    %v6493 = vpack.c.b16 %v3505, %v3493
    %v6494 = vpack.c.b16 %v3506, %v3494
    %v6495 = vpack.c.b16 %v3507, %v3495
    %v6496 = vpack.c.b16 %v3508, %v3496
    %v6497 = vpack.c.b16 %v3509, %v3497
    %v6498 = vpack.c.b16 %v3510, %v3498
    %v6499 = vpack.c.b16 %v3511, %v3499
    %v6500 = vpack.c.b16 %v3512, %v3500
    %v6501 = vpack.c.b16 %v3513, %v3501
    %v6502 = vpack.c.b16 %v3514, %v3502
    %v6503 = vpack.c.b16 %v3515, %v3503
    %v6504 = vpack.c.b16 %v3516, %v3504
    %v6505 = vpack.c.b16 %v3529, %v3517
    %v6506 = vpack.c.b16 %v3530, %v3518
    %v6507 = vpack.c.b16 %v3531, %v3519
    %v6508 = vpack.c.b16 %v3532, %v3520
    %v6509 = vpack.c.b16 %v3533, %v3521
    %v6510 = vpack.c.b16 %v3534, %v3522
    %v6511 = vpack.c.b16 %v3535, %v3523
    %v6512 = vpack.c.b16 %v3536, %v3524
    %v6513 = vpack.c.b16 %v3537, %v3525
    %v6514 = vpack.c.b16 %v3538, %v3526
    %v6515 = vpack.c.b16 %v3539, %v3527
    %v6516 = vpack.c.b16 %v3540, %v3528
    %v6517 = vpack.c.b16 %v3553, %v3541
    %v6518 = vpack.c.b16 %v3554, %v3542
    %v6519 = vpack.c.b16 %v3555, %v3543
    %v6520 = vpack.c.b16 %v3556, %v3544
    %v6521 = vpack.c.b16 %v3557, %v3545
    %v6522 = vpack.c.b16 %v3558, %v3546
    %v6523 = vpack.c.b16 %v3559, %v3547
    %v6524 = vpack.c.b16 %v3560, %v3548
    %v6525 = vpack.c.b16 %v3561, %v3549
    %v6526 = vpack.c.b16 %v3562, %v3550
    %v6527 = vpack.c.b16 %v3563, %v3551
    %v6528 = vpack.c.b16 %v3564, %v3552
    %v6529 = vpack.c.b16 %v3577, %v3565
    %v6530 = vpack.c.b16 %v3578, %v3566
    %v6531 = vpack.c.b16 %v3579, %v3567
    %v6532 = vpack.c.b16 %v3580, %v3568
    %v6533 = vpack.c.b16 %v3581, %v3569
    %v6534 = vpack.c.b16 %v3582, %v3570
    %v6535 = vpack.c.b16 %v3583, %v3571
    %v6536 = vpack.c.b16 %v3584, %v3572
    %v6537 = vpack.c.b16 %v3585, %v3573
    %v6538 = vpack.c.b16 %v3586, %v3574
    %v6539 = vpack.c.b16 %v3587, %v3575
    %v6540 = vpack.c.b16 %v3588, %v3576
    %v6541 = vpack.c.b16 %v3601, %v3589
    %v6542 = vpack.c.b16 %v3602, %v3590
    %v6543 = vpack.c.b16 %v3603, %v3591
    %v6544 = vpack.c.b16 %v3604, %v3592
    %v6545 = vpack.c.b16 %v3605, %v3593
    %v6546 = vpack.c.b16 %v3606, %v3594
    %v6547 = vpack.c.b16 %v3607, %v3595
    %v6548 = vpack.c.b16 %v3608, %v3596
    %v6549 = vpack.c.b16 %v3609, %v3597
    %v6550 = vpack.c.b16 %v3610, %v3598
    %v6551 = vpack.c.b16 %v3611, %v3599
    %v6552 = vpack.c.b16 %v3612, %v3600
    %v6553 = vpack.c.b16 %v3625, %v3613
    %v6554 = vpack.c.b16 %v3626, %v3614
    %v6555 = vpack.c.b16 %v3627, %v3615
    %v6556 = vpack.c.b16 %v3628, %v3616
    %v6557 = vpack.c.b16 %v3629, %v3617
    %v6558 = vpack.c.b16 %v3630, %v3618
    %v6559 = vpack.c.b16 %v3631, %v3619
    %v6560 = vpack.c.b16 %v3632, %v3620
    %v6561 = vpack.c.b16 %v3633, %v3621
    %v6562 = vpack.c.b16 %v3634, %v3622
    %v6563 = vpack.c.b16 %v3635, %v3623
    %v6564 = vpack.c.b16 %v3636, %v3624
    %v6565 = vpack.c.b16 %v3649, %v3637
    %v6566 = vpack.c.b16 %v3650, %v3638
    %v6567 = vpack.c.b16 %v3651, %v3639
    %v6568 = vpack.c.b16 %v3652, %v3640
    %v6569 = vpack.c.b16 %v3653, %v3641
    %v6570 = vpack.c.b16 %v3654, %v3642
    %v6571 = vpack.c.b16 %v3655, %v3643
    %v6572 = vpack.c.b16 %v3656, %v3644
    %v6573 = vpack.c.b16 %v3657, %v3645
    %v6574 = vpack.c.b16 %v3658, %v3646
    %v6575 = vpack.c.b16 %v3659, %v3647
    %v6576 = vpack.c.b16 %v3660, %v3648
    %v6577 = vpack.c.b16 %v3673, %v3661
    %v6578 = vpack.c.b16 %v3674, %v3662
    %v6579 = vpack.c.b16 %v3675, %v3663
    %v6580 = vpack.c.b16 %v3676, %v3664
    %v6581 = vpack.c.b16 %v3677, %v3665
    %v6582 = vpack.c.b16 %v3678, %v3666
    %v6583 = vpack.c.b16 %v3679, %v3667
    %v6584 = vpack.c.b16 %v3680, %v3668
    %v6585 = vpack.c.b16 %v3681, %v3669
    %v6586 = vpack.c.b16 %v3682, %v3670
    %v6587 = vpack.c.b16 %v3683, %v3671
    %v6588 = vpack.c.b16 %v3684, %v3672
    %v6589 = vpack.c.b16 %v3697, %v3685
    %v6590 = vpack.c.b16 %v3698, %v3686
    %v6591 = vpack.c.b16 %v3699, %v3687
    %v6592 = vpack.c.b16 %v3700, %v3688
    %v6593 = vpack.c.b16 %v3701, %v3689
    %v6594 = vpack.c.b16 %v3702, %v3690
    %v6595 = vpack.c.b16 %v3703, %v3691
    %v6596 = vpack.c.b16 %v3704, %v3692
    %v6597 = vpack.c.b16 %v3705, %v3693
    %v6598 = vpack.c.b16 %v3706, %v3694
    %v6599 = vpack.c.b16 %v3707, %v3695
    %v6600 = vpack.c.b16 %v3708, %v3696
    %v6601 = vpack.c.b16 %v3721, %v3709
    %v6602 = vpack.c.b16 %v3722, %v3710
    %v6603 = vpack.c.b16 %v3723, %v3711
    %v6604 = vpack.c.b16 %v3724, %v3712
    %v6605 = vpack.c.b16 %v3725, %v3713
    %v6606 = vpack.c.b16 %v3726, %v3714
    %v6607 = vpack.c.b16 %v3727, %v3715
    %v6608 = vpack.c.b16 %v3728, %v3716
    %v6609 = vpack.c.b16 %v3729, %v3717
    %v6610 = vpack.c.b16 %v3730, %v3718
    %v6611 = vpack.c.b16 %v3731, %v3719
    %v6612 = vpack.c.b16 %v3732, %v3720
    %v6613 = vpack.c.b16 %v3745, %v3733
    %v6614 = vpack.c.b16 %v3746, %v3734
    %v6615 = vpack.c.b16 %v3747, %v3735
    %v6616 = vpack.c.b16 %v3748, %v3736
    %v6617 = vpack.c.b16 %v3749, %v3737
    %v6618 = vpack.c.b16 %v3750, %v3738
    %v6619 = vpack.c.b16 %v3751, %v3739
    %v6620 = vpack.c.b16 %v3752, %v3740
    %v6621 = vpack.c.b16 %v3753, %v3741
    %v6622 = vpack.c.b16 %v3754, %v3742
    %v6623 = vpack.c.b16 %v3755, %v3743
    %v6624 = vpack.c.b16 %v3756, %v3744
    %v6625 = vpack.c.b16 %v3769, %v3757
    %v6626 = vpack.c.b16 %v3770, %v3758
    %v6627 = vpack.c.b16 %v3771, %v3759
    %v6628 = vpack.c.b16 %v3772, %v3760
    %v6629 = vpack.c.b16 %v3773, %v3761
    %v6630 = vpack.c.b16 %v3774, %v3762
    %v6631 = vpack.c.b16 %v3775, %v3763
    %v6632 = vpack.c.b16 %v3776, %v3764
    %v6633 = vpack.c.b16 %v3777, %v3765
    %v6634 = vpack.c.b16 %v3778, %v3766
    %v6635 = vpack.c.b16 %v3779, %v3767
    %v6636 = vpack.c.b16 %v3780, %v3768
    %v6637 = vpack.c.b16 %v3793, %v3781
    %v6638 = vpack.c.b16 %v3794, %v3782
    %v6639 = vpack.c.b16 %v3795, %v3783
    %v6640 = vpack.c.b16 %v3796, %v3784
    %v6641 = vpack.c.b16 %v3797, %v3785
    %v6642 = vpack.c.b16 %v3798, %v3786
    %v6643 = vpack.c.b16 %v3799, %v3787
    %v6644 = vpack.c.b16 %v3800, %v3788
    %v6645 = vpack.c.b16 %v3801, %v3789
    %v6646 = vpack.c.b16 %v3802, %v3790
    %v6647 = vpack.c.b16 %v3803, %v3791
    %v6648 = vpack.c.b16 %v3804, %v3792
    %v6649 = vpack.c.b16 %v3817, %v3805
    %v6650 = vpack.c.b16 %v3818, %v3806
    %v6651 = vpack.c.b16 %v3819, %v3807
    %v6652 = vpack.c.b16 %v3820, %v3808
    %v6653 = vpack.c.b16 %v3821, %v3809
    %v6654 = vpack.c.b16 %v3822, %v3810
    %v6655 = vpack.c.b16 %v3823, %v3811
    %v6656 = vpack.c.b16 %v3824, %v3812
    %v6657 = vpack.c.b16 %v3825, %v3813
    %v6658 = vpack.c.b16 %v3826, %v3814
    %v6659 = vpack.c.b16 %v3827, %v3815
    %v6660 = vpack.c.b16 %v3828, %v3816
    %v6661 = vpack.c.b16 %v3841, %v3829
    %v6662 = vpack.c.b16 %v3842, %v3830
    %v6663 = vpack.c.b16 %v3843, %v3831
    %v6664 = vpack.c.b16 %v3844, %v3832
    %v6665 = vpack.c.b16 %v3845, %v3833
    %v6666 = vpack.c.b16 %v3846, %v3834
    %v6667 = vpack.c.b16 %v3847, %v3835
    %v6668 = vpack.c.b16 %v3848, %v3836
    %v6669 = vpack.c.b16 %v3849, %v3837
    %v6670 = vpack.c.b16 %v3850, %v3838
    %v6671 = vpack.c.b16 %v3851, %v3839
    %v6672 = vpack.c.b16 %v3852, %v3840
    %v6673 = vpack.c.b16 %v3865, %v3853
    %v6674 = vpack.c.b16 %v3866, %v3854
    %v6675 = vpack.c.b16 %v3867, %v3855
    %v6676 = vpack.c.b16 %v3868, %v3856
    %v6677 = vpack.c.b16 %v3869, %v3857
    %v6678 = vpack.c.b16 %v3870, %v3858
    %v6679 = vpack.c.b16 %v3871, %v3859
    %v6680 = vpack.c.b16 %v3872, %v3860
    %v6681 = vpack.c.b16 %v3873, %v3861
    %v6682 = vpack.c.b16 %v3874, %v3862
    %v6683 = vpack.c.b16 %v3875, %v3863
    %v6684 = vpack.c.b16 %v3876, %v3864
    %v6685 = vpack.c.b16 %v3889, %v3877
    %v6686 = vpack.c.b16 %v3890, %v3878
    %v6687 = vpack.c.b16 %v3891, %v3879
    %v6688 = vpack.c.b16 %v3892, %v3880
    %v6689 = vpack.c.b16 %v3893, %v3881
    %v6690 = vpack.c.b16 %v3894, %v3882
    %v6691 = vpack.c.b16 %v3895, %v3883
    %v6692 = vpack.c.b16 %v3896, %v3884
    %v6693 = vpack.c.b16 %v3897, %v3885
    %v6694 = vpack.c.b16 %v3898, %v3886
    %v6695 = vpack.c.b16 %v3899, %v3887
    %v6696 = vpack.c.b16 %v3900, %v3888
    %v6697 = vpack.c.b16 %v3913, %v3901
    %v6698 = vpack.c.b16 %v3914, %v3902
    %v6699 = vpack.c.b16 %v3915, %v3903
    %v6700 = vpack.c.b16 %v3916, %v3904
    %v6701 = vpack.c.b16 %v3917, %v3905
    %v6702 = vpack.c.b16 %v3918, %v3906
    %v6703 = vpack.c.b16 %v3919, %v3907
    %v6704 = vpack.c.b16 %v3920, %v3908
    %v6705 = vpack.c.b16 %v3921, %v3909
    %v6706 = vpack.c.b16 %v3922, %v3910
    %v6707 = vpack.c.b16 %v3923, %v3911
    %v6708 = vpack.c.b16 %v3924, %v3912
    %v6709 = vpack.c.b16 %v3937, %v3925
    %v6710 = vpack.c.b16 %v3938, %v3926
    %v6711 = vpack.c.b16 %v3939, %v3927
    %v6712 = vpack.c.b16 %v3940, %v3928
    %v6713 = vpack.c.b16 %v3941, %v3929
    %v6714 = vpack.c.b16 %v3942, %v3930
    %v6715 = vpack.c.b16 %v3943, %v3931
    %v6716 = vpack.c.b16 %v3944, %v3932
    %v6717 = vpack.c.b16 %v3945, %v3933
    %v6718 = vpack.c.b16 %v3946, %v3934
    %v6719 = vpack.c.b16 %v3947, %v3935
    %v6720 = vpack.c.b16 %v3948, %v3936
    %v6721 = vpack.c.b16 %v3961, %v3949
    %v6722 = vpack.c.b16 %v3962, %v3950
    %v6723 = vpack.c.b16 %v3963, %v3951
    %v6724 = vpack.c.b16 %v3964, %v3952
    %v6725 = vpack.c.b16 %v3965, %v3953
    %v6726 = vpack.c.b16 %v3966, %v3954
    %v6727 = vpack.c.b16 %v3967, %v3955
    %v6728 = vpack.c.b16 %v3968, %v3956
    %v6729 = vpack.c.b16 %v3969, %v3957
    %v6730 = vpack.c.b16 %v3970, %v3958
    %v6731 = vpack.c.b16 %v3971, %v3959
    %v6732 = vpack.c.b16 %v3972, %v3960
    %v6733 = vpack.c.b16 %v3985, %v3973
    %v6734 = vpack.c.b16 %v3986, %v3974
    %v6735 = vpack.c.b16 %v3987, %v3975
    %v6736 = vpack.c.b16 %v3988, %v3976
    %v6737 = vpack.c.b16 %v3989, %v3977
    %v6738 = vpack.c.b16 %v3990, %v3978
    %v6739 = vpack.c.b16 %v3991, %v3979
    %v6740 = vpack.c.b16 %v3992, %v3980
    %v6741 = vpack.c.b16 %v3993, %v3981
    %v6742 = vpack.c.b16 %v3994, %v3982
    %v6743 = vpack.c.b16 %v3995, %v3983
    %v6744 = vpack.c.b16 %v3996, %v3984
    %v6745 = vpack.c.b16 %v4009, %v3997
    %v6746 = vpack.c.b16 %v4010, %v3998
    %v6747 = vpack.c.b16 %v4011, %v3999
    %v6748 = vpack.c.b16 %v4012, %v4000
    %v6749 = vpack.c.b16 %v4013, %v4001
    %v6750 = vpack.c.b16 %v4014, %v4002
    %v6751 = vpack.c.b16 %v4015, %v4003
    %v6752 = vpack.c.b16 %v4016, %v4004
    %v6753 = vpack.c.b16 %v4017, %v4005
    %v6754 = vpack.c.b16 %v4018, %v4006
    %v6755 = vpack.c.b16 %v4019, %v4007
    %v6756 = vpack.c.b16 %v4020, %v4008
    %v6757 = vpack.c.b16 %v4033, %v4021
    %v6758 = vpack.c.b16 %v4034, %v4022
    %v6759 = vpack.c.b16 %v4035, %v4023
    %v6760 = vpack.c.b16 %v4036, %v4024
    %v6761 = vpack.c.b16 %v4037, %v4025
    %v6762 = vpack.c.b16 %v4038, %v4026
    %v6763 = vpack.c.b16 %v4039, %v4027
    %v6764 = vpack.c.b16 %v4040, %v4028
    %v6765 = vpack.c.b16 %v4041, %v4029
    %v6766 = vpack.c.b16 %v4042, %v4030
    %v6767 = vpack.c.b16 %v4043, %v4031
    %v6768 = vpack.c.b16 %v4044, %v4032
    %v6769 = vpack.c.b16 %v4057, %v4045
    %v6770 = vpack.c.b16 %v4058, %v4046
    %v6771 = vpack.c.b16 %v4059, %v4047
    %v6772 = vpack.c.b16 %v4060, %v4048
    %v6773 = vpack.c.b16 %v4061, %v4049
    %v6774 = vpack.c.b16 %v4062, %v4050
    %v6775 = vpack.c.b16 %v4063, %v4051
    %v6776 = vpack.c.b16 %v4064, %v4052
    %v6777 = vpack.c.b16 %v4065, %v4053
    %v6778 = vpack.c.b16 %v4066, %v4054
    %v6779 = vpack.c.b16 %v4067, %v4055
    %v6780 = vpack.c.b16 %v4068, %v4056
    %v6781 = vpack.c.b16 %v4081, %v4069
    %v6782 = vpack.c.b16 %v4082, %v4070
    %v6783 = vpack.c.b16 %v4083, %v4071
    %v6784 = vpack.c.b16 %v4084, %v4072
    %v6785 = vpack.c.b16 %v4085, %v4073
    %v6786 = vpack.c.b16 %v4086, %v4074
    %v6787 = vpack.c.b16 %v4087, %v4075
    %v6788 = vpack.c.b16 %v4088, %v4076
    %v6789 = vpack.c.b16 %v4089, %v4077
    %v6790 = vpack.c.b16 %v4090, %v4078
    %v6791 = vpack.c.b16 %v4091, %v4079
    %v6792 = vpack.c.b16 %v4092, %v4080
    %v6793 = vpack.c.b16 %v4105, %v4093
    %v6794 = vpack.c.b16 %v4106, %v4094
    %v6795 = vpack.c.b16 %v4107, %v4095
    %v6796 = vpack.c.b16 %v4108, %v4096
    %v6797 = vpack.c.b16 %v4109, %v4097
    %v6798 = vpack.c.b16 %v4110, %v4098
    %v6799 = vpack.c.b16 %v4111, %v4099
    %v6800 = vpack.c.b16 %v4112, %v4100
    %v6801 = vpack.c.b16 %v4113, %v4101
    %v6802 = vpack.c.b16 %v4114, %v4102
    %v6803 = vpack.c.b16 %v4115, %v4103
    %v6804 = vpack.c.b16 %v4116, %v4104
    %v6805 = vpack.c.b16 %v4129, %v4117
    %v6806 = vpack.c.b16 %v4130, %v4118
    %v6807 = vpack.c.b16 %v4131, %v4119
    %v6808 = vpack.c.b16 %v4132, %v4120
    %v6809 = vpack.c.b16 %v4133, %v4121
    %v6810 = vpack.c.b16 %v4134, %v4122
    %v6811 = vpack.c.b16 %v4135, %v4123
    %v6812 = vpack.c.b16 %v4136, %v4124
    %v6813 = vpack.c.b16 %v4137, %v4125
    %v6814 = vpack.c.b16 %v4138, %v4126
    %v6815 = vpack.c.b16 %v4139, %v4127
    %v6816 = vpack.c.b16 %v4140, %v4128
    %v6817 = vpack.c.b16 %v4153, %v4141
    %v6818 = vpack.c.b16 %v4154, %v4142
    %v6819 = vpack.c.b16 %v4155, %v4143
    %v6820 = vpack.c.b16 %v4156, %v4144
    %v6821 = vpack.c.b16 %v4157, %v4145
    %v6822 = vpack.c.b16 %v4158, %v4146
    %v6823 = vpack.c.b16 %v4159, %v4147
    %v6824 = vpack.c.b16 %v4160, %v4148
    %v6825 = vpack.c.b16 %v4161, %v4149
    %v6826 = vpack.c.b16 %v4162, %v4150
    %v6827 = vpack.c.b16 %v4163, %v4151
    %v6828 = vpack.c.b16 %v4164, %v4152
    %v6829 = vpack.c.b16 %v4177, %v4165
    %v6830 = vpack.c.b16 %v4178, %v4166
    %v6831 = vpack.c.b16 %v4179, %v4167
    %v6832 = vpack.c.b16 %v4180, %v4168
    %v6833 = vpack.c.b16 %v4181, %v4169
    %v6834 = vpack.c.b16 %v4182, %v4170
    %v6835 = vpack.c.b16 %v4183, %v4171
    %v6836 = vpack.c.b16 %v4184, %v4172
    %v6837 = vpack.c.b16 %v4185, %v4173
    %v6838 = vpack.c.b16 %v4186, %v4174
    %v6839 = vpack.c.b16 %v4187, %v4175
    %v6840 = vpack.c.b16 %v4188, %v4176
    %v6841 = vpack.c.b16 %v4201, %v4189
    %v6842 = vpack.c.b16 %v4202, %v4190
    %v6843 = vpack.c.b16 %v4203, %v4191
    %v6844 = vpack.c.b16 %v4204, %v4192
    %v6845 = vpack.c.b16 %v4205, %v4193
    %v6846 = vpack.c.b16 %v4206, %v4194
    %v6847 = vpack.c.b16 %v4207, %v4195
    %v6848 = vpack.c.b16 %v4208, %v4196
    %v6849 = vpack.c.b16 %v4209, %v4197
    %v6850 = vpack.c.b16 %v4210, %v4198
    %v6851 = vpack.c.b16 %v4211, %v4199
    %v6852 = vpack.c.b16 %v4212, %v4200
    %v6853 = vpack.c.b16 %v4225, %v4213
    %v6854 = vpack.c.b16 %v4226, %v4214
    %v6855 = vpack.c.b16 %v4227, %v4215
    %v6856 = vpack.c.b16 %v4228, %v4216
    %v6857 = vpack.c.b16 %v4229, %v4217
    %v6858 = vpack.c.b16 %v4230, %v4218
    %v6859 = vpack.c.b16 %v4231, %v4219
    %v6860 = vpack.c.b16 %v4232, %v4220
    %v6861 = vpack.c.b16 %v4233, %v4221
    %v6862 = vpack.c.b16 %v4234, %v4222
    %v6863 = vpack.c.b16 %v4235, %v4223
    %v6864 = vpack.c.b16 %v4236, %v4224
    %v6865 = vpack.c.b16 %v4249, %v4237
    %v6866 = vpack.c.b16 %v4250, %v4238
    %v6867 = vpack.c.b16 %v4251, %v4239
    %v6868 = vpack.c.b16 %v4252, %v4240
    %v6869 = vpack.c.b16 %v4253, %v4241
    %v6870 = vpack.c.b16 %v4254, %v4242
    %v6871 = vpack.c.b16 %v4255, %v4243
    %v6872 = vpack.c.b16 %v4256, %v4244
    %v6873 = vpack.c.b16 %v4257, %v4245
    %v6874 = vpack.c.b16 %v4258, %v4246
    %v6875 = vpack.c.b16 %v4259, %v4247
    %v6876 = vpack.c.b16 %v4260, %v4248
    %v6877 = vpack.c.b16 %v4273, %v4261
    %v6878 = vpack.c.b16 %v4274, %v4262
    %v6879 = vpack.c.b16 %v4275, %v4263
    %v6880 = vpack.c.b16 %v4276, %v4264
    %v6881 = vpack.c.b16 %v4277, %v4265
    %v6882 = vpack.c.b16 %v4278, %v4266
    %v6883 = vpack.c.b16 %v4279, %v4267
    %v6884 = vpack.c.b16 %v4280, %v4268
    %v6885 = vpack.c.b16 %v4281, %v4269
    %v6886 = vpack.c.b16 %v4282, %v4270
    %v6887 = vpack.c.b16 %v4283, %v4271
    %v6888 = vpack.c.b16 %v4284, %v4272
    %v6889 = vpack.c.b16 %v4297, %v4285
    %v6890 = vpack.c.b16 %v4298, %v4286
    %v6891 = vpack.c.b16 %v4299, %v4287
    %v6892 = vpack.c.b16 %v4300, %v4288
    %v6893 = vpack.c.b16 %v4301, %v4289
    %v6894 = vpack.c.b16 %v4302, %v4290
    %v6895 = vpack.c.b16 %v4303, %v4291
    %v6896 = vpack.c.b16 %v4304, %v4292
    %v6897 = vpack.c.b16 %v4305, %v4293
    %v6898 = vpack.c.b16 %v4306, %v4294
    %v6899 = vpack.c.b16 %v4307, %v4295
    %v6900 = vpack.c.b16 %v4308, %v4296
    %v6901 = vpack.c.b16 %v4321, %v4309
    %v6902 = vpack.c.b16 %v4322, %v4310
    %v6903 = vpack.c.b16 %v4323, %v4311
    %v6904 = vpack.c.b16 %v4324, %v4312
    %v6905 = vpack.c.b16 %v4325, %v4313
    %v6906 = vpack.c.b16 %v4326, %v4314
    %v6907 = vpack.c.b16 %v4327, %v4315
    %v6908 = vpack.c.b16 %v4328, %v4316
    %v6909 = vpack.c.b16 %v4329, %v4317
    %v6910 = vpack.c.b16 %v4330, %v4318
    %v6911 = vpack.c.b16 %v4331, %v4319
    %v6912 = vpack.c.b16 %v4332, %v4320
    %v6913 = vpack.c.b16 %v4345, %v4333
    %v6914 = vpack.c.b16 %v4346, %v4334
    %v6915 = vpack.c.b16 %v4347, %v4335
    %v6916 = vpack.c.b16 %v4348, %v4336
    %v6917 = vpack.c.b16 %v4349, %v4337
    %v6918 = vpack.c.b16 %v4350, %v4338
    %v6919 = vpack.c.b16 %v4351, %v4339
    %v6920 = vpack.c.b16 %v4352, %v4340
    %v6921 = vpack.c.b16 %v4353, %v4341
    %v6922 = vpack.c.b16 %v4354, %v4342
    %v6923 = vpack.c.b16 %v4355, %v4343
    %v6924 = vpack.c.b16 %v4356, %v4344
    %v6925 = vpack.c.b16 %v4369, %v4357
    %v6926 = vpack.c.b16 %v4370, %v4358
    %v6927 = vpack.c.b16 %v4371, %v4359
    %v6928 = vpack.c.b16 %v4372, %v4360
    %v6929 = vpack.c.b16 %v4373, %v4361
    %v6930 = vpack.c.b16 %v4374, %v4362
    %v6931 = vpack.c.b16 %v4375, %v4363
    %v6932 = vpack.c.b16 %v4376, %v4364
    %v6933 = vpack.c.b16 %v4377, %v4365
    %v6934 = vpack.c.b16 %v4378, %v4366
    %v6935 = vpack.c.b16 %v4379, %v4367
    %v6936 = vpack.c.b16 %v4380, %v4368
    %v6937 = vpack.c.b16 %v4393, %v4381
    %v6938 = vpack.c.b16 %v4394, %v4382
    %v6939 = vpack.c.b16 %v4395, %v4383
    %v6940 = vpack.c.b16 %v4396, %v4384
    %v6941 = vpack.c.b16 %v4397, %v4385
    %v6942 = vpack.c.b16 %v4398, %v4386
    %v6943 = vpack.c.b16 %v4399, %v4387
    %v6944 = vpack.c.b16 %v4400, %v4388
    %v6945 = vpack.c.b16 %v4401, %v4389
    %v6946 = vpack.c.b16 %v4402, %v4390
    %v6947 = vpack.c.b16 %v4403, %v4391
    %v6948 = vpack.c.b16 %v4404, %v4392
    %v6949 = vpack.c.b16 %v4417, %v4405
    %v6950 = vpack.c.b16 %v4418, %v4406
    %v6951 = vpack.c.b16 %v4419, %v4407
    %v6952 = vpack.c.b16 %v4420, %v4408
    %v6953 = vpack.c.b16 %v4421, %v4409
    %v6954 = vpack.c.b16 %v4422, %v4410
    %v6955 = vpack.c.b16 %v4423, %v4411
    %v6956 = vpack.c.b16 %v4424, %v4412
    %v6957 = vpack.c.b16 %v4425, %v4413
    %v6958 = vpack.c.b16 %v4426, %v4414
    %v6959 = vpack.c.b16 %v4427, %v4415
    %v6960 = vpack.c.b16 %v4428, %v4416
    %v6961 = vpack.c.b16 %v4441, %v4429
    %v6962 = vpack.c.b16 %v4442, %v4430
    %v6963 = vpack.c.b16 %v4443, %v4431
    %v6964 = vpack.c.b16 %v4444, %v4432
    %v6965 = vpack.c.b16 %v4445, %v4433
    %v6966 = vpack.c.b16 %v4446, %v4434
    %v6967 = vpack.c.b16 %v4447, %v4435
    %v6968 = vpack.c.b16 %v4448, %v4436
    %v6969 = vpack.c.b16 %v4449, %v4437
    %v6970 = vpack.c.b16 %v4450, %v4438
    %v6971 = vpack.c.b16 %v4451, %v4439
    %v6972 = vpack.c.b16 %v4452, %v4440
    %v6973 = vpack.c.b16 %v4465, %v4453
    %v6974 = vpack.c.b16 %v4466, %v4454
    %v6975 = vpack.c.b16 %v4467, %v4455
    %v6976 = vpack.c.b16 %v4468, %v4456
    %v6977 = vpack.c.b16 %v4469, %v4457
    %v6978 = vpack.c.b16 %v4470, %v4458
    %v6979 = vpack.c.b16 %v4471, %v4459
    %v6980 = vpack.c.b16 %v4472, %v4460
    %v6981 = vpack.c.b16 %v4473, %v4461
    %v6982 = vpack.c.b16 %v4474, %v4462
    %v6983 = vpack.c.b16 %v4475, %v4463
    %v6984 = vpack.c.b16 %v4476, %v4464
    %v6985 = vpack.c.b16 %v4489, %v4477
    %v6986 = vpack.c.b16 %v4490, %v4478
    %v6987 = vpack.c.b16 %v4491, %v4479
    %v6988 = vpack.c.b16 %v4492, %v4480
    %v6989 = vpack.c.b16 %v4493, %v4481
    %v6990 = vpack.c.b16 %v4494, %v4482
    %v6991 = vpack.c.b16 %v4495, %v4483
    %v6992 = vpack.c.b16 %v4496, %v4484
    %v6993 = vpack.c.b16 %v4497, %v4485
    %v6994 = vpack.c.b16 %v4498, %v4486
    %v6995 = vpack.c.b16 %v4499, %v4487
    %v6996 = vpack.c.b16 %v4500, %v4488
    %v6997 = vpack.c.b16 %v4513, %v4501
    %v6998 = vpack.c.b16 %v4514, %v4502
    %v6999 = vpack.c.b16 %v4515, %v4503
    %v7000 = vpack.c.b16 %v4516, %v4504
    %v7001 = vpack.c.b16 %v4517, %v4505
    %v7002 = vpack.c.b16 %v4518, %v4506
    %v7003 = vpack.c.b16 %v4519, %v4507
    %v7004 = vpack.c.b16 %v4520, %v4508
    %v7005 = vpack.c.b16 %v4521, %v4509
    %v7006 = vpack.c.b16 %v4522, %v4510
    %v7007 = vpack.c.b16 %v4523, %v4511
    %v7008 = vpack.c.b16 %v4524, %v4512
    %v7009 = vpack.c.b16 %v4537, %v4525
    %v7010 = vpack.c.b16 %v4538, %v4526
    %v7011 = vpack.c.b16 %v4539, %v4527
    %v7012 = vpack.c.b16 %v4540, %v4528
    %v7013 = vpack.c.b16 %v4541, %v4529
    %v7014 = vpack.c.b16 %v4542, %v4530
    %v7015 = vpack.c.b16 %v4543, %v4531
    %v7016 = vpack.c.b16 %v4544, %v4532
    %v7017 = vpack.c.b16 %v4545, %v4533
    %v7018 = vpack.c.b16 %v4546, %v4534
    %v7019 = vpack.c.b16 %v4547, %v4535
    %v7020 = vpack.c.b16 %v4548, %v4536
    %v7021 = vpack.c.b16 %v4561, %v4549
    %v7022 = vpack.c.b16 %v4562, %v4550
    %v7023 = vpack.c.b16 %v4563, %v4551
    %v7024 = vpack.c.b16 %v4564, %v4552
    %v7025 = vpack.c.b16 %v4565, %v4553
    %v7026 = vpack.c.b16 %v4566, %v4554
    %v7027 = vpack.c.b16 %v4567, %v4555
    %v7028 = vpack.c.b16 %v4568, %v4556
    %v7029 = vpack.c.b16 %v4569, %v4557
    %v7030 = vpack.c.b16 %v4570, %v4558
    %v7031 = vpack.c.b16 %v4571, %v4559
    %v7032 = vpack.c.b16 %v4572, %v4560
    %v7033 = vpack.c.b16 %v4585, %v4573
    %v7034 = vpack.c.b16 %v4586, %v4574
    %v7035 = vpack.c.b16 %v4587, %v4575
    %v7036 = vpack.c.b16 %v4588, %v4576
    %v7037 = vpack.c.b16 %v4589, %v4577
    %v7038 = vpack.c.b16 %v4590, %v4578
    %v7039 = vpack.c.b16 %v4591, %v4579
    %v7040 = vpack.c.b16 %v4592, %v4580
    %v7041 = vpack.c.b16 %v4593, %v4581
    %v7042 = vpack.c.b16 %v4594, %v4582
    %v7043 = vpack.c.b16 %v4595, %v4583
    %v7044 = vpack.c.b16 %v4596, %v4584
    %v7045 = vpack.c.b16 %v4609, %v4597
    %v7046 = vpack.c.b16 %v4610, %v4598
    %v7047 = vpack.c.b16 %v4611, %v4599
    %v7048 = vpack.c.b16 %v4612, %v4600
    %v7049 = vpack.c.b16 %v4613, %v4601
    %v7050 = vpack.c.b16 %v4614, %v4602
    %v7051 = vpack.c.b16 %v4615, %v4603
    %v7052 = vpack.c.b16 %v4616, %v4604
    %v7053 = vpack.c.b16 %v4617, %v4605
    %v7054 = vpack.c.b16 %v4618, %v4606
    %v7055 = vpack.c.b16 %v4619, %v4607
    %v7056 = vpack.c.b16 %v4620, %v4608
    %v7057 = vpack.c.b16 %v4633, %v4621
    %v7058 = vpack.c.b16 %v4634, %v4622
    %v7059 = vpack.c.b16 %v4635, %v4623
    %v7060 = vpack.c.b16 %v4636, %v4624
    %v7061 = vpack.c.b16 %v4637, %v4625
    %v7062 = vpack.c.b16 %v4638, %v4626
    %v7063 = vpack.c.b16 %v4639, %v4627
    %v7064 = vpack.c.b16 %v4640, %v4628
    %v7065 = vpack.c.b16 %v4641, %v4629
    %v7066 = vpack.c.b16 %v4642, %v4630
    %v7067 = vpack.c.b16 %v4643, %v4631
    %v7068 = vpack.c.b16 %v4644, %v4632
    %v7069 = vpack.c.b16 %v4657, %v4645
    %v7070 = vpack.c.b16 %v4658, %v4646
    %v7071 = vpack.c.b16 %v4659, %v4647
    %v7072 = vpack.c.b16 %v4660, %v4648
    %v7073 = vpack.c.b16 %v4661, %v4649
    %v7074 = vpack.c.b16 %v4662, %v4650
    %v7075 = vpack.c.b16 %v4663, %v4651
    %v7076 = vpack.c.b16 %v4664, %v4652
    %v7077 = vpack.c.b16 %v4665, %v4653
    %v7078 = vpack.c.b16 %v4666, %v4654
    %v7079 = vpack.c.b16 %v4667, %v4655
    %v7080 = vpack.c.b16 %v4668, %v4656
    %v7081 = vpack.c.b16 %v4681, %v4669
    %v7082 = vpack.c.b16 %v4682, %v4670
    %v7083 = vpack.c.b16 %v4683, %v4671
    %v7084 = vpack.c.b16 %v4684, %v4672
    %v7085 = vpack.c.b16 %v4685, %v4673
    %v7086 = vpack.c.b16 %v4686, %v4674
    %v7087 = vpack.c.b16 %v4687, %v4675
    %v7088 = vpack.c.b16 %v4688, %v4676
    %v7089 = vpack.c.b16 %v4689, %v4677
    %v7090 = vpack.c.b16 %v4690, %v4678
    %v7091 = vpack.c.b16 %v4691, %v4679
    %v7092 = vpack.c.b16 %v4692, %v4680
    %v7093 = vpack.c.b16 %v4705, %v4693
    %v7094 = vpack.c.b16 %v4706, %v4694
    %v7095 = vpack.c.b16 %v4707, %v4695
    %v7096 = vpack.c.b16 %v4708, %v4696
    %v7097 = vpack.c.b16 %v4709, %v4697
    %v7098 = vpack.c.b16 %v4710, %v4698
    %v7099 = vpack.c.b16 %v4711, %v4699
    %v7100 = vpack.c.b16 %v4712, %v4700
    %v7101 = vpack.c.b16 %v4713, %v4701
    %v7102 = vpack.c.b16 %v4714, %v4702
    %v7103 = vpack.c.b16 %v4715, %v4703
    %v7104 = vpack.c.b16 %v4716, %v4704
    %v7105 = vpack.c.b16 %v4729, %v4717
    %v7106 = vpack.c.b16 %v4730, %v4718
    %v7107 = vpack.c.b16 %v4731, %v4719
    %v7108 = vpack.c.b16 %v4732, %v4720
    %v7109 = vpack.c.b16 %v4733, %v4721
    %v7110 = vpack.c.b16 %v4734, %v4722
    %v7111 = vpack.c.b16 %v4735, %v4723
    %v7112 = vpack.c.b16 %v4736, %v4724
    %v7113 = vpack.c.b16 %v4737, %v4725
    %v7114 = vpack.c.b16 %v4738, %v4726
    %v7115 = vpack.c.b16 %v4739, %v4727
    %v7116 = vpack.c.b16 %v4740, %v4728
    %v7117 = vpack.c.b16 %v4753, %v4741
    %v7118 = vpack.c.b16 %v4754, %v4742
    %v7119 = vpack.c.b16 %v4755, %v4743
    %v7120 = vpack.c.b16 %v4756, %v4744
    %v7121 = vpack.c.b16 %v4757, %v4745
    %v7122 = vpack.c.b16 %v4758, %v4746
    %v7123 = vpack.c.b16 %v4759, %v4747
    %v7124 = vpack.c.b16 %v4760, %v4748
    %v7125 = vpack.c.b16 %v4761, %v4749
    %v7126 = vpack.c.b16 %v4762, %v4750
    %v7127 = vpack.c.b16 %v4763, %v4751
    %v7128 = vpack.c.b16 %v4764, %v4752
    %v7129 = vpack.c.b16 %v4777, %v4765
    %v7130 = vpack.c.b16 %v4778, %v4766
    %v7131 = vpack.c.b16 %v4779, %v4767
    %v7132 = vpack.c.b16 %v4780, %v4768
    %v7133 = vpack.c.b16 %v4781, %v4769
    %v7134 = vpack.c.b16 %v4782, %v4770
    %v7135 = vpack.c.b16 %v4783, %v4771
    %v7136 = vpack.c.b16 %v4784, %v4772
    %v7137 = vpack.c.b16 %v4785, %v4773
    %v7138 = vpack.c.b16 %v4786, %v4774
    %v7139 = vpack.c.b16 %v4787, %v4775
    %v7140 = vpack.c.b16 %v4788, %v4776
    %v7141 = vpack.c.b16 %v4801, %v4789
    %v7142 = vpack.c.b16 %v4802, %v4790
    %v7143 = vpack.c.b16 %v4803, %v4791
    %v7144 = vpack.c.b16 %v4804, %v4792
    %v7145 = vpack.c.b16 %v4805, %v4793
    %v7146 = vpack.c.b16 %v4806, %v4794
    %v7147 = vpack.c.b16 %v4807, %v4795
    %v7148 = vpack.c.b16 %v4808, %v4796
    %v7149 = vpack.c.b16 %v4809, %v4797
    %v7150 = vpack.c.b16 %v4810, %v4798
    %v7151 = vpack.c.b16 %v4811, %v4799
    %v7152 = vpack.c.b16 %v4812, %v4800
    %v7153 = vpack.c.b16 %v4825, %v4813
    %v7154 = vpack.c.b16 %v4826, %v4814
    %v7155 = vpack.c.b16 %v4827, %v4815
    %v7156 = vpack.c.b16 %v4828, %v4816
    %v7157 = vpack.c.b16 %v4829, %v4817
    %v7158 = vpack.c.b16 %v4830, %v4818
    %v7159 = vpack.c.b16 %v4831, %v4819
    %v7160 = vpack.c.b16 %v4832, %v4820
    %v7161 = vpack.c.b16 %v4833, %v4821
    %v7162 = vpack.c.b16 %v4834, %v4822
    %v7163 = vpack.c.b16 %v4835, %v4823
    %v7164 = vpack.c.b16 %v4836, %v4824
    %v7165 = vpack.c.b16 %v4849, %v4837
    %v7166 = vpack.c.b16 %v4850, %v4838
    %v7167 = vpack.c.b16 %v4851, %v4839
    %v7168 = vpack.c.b16 %v4852, %v4840
    %v7169 = vpack.c.b16 %v4853, %v4841
    %v7170 = vpack.c.b16 %v4854, %v4842
    %v7171 = vpack.c.b16 %v4855, %v4843
    %v7172 = vpack.c.b16 %v4856, %v4844
    %v7173 = vpack.c.b16 %v4857, %v4845
    %v7174 = vpack.c.b16 %v4858, %v4846
    %v7175 = vpack.c.b16 %v4859, %v4847
    %v7176 = vpack.c.b16 %v4860, %v4848
    %v7177 = vpack.c.b16 %v4873, %v4861
    %v7178 = vpack.c.b16 %v4874, %v4862
    %v7179 = vpack.c.b16 %v4875, %v4863
    %v7180 = vpack.c.b16 %v4876, %v4864
    %v7181 = vpack.c.b16 %v4877, %v4865
    %v7182 = vpack.c.b16 %v4878, %v4866
    %v7183 = vpack.c.b16 %v4879, %v4867
    %v7184 = vpack.c.b16 %v4880, %v4868
    %v7185 = vpack.c.b16 %v4881, %v4869
    %v7186 = vpack.c.b16 %v4882, %v4870
    %v7187 = vpack.c.b16 %v4883, %v4871
    %v7188 = vpack.c.b16 %v4884, %v4872
    %v7189 = vpack.c.b16 %v4897, %v4885
    %v7190 = vpack.c.b16 %v4898, %v4886
    %v7191 = vpack.c.b16 %v4899, %v4887
    %v7192 = vpack.c.b16 %v4900, %v4888
    %v7193 = vpack.c.b16 %v4901, %v4889
    %v7194 = vpack.c.b16 %v4902, %v4890
    %v7195 = vpack.c.b16 %v4903, %v4891
    %v7196 = vpack.c.b16 %v4904, %v4892
    %v7197 = vpack.c.b16 %v4905, %v4893
    %v7198 = vpack.c.b16 %v4906, %v4894
    %v7199 = vpack.c.b16 %v4907, %v4895
    %v7200 = vpack.c.b16 %v4908, %v4896
    %v7201 = vpack.c.b16 %v4921, %v4909
    %v7202 = vpack.c.b16 %v4922, %v4910
    %v7203 = vpack.c.b16 %v4923, %v4911
    %v7204 = vpack.c.b16 %v4924, %v4912
    %v7205 = vpack.c.b16 %v4925, %v4913
    %v7206 = vpack.c.b16 %v4926, %v4914
    %v7207 = vpack.c.b16 %v4927, %v4915
    %v7208 = vpack.c.b16 %v4928, %v4916
    %v7209 = vpack.c.b16 %v4929, %v4917
    %v7210 = vpack.c.b16 %v4930, %v4918
    %v7211 = vpack.c.b16 %v4931, %v4919
    %v7212 = vpack.c.b16 %v4932, %v4920
    %v7213 = vpack.c.b16 %v4945, %v4933
    %v7214 = vpack.c.b16 %v4946, %v4934
    %v7215 = vpack.c.b16 %v4947, %v4935
    %v7216 = vpack.c.b16 %v4948, %v4936
    %v7217 = vpack.c.b16 %v4949, %v4937
    %v7218 = vpack.c.b16 %v4950, %v4938
    %v7219 = vpack.c.b16 %v4951, %v4939
    %v7220 = vpack.c.b16 %v4952, %v4940
    %v7221 = vpack.c.b16 %v4953, %v4941
    %v7222 = vpack.c.b16 %v4954, %v4942
    %v7223 = vpack.c.b16 %v4955, %v4943
    %v7224 = vpack.c.b16 %v4956, %v4944
    %v7225 = vpack.c.b16 %v4969, %v4957
    %v7226 = vpack.c.b16 %v4970, %v4958
    %v7227 = vpack.c.b16 %v4971, %v4959
    %v7228 = vpack.c.b16 %v4972, %v4960
    %v7229 = vpack.c.b16 %v4973, %v4961
    %v7230 = vpack.c.b16 %v4974, %v4962
    %v7231 = vpack.c.b16 %v4975, %v4963
    %v7232 = vpack.c.b16 %v4976, %v4964
    %v7233 = vpack.c.b16 %v4977, %v4965
    %v7234 = vpack.c.b16 %v4978, %v4966
    %v7235 = vpack.c.b16 %v4979, %v4967
    %v7236 = vpack.c.b16 %v4980, %v4968
    %v7237 = vpack.c.b16 %v4993, %v4981
    %v7238 = vpack.c.b16 %v4994, %v4982
    %v7239 = vpack.c.b16 %v4995, %v4983
    %v7240 = vpack.c.b16 %v4996, %v4984
    %v7241 = vpack.c.b16 %v4997, %v4985
    %v7242 = vpack.c.b16 %v4998, %v4986
    %v7243 = vpack.c.b16 %v4999, %v4987
    %v7244 = vpack.c.b16 %v5000, %v4988
    %v7245 = vpack.c.b16 %v5001, %v4989
    %v7246 = vpack.c.b16 %v5002, %v4990
    %v7247 = vpack.c.b16 %v5003, %v4991
    %v7248 = vpack.c.b16 %v5004, %v4992
    %v7249 = vpack.c.b16 %v5017, %v5005
    %v7250 = vpack.c.b16 %v5018, %v5006
    %v7251 = vpack.c.b16 %v5019, %v5007
    %v7252 = vpack.c.b16 %v5020, %v5008
    %v7253 = vpack.c.b16 %v5021, %v5009
    %v7254 = vpack.c.b16 %v5022, %v5010
    %v7255 = vpack.c.b16 %v5023, %v5011
    %v7256 = vpack.c.b16 %v5024, %v5012
    %v7257 = vpack.c.b16 %v5025, %v5013
    %v7258 = vpack.c.b16 %v5026, %v5014
    %v7259 = vpack.c.b16 %v5027, %v5015
    %v7260 = vpack.c.b16 %v5028, %v5016
    %v7261 = vpack.c.b16 %v5041, %v5029
    %v7262 = vpack.c.b16 %v5042, %v5030
    %v7263 = vpack.c.b16 %v5043, %v5031
    %v7264 = vpack.c.b16 %v5044, %v5032
    %v7265 = vpack.c.b16 %v5045, %v5033
    %v7266 = vpack.c.b16 %v5046, %v5034
    %v7267 = vpack.c.b16 %v5047, %v5035
    %v7268 = vpack.c.b16 %v5048, %v5036
    %v7269 = vpack.c.b16 %v5049, %v5037
    %v7270 = vpack.c.b16 %v5050, %v5038
    %v7271 = vpack.c.b16 %v5051, %v5039
    %v7272 = vpack.c.b16 %v5052, %v5040
    %v7273 = vpack.c.b16 %v5065, %v5053
    %v7274 = vpack.c.b16 %v5066, %v5054
    %v7275 = vpack.c.b16 %v5067, %v5055
    %v7276 = vpack.c.b16 %v5068, %v5056
    %v7277 = vpack.c.b16 %v5069, %v5057
    %v7278 = vpack.c.b16 %v5070, %v5058
    %v7279 = vpack.c.b16 %v5071, %v5059
    %v7280 = vpack.c.b16 %v5072, %v5060
    %v7281 = vpack.c.b16 %v5073, %v5061
    %v7282 = vpack.c.b16 %v5074, %v5062
    %v7283 = vpack.c.b16 %v5075, %v5063
    %v7284 = vpack.c.b16 %v5076, %v5064
    %v7285 = vpack.c.b16 %v5089, %v5077
    %v7286 = vpack.c.b16 %v5090, %v5078
    %v7287 = vpack.c.b16 %v5091, %v5079
    %v7288 = vpack.c.b16 %v5092, %v5080
    %v7289 = vpack.c.b16 %v5093, %v5081
    %v7290 = vpack.c.b16 %v5094, %v5082
    %v7291 = vpack.c.b16 %v5095, %v5083
    %v7292 = vpack.c.b16 %v5096, %v5084
    %v7293 = vpack.c.b16 %v5097, %v5085
    %v7294 = vpack.c.b16 %v5098, %v5086
    %v7295 = vpack.c.b16 %v5099, %v5087
    %v7296 = vpack.c.b16 %v5100, %v5088
    %v7297 = vpack.c.b16 %v5113, %v5101
    %v7298 = vpack.c.b16 %v5114, %v5102
    %v7299 = vpack.c.b16 %v5115, %v5103
    %v7300 = vpack.c.b16 %v5116, %v5104
    %v7301 = vpack.c.b16 %v5117, %v5105
    %v7302 = vpack.c.b16 %v5118, %v5106
    %v7303 = vpack.c.b16 %v5119, %v5107
    %v7304 = vpack.c.b16 %v5120, %v5108
    %v7305 = vpack.c.b16 %v5121, %v5109
    %v7306 = vpack.c.b16 %v5122, %v5110
    %v7307 = vpack.c.b16 %v5123, %v5111
    %v7308 = vpack.c.b16 %v5124, %v5112
    %v7309 = vpack.c.b16 %v5137, %v5125
    %v7310 = vpack.c.b16 %v5138, %v5126
    %v7311 = vpack.c.b16 %v5139, %v5127
    %v7312 = vpack.c.b16 %v5140, %v5128
    %v7313 = vpack.c.b16 %v5141, %v5129
    %v7314 = vpack.c.b16 %v5142, %v5130
    %v7315 = vpack.c.b16 %v5143, %v5131
    %v7316 = vpack.c.b16 %v5144, %v5132
    %v7317 = vpack.c.b16 %v5145, %v5133
    %v7318 = vpack.c.b16 %v5146, %v5134
    %v7319 = vpack.c.b16 %v5147, %v5135
    %v7320 = vpack.c.b16 %v5148, %v5136
    %v7321 = vpack.c.b16 %v5161, %v5149
    %v7322 = vpack.c.b16 %v5162, %v5150
    %v7323 = vpack.c.b16 %v5163, %v5151
    %v7324 = vpack.c.b16 %v5164, %v5152
    %v7325 = vpack.c.b16 %v5165, %v5153
    %v7326 = vpack.c.b16 %v5166, %v5154
    %v7327 = vpack.c.b16 %v5167, %v5155
    %v7328 = vpack.c.b16 %v5168, %v5156
    %v7329 = vpack.c.b16 %v5169, %v5157
    %v7330 = vpack.c.b16 %v5170, %v5158
    %v7331 = vpack.c.b16 %v5171, %v5159
    %v7332 = vpack.c.b16 %v5172, %v5160
    %v7333 = vpack.c.b16 %v5185, %v5173
    %v7334 = vpack.c.b16 %v5186, %v5174
    %v7335 = vpack.c.b16 %v5187, %v5175
    %v7336 = vpack.c.b16 %v5188, %v5176
    %v7337 = vpack.c.b16 %v5189, %v5177
    %v7338 = vpack.c.b16 %v5190, %v5178
    %v7339 = vpack.c.b16 %v5191, %v5179
    %v7340 = vpack.c.b16 %v5192, %v5180
    %v7341 = vpack.c.b16 %v5193, %v5181
    %v7342 = vpack.c.b16 %v5194, %v5182
    %v7343 = vpack.c.b16 %v5195, %v5183
    %v7344 = vpack.c.b16 %v5196, %v5184
    %v7345 = vpack.c.b16 %v5209, %v5197
    %v7346 = vpack.c.b16 %v5210, %v5198
    %v7347 = vpack.c.b16 %v5211, %v5199
    %v7348 = vpack.c.b16 %v5212, %v5200
    %v7349 = vpack.c.b16 %v5213, %v5201
    %v7350 = vpack.c.b16 %v5214, %v5202
    %v7351 = vpack.c.b16 %v5215, %v5203
    %v7352 = vpack.c.b16 %v5216, %v5204
    %v7353 = vpack.c.b16 %v5217, %v5205
    %v7354 = vpack.c.b16 %v5218, %v5206
    %v7355 = vpack.c.b16 %v5219, %v5207
    %v7356 = vpack.c.b16 %v5220, %v5208
    %v7357 = vpack.c.b16 %v5233, %v5221
    %v7358 = vpack.c.b16 %v5234, %v5222
    %v7359 = vpack.c.b16 %v5235, %v5223
    %v7360 = vpack.c.b16 %v5236, %v5224
    %v7361 = vpack.c.b16 %v5237, %v5225
    %v7362 = vpack.c.b16 %v5238, %v5226
    %v7363 = vpack.c.b16 %v5239, %v5227
    %v7364 = vpack.c.b16 %v5240, %v5228
    %v7365 = vpack.c.b16 %v5241, %v5229
    %v7366 = vpack.c.b16 %v5242, %v5230
    %v7367 = vpack.c.b16 %v5243, %v5231
    %v7368 = vpack.c.b16 %v5244, %v5232
    %v7369 = vpack.c.b16 %v5257, %v5245
    %v7370 = vpack.c.b16 %v5258, %v5246
    %v7371 = vpack.c.b16 %v5259, %v5247
    %v7372 = vpack.c.b16 %v5260, %v5248
    %v7373 = vpack.c.b16 %v5261, %v5249
    %v7374 = vpack.c.b16 %v5262, %v5250
    %v7375 = vpack.c.b16 %v5263, %v5251
    %v7376 = vpack.c.b16 %v5264, %v5252
    %v7377 = vpack.c.b16 %v5265, %v5253
    %v7378 = vpack.c.b16 %v5266, %v5254
    %v7379 = vpack.c.b16 %v5267, %v5255
    %v7380 = vpack.c.b16 %v5268, %v5256
    %v7381 = vpack.c.b16 %v5281, %v5269
    %v7382 = vpack.c.b16 %v5282, %v5270
    %v7383 = vpack.c.b16 %v5283, %v5271
    %v7384 = vpack.c.b16 %v5284, %v5272
    %v7385 = vpack.c.b16 %v5285, %v5273
    %v7386 = vpack.c.b16 %v5286, %v5274
    %v7387 = vpack.c.b16 %v5287, %v5275
    %v7388 = vpack.c.b16 %v5288, %v5276
    %v7389 = vpack.c.b16 %v5289, %v5277
    %v7390 = vpack.c.b16 %v5290, %v5278
    %v7391 = vpack.c.b16 %v5291, %v5279
    %v7392 = vpack.c.b16 %v5292, %v5280
    %v7393 = vpack.c.b16 %v5305, %v5293
    %v7394 = vpack.c.b16 %v5306, %v5294
    %v7395 = vpack.c.b16 %v5307, %v5295
    %v7396 = vpack.c.b16 %v5308, %v5296
    %v7397 = vpack.c.b16 %v5309, %v5297
    %v7398 = vpack.c.b16 %v5310, %v5298
    %v7399 = vpack.c.b16 %v5311, %v5299
    %v7400 = vpack.c.b16 %v5312, %v5300
    %v7401 = vpack.c.b16 %v5313, %v5301
    %v7402 = vpack.c.b16 %v5314, %v5302
    %v7403 = vpack.c.b16 %v5315, %v5303
    %v7404 = vpack.c.b16 %v5316, %v5304
    %v7405 = vpack.c.b16 %v5329, %v5317
    %v7406 = vpack.c.b16 %v5330, %v5318
    %v7407 = vpack.c.b16 %v5331, %v5319
    %v7408 = vpack.c.b16 %v5332, %v5320
    %v7409 = vpack.c.b16 %v5333, %v5321
    %v7410 = vpack.c.b16 %v5334, %v5322
    %v7411 = vpack.c.b16 %v5335, %v5323
    %v7412 = vpack.c.b16 %v5336, %v5324
    %v7413 = vpack.c.b16 %v5337, %v5325
    %v7414 = vpack.c.b16 %v5338, %v5326
    %v7415 = vpack.c.b16 %v5339, %v5327
    %v7416 = vpack.c.b16 %v5340, %v5328
    %v7417 = vpack.c.b16 %v5353, %v5341
    %v7418 = vpack.c.b16 %v5354, %v5342
    %v7419 = vpack.c.b16 %v5355, %v5343
    %v7420 = vpack.c.b16 %v5356, %v5344
    %v7421 = vpack.c.b16 %v5357, %v5345
    %v7422 = vpack.c.b16 %v5358, %v5346
    %v7423 = vpack.c.b16 %v5359, %v5347
    %v7424 = vpack.c.b16 %v5360, %v5348
    %v7425 = vpack.c.b16 %v5361, %v5349
    %v7426 = vpack.c.b16 %v5362, %v5350
    %v7427 = vpack.c.b16 %v5363, %v5351
    %v7428 = vpack.c.b16 %v5364, %v5352
    %v7429 = vpack.c.b16 %v5377, %v5365
    %v7430 = vpack.c.b16 %v5378, %v5366
    %v7431 = vpack.c.b16 %v5379, %v5367
    %v7432 = vpack.c.b16 %v5380, %v5368
    %v7433 = vpack.c.b16 %v5381, %v5369
    %v7434 = vpack.c.b16 %v5382, %v5370
    %v7435 = vpack.c.b16 %v5383, %v5371
    %v7436 = vpack.c.b16 %v5384, %v5372
    %v7437 = vpack.c.b16 %v5385, %v5373
    %v7438 = vpack.c.b16 %v5386, %v5374
    %v7439 = vpack.c.b16 %v5387, %v5375
    %v7440 = vpack.c.b16 %v5388, %v5376
    %v7441 = vpack.c.b16 %v5401, %v5389
    %v7442 = vpack.c.b16 %v5402, %v5390
    %v7443 = vpack.c.b16 %v5403, %v5391
    %v7444 = vpack.c.b16 %v5404, %v5392
    %v7445 = vpack.c.b16 %v5405, %v5393
    %v7446 = vpack.c.b16 %v5406, %v5394
    %v7447 = vpack.c.b16 %v5407, %v5395
    %v7448 = vpack.c.b16 %v5408, %v5396
    %v7449 = vpack.c.b16 %v5409, %v5397
    %v7450 = vpack.c.b16 %v5410, %v5398
    %v7451 = vpack.c.b16 %v5411, %v5399
    %v7452 = vpack.c.b16 %v5412, %v5400
    %v7453 = vpack.c.b16 %v5425, %v5413
    %v7454 = vpack.c.b16 %v5426, %v5414
    %v7455 = vpack.c.b16 %v5427, %v5415
    %v7456 = vpack.c.b16 %v5428, %v5416
    %v7457 = vpack.c.b16 %v5429, %v5417
    %v7458 = vpack.c.b16 %v5430, %v5418
    %v7459 = vpack.c.b16 %v5431, %v5419
    %v7460 = vpack.c.b16 %v5432, %v5420
    %v7461 = vpack.c.b16 %v5433, %v5421
    %v7462 = vpack.c.b16 %v5434, %v5422
    %v7463 = vpack.c.b16 %v5435, %v5423
    %v7464 = vpack.c.b16 %v5436, %v5424
    %v7465 = vpack.c.b16 %v5449, %v5437
    %v7466 = vpack.c.b16 %v5450, %v5438
    %v7467 = vpack.c.b16 %v5451, %v5439
    %v7468 = vpack.c.b16 %v5452, %v5440
    %v7469 = vpack.c.b16 %v5453, %v5441
    %v7470 = vpack.c.b16 %v5454, %v5442
    %v7471 = vpack.c.b16 %v5455, %v5443
    %v7472 = vpack.c.b16 %v5456, %v5444
    %v7473 = vpack.c.b16 %v5457, %v5445
    %v7474 = vpack.c.b16 %v5458, %v5446
    %v7475 = vpack.c.b16 %v5459, %v5447
    %v7476 = vpack.c.b16 %v5460, %v5448
    %v7477 = vpack.c.b16 %v5473, %v5461
    %v7478 = vpack.c.b16 %v5474, %v5462
    %v7479 = vpack.c.b16 %v5475, %v5463
    %v7480 = vpack.c.b16 %v5476, %v5464
    %v7481 = vpack.c.b16 %v5477, %v5465
    %v7482 = vpack.c.b16 %v5478, %v5466
    %v7483 = vpack.c.b16 %v5479, %v5467
    %v7484 = vpack.c.b16 %v5480, %v5468
    %v7485 = vpack.c.b16 %v5481, %v5469
    %v7486 = vpack.c.b16 %v5482, %v5470
    %v7487 = vpack.c.b16 %v5483, %v5471
    %v7488 = vpack.c.b16 %v5484, %v5472
    %v7489 = vpack.c.b16 %v5497, %v5485
    %v7490 = vpack.c.b16 %v5498, %v5486
    %v7491 = vpack.c.b16 %v5499, %v5487
    %v7492 = vpack.c.b16 %v5500, %v5488
    %v7493 = vpack.c.b16 %v5501, %v5489
    %v7494 = vpack.c.b16 %v5502, %v5490
    %v7495 = vpack.c.b16 %v5503, %v5491
    %v7496 = vpack.c.b16 %v5504, %v5492
    %v7497 = vpack.c.b16 %v5505, %v5493
    %v7498 = vpack.c.b16 %v5506, %v5494
    %v7499 = vpack.c.b16 %v5507, %v5495
    %v7500 = vpack.c.b16 %v5508, %v5496
    %v7501 = vpack.c.b16 %v5521, %v5509
    %v7502 = vpack.c.b16 %v5522, %v5510
    %v7503 = vpack.c.b16 %v5523, %v5511
    %v7504 = vpack.c.b16 %v5524, %v5512
    %v7505 = vpack.c.b16 %v5525, %v5513
    %v7506 = vpack.c.b16 %v5526, %v5514
    %v7507 = vpack.c.b16 %v5527, %v5515
    %v7508 = vpack.c.b16 %v5528, %v5516
    %v7509 = vpack.c.b16 %v5529, %v5517
    %v7510 = vpack.c.b16 %v5530, %v5518
    %v7511 = vpack.c.b16 %v5531, %v5519
    %v7512 = vpack.c.b16 %v5532, %v5520
    %v7513 = vpack.c.b16 %v5545, %v5533
    %v7514 = vpack.c.b16 %v5546, %v5534
    %v7515 = vpack.c.b16 %v5547, %v5535
    %v7516 = vpack.c.b16 %v5548, %v5536
    %v7517 = vpack.c.b16 %v5549, %v5537
    %v7518 = vpack.c.b16 %v5550, %v5538
    %v7519 = vpack.c.b16 %v5551, %v5539
    %v7520 = vpack.c.b16 %v5552, %v5540
    %v7521 = vpack.c.b16 %v5553, %v5541
    %v7522 = vpack.c.b16 %v5554, %v5542
    %v7523 = vpack.c.b16 %v5555, %v5543
    %v7524 = vpack.c.b16 %v5556, %v5544
    %v7525 = vpack.c.b16 %v5569, %v5557
    %v7526 = vpack.c.b16 %v5570, %v5558
    %v7527 = vpack.c.b16 %v5571, %v5559
    %v7528 = vpack.c.b16 %v5572, %v5560
    %v7529 = vpack.c.b16 %v5573, %v5561
    %v7530 = vpack.c.b16 %v5574, %v5562
    %v7531 = vpack.c.b16 %v5575, %v5563
    %v7532 = vpack.c.b16 %v5576, %v5564
    %v7533 = vpack.c.b16 %v5577, %v5565
    %v7534 = vpack.c.b16 %v5578, %v5566
    %v7535 = vpack.c.b16 %v5579, %v5567
    %v7536 = vpack.c.b16 %v5580, %v5568
    %v7537 = vpack.c.b16 %v5593, %v5581
    %v7538 = vpack.c.b16 %v5594, %v5582
    %v7539 = vpack.c.b16 %v5595, %v5583
    %v7540 = vpack.c.b16 %v5596, %v5584
    %v7541 = vpack.c.b16 %v5597, %v5585
    %v7542 = vpack.c.b16 %v5598, %v5586
    %v7543 = vpack.c.b16 %v5599, %v5587
    %v7544 = vpack.c.b16 %v5600, %v5588
    %v7545 = vpack.c.b16 %v5601, %v5589
    %v7546 = vpack.c.b16 %v5602, %v5590
    %v7547 = vpack.c.b16 %v5603, %v5591
    %v7548 = vpack.c.b16 %v5604, %v5592
    %v7549 = vpack.c.b16 %v5617, %v5605
    %v7550 = vpack.c.b16 %v5618, %v5606
    %v7551 = vpack.c.b16 %v5619, %v5607
    %v7552 = vpack.c.b16 %v5620, %v5608
    %v7553 = vpack.c.b16 %v5621, %v5609
    %v7554 = vpack.c.b16 %v5622, %v5610
    %v7555 = vpack.c.b16 %v5623, %v5611
    %v7556 = vpack.c.b16 %v5624, %v5612
    %v7557 = vpack.c.b16 %v5625, %v5613
    %v7558 = vpack.c.b16 %v5626, %v5614
    %v7559 = vpack.c.b16 %v5627, %v5615
    %v7560 = vpack.c.b16 %v5628, %v5616
    %v7561 = vpack.c.b16 %v5641, %v5629
    %v7562 = vpack.c.b16 %v5642, %v5630
    %v7563 = vpack.c.b16 %v5643, %v5631
    %v7564 = vpack.c.b16 %v5644, %v5632
    %v7565 = vpack.c.b16 %v5645, %v5633
    %v7566 = vpack.c.b16 %v5646, %v5634
    %v7567 = vpack.c.b16 %v5647, %v5635
    %v7568 = vpack.c.b16 %v5648, %v5636
    %v7569 = vpack.c.b16 %v5649, %v5637
    %v7570 = vpack.c.b16 %v5650, %v5638
    %v7571 = vpack.c.b16 %v5651, %v5639
    %v7572 = vpack.c.b16 %v5652, %v5640
    %v7573 = vpack.c.b16 %v5665, %v5653
    %v7574 = vpack.c.b16 %v5666, %v5654
    %v7575 = vpack.c.b16 %v5667, %v5655
    %v7576 = vpack.c.b16 %v5668, %v5656
    %v7577 = vpack.c.b16 %v5669, %v5657
    %v7578 = vpack.c.b16 %v5670, %v5658
    %v7579 = vpack.c.b16 %v5671, %v5659
    %v7580 = vpack.c.b16 %v5672, %v5660
    %v7581 = vpack.c.b16 %v5673, %v5661
    %v7582 = vpack.c.b16 %v5674, %v5662
    %v7583 = vpack.c.b16 %v5675, %v5663
    %v7584 = vpack.c.b16 %v5676, %v5664
    %v7585 = vpack.c.b16 %v5689, %v5677
    %v7586 = vpack.c.b16 %v5690, %v5678
    %v7587 = vpack.c.b16 %v5691, %v5679
    %v7588 = vpack.c.b16 %v5692, %v5680
    %v7589 = vpack.c.b16 %v5693, %v5681
    %v7590 = vpack.c.b16 %v5694, %v5682
    %v7591 = vpack.c.b16 %v5695, %v5683
    %v7592 = vpack.c.b16 %v5696, %v5684
    %v7593 = vpack.c.b16 %v5697, %v5685
    %v7594 = vpack.c.b16 %v5698, %v5686
    %v7595 = vpack.c.b16 %v5699, %v5687
    %v7596 = vpack.c.b16 %v5700, %v5688
    %v7597 = vpack.c.b16 %v5713, %v5701
    %v7598 = vpack.c.b16 %v5714, %v5702
    %v7599 = vpack.c.b16 %v5715, %v5703
    %v7600 = vpack.c.b16 %v5716, %v5704
    %v7601 = vpack.c.b16 %v5717, %v5705
    %v7602 = vpack.c.b16 %v5718, %v5706
    %v7603 = vpack.c.b16 %v5719, %v5707
    %v7604 = vpack.c.b16 %v5720, %v5708
    %v7605 = vpack.c.b16 %v5721, %v5709
    %v7606 = vpack.c.b16 %v5722, %v5710
    %v7607 = vpack.c.b16 %v5723, %v5711
    %v7608 = vpack.c.b16 %v5724, %v5712
    %v7609 = vpack.c.b16 %v5737, %v5725
    %v7610 = vpack.c.b16 %v5738, %v5726
    %v7611 = vpack.c.b16 %v5739, %v5727
    %v7612 = vpack.c.b16 %v5740, %v5728
    %v7613 = vpack.c.b16 %v5741, %v5729
    %v7614 = vpack.c.b16 %v5742, %v5730
    %v7615 = vpack.c.b16 %v5743, %v5731
    %v7616 = vpack.c.b16 %v5744, %v5732
    %v7617 = vpack.c.b16 %v5745, %v5733
    %v7618 = vpack.c.b16 %v5746, %v5734
    %v7619 = vpack.c.b16 %v5747, %v5735
    %v7620 = vpack.c.b16 %v5748, %v5736
    %v7621 = vpack.c.b16 %v5761, %v5749
    %v7622 = vpack.c.b16 %v5762, %v5750
    %v7623 = vpack.c.b16 %v5763, %v5751
    %v7624 = vpack.c.b16 %v5764, %v5752
    %v7625 = vpack.c.b16 %v5765, %v5753
    %v7626 = vpack.c.b16 %v5766, %v5754
    %v7627 = vpack.c.b16 %v5767, %v5755
    %v7628 = vpack.c.b16 %v5768, %v5756
    %v7629 = vpack.c.b16 %v5769, %v5757
    %v7630 = vpack.c.b16 %v5770, %v5758
    %v7631 = vpack.c.b16 %v5771, %v5759
    %v7632 = vpack.c.b16 %v5772, %v5760
    %v7633 = vpack.c.b16 %v5785, %v5773
    %v7634 = vpack.c.b16 %v5786, %v5774
    %v7635 = vpack.c.b16 %v5787, %v5775
    %v7636 = vpack.c.b16 %v5788, %v5776
    %v7637 = vpack.c.b16 %v5789, %v5777
    %v7638 = vpack.c.b16 %v5790, %v5778
    %v7639 = vpack.c.b16 %v5791, %v5779
    %v7640 = vpack.c.b16 %v5792, %v5780
    %v7641 = vpack.c.b16 %v5793, %v5781
    %v7642 = vpack.c.b16 %v5794, %v5782
    %v7643 = vpack.c.b16 %v5795, %v5783
    %v7644 = vpack.c.b16 %v5796, %v5784
    %v7645 = vpack.c.b16 %v5809, %v5797
    %v7646 = vpack.c.b16 %v5810, %v5798
    %v7647 = vpack.c.b16 %v5811, %v5799
    %v7648 = vpack.c.b16 %v5812, %v5800
    %v7649 = vpack.c.b16 %v5813, %v5801
    %v7650 = vpack.c.b16 %v5814, %v5802
    %v7651 = vpack.c.b16 %v5815, %v5803
    %v7652 = vpack.c.b16 %v5816, %v5804
    %v7653 = vpack.c.b16 %v5817, %v5805
    %v7654 = vpack.c.b16 %v5818, %v5806
    %v7655 = vpack.c.b16 %v5819, %v5807
    %v7656 = vpack.c.b16 %v5820, %v5808
    %v7657 = vpack.c.b16 %v5833, %v5821
    %v7658 = vpack.c.b16 %v5834, %v5822
    %v7659 = vpack.c.b16 %v5835, %v5823
    %v7660 = vpack.c.b16 %v5836, %v5824
    %v7661 = vpack.c.b16 %v5837, %v5825
    %v7662 = vpack.c.b16 %v5838, %v5826
    %v7663 = vpack.c.b16 %v5839, %v5827
    %v7664 = vpack.c.b16 %v5840, %v5828
    %v7665 = vpack.c.b16 %v5841, %v5829
    %v7666 = vpack.c.b16 %v5842, %v5830
    %v7667 = vpack.c.b16 %v5843, %v5831
    %v7668 = vpack.c.b16 %v5844, %v5832
    %v7669 = vpack.c.b16 %v5857, %v5845
    %v7670 = vpack.c.b16 %v5858, %v5846
    %v7671 = vpack.c.b16 %v5859, %v5847
    %v7672 = vpack.c.b16 %v5860, %v5848
    %v7673 = vpack.c.b16 %v5861, %v5849
    %v7674 = vpack.c.b16 %v5862, %v5850
    %v7675 = vpack.c.b16 %v5863, %v5851
    %v7676 = vpack.c.b16 %v5864, %v5852
    %v7677 = vpack.c.b16 %v5865, %v5853
    %v7678 = vpack.c.b16 %v5866, %v5854
    %v7679 = vpack.c.b16 %v5867, %v5855
    %v7680 = vpack.c.b16 %v5868, %v5856
    %v7681 = vpack.c.b16 %v5881, %v5869
    %v7682 = vpack.c.b16 %v5882, %v5870
    %v7683 = vpack.c.b16 %v5883, %v5871
    %v7684 = vpack.c.b16 %v5884, %v5872
    %v7685 = vpack.c.b16 %v5885, %v5873
    %v7686 = vpack.c.b16 %v5886, %v5874
    %v7687 = vpack.c.b16 %v5887, %v5875
    %v7688 = vpack.c.b16 %v5888, %v5876
    %v7689 = vpack.c.b16 %v5889, %v5877
    %v7690 = vpack.c.b16 %v5890, %v5878
    %v7691 = vpack.c.b16 %v5891, %v5879
    %v7692 = vpack.c.b16 %v5892, %v5880
    %v7693 = vpack.c.b16 %v5905, %v5893
    %v7694 = vpack.c.b16 %v5906, %v5894
    %v7695 = vpack.c.b16 %v5907, %v5895
    %v7696 = vpack.c.b16 %v5908, %v5896
    %v7697 = vpack.c.b16 %v5909, %v5897
    %v7698 = vpack.c.b16 %v5910, %v5898
    %v7699 = vpack.c.b16 %v5911, %v5899
    %v7700 = vpack.c.b16 %v5912, %v5900
    %v7701 = vpack.c.b16 %v5913, %v5901
    %v7702 = vpack.c.b16 %v5914, %v5902
    %v7703 = vpack.c.b16 %v5915, %v5903
    %v7704 = vpack.c.b16 %v5916, %v5904
    %v7705 = vpack.c.b16 %v5929, %v5917
    %v7706 = vpack.c.b16 %v5930, %v5918
    %v7707 = vpack.c.b16 %v5931, %v5919
    %v7708 = vpack.c.b16 %v5932, %v5920
    %v7709 = vpack.c.b16 %v5933, %v5921
    %v7710 = vpack.c.b16 %v5934, %v5922
    %v7711 = vpack.c.b16 %v5935, %v5923
    %v7712 = vpack.c.b16 %v5936, %v5924
    %v7713 = vpack.c.b16 %v5937, %v5925
    %v7714 = vpack.c.b16 %v5938, %v5926
    %v7715 = vpack.c.b16 %v5939, %v5927
    %v7716 = vpack.c.b16 %v5940, %v5928
    %v7717 = vpack.c.b16 %v5953, %v5941
    %v7718 = vpack.c.b16 %v5954, %v5942
    %v7719 = vpack.c.b16 %v5955, %v5943
    %v7720 = vpack.c.b16 %v5956, %v5944
    %v7721 = vpack.c.b16 %v5957, %v5945
    %v7722 = vpack.c.b16 %v5958, %v5946
    %v7723 = vpack.c.b16 %v5959, %v5947
    %v7724 = vpack.c.b16 %v5960, %v5948
    %v7725 = vpack.c.b16 %v5961, %v5949
    %v7726 = vpack.c.b16 %v5962, %v5950
    %v7727 = vpack.c.b16 %v5963, %v5951
    %v7728 = vpack.c.b16 %v5964, %v5952
    %v7729 = vpack.c.b16 %v5977, %v5965
    %v7730 = vpack.c.b16 %v5978, %v5966
    %v7731 = vpack.c.b16 %v5979, %v5967
    %v7732 = vpack.c.b16 %v5980, %v5968
    %v7733 = vpack.c.b16 %v5981, %v5969
    %v7734 = vpack.c.b16 %v5982, %v5970
    %v7735 = vpack.c.b16 %v5983, %v5971
    %v7736 = vpack.c.b16 %v5984, %v5972
    %v7737 = vpack.c.b16 %v5985, %v5973
    %v7738 = vpack.c.b16 %v5986, %v5974
    %v7739 = vpack.c.b16 %v5987, %v5975
    %v7740 = vpack.c.b16 %v5988, %v5976
    %v7741 = vpack.c.b16 %v6001, %v5989
    %v7742 = vpack.c.b16 %v6002, %v5990
    %v7743 = vpack.c.b16 %v6003, %v5991
    %v7744 = vpack.c.b16 %v6004, %v5992
    %v7745 = vpack.c.b16 %v6005, %v5993
    %v7746 = vpack.c.b16 %v6006, %v5994
    %v7747 = vpack.c.b16 %v6007, %v5995
    %v7748 = vpack.c.b16 %v6008, %v5996
    %v7749 = vpack.c.b16 %v6009, %v5997
    %v7750 = vpack.c.b16 %v6010, %v5998
    %v7751 = vpack.c.b16 %v6011, %v5999
    %v7752 = vpack.c.b16 %v6012, %v6000
    %v7753 = vpack.c.b16 %v6025, %v6013
    %v7754 = vpack.c.b16 %v6026, %v6014
    %v7755 = vpack.c.b16 %v6027, %v6015
    %v7756 = vpack.c.b16 %v6028, %v6016
    %v7757 = vpack.c.b16 %v6029, %v6017
    %v7758 = vpack.c.b16 %v6030, %v6018
    %v7759 = vpack.c.b16 %v6031, %v6019
    %v7760 = vpack.c.b16 %v6032, %v6020
    %v7761 = vpack.c.b16 %v6033, %v6021
    %v7762 = vpack.c.b16 %v6034, %v6022
    %v7763 = vpack.c.b16 %v6035, %v6023
    %v7764 = vpack.c.b16 %v6036, %v6024
    %v7765 = vpack.c.b16 %v6049, %v6037
    %v7766 = vpack.c.b16 %v6050, %v6038
    %v7767 = vpack.c.b16 %v6051, %v6039
    %v7768 = vpack.c.b16 %v6052, %v6040
    %v7769 = vpack.c.b16 %v6053, %v6041
    %v7770 = vpack.c.b16 %v6054, %v6042
    %v7771 = vpack.c.b16 %v6055, %v6043
    %v7772 = vpack.c.b16 %v6056, %v6044
    %v7773 = vpack.c.b16 %v6057, %v6045
    %v7774 = vpack.c.b16 %v6058, %v6046
    %v7775 = vpack.c.b16 %v6059, %v6047
    %v7776 = vpack.c.b16 %v6060, %v6048
    %v7777 = vpack.c.b16 %v6073, %v6061
    %v7778 = vpack.c.b16 %v6074, %v6062
    %v7779 = vpack.c.b16 %v6075, %v6063
    %v7780 = vpack.c.b16 %v6076, %v6064
    %v7781 = vpack.c.b16 %v6077, %v6065
    %v7782 = vpack.c.b16 %v6078, %v6066
    %v7783 = vpack.c.b16 %v6079, %v6067
    %v7784 = vpack.c.b16 %v6080, %v6068
    %v7785 = vpack.c.b16 %v6081, %v6069
    %v7786 = vpack.c.b16 %v6082, %v6070
    %v7787 = vpack.c.b16 %v6083, %v6071
    %v7788 = vpack.c.b16 %v6084, %v6072
    %v7789 = vpack.c.b16 %v6097, %v6085
    %v7790 = vpack.c.b16 %v6098, %v6086
    %v7791 = vpack.c.b16 %v6099, %v6087
    %v7792 = vpack.c.b16 %v6100, %v6088
    %v7793 = vpack.c.b16 %v6101, %v6089
    %v7794 = vpack.c.b16 %v6102, %v6090
    %v7795 = vpack.c.b16 %v6103, %v6091
    %v7796 = vpack.c.b16 %v6104, %v6092
    %v7797 = vpack.c.b16 %v6105, %v6093
    %v7798 = vpack.c.b16 %v6106, %v6094
    %v7799 = vpack.c.b16 %v6107, %v6095
    %v7800 = vpack.c.b16 %v6108, %v6096
    %v7801 = vpack.c.b16 %v6121, %v6109
    %v7802 = vpack.c.b16 %v6122, %v6110
    %v7803 = vpack.c.b16 %v6123, %v6111
    %v7804 = vpack.c.b16 %v6124, %v6112
    %v7805 = vpack.c.b16 %v6125, %v6113
    %v7806 = vpack.c.b16 %v6126, %v6114
    %v7807 = vpack.c.b16 %v6127, %v6115
    %v7808 = vpack.c.b16 %v6128, %v6116
    %v7809 = vpack.c.b16 %v6129, %v6117
    %v7810 = vpack.c.b16 %v6130, %v6118
    %v7811 = vpack.c.b16 %v6131, %v6119
    %v7812 = vpack.c.b16 %v6132, %v6120
    %v7813 = vpack.c.b16 %v6145, %v6133
    %v7814 = vpack.c.b16 %v6146, %v6134
    %v7815 = vpack.c.b16 %v6147, %v6135
    %v7816 = vpack.c.b16 %v6148, %v6136
    %v7817 = vpack.c.b16 %v6149, %v6137
    %v7818 = vpack.c.b16 %v6150, %v6138
    %v7819 = vpack.c.b16 %v6151, %v6139
    %v7820 = vpack.c.b16 %v6152, %v6140
    %v7821 = vpack.c.b16 %v6153, %v6141
    %v7822 = vpack.c.b16 %v6154, %v6142
    %v7823 = vpack.c.b16 %v6155, %v6143
    %v7824 = vpack.c.b16 %v6156, %v6144
    %v7825 = vpack.c.b16 %v6169, %v6157
    %v7826 = vpack.c.b16 %v6170, %v6158
    %v7827 = vpack.c.b16 %v6171, %v6159
    %v7828 = vpack.c.b16 %v6172, %v6160
    %v7829 = vpack.c.b16 %v6173, %v6161
    %v7830 = vpack.c.b16 %v6174, %v6162
    %v7831 = vpack.c.b16 %v6175, %v6163
    %v7832 = vpack.c.b16 %v6176, %v6164
    %v7833 = vpack.c.b16 %v6177, %v6165
    %v7834 = vpack.c.b16 %v6178, %v6166
    %v7835 = vpack.c.b16 %v6179, %v6167
    %v7836 = vpack.c.b16 %v6180, %v6168
    %v7837 = vpack.c.b16 %v6193, %v6181
    %v7838 = vpack.c.b16 %v6194, %v6182
    %v7839 = vpack.c.b16 %v6195, %v6183
    %v7840 = vpack.c.b16 %v6196, %v6184
    %v7841 = vpack.c.b16 %v6197, %v6185
    %v7842 = vpack.c.b16 %v6198, %v6186
    %v7843 = vpack.c.b16 %v6199, %v6187
    %v7844 = vpack.c.b16 %v6200, %v6188
    %v7845 = vpack.c.b16 %v6201, %v6189
    %v7846 = vpack.c.b16 %v6202, %v6190
    %v7847 = vpack.c.b16 %v6203, %v6191
    %v7848 = vpack.c.b16 %v6204, %v6192
    %v7849 = vpack.c.b16 %v6217, %v6205
    %v7850 = vpack.c.b16 %v6218, %v6206
    %v7851 = vpack.c.b16 %v6219, %v6207
    %v7852 = vpack.c.b16 %v6220, %v6208
    %v7853 = vpack.c.b16 %v6221, %v6209
    %v7854 = vpack.c.b16 %v6222, %v6210
    %v7855 = vpack.c.b16 %v6223, %v6211
    %v7856 = vpack.c.b16 %v6224, %v6212
    %v7857 = vpack.c.b16 %v6225, %v6213
    %v7858 = vpack.c.b16 %v6226, %v6214
    %v7859 = vpack.c.b16 %v6227, %v6215
    %v7860 = vpack.c.b16 %v6228, %v6216
    %v7861 = vpack.c.b16 %v6241, %v6229
    %v7862 = vpack.c.b16 %v6242, %v6230
    %v7863 = vpack.c.b16 %v6243, %v6231
    %v7864 = vpack.c.b16 %v6244, %v6232
    %v7865 = vpack.c.b16 %v6245, %v6233
    %v7866 = vpack.c.b16 %v6246, %v6234
    %v7867 = vpack.c.b16 %v6247, %v6235
    %v7868 = vpack.c.b16 %v6248, %v6236
    %v7869 = vpack.c.b16 %v6249, %v6237
    %v7870 = vpack.c.b16 %v6250, %v6238
    %v7871 = vpack.c.b16 %v6251, %v6239
    %v7872 = vpack.c.b16 %v6252, %v6240
    %v7873 = vpack.c.b16 %v6265, %v6253
    %v7874 = vpack.c.b16 %v6266, %v6254
    %v7875 = vpack.c.b16 %v6267, %v6255
    %v7876 = vpack.c.b16 %v6268, %v6256
    %v7877 = vpack.c.b16 %v6269, %v6257
    %v7878 = vpack.c.b16 %v6270, %v6258
    %v7879 = vpack.c.b16 %v6271, %v6259
    %v7880 = vpack.c.b16 %v6272, %v6260
    %v7881 = vpack.c.b16 %v6273, %v6261
    %v7882 = vpack.c.b16 %v6274, %v6262
    %v7883 = vpack.c.b16 %v6275, %v6263
    %v7884 = vpack.c.b16 %v6276, %v6264
    %v7885 = vpack.c.b16 %v6289, %v6277
    %v7886 = vpack.c.b16 %v6290, %v6278
    %v7887 = vpack.c.b16 %v6291, %v6279
    %v7888 = vpack.c.b16 %v6292, %v6280
    %v7889 = vpack.c.b16 %v6293, %v6281
    %v7890 = vpack.c.b16 %v6294, %v6282
    %v7891 = vpack.c.b16 %v6295, %v6283
    %v7892 = vpack.c.b16 %v6296, %v6284
    %v7893 = vpack.c.b16 %v6297, %v6285
    %v7894 = vpack.c.b16 %v6298, %v6286
    %v7895 = vpack.c.b16 %v6299, %v6287
    %v7896 = vpack.c.b16 %v6300, %v6288
    %v7897 = vpack.c.b16 %v6313, %v6301
    %v7898 = vpack.c.b16 %v6314, %v6302
    %v7899 = vpack.c.b16 %v6315, %v6303
    %v7900 = vpack.c.b16 %v6316, %v6304
    %v7901 = vpack.c.b16 %v6317, %v6305
    %v7902 = vpack.c.b16 %v6318, %v6306
    %v7903 = vpack.c.b16 %v6319, %v6307
    %v7904 = vpack.c.b16 %v6320, %v6308
    %v7905 = vpack.c.b16 %v6321, %v6309
    %v7906 = vpack.c.b16 %v6322, %v6310
    %v7907 = vpack.c.b16 %v6323, %v6311
    %v7908 = vpack.c.b16 %v6324, %v6312
    %v7909 = vpack.c.b16 %v6337, %v6325
    %v7910 = vpack.c.b16 %v6338, %v6326
    %v7911 = vpack.c.b16 %v6339, %v6327
    %v7912 = vpack.c.b16 %v6340, %v6328
    %v7913 = vpack.c.b16 %v6341, %v6329
    %v7914 = vpack.c.b16 %v6342, %v6330
    %v7915 = vpack.c.b16 %v6343, %v6331
    %v7916 = vpack.c.b16 %v6344, %v6332
    %v7917 = vpack.c.b16 %v6345, %v6333
    %v7918 = vpack.c.b16 %v6346, %v6334
    %v7919 = vpack.c.b16 %v6347, %v6335
    %v7920 = vpack.c.b16 %v6348, %v6336
    %v7921 = vpack.c.b16 %v6361, %v6349
    %v7922 = vpack.c.b16 %v6362, %v6350
    %v7923 = vpack.c.b16 %v6363, %v6351
    %v7924 = vpack.c.b16 %v6364, %v6352
    %v7925 = vpack.c.b16 %v6365, %v6353
    %v7926 = vpack.c.b16 %v6366, %v6354
    %v7927 = vpack.c.b16 %v6367, %v6355
    %v7928 = vpack.c.b16 %v6368, %v6356
    %v7929 = vpack.c.b16 %v6369, %v6357
    %v7930 = vpack.c.b16 %v6370, %v6358
    %v7931 = vpack.c.b16 %v6371, %v6359
    %v7932 = vpack.c.b16 %v6372, %v6360
    %v7933 = vpack.c.b16 %v6385, %v6373
    %v7934 = vpack.c.b16 %v6386, %v6374
    %v7935 = vpack.c.b16 %v6387, %v6375
    %v7936 = vpack.c.b16 %v6388, %v6376
    %v7937 = vpack.c.b16 %v6389, %v6377
    %v7938 = vpack.c.b16 %v6390, %v6378
    %v7939 = vpack.c.b16 %v6391, %v6379
    %v7940 = vpack.c.b16 %v6392, %v6380
    %v7941 = vpack.c.b16 %v6393, %v6381
    %v7942 = vpack.c.b16 %v6394, %v6382
    %v7943 = vpack.c.b16 %v6395, %v6383
    %v7944 = vpack.c.b16 %v6396, %v6384
    %v7945 = vpack.c.b16 %v6409, %v6397
    %v7946 = vpack.c.b16 %v6410, %v6398
    %v7947 = vpack.c.b16 %v6411, %v6399
    %v7948 = vpack.c.b16 %v6412, %v6400
    %v7949 = vpack.c.b16 %v6413, %v6401
    %v7950 = vpack.c.b16 %v6414, %v6402
    %v7951 = vpack.c.b16 %v6415, %v6403
    %v7952 = vpack.c.b16 %v6416, %v6404
    %v7953 = vpack.c.b16 %v6417, %v6405
    %v7954 = vpack.c.b16 %v6418, %v6406
    %v7955 = vpack.c.b16 %v6419, %v6407
    %v7956 = vpack.c.b16 %v6420, %v6408
    %9493 = vmatprep.subr.bf16.mxu0 %v6506
    %9494 = vmatpush1.bf16.msra.mxu0 %v6505
    %9495 = vmatprep.subr.bf16.mxu0 %v6494
    %9496 = vmatpush1.bf16.msra.mxu0 %v6493
    %9497 = vmatprep.subr.bf16.mxu0 %v6482
    %9498 = vmatpush1.bf16.msra.mxu0 %v6481
    %9499 = vmatprep.subr.bf16.mxu0 %v6470
    %9500 = vmatpush1.bf16.msra.mxu0 %v6469
    %9501 = vmatprep.subr.bf16.mxu0 %v6458
    %9502 = vmatpush1.bf16.msra.mxu0 %v6457
    %9503 = vmatprep.subr.bf16.mxu0 %v6446
    %9504 = vmatpush1.bf16.msra.mxu0 %v6445
    %9505 = vmatprep.subr.bf16.mxu0 %v6434
    %9506 = vmatpush1.bf16.msra.mxu0 %v6433
    %9507 = vmatprep.subr.bf16.mxu0 %v6422
    %9508 = vmatpush1.bf16.msra.mxu0 %v6421
    %9509 = vmatprep.subr.bf16.mxu0 %v6602
    %9510 = vmatpush2.bf16.msra.mxu0 %v6601
    %9511 = vmatprep.subr.bf16.mxu0 %v6590
    %9512 = vmatpush2.bf16.msra.mxu0 %v6589
    %9513 = vmatprep.subr.bf16.mxu0 %v6578
    %9514 = vmatpush2.bf16.msra.mxu0 %v6577
    %9515 = vmatprep.subr.bf16.mxu0 %v6566
    %9516 = vmatpush2.bf16.msra.mxu0 %v6565
    %9517 = vmatprep.subr.bf16.mxu0 %v6554
    %9518 = vmatpush2.bf16.msra.mxu0 %v6553
    %9519 = vmatprep.subr.bf16.mxu0 %v6542
    %9520 = vmatpush2.bf16.msra.mxu0 %v6541
    %9521 = vmatprep.subr.bf16.mxu0 %v6530
    %9522 = vmatpush2.bf16.msra.mxu0 %v6529
    %9523 = vmatprep.subr.bf16.mxu0 %v6518
    %9524 = vmatpush2.bf16.msra.mxu0 %v6517
    %9525 = vmatprep.mubr.bf16.mxu0 %v1782
    %9526 = vmatmul.mubr.bf16.gmra.mxu0 %v1781
    %v9527 = vpop.f32.mrf.mxu0
    %v9528 = vadd.f32 %v1676, %v9527
    %v9529 = vpop.f32.mrf.mxu0
    %v9530 = vadd.f32 %v1680, %v9529
    %v9531 = vpop.f32.mrf.mxu0
    %v9532 = vadd.f32 %v1676, %v9531
    %v9533 = vpop.f32.mrf.mxu0
    %v9534 = vadd.f32 %v1680, %v9533
    %9535 = vdwg.mxu0
    %9536 = vmatprep.subr.bf16.mxu0 %v6698
    %9537 = vmatpush1.bf16.msra.mxu0 %v6697
    %9538 = vmatprep.subr.bf16.mxu0 %v6686
    %9539 = vmatpush1.bf16.msra.mxu0 %v6685
    %9540 = vmatprep.subr.bf16.mxu0 %v6674
    %9541 = vmatpush1.bf16.msra.mxu0 %v6673
    %9542 = vmatprep.subr.bf16.mxu0 %v6662
    %9543 = vmatpush1.bf16.msra.mxu0 %v6661
    %9544 = vmatprep.subr.bf16.mxu0 %v6650
    %9545 = vmatpush1.bf16.msra.mxu0 %v6649
    %9546 = vmatprep.subr.bf16.mxu0 %v6638
    %9547 = vmatpush1.bf16.msra.mxu0 %v6637
    %9548 = vmatprep.subr.bf16.mxu0 %v6626
    %9549 = vmatpush1.bf16.msra.mxu0 %v6625
    %9550 = vmatprep.subr.bf16.mxu0 %v6614
    %9551 = vmatpush1.bf16.msra.mxu0 %v6613
    %9552 = vmatprep.subr.bf16.mxu0 %v6794
    %9553 = vmatpush2.bf16.msra.mxu0 %v6793
    %9554 = vmatprep.subr.bf16.mxu0 %v6782
    %9555 = vmatpush2.bf16.msra.mxu0 %v6781
    %9556 = vmatprep.subr.bf16.mxu0 %v6770
    %9557 = vmatpush2.bf16.msra.mxu0 %v6769
    %9558 = vmatprep.subr.bf16.mxu0 %v6758
    %9559 = vmatpush2.bf16.msra.mxu0 %v6757
    %9560 = vmatprep.subr.bf16.mxu0 %v6746
    %9561 = vmatpush2.bf16.msra.mxu0 %v6745
    %9562 = vmatprep.subr.bf16.mxu0 %v6734
    %9563 = vmatpush2.bf16.msra.mxu0 %v6733
    %9564 = vmatprep.subr.bf16.mxu0 %v6722
    %9565 = vmatpush2.bf16.msra.mxu0 %v6721
    %9566 = vmatprep.subr.bf16.mxu0 %v6710
    %9567 = vmatpush2.bf16.msra.mxu0 %v6709
    %9568 = vmatprep.mubr.bf16.mxu0 %v1784
    %9569 = vmatmul.mubr.bf16.gmra.mxu0 %v1783
    %v9570 = vpop.f32.mrf.mxu0
    %v9571 = vadd.f32 %v9528, %v9570
    %v9572 = vpop.f32.mrf.mxu0
    %v9573 = vadd.f32 %v9530, %v9572
    %v9574 = vpop.f32.mrf.mxu0
    %v9575 = vadd.f32 %v9532, %v9574
    %v9576 = vpop.f32.mrf.mxu0
    %v9577 = vadd.f32 %v9534, %v9576
    %9578 = vdwg.mxu0
    %9579 = vmatprep.subr.bf16.mxu0 %v6890
    %9580 = vmatpush1.bf16.msra.mxu0 %v6889
    %9581 = vmatprep.subr.bf16.mxu0 %v6878
    %9582 = vmatpush1.bf16.msra.mxu0 %v6877
    %9583 = vmatprep.subr.bf16.mxu0 %v6866
    %9584 = vmatpush1.bf16.msra.mxu0 %v6865
    %9585 = vmatprep.subr.bf16.mxu0 %v6854
    %9586 = vmatpush1.bf16.msra.mxu0 %v6853
    %9587 = vmatprep.subr.bf16.mxu0 %v6842
    %9588 = vmatpush1.bf16.msra.mxu0 %v6841
    %9589 = vmatprep.subr.bf16.mxu0 %v6830
    %9590 = vmatpush1.bf16.msra.mxu0 %v6829
    %9591 = vmatprep.subr.bf16.mxu0 %v6818
    %9592 = vmatpush1.bf16.msra.mxu0 %v6817
    %9593 = vmatprep.subr.bf16.mxu0 %v6806
    %9594 = vmatpush1.bf16.msra.mxu0 %v6805
    %9595 = vmatprep.subr.bf16.mxu0 %v6986
    %9596 = vmatpush2.bf16.msra.mxu0 %v6985
    %9597 = vmatprep.subr.bf16.mxu0 %v6974
    %9598 = vmatpush2.bf16.msra.mxu0 %v6973
    %9599 = vmatprep.subr.bf16.mxu0 %v6962
    %9600 = vmatpush2.bf16.msra.mxu0 %v6961
    %9601 = vmatprep.subr.bf16.mxu0 %v6950
    %9602 = vmatpush2.bf16.msra.mxu0 %v6949
    %9603 = vmatprep.subr.bf16.mxu0 %v6938
    %9604 = vmatpush2.bf16.msra.mxu0 %v6937
    %9605 = vmatprep.subr.bf16.mxu0 %v6926
    %9606 = vmatpush2.bf16.msra.mxu0 %v6925
    %9607 = vmatprep.subr.bf16.mxu0 %v6914
    %9608 = vmatpush2.bf16.msra.mxu0 %v6913
    %9609 = vmatprep.subr.bf16.mxu0 %v6902
    %9610 = vmatpush2.bf16.msra.mxu0 %v6901
    %9611 = vmatprep.mubr.bf16.mxu0 %v1786
    %9612 = vmatmul.mubr.bf16.gmra.mxu0 %v1785
    %v9613 = vpop.f32.mrf.mxu0
    %v9614 = vadd.f32 %v9571, %v9613
    %v9615 = vpop.f32.mrf.mxu0
    %v9616 = vadd.f32 %v9573, %v9615
    %v9617 = vpop.f32.mrf.mxu0
    %v9618 = vadd.f32 %v9575, %v9617
    %v9619 = vpop.f32.mrf.mxu0
    %v9620 = vadd.f32 %v9577, %v9619
    %9621 = vdwg.mxu0
    %9622 = vmatprep.subr.bf16.mxu0 %v7082
    %9623 = vmatpush1.bf16.msra.mxu0 %v7081
    %9624 = vmatprep.subr.bf16.mxu0 %v7070
    %9625 = vmatpush1.bf16.msra.mxu0 %v7069
    %9626 = vmatprep.subr.bf16.mxu0 %v7058
    %9627 = vmatpush1.bf16.msra.mxu0 %v7057
    %9628 = vmatprep.subr.bf16.mxu0 %v7046
    %9629 = vmatpush1.bf16.msra.mxu0 %v7045
    %9630 = vmatprep.subr.bf16.mxu0 %v7034
    %9631 = vmatpush1.bf16.msra.mxu0 %v7033
    %9632 = vmatprep.subr.bf16.mxu0 %v7022
    %9633 = vmatpush1.bf16.msra.mxu0 %v7021
    %9634 = vmatprep.subr.bf16.mxu0 %v7010
    %9635 = vmatpush1.bf16.msra.mxu0 %v7009
    %9636 = vmatprep.subr.bf16.mxu0 %v6998
    %9637 = vmatpush1.bf16.msra.mxu0 %v6997
    %9638 = vmatprep.subr.bf16.mxu0 %v7178
    %9639 = vmatpush2.bf16.msra.mxu0 %v7177
    %9640 = vmatprep.subr.bf16.mxu0 %v7166
    %9641 = vmatpush2.bf16.msra.mxu0 %v7165
    %9642 = vmatprep.subr.bf16.mxu0 %v7154
    %9643 = vmatpush2.bf16.msra.mxu0 %v7153
    %9644 = vmatprep.subr.bf16.mxu0 %v7142
    %9645 = vmatpush2.bf16.msra.mxu0 %v7141
    %9646 = vmatprep.subr.bf16.mxu0 %v7130
    %9647 = vmatpush2.bf16.msra.mxu0 %v7129
    %9648 = vmatprep.subr.bf16.mxu0 %v7118
    %9649 = vmatpush2.bf16.msra.mxu0 %v7117
    %9650 = vmatprep.subr.bf16.mxu0 %v7106
    %9651 = vmatpush2.bf16.msra.mxu0 %v7105
    %9652 = vmatprep.subr.bf16.mxu0 %v7094
    %9653 = vmatpush2.bf16.msra.mxu0 %v7093
    %9654 = vmatprep.mubr.bf16.mxu0 %v1788
    %9655 = vmatmul.mubr.bf16.gmra.mxu0 %v1787
    %v9656 = vpop.f32.mrf.mxu0
    %v9657 = vadd.f32 %v9614, %v9656
    %v9658 = vpop.f32.mrf.mxu0
    %v9659 = vadd.f32 %v9616, %v9658
    %v9660 = vpop.f32.mrf.mxu0
    %v9661 = vadd.f32 %v9618, %v9660
    %v9662 = vpop.f32.mrf.mxu0
    %v9663 = vadd.f32 %v9620, %v9662
    %9664 = vdwg.mxu0
    %9665 = vmatprep.subr.bf16.mxu0 %v7274
    %9666 = vmatpush1.bf16.msra.mxu0 %v7273
    %9667 = vmatprep.subr.bf16.mxu0 %v7262
    %9668 = vmatpush1.bf16.msra.mxu0 %v7261
    %9669 = vmatprep.subr.bf16.mxu0 %v7250
    %9670 = vmatpush1.bf16.msra.mxu0 %v7249
    %9671 = vmatprep.subr.bf16.mxu0 %v7238
    %9672 = vmatpush1.bf16.msra.mxu0 %v7237
    %9673 = vmatprep.subr.bf16.mxu0 %v7226
    %9674 = vmatpush1.bf16.msra.mxu0 %v7225
    %9675 = vmatprep.subr.bf16.mxu0 %v7214
    %9676 = vmatpush1.bf16.msra.mxu0 %v7213
    %9677 = vmatprep.subr.bf16.mxu0 %v7202
    %9678 = vmatpush1.bf16.msra.mxu0 %v7201
    %9679 = vmatprep.subr.bf16.mxu0 %v7190
    %9680 = vmatpush1.bf16.msra.mxu0 %v7189
    %9681 = vmatprep.subr.bf16.mxu0 %v7370
    %9682 = vmatpush2.bf16.msra.mxu0 %v7369
    %9683 = vmatprep.subr.bf16.mxu0 %v7358
    %9684 = vmatpush2.bf16.msra.mxu0 %v7357
    %9685 = vmatprep.subr.bf16.mxu0 %v7346
    %9686 = vmatpush2.bf16.msra.mxu0 %v7345
    %9687 = vmatprep.subr.bf16.mxu0 %v7334
    %9688 = vmatpush2.bf16.msra.mxu0 %v7333
    %9689 = vmatprep.subr.bf16.mxu0 %v7322
    %9690 = vmatpush2.bf16.msra.mxu0 %v7321
    %9691 = vmatprep.subr.bf16.mxu0 %v7310
    %9692 = vmatpush2.bf16.msra.mxu0 %v7309
    %9693 = vmatprep.subr.bf16.mxu0 %v7298
    %9694 = vmatpush2.bf16.msra.mxu0 %v7297
    %9695 = vmatprep.subr.bf16.mxu0 %v7286
    %9696 = vmatpush2.bf16.msra.mxu0 %v7285
    %9697 = vmatprep.mubr.bf16.mxu0 %v1790
    %9698 = vmatmul.mubr.bf16.gmra.mxu0 %v1789
    %v9699 = vpop.f32.mrf.mxu0
    %v9700 = vadd.f32 %v9657, %v9699
    %v9701 = vpop.f32.mrf.mxu0
    %v9702 = vadd.f32 %v9659, %v9701
    %v9703 = vpop.f32.mrf.mxu0
    %v9704 = vadd.f32 %v9661, %v9703
    %v9705 = vpop.f32.mrf.mxu0
    %v9706 = vadd.f32 %v9663, %v9705
    %9707 = vdwg.mxu0
    %9708 = vmatprep.subr.bf16.mxu0 %v7466
    %9709 = vmatpush1.bf16.msra.mxu0 %v7465
    %9710 = vmatprep.subr.bf16.mxu0 %v7454
    %9711 = vmatpush1.bf16.msra.mxu0 %v7453
    %9712 = vmatprep.subr.bf16.mxu0 %v7442
    %9713 = vmatpush1.bf16.msra.mxu0 %v7441
    %9714 = vmatprep.subr.bf16.mxu0 %v7430
    %9715 = vmatpush1.bf16.msra.mxu0 %v7429
    %9716 = vmatprep.subr.bf16.mxu0 %v7418
    %9717 = vmatpush1.bf16.msra.mxu0 %v7417
    %9718 = vmatprep.subr.bf16.mxu0 %v7406
    %9719 = vmatpush1.bf16.msra.mxu0 %v7405
    %9720 = vmatprep.subr.bf16.mxu0 %v7394
    %9721 = vmatpush1.bf16.msra.mxu0 %v7393
    %9722 = vmatprep.subr.bf16.mxu0 %v7382
    %9723 = vmatpush1.bf16.msra.mxu0 %v7381
    %9724 = vmatprep.subr.bf16.mxu0 %v7562
    %9725 = vmatpush2.bf16.msra.mxu0 %v7561
    %9726 = vmatprep.subr.bf16.mxu0 %v7550
    %9727 = vmatpush2.bf16.msra.mxu0 %v7549
    %9728 = vmatprep.subr.bf16.mxu0 %v7538
    %9729 = vmatpush2.bf16.msra.mxu0 %v7537
    %9730 = vmatprep.subr.bf16.mxu0 %v7526
    %9731 = vmatpush2.bf16.msra.mxu0 %v7525
    %9732 = vmatprep.subr.bf16.mxu0 %v7514
    %9733 = vmatpush2.bf16.msra.mxu0 %v7513
    %9734 = vmatprep.subr.bf16.mxu0 %v7502
    %9735 = vmatpush2.bf16.msra.mxu0 %v7501
    %9736 = vmatprep.subr.bf16.mxu0 %v7490
    %9737 = vmatpush2.bf16.msra.mxu0 %v7489
    %9738 = vmatprep.subr.bf16.mxu0 %v7478
    %9739 = vmatpush2.bf16.msra.mxu0 %v7477
    %9740 = vmatprep.mubr.bf16.mxu0 %v1792
    %9741 = vmatmul.mubr.bf16.gmra.mxu0 %v1791
    %v9742 = vpop.f32.mrf.mxu0
    %v9743 = vadd.f32 %v9700, %v9742
    %v9744 = vpop.f32.mrf.mxu0
    %v9745 = vadd.f32 %v9702, %v9744
    %v9746 = vpop.f32.mrf.mxu0
    %v9747 = vadd.f32 %v9704, %v9746
    %v9748 = vpop.f32.mrf.mxu0
    %v9749 = vadd.f32 %v9706, %v9748
    %9750 = vdwg.mxu0
    %9751 = vmatprep.subr.bf16.mxu0 %v7658
    %9752 = vmatpush1.bf16.msra.mxu0 %v7657
    %9753 = vmatprep.subr.bf16.mxu0 %v7646
    %9754 = vmatpush1.bf16.msra.mxu0 %v7645
    %9755 = vmatprep.subr.bf16.mxu0 %v7634
    %9756 = vmatpush1.bf16.msra.mxu0 %v7633
    %9757 = vmatprep.subr.bf16.mxu0 %v7622
    %9758 = vmatpush1.bf16.msra.mxu0 %v7621
    %9759 = vmatprep.subr.bf16.mxu0 %v7610
    %9760 = vmatpush1.bf16.msra.mxu0 %v7609
    %9761 = vmatprep.subr.bf16.mxu0 %v7598
    %9762 = vmatpush1.bf16.msra.mxu0 %v7597
    %9763 = vmatprep.subr.bf16.mxu0 %v7586
    %9764 = vmatpush1.bf16.msra.mxu0 %v7585
    %9765 = vmatprep.subr.bf16.mxu0 %v7574
    %9766 = vmatpush1.bf16.msra.mxu0 %v7573
    %9767 = vmatprep.subr.bf16.mxu0 %v7754
    %9768 = vmatpush2.bf16.msra.mxu0 %v7753
    %9769 = vmatprep.subr.bf16.mxu0 %v7742
    %9770 = vmatpush2.bf16.msra.mxu0 %v7741
    %9771 = vmatprep.subr.bf16.mxu0 %v7730
    %9772 = vmatpush2.bf16.msra.mxu0 %v7729
    %9773 = vmatprep.subr.bf16.mxu0 %v7718
    %9774 = vmatpush2.bf16.msra.mxu0 %v7717
    %9775 = vmatprep.subr.bf16.mxu0 %v7706
    %9776 = vmatpush2.bf16.msra.mxu0 %v7705
    %9777 = vmatprep.subr.bf16.mxu0 %v7694
    %9778 = vmatpush2.bf16.msra.mxu0 %v7693
    %9779 = vmatprep.subr.bf16.mxu0 %v7682
    %9780 = vmatpush2.bf16.msra.mxu0 %v7681
    %9781 = vmatprep.subr.bf16.mxu0 %v7670
    %9782 = vmatpush2.bf16.msra.mxu0 %v7669
    %9783 = vmatprep.mubr.bf16.mxu0 %v1794
    %9784 = vmatmul.mubr.bf16.gmra.mxu0 %v1793
    %v9785 = vpop.f32.mrf.mxu0
    %v9786 = vadd.f32 %v9743, %v9785
    %v9787 = vpop.f32.mrf.mxu0
    %v9788 = vadd.f32 %v9745, %v9787
    %v9789 = vpop.f32.mrf.mxu0
    %v9790 = vadd.f32 %v9747, %v9789
    %v9791 = vpop.f32.mrf.mxu0
    %v9792 = vadd.f32 %v9749, %v9791
    %9793 = vdwg.mxu0
    %9794 = vmatprep.subr.bf16.mxu0 %v7850
    %9795 = vmatpush1.bf16.msra.mxu0 %v7849
    %9796 = vmatprep.subr.bf16.mxu0 %v7838
    %9797 = vmatpush1.bf16.msra.mxu0 %v7837
    %9798 = vmatprep.subr.bf16.mxu0 %v7826
    %9799 = vmatpush1.bf16.msra.mxu0 %v7825
    %9800 = vmatprep.subr.bf16.mxu0 %v7814
    %9801 = vmatpush1.bf16.msra.mxu0 %v7813
    %9802 = vmatprep.subr.bf16.mxu0 %v7802
    %9803 = vmatpush1.bf16.msra.mxu0 %v7801
    %9804 = vmatprep.subr.bf16.mxu0 %v7790
    %9805 = vmatpush1.bf16.msra.mxu0 %v7789
    %9806 = vmatprep.subr.bf16.mxu0 %v7778
    %9807 = vmatpush1.bf16.msra.mxu0 %v7777
    %9808 = vmatprep.subr.bf16.mxu0 %v7766
    %9809 = vmatpush1.bf16.msra.mxu0 %v7765
    %9810 = vmatprep.subr.bf16.mxu0 %v7946
    %9811 = vmatpush2.bf16.msra.mxu0 %v7945
    %9812 = vmatprep.subr.bf16.mxu0 %v7934
    %9813 = vmatpush2.bf16.msra.mxu0 %v7933
    %9814 = vmatprep.subr.bf16.mxu0 %v7922
    %9815 = vmatpush2.bf16.msra.mxu0 %v7921
    %9816 = vmatprep.subr.bf16.mxu0 %v7910
    %9817 = vmatpush2.bf16.msra.mxu0 %v7909
    %9818 = vmatprep.subr.bf16.mxu0 %v7898
    %9819 = vmatpush2.bf16.msra.mxu0 %v7897
    %9820 = vmatprep.subr.bf16.mxu0 %v7886
    %9821 = vmatpush2.bf16.msra.mxu0 %v7885
    %9822 = vmatprep.subr.bf16.mxu0 %v7874
    %9823 = vmatpush2.bf16.msra.mxu0 %v7873
    %9824 = vmatprep.subr.bf16.mxu0 %v7862
    %9825 = vmatpush2.bf16.msra.mxu0 %v7861
    %9826 = vmatprep.mubr.bf16.mxu0 %v1796
    %9827 = vmatmul.mubr.bf16.gmra.mxu0 %v1795
    %v9828 = vpop.f32.mrf.mxu0
    %v9829 = vadd.f32 %v9786, %v9828
    %v9830 = vpop.f32.mrf.mxu0
    %v9831 = vadd.f32 %v9788, %v9830
    %v9832 = vpop.f32.mrf.mxu0
    %v9833 = vadd.f32 %v9790, %v9832
    %v9834 = vpop.f32.mrf.mxu0
    %v9835 = vadd.f32 %v9792, %v9834
    %9836 = vdwg.mxu0
    %9837 = vmatprep.subr.bf16.mxu0 %v6508
    %9838 = vmatpush1.bf16.msra.mxu0 %v6507
    %9839 = vmatprep.subr.bf16.mxu0 %v6496
    %9840 = vmatpush1.bf16.msra.mxu0 %v6495
    %9841 = vmatprep.subr.bf16.mxu0 %v6484
    %9842 = vmatpush1.bf16.msra.mxu0 %v6483
    %9843 = vmatprep.subr.bf16.mxu0 %v6472
    %9844 = vmatpush1.bf16.msra.mxu0 %v6471
    %9845 = vmatprep.subr.bf16.mxu0 %v6460
    %9846 = vmatpush1.bf16.msra.mxu0 %v6459
    %9847 = vmatprep.subr.bf16.mxu0 %v6448
    %9848 = vmatpush1.bf16.msra.mxu0 %v6447
    %9849 = vmatprep.subr.bf16.mxu0 %v6436
    %9850 = vmatpush1.bf16.msra.mxu0 %v6435
    %9851 = vmatprep.subr.bf16.mxu0 %v6424
    %9852 = vmatpush1.bf16.msra.mxu0 %v6423
    %9853 = vmatprep.subr.bf16.mxu0 %v6604
    %9854 = vmatpush2.bf16.msra.mxu0 %v6603
    %9855 = vmatprep.subr.bf16.mxu0 %v6592
    %9856 = vmatpush2.bf16.msra.mxu0 %v6591
    %9857 = vmatprep.subr.bf16.mxu0 %v6580
    %9858 = vmatpush2.bf16.msra.mxu0 %v6579
    %9859 = vmatprep.subr.bf16.mxu0 %v6568
    %9860 = vmatpush2.bf16.msra.mxu0 %v6567
    %9861 = vmatprep.subr.bf16.mxu0 %v6556
    %9862 = vmatpush2.bf16.msra.mxu0 %v6555
    %9863 = vmatprep.subr.bf16.mxu0 %v6544
    %9864 = vmatpush2.bf16.msra.mxu0 %v6543
    %9865 = vmatprep.subr.bf16.mxu0 %v6532
    %9866 = vmatpush2.bf16.msra.mxu0 %v6531
    %9867 = vmatprep.subr.bf16.mxu0 %v6520
    %9868 = vmatpush2.bf16.msra.mxu0 %v6519
    %9869 = vmatprep.mubr.bf16.mxu0 %v1782
    %9870 = vmatmul.mubr.bf16.gmra.mxu0 %v1781
    %v9871 = vpop.f32.mrf.mxu0
    %v9872 = vadd.f32 %v1684, %v9871
    %v9873 = vpop.f32.mrf.mxu0
    %v9874 = vadd.f32 %v1688, %v9873
    %v9875 = vpop.f32.mrf.mxu0
    %v9876 = vadd.f32 %v1684, %v9875
    %v9877 = vpop.f32.mrf.mxu0
    %v9878 = vadd.f32 %v1688, %v9877
    %9879 = vdwg.mxu0
    %9880 = vmatprep.subr.bf16.mxu0 %v6700
    %9881 = vmatpush1.bf16.msra.mxu0 %v6699
    %9882 = vmatprep.subr.bf16.mxu0 %v6688
    %9883 = vmatpush1.bf16.msra.mxu0 %v6687
    %9884 = vmatprep.subr.bf16.mxu0 %v6676
    %9885 = vmatpush1.bf16.msra.mxu0 %v6675
    %9886 = vmatprep.subr.bf16.mxu0 %v6664
    %9887 = vmatpush1.bf16.msra.mxu0 %v6663
    %9888 = vmatprep.subr.bf16.mxu0 %v6652
    %9889 = vmatpush1.bf16.msra.mxu0 %v6651
    %9890 = vmatprep.subr.bf16.mxu0 %v6640
    %9891 = vmatpush1.bf16.msra.mxu0 %v6639
    %9892 = vmatprep.subr.bf16.mxu0 %v6628
    %9893 = vmatpush1.bf16.msra.mxu0 %v6627
    %9894 = vmatprep.subr.bf16.mxu0 %v6616
    %9895 = vmatpush1.bf16.msra.mxu0 %v6615
    %9896 = vmatprep.subr.bf16.mxu0 %v6796
    %9897 = vmatpush2.bf16.msra.mxu0 %v6795
    %9898 = vmatprep.subr.bf16.mxu0 %v6784
    %9899 = vmatpush2.bf16.msra.mxu0 %v6783
    %9900 = vmatprep.subr.bf16.mxu0 %v6772
    %9901 = vmatpush2.bf16.msra.mxu0 %v6771
    %9902 = vmatprep.subr.bf16.mxu0 %v6760
    %9903 = vmatpush2.bf16.msra.mxu0 %v6759
    %9904 = vmatprep.subr.bf16.mxu0 %v6748
    %9905 = vmatpush2.bf16.msra.mxu0 %v6747
    %9906 = vmatprep.subr.bf16.mxu0 %v6736
    %9907 = vmatpush2.bf16.msra.mxu0 %v6735
    %9908 = vmatprep.subr.bf16.mxu0 %v6724
    %9909 = vmatpush2.bf16.msra.mxu0 %v6723
    %9910 = vmatprep.subr.bf16.mxu0 %v6712
    %9911 = vmatpush2.bf16.msra.mxu0 %v6711
    %9912 = vmatprep.mubr.bf16.mxu0 %v1784
    %9913 = vmatmul.mubr.bf16.gmra.mxu0 %v1783
    %v9914 = vpop.f32.mrf.mxu0
    %v9915 = vadd.f32 %v9872, %v9914
    %v9916 = vpop.f32.mrf.mxu0
    %v9917 = vadd.f32 %v9874, %v9916
    %v9918 = vpop.f32.mrf.mxu0
    %v9919 = vadd.f32 %v9876, %v9918
    %v9920 = vpop.f32.mrf.mxu0
    %v9921 = vadd.f32 %v9878, %v9920
    %9922 = vdwg.mxu0
    %9923 = vmatprep.subr.bf16.mxu0 %v6892
    %9924 = vmatpush1.bf16.msra.mxu0 %v6891
    %9925 = vmatprep.subr.bf16.mxu0 %v6880
    %9926 = vmatpush1.bf16.msra.mxu0 %v6879
    %9927 = vmatprep.subr.bf16.mxu0 %v6868
    %9928 = vmatpush1.bf16.msra.mxu0 %v6867
    %9929 = vmatprep.subr.bf16.mxu0 %v6856
    %9930 = vmatpush1.bf16.msra.mxu0 %v6855
    %9931 = vmatprep.subr.bf16.mxu0 %v6844
    %9932 = vmatpush1.bf16.msra.mxu0 %v6843
    %9933 = vmatprep.subr.bf16.mxu0 %v6832
    %9934 = vmatpush1.bf16.msra.mxu0 %v6831
    %9935 = vmatprep.subr.bf16.mxu0 %v6820
    %9936 = vmatpush1.bf16.msra.mxu0 %v6819
    %9937 = vmatprep.subr.bf16.mxu0 %v6808
    %9938 = vmatpush1.bf16.msra.mxu0 %v6807
    %9939 = vmatprep.subr.bf16.mxu0 %v6988
    %9940 = vmatpush2.bf16.msra.mxu0 %v6987
    %9941 = vmatprep.subr.bf16.mxu0 %v6976
    %9942 = vmatpush2.bf16.msra.mxu0 %v6975
    %9943 = vmatprep.subr.bf16.mxu0 %v6964
    %9944 = vmatpush2.bf16.msra.mxu0 %v6963
    %9945 = vmatprep.subr.bf16.mxu0 %v6952
    %9946 = vmatpush2.bf16.msra.mxu0 %v6951
    %9947 = vmatprep.subr.bf16.mxu0 %v6940
    %9948 = vmatpush2.bf16.msra.mxu0 %v6939
    %9949 = vmatprep.subr.bf16.mxu0 %v6928
    %9950 = vmatpush2.bf16.msra.mxu0 %v6927
    %9951 = vmatprep.subr.bf16.mxu0 %v6916
    %9952 = vmatpush2.bf16.msra.mxu0 %v6915
    %9953 = vmatprep.subr.bf16.mxu0 %v6904
    %9954 = vmatpush2.bf16.msra.mxu0 %v6903
    %9955 = vmatprep.mubr.bf16.mxu0 %v1786
    %9956 = vmatmul.mubr.bf16.gmra.mxu0 %v1785
    %v9957 = vpop.f32.mrf.mxu0
    %v9958 = vadd.f32 %v9915, %v9957
    %v9959 = vpop.f32.mrf.mxu0
    %v9960 = vadd.f32 %v9917, %v9959
    %v9961 = vpop.f32.mrf.mxu0
    %v9962 = vadd.f32 %v9919, %v9961
    %v9963 = vpop.f32.mrf.mxu0
    %v9964 = vadd.f32 %v9921, %v9963
    %9965 = vdwg.mxu0
    %9966 = vmatprep.subr.bf16.mxu0 %v7084
    %9967 = vmatpush1.bf16.msra.mxu0 %v7083
    %9968 = vmatprep.subr.bf16.mxu0 %v7072
    %9969 = vmatpush1.bf16.msra.mxu0 %v7071
    %9970 = vmatprep.subr.bf16.mxu0 %v7060
    %9971 = vmatpush1.bf16.msra.mxu0 %v7059
    %9972 = vmatprep.subr.bf16.mxu0 %v7048
    %9973 = vmatpush1.bf16.msra.mxu0 %v7047
    %9974 = vmatprep.subr.bf16.mxu0 %v7036
    %9975 = vmatpush1.bf16.msra.mxu0 %v7035
    %9976 = vmatprep.subr.bf16.mxu0 %v7024
    %9977 = vmatpush1.bf16.msra.mxu0 %v7023
    %9978 = vmatprep.subr.bf16.mxu0 %v7012
    %9979 = vmatpush1.bf16.msra.mxu0 %v7011
    %9980 = vmatprep.subr.bf16.mxu0 %v7000
    %9981 = vmatpush1.bf16.msra.mxu0 %v6999
    %9982 = vmatprep.subr.bf16.mxu0 %v7180
    %9983 = vmatpush2.bf16.msra.mxu0 %v7179
    %9984 = vmatprep.subr.bf16.mxu0 %v7168
    %9985 = vmatpush2.bf16.msra.mxu0 %v7167
    %9986 = vmatprep.subr.bf16.mxu0 %v7156
    %9987 = vmatpush2.bf16.msra.mxu0 %v7155
    %9988 = vmatprep.subr.bf16.mxu0 %v7144
    %9989 = vmatpush2.bf16.msra.mxu0 %v7143
    %9990 = vmatprep.subr.bf16.mxu0 %v7132
    %9991 = vmatpush2.bf16.msra.mxu0 %v7131
    %9992 = vmatprep.subr.bf16.mxu0 %v7120
    %9993 = vmatpush2.bf16.msra.mxu0 %v7119
    %9994 = vmatprep.subr.bf16.mxu0 %v7108
    %9995 = vmatpush2.bf16.msra.mxu0 %v7107
    %9996 = vmatprep.subr.bf16.mxu0 %v7096
    %9997 = vmatpush2.bf16.msra.mxu0 %v7095
    %9998 = vmatprep.mubr.bf16.mxu0 %v1788
    %9999 = vmatmul.mubr.bf16.gmra.mxu0 %v1787
    %v10000 = vpop.f32.mrf.mxu0
    %v10001 = vadd.f32 %v9958, %v10000
    %v10002 = vpop.f32.mrf.mxu0
    %v10003 = vadd.f32 %v9960, %v10002
    %v10004 = vpop.f32.mrf.mxu0
    %v10005 = vadd.f32 %v9962, %v10004
    %v10006 = vpop.f32.mrf.mxu0
    %v10007 = vadd.f32 %v9964, %v10006
    %10008 = vdwg.mxu0
    %10009 = vmatprep.subr.bf16.mxu0 %v7276
    %10010 = vmatpush1.bf16.msra.mxu0 %v7275
    %10011 = vmatprep.subr.bf16.mxu0 %v7264
    %10012 = vmatpush1.bf16.msra.mxu0 %v7263
    %10013 = vmatprep.subr.bf16.mxu0 %v7252
    %10014 = vmatpush1.bf16.msra.mxu0 %v7251
    %10015 = vmatprep.subr.bf16.mxu0 %v7240
    %10016 = vmatpush1.bf16.msra.mxu0 %v7239
    %10017 = vmatprep.subr.bf16.mxu0 %v7228
    %10018 = vmatpush1.bf16.msra.mxu0 %v7227
    %10019 = vmatprep.subr.bf16.mxu0 %v7216
    %10020 = vmatpush1.bf16.msra.mxu0 %v7215
    %10021 = vmatprep.subr.bf16.mxu0 %v7204
    %10022 = vmatpush1.bf16.msra.mxu0 %v7203
    %10023 = vmatprep.subr.bf16.mxu0 %v7192
    %10024 = vmatpush1.bf16.msra.mxu0 %v7191
    %10025 = vmatprep.subr.bf16.mxu0 %v7372
    %10026 = vmatpush2.bf16.msra.mxu0 %v7371
    %10027 = vmatprep.subr.bf16.mxu0 %v7360
    %10028 = vmatpush2.bf16.msra.mxu0 %v7359
    %10029 = vmatprep.subr.bf16.mxu0 %v7348
    %10030 = vmatpush2.bf16.msra.mxu0 %v7347
    %10031 = vmatprep.subr.bf16.mxu0 %v7336
    %10032 = vmatpush2.bf16.msra.mxu0 %v7335
    %10033 = vmatprep.subr.bf16.mxu0 %v7324
    %10034 = vmatpush2.bf16.msra.mxu0 %v7323
    %10035 = vmatprep.subr.bf16.mxu0 %v7312
    %10036 = vmatpush2.bf16.msra.mxu0 %v7311
    %10037 = vmatprep.subr.bf16.mxu0 %v7300
    %10038 = vmatpush2.bf16.msra.mxu0 %v7299
    %10039 = vmatprep.subr.bf16.mxu0 %v7288
    %10040 = vmatpush2.bf16.msra.mxu0 %v7287
    %10041 = vmatprep.mubr.bf16.mxu0 %v1790
    %10042 = vmatmul.mubr.bf16.gmra.mxu0 %v1789
    %v10043 = vpop.f32.mrf.mxu0
    %v10044 = vadd.f32 %v10001, %v10043
    %v10045 = vpop.f32.mrf.mxu0
    %v10046 = vadd.f32 %v10003, %v10045
    %v10047 = vpop.f32.mrf.mxu0
    %v10048 = vadd.f32 %v10005, %v10047
    %v10049 = vpop.f32.mrf.mxu0
    %v10050 = vadd.f32 %v10007, %v10049
    %10051 = vdwg.mxu0
    %10052 = vmatprep.subr.bf16.mxu0 %v7468
    %10053 = vmatpush1.bf16.msra.mxu0 %v7467
    %10054 = vmatprep.subr.bf16.mxu0 %v7456
    %10055 = vmatpush1.bf16.msra.mxu0 %v7455
    %10056 = vmatprep.subr.bf16.mxu0 %v7444
    %10057 = vmatpush1.bf16.msra.mxu0 %v7443
    %10058 = vmatprep.subr.bf16.mxu0 %v7432
    %10059 = vmatpush1.bf16.msra.mxu0 %v7431
    %10060 = vmatprep.subr.bf16.mxu0 %v7420
    %10061 = vmatpush1.bf16.msra.mxu0 %v7419
    %10062 = vmatprep.subr.bf16.mxu0 %v7408
    %10063 = vmatpush1.bf16.msra.mxu0 %v7407
    %10064 = vmatprep.subr.bf16.mxu0 %v7396
    %10065 = vmatpush1.bf16.msra.mxu0 %v7395
    %10066 = vmatprep.subr.bf16.mxu0 %v7384
    %10067 = vmatpush1.bf16.msra.mxu0 %v7383
    %10068 = vmatprep.subr.bf16.mxu0 %v7564
    %10069 = vmatpush2.bf16.msra.mxu0 %v7563
    %10070 = vmatprep.subr.bf16.mxu0 %v7552
    %10071 = vmatpush2.bf16.msra.mxu0 %v7551
    %10072 = vmatprep.subr.bf16.mxu0 %v7540
    %10073 = vmatpush2.bf16.msra.mxu0 %v7539
    %10074 = vmatprep.subr.bf16.mxu0 %v7528
    %10075 = vmatpush2.bf16.msra.mxu0 %v7527
    %10076 = vmatprep.subr.bf16.mxu0 %v7516
    %10077 = vmatpush2.bf16.msra.mxu0 %v7515
    %10078 = vmatprep.subr.bf16.mxu0 %v7504
    %10079 = vmatpush2.bf16.msra.mxu0 %v7503
    %10080 = vmatprep.subr.bf16.mxu0 %v7492
    %10081 = vmatpush2.bf16.msra.mxu0 %v7491
    %10082 = vmatprep.subr.bf16.mxu0 %v7480
    %10083 = vmatpush2.bf16.msra.mxu0 %v7479
    %10084 = vmatprep.mubr.bf16.mxu0 %v1792
    %10085 = vmatmul.mubr.bf16.gmra.mxu0 %v1791
    %v10086 = vpop.f32.mrf.mxu0
    %v10087 = vadd.f32 %v10044, %v10086
    %v10088 = vpop.f32.mrf.mxu0
    %v10089 = vadd.f32 %v10046, %v10088
    %v10090 = vpop.f32.mrf.mxu0
    %v10091 = vadd.f32 %v10048, %v10090
    %v10092 = vpop.f32.mrf.mxu0
    %v10093 = vadd.f32 %v10050, %v10092
    %10094 = vdwg.mxu0
    %10095 = vmatprep.subr.bf16.mxu0 %v7660
    %10096 = vmatpush1.bf16.msra.mxu0 %v7659
    %10097 = vmatprep.subr.bf16.mxu0 %v7648
    %10098 = vmatpush1.bf16.msra.mxu0 %v7647
    %10099 = vmatprep.subr.bf16.mxu0 %v7636
    %10100 = vmatpush1.bf16.msra.mxu0 %v7635
    %10101 = vmatprep.subr.bf16.mxu0 %v7624
    %10102 = vmatpush1.bf16.msra.mxu0 %v7623
    %10103 = vmatprep.subr.bf16.mxu0 %v7612
    %10104 = vmatpush1.bf16.msra.mxu0 %v7611
    %10105 = vmatprep.subr.bf16.mxu0 %v7600
    %10106 = vmatpush1.bf16.msra.mxu0 %v7599
    %10107 = vmatprep.subr.bf16.mxu0 %v7588
    %10108 = vmatpush1.bf16.msra.mxu0 %v7587
    %10109 = vmatprep.subr.bf16.mxu0 %v7576
    %10110 = vmatpush1.bf16.msra.mxu0 %v7575
    %10111 = vmatprep.subr.bf16.mxu0 %v7756
    %10112 = vmatpush2.bf16.msra.mxu0 %v7755
    %10113 = vmatprep.subr.bf16.mxu0 %v7744
    %10114 = vmatpush2.bf16.msra.mxu0 %v7743
    %10115 = vmatprep.subr.bf16.mxu0 %v7732
    %10116 = vmatpush2.bf16.msra.mxu0 %v7731
    %10117 = vmatprep.subr.bf16.mxu0 %v7720
    %10118 = vmatpush2.bf16.msra.mxu0 %v7719
    %10119 = vmatprep.subr.bf16.mxu0 %v7708
    %10120 = vmatpush2.bf16.msra.mxu0 %v7707
    %10121 = vmatprep.subr.bf16.mxu0 %v7696
    %10122 = vmatpush2.bf16.msra.mxu0 %v7695
    %10123 = vmatprep.subr.bf16.mxu0 %v7684
    %10124 = vmatpush2.bf16.msra.mxu0 %v7683
    %10125 = vmatprep.subr.bf16.mxu0 %v7672
    %10126 = vmatpush2.bf16.msra.mxu0 %v7671
    %10127 = vmatprep.mubr.bf16.mxu0 %v1794
    %10128 = vmatmul.mubr.bf16.gmra.mxu0 %v1793
    %v10129 = vpop.f32.mrf.mxu0
    %v10130 = vadd.f32 %v10087, %v10129
    %v10131 = vpop.f32.mrf.mxu0
    %v10132 = vadd.f32 %v10089, %v10131
    %v10133 = vpop.f32.mrf.mxu0
    %v10134 = vadd.f32 %v10091, %v10133
    %v10135 = vpop.f32.mrf.mxu0
    %v10136 = vadd.f32 %v10093, %v10135
    %10137 = vdwg.mxu0
    %10138 = vmatprep.subr.bf16.mxu0 %v7852
    %10139 = vmatpush1.bf16.msra.mxu0 %v7851
    %10140 = vmatprep.subr.bf16.mxu0 %v7840
    %10141 = vmatpush1.bf16.msra.mxu0 %v7839
    %10142 = vmatprep.subr.bf16.mxu0 %v7828
    %10143 = vmatpush1.bf16.msra.mxu0 %v7827
    %10144 = vmatprep.subr.bf16.mxu0 %v7816
    %10145 = vmatpush1.bf16.msra.mxu0 %v7815
    %10146 = vmatprep.subr.bf16.mxu0 %v7804
    %10147 = vmatpush1.bf16.msra.mxu0 %v7803
    %10148 = vmatprep.subr.bf16.mxu0 %v7792
    %10149 = vmatpush1.bf16.msra.mxu0 %v7791
    %10150 = vmatprep.subr.bf16.mxu0 %v7780
    %10151 = vmatpush1.bf16.msra.mxu0 %v7779
    %10152 = vmatprep.subr.bf16.mxu0 %v7768
    %10153 = vmatpush1.bf16.msra.mxu0 %v7767
    %10154 = vmatprep.subr.bf16.mxu0 %v7948
    %10155 = vmatpush2.bf16.msra.mxu0 %v7947
    %10156 = vmatprep.subr.bf16.mxu0 %v7936
    %10157 = vmatpush2.bf16.msra.mxu0 %v7935
    %10158 = vmatprep.subr.bf16.mxu0 %v7924
    %10159 = vmatpush2.bf16.msra.mxu0 %v7923
    %10160 = vmatprep.subr.bf16.mxu0 %v7912
    %10161 = vmatpush2.bf16.msra.mxu0 %v7911
    %10162 = vmatprep.subr.bf16.mxu0 %v7900
    %10163 = vmatpush2.bf16.msra.mxu0 %v7899
    %10164 = vmatprep.subr.bf16.mxu0 %v7888
    %10165 = vmatpush2.bf16.msra.mxu0 %v7887
    %10166 = vmatprep.subr.bf16.mxu0 %v7876
    %10167 = vmatpush2.bf16.msra.mxu0 %v7875
    %10168 = vmatprep.subr.bf16.mxu0 %v7864
    %10169 = vmatpush2.bf16.msra.mxu0 %v7863
    %10170 = vmatprep.mubr.bf16.mxu0 %v1796
    %10171 = vmatmul.mubr.bf16.gmra.mxu0 %v1795
    %v10172 = vpop.f32.mrf.mxu0
    %v10173 = vadd.f32 %v10130, %v10172
    %v10174 = vpop.f32.mrf.mxu0
    %v10175 = vadd.f32 %v10132, %v10174
    %v10176 = vpop.f32.mrf.mxu0
    %v10177 = vadd.f32 %v10134, %v10176
    %v10178 = vpop.f32.mrf.mxu0
    %v10179 = vadd.f32 %v10136, %v10178
    %10180 = vdwg.mxu0
    %10181 = vmatprep.subr.bf16.mxu0 %v6510
    %10182 = vmatpush1.bf16.msra.mxu0 %v6509
    %10183 = vmatprep.subr.bf16.mxu0 %v6498
    %10184 = vmatpush1.bf16.msra.mxu0 %v6497
    %10185 = vmatprep.subr.bf16.mxu0 %v6486
    %10186 = vmatpush1.bf16.msra.mxu0 %v6485
    %10187 = vmatprep.subr.bf16.mxu0 %v6474
    %10188 = vmatpush1.bf16.msra.mxu0 %v6473
    %10189 = vmatprep.subr.bf16.mxu0 %v6462
    %10190 = vmatpush1.bf16.msra.mxu0 %v6461
    %10191 = vmatprep.subr.bf16.mxu0 %v6450
    %10192 = vmatpush1.bf16.msra.mxu0 %v6449
    %10193 = vmatprep.subr.bf16.mxu0 %v6438
    %10194 = vmatpush1.bf16.msra.mxu0 %v6437
    %10195 = vmatprep.subr.bf16.mxu0 %v6426
    %10196 = vmatpush1.bf16.msra.mxu0 %v6425
    %10197 = vmatprep.subr.bf16.mxu0 %v6606
    %10198 = vmatpush2.bf16.msra.mxu0 %v6605
    %10199 = vmatprep.subr.bf16.mxu0 %v6594
    %10200 = vmatpush2.bf16.msra.mxu0 %v6593
    %10201 = vmatprep.subr.bf16.mxu0 %v6582
    %10202 = vmatpush2.bf16.msra.mxu0 %v6581
    %10203 = vmatprep.subr.bf16.mxu0 %v6570
    %10204 = vmatpush2.bf16.msra.mxu0 %v6569
    %10205 = vmatprep.subr.bf16.mxu0 %v6558
    %10206 = vmatpush2.bf16.msra.mxu0 %v6557
    %10207 = vmatprep.subr.bf16.mxu0 %v6546
    %10208 = vmatpush2.bf16.msra.mxu0 %v6545
    %10209 = vmatprep.subr.bf16.mxu0 %v6534
    %10210 = vmatpush2.bf16.msra.mxu0 %v6533
    %10211 = vmatprep.subr.bf16.mxu0 %v6522
    %10212 = vmatpush2.bf16.msra.mxu0 %v6521
    %10213 = vmatprep.mubr.bf16.mxu0 %v1782
    %10214 = vmatmul.mubr.bf16.gmra.mxu0 %v1781
    %v10215 = vpop.f32.mrf.mxu0
    %v10216 = vadd.f32 %v1692, %v10215
    %v10217 = vpop.f32.mrf.mxu0
    %v10218 = vadd.f32 %v1696, %v10217
    %v10219 = vpop.f32.mrf.mxu0
    %v10220 = vadd.f32 %v1692, %v10219
    %v10221 = vpop.f32.mrf.mxu0
    %v10222 = vadd.f32 %v1696, %v10221
    %10223 = vdwg.mxu0
    %10224 = vmatprep.subr.bf16.mxu0 %v6702
    %10225 = vmatpush1.bf16.msra.mxu0 %v6701
    %10226 = vmatprep.subr.bf16.mxu0 %v6690
    %10227 = vmatpush1.bf16.msra.mxu0 %v6689
    %10228 = vmatprep.subr.bf16.mxu0 %v6678
    %10229 = vmatpush1.bf16.msra.mxu0 %v6677
    %10230 = vmatprep.subr.bf16.mxu0 %v6666
    %10231 = vmatpush1.bf16.msra.mxu0 %v6665
    %10232 = vmatprep.subr.bf16.mxu0 %v6654
    %10233 = vmatpush1.bf16.msra.mxu0 %v6653
    %10234 = vmatprep.subr.bf16.mxu0 %v6642
    %10235 = vmatpush1.bf16.msra.mxu0 %v6641
    %10236 = vmatprep.subr.bf16.mxu0 %v6630
    %10237 = vmatpush1.bf16.msra.mxu0 %v6629
    %10238 = vmatprep.subr.bf16.mxu0 %v6618
    %10239 = vmatpush1.bf16.msra.mxu0 %v6617
    %10240 = vmatprep.subr.bf16.mxu0 %v6798
    %10241 = vmatpush2.bf16.msra.mxu0 %v6797
    %10242 = vmatprep.subr.bf16.mxu0 %v6786
    %10243 = vmatpush2.bf16.msra.mxu0 %v6785
    %10244 = vmatprep.subr.bf16.mxu0 %v6774
    %10245 = vmatpush2.bf16.msra.mxu0 %v6773
    %10246 = vmatprep.subr.bf16.mxu0 %v6762
    %10247 = vmatpush2.bf16.msra.mxu0 %v6761
    %10248 = vmatprep.subr.bf16.mxu0 %v6750
    %10249 = vmatpush2.bf16.msra.mxu0 %v6749
    %10250 = vmatprep.subr.bf16.mxu0 %v6738
    %10251 = vmatpush2.bf16.msra.mxu0 %v6737
    %10252 = vmatprep.subr.bf16.mxu0 %v6726
    %10253 = vmatpush2.bf16.msra.mxu0 %v6725
    %10254 = vmatprep.subr.bf16.mxu0 %v6714
    %10255 = vmatpush2.bf16.msra.mxu0 %v6713
    %10256 = vmatprep.mubr.bf16.mxu0 %v1784
    %10257 = vmatmul.mubr.bf16.gmra.mxu0 %v1783
    %v10258 = vpop.f32.mrf.mxu0
    %v10259 = vadd.f32 %v10216, %v10258
    %v10260 = vpop.f32.mrf.mxu0
    %v10261 = vadd.f32 %v10218, %v10260
    %v10262 = vpop.f32.mrf.mxu0
    %v10263 = vadd.f32 %v10220, %v10262
    %v10264 = vpop.f32.mrf.mxu0
    %v10265 = vadd.f32 %v10222, %v10264
    %10266 = vdwg.mxu0
    %10267 = vmatprep.subr.bf16.mxu0 %v6894
    %10268 = vmatpush1.bf16.msra.mxu0 %v6893
    %10269 = vmatprep.subr.bf16.mxu0 %v6882
    %10270 = vmatpush1.bf16.msra.mxu0 %v6881
    %10271 = vmatprep.subr.bf16.mxu0 %v6870
    %10272 = vmatpush1.bf16.msra.mxu0 %v6869
    %10273 = vmatprep.subr.bf16.mxu0 %v6858
    %10274 = vmatpush1.bf16.msra.mxu0 %v6857
    %10275 = vmatprep.subr.bf16.mxu0 %v6846
    %10276 = vmatpush1.bf16.msra.mxu0 %v6845
    %10277 = vmatprep.subr.bf16.mxu0 %v6834
    %10278 = vmatpush1.bf16.msra.mxu0 %v6833
    %10279 = vmatprep.subr.bf16.mxu0 %v6822
    %10280 = vmatpush1.bf16.msra.mxu0 %v6821
    %10281 = vmatprep.subr.bf16.mxu0 %v6810
    %10282 = vmatpush1.bf16.msra.mxu0 %v6809
    %10283 = vmatprep.subr.bf16.mxu0 %v6990
    %10284 = vmatpush2.bf16.msra.mxu0 %v6989
    %10285 = vmatprep.subr.bf16.mxu0 %v6978
    %10286 = vmatpush2.bf16.msra.mxu0 %v6977
    %10287 = vmatprep.subr.bf16.mxu0 %v6966
    %10288 = vmatpush2.bf16.msra.mxu0 %v6965
    %10289 = vmatprep.subr.bf16.mxu0 %v6954
    %10290 = vmatpush2.bf16.msra.mxu0 %v6953
    %10291 = vmatprep.subr.bf16.mxu0 %v6942
    %10292 = vmatpush2.bf16.msra.mxu0 %v6941
    %10293 = vmatprep.subr.bf16.mxu0 %v6930
    %10294 = vmatpush2.bf16.msra.mxu0 %v6929
    %10295 = vmatprep.subr.bf16.mxu0 %v6918
    %10296 = vmatpush2.bf16.msra.mxu0 %v6917
    %10297 = vmatprep.subr.bf16.mxu0 %v6906
    %10298 = vmatpush2.bf16.msra.mxu0 %v6905
    %10299 = vmatprep.mubr.bf16.mxu0 %v1786
    %10300 = vmatmul.mubr.bf16.gmra.mxu0 %v1785
    %v10301 = vpop.f32.mrf.mxu0
    %v10302 = vadd.f32 %v10259, %v10301
    %v10303 = vpop.f32.mrf.mxu0
    %v10304 = vadd.f32 %v10261, %v10303
    %v10305 = vpop.f32.mrf.mxu0
    %v10306 = vadd.f32 %v10263, %v10305
    %v10307 = vpop.f32.mrf.mxu0
    %v10308 = vadd.f32 %v10265, %v10307
    %10309 = vdwg.mxu0
    %10310 = vmatprep.subr.bf16.mxu0 %v7086
    %10311 = vmatpush1.bf16.msra.mxu0 %v7085
    %10312 = vmatprep.subr.bf16.mxu0 %v7074
    %10313 = vmatpush1.bf16.msra.mxu0 %v7073
    %10314 = vmatprep.subr.bf16.mxu0 %v7062
    %10315 = vmatpush1.bf16.msra.mxu0 %v7061
    %10316 = vmatprep.subr.bf16.mxu0 %v7050
    %10317 = vmatpush1.bf16.msra.mxu0 %v7049
    %10318 = vmatprep.subr.bf16.mxu0 %v7038
    %10319 = vmatpush1.bf16.msra.mxu0 %v7037
    %10320 = vmatprep.subr.bf16.mxu0 %v7026
    %10321 = vmatpush1.bf16.msra.mxu0 %v7025
    %10322 = vmatprep.subr.bf16.mxu0 %v7014
    %10323 = vmatpush1.bf16.msra.mxu0 %v7013
    %10324 = vmatprep.subr.bf16.mxu0 %v7002
    %10325 = vmatpush1.bf16.msra.mxu0 %v7001
    %10326 = vmatprep.subr.bf16.mxu0 %v7182
    %10327 = vmatpush2.bf16.msra.mxu0 %v7181
    %10328 = vmatprep.subr.bf16.mxu0 %v7170
    %10329 = vmatpush2.bf16.msra.mxu0 %v7169
    %10330 = vmatprep.subr.bf16.mxu0 %v7158
    %10331 = vmatpush2.bf16.msra.mxu0 %v7157
    %10332 = vmatprep.subr.bf16.mxu0 %v7146
    %10333 = vmatpush2.bf16.msra.mxu0 %v7145
    %10334 = vmatprep.subr.bf16.mxu0 %v7134
    %10335 = vmatpush2.bf16.msra.mxu0 %v7133
    %10336 = vmatprep.subr.bf16.mxu0 %v7122
    %10337 = vmatpush2.bf16.msra.mxu0 %v7121
    %10338 = vmatprep.subr.bf16.mxu0 %v7110
    %10339 = vmatpush2.bf16.msra.mxu0 %v7109
    %10340 = vmatprep.subr.bf16.mxu0 %v7098
    %10341 = vmatpush2.bf16.msra.mxu0 %v7097
    %10342 = vmatprep.mubr.bf16.mxu0 %v1788
    %10343 = vmatmul.mubr.bf16.gmra.mxu0 %v1787
    %v10344 = vpop.f32.mrf.mxu0
    %v10345 = vadd.f32 %v10302, %v10344
    %v10346 = vpop.f32.mrf.mxu0
    %v10347 = vadd.f32 %v10304, %v10346
    %v10348 = vpop.f32.mrf.mxu0
    %v10349 = vadd.f32 %v10306, %v10348
    %v10350 = vpop.f32.mrf.mxu0
    %v10351 = vadd.f32 %v10308, %v10350
    %10352 = vdwg.mxu0
    %10353 = vmatprep.subr.bf16.mxu0 %v7278
    %10354 = vmatpush1.bf16.msra.mxu0 %v7277
    %10355 = vmatprep.subr.bf16.mxu0 %v7266
    %10356 = vmatpush1.bf16.msra.mxu0 %v7265
    %10357 = vmatprep.subr.bf16.mxu0 %v7254
    %10358 = vmatpush1.bf16.msra.mxu0 %v7253
    %10359 = vmatprep.subr.bf16.mxu0 %v7242
    %10360 = vmatpush1.bf16.msra.mxu0 %v7241
    %10361 = vmatprep.subr.bf16.mxu0 %v7230
    %10362 = vmatpush1.bf16.msra.mxu0 %v7229
    %10363 = vmatprep.subr.bf16.mxu0 %v7218
    %10364 = vmatpush1.bf16.msra.mxu0 %v7217
    %10365 = vmatprep.subr.bf16.mxu0 %v7206
    %10366 = vmatpush1.bf16.msra.mxu0 %v7205
    %10367 = vmatprep.subr.bf16.mxu0 %v7194
    %10368 = vmatpush1.bf16.msra.mxu0 %v7193
    %10369 = vmatprep.subr.bf16.mxu0 %v7374
    %10370 = vmatpush2.bf16.msra.mxu0 %v7373
    %10371 = vmatprep.subr.bf16.mxu0 %v7362
    %10372 = vmatpush2.bf16.msra.mxu0 %v7361
    %10373 = vmatprep.subr.bf16.mxu0 %v7350
    %10374 = vmatpush2.bf16.msra.mxu0 %v7349
    %10375 = vmatprep.subr.bf16.mxu0 %v7338
    %10376 = vmatpush2.bf16.msra.mxu0 %v7337
    %10377 = vmatprep.subr.bf16.mxu0 %v7326
    %10378 = vmatpush2.bf16.msra.mxu0 %v7325
    %10379 = vmatprep.subr.bf16.mxu0 %v7314
    %10380 = vmatpush2.bf16.msra.mxu0 %v7313
    %10381 = vmatprep.subr.bf16.mxu0 %v7302
    %10382 = vmatpush2.bf16.msra.mxu0 %v7301
    %10383 = vmatprep.subr.bf16.mxu0 %v7290
    %10384 = vmatpush2.bf16.msra.mxu0 %v7289
    %10385 = vmatprep.mubr.bf16.mxu0 %v1790
    %10386 = vmatmul.mubr.bf16.gmra.mxu0 %v1789
    %v10387 = vpop.f32.mrf.mxu0
    %v10388 = vadd.f32 %v10345, %v10387
    %v10389 = vpop.f32.mrf.mxu0
    %v10390 = vadd.f32 %v10347, %v10389
    %v10391 = vpop.f32.mrf.mxu0
    %v10392 = vadd.f32 %v10349, %v10391
    %v10393 = vpop.f32.mrf.mxu0
    %v10394 = vadd.f32 %v10351, %v10393
    %10395 = vdwg.mxu0
    %10396 = vmatprep.subr.bf16.mxu0 %v7470
    %10397 = vmatpush1.bf16.msra.mxu0 %v7469
    %10398 = vmatprep.subr.bf16.mxu0 %v7458
    %10399 = vmatpush1.bf16.msra.mxu0 %v7457
    %10400 = vmatprep.subr.bf16.mxu0 %v7446
    %10401 = vmatpush1.bf16.msra.mxu0 %v7445
    %10402 = vmatprep.subr.bf16.mxu0 %v7434
    %10403 = vmatpush1.bf16.msra.mxu0 %v7433
    %10404 = vmatprep.subr.bf16.mxu0 %v7422
    %10405 = vmatpush1.bf16.msra.mxu0 %v7421
    %10406 = vmatprep.subr.bf16.mxu0 %v7410
    %10407 = vmatpush1.bf16.msra.mxu0 %v7409
    %10408 = vmatprep.subr.bf16.mxu0 %v7398
    %10409 = vmatpush1.bf16.msra.mxu0 %v7397
    %10410 = vmatprep.subr.bf16.mxu0 %v7386
    %10411 = vmatpush1.bf16.msra.mxu0 %v7385
    %10412 = vmatprep.subr.bf16.mxu0 %v7566
    %10413 = vmatpush2.bf16.msra.mxu0 %v7565
    %10414 = vmatprep.subr.bf16.mxu0 %v7554
    %10415 = vmatpush2.bf16.msra.mxu0 %v7553
    %10416 = vmatprep.subr.bf16.mxu0 %v7542
    %10417 = vmatpush2.bf16.msra.mxu0 %v7541
    %10418 = vmatprep.subr.bf16.mxu0 %v7530
    %10419 = vmatpush2.bf16.msra.mxu0 %v7529
    %10420 = vmatprep.subr.bf16.mxu0 %v7518
    %10421 = vmatpush2.bf16.msra.mxu0 %v7517
    %10422 = vmatprep.subr.bf16.mxu0 %v7506
    %10423 = vmatpush2.bf16.msra.mxu0 %v7505
    %10424 = vmatprep.subr.bf16.mxu0 %v7494
    %10425 = vmatpush2.bf16.msra.mxu0 %v7493
    %10426 = vmatprep.subr.bf16.mxu0 %v7482
    %10427 = vmatpush2.bf16.msra.mxu0 %v7481
    %10428 = vmatprep.mubr.bf16.mxu0 %v1792
    %10429 = vmatmul.mubr.bf16.gmra.mxu0 %v1791
    %v10430 = vpop.f32.mrf.mxu0
    %v10431 = vadd.f32 %v10388, %v10430
    %v10432 = vpop.f32.mrf.mxu0
    %v10433 = vadd.f32 %v10390, %v10432
    %v10434 = vpop.f32.mrf.mxu0
    %v10435 = vadd.f32 %v10392, %v10434
    %v10436 = vpop.f32.mrf.mxu0
    %v10437 = vadd.f32 %v10394, %v10436
    %10438 = vdwg.mxu0
    %10439 = vmatprep.subr.bf16.mxu0 %v7662
    %10440 = vmatpush1.bf16.msra.mxu0 %v7661
    %10441 = vmatprep.subr.bf16.mxu0 %v7650
    %10442 = vmatpush1.bf16.msra.mxu0 %v7649
    %10443 = vmatprep.subr.bf16.mxu0 %v7638
    %10444 = vmatpush1.bf16.msra.mxu0 %v7637
    %10445 = vmatprep.subr.bf16.mxu0 %v7626
    %10446 = vmatpush1.bf16.msra.mxu0 %v7625
    %10447 = vmatprep.subr.bf16.mxu0 %v7614
    %10448 = vmatpush1.bf16.msra.mxu0 %v7613
    %10449 = vmatprep.subr.bf16.mxu0 %v7602
    %10450 = vmatpush1.bf16.msra.mxu0 %v7601
    %10451 = vmatprep.subr.bf16.mxu0 %v7590
    %10452 = vmatpush1.bf16.msra.mxu0 %v7589
    %10453 = vmatprep.subr.bf16.mxu0 %v7578
    %10454 = vmatpush1.bf16.msra.mxu0 %v7577
    %10455 = vmatprep.subr.bf16.mxu0 %v7758
    %10456 = vmatpush2.bf16.msra.mxu0 %v7757
    %10457 = vmatprep.subr.bf16.mxu0 %v7746
    %10458 = vmatpush2.bf16.msra.mxu0 %v7745
    %10459 = vmatprep.subr.bf16.mxu0 %v7734
    %10460 = vmatpush2.bf16.msra.mxu0 %v7733
    %10461 = vmatprep.subr.bf16.mxu0 %v7722
    %10462 = vmatpush2.bf16.msra.mxu0 %v7721
    %10463 = vmatprep.subr.bf16.mxu0 %v7710
    %10464 = vmatpush2.bf16.msra.mxu0 %v7709
    %10465 = vmatprep.subr.bf16.mxu0 %v7698
    %10466 = vmatpush2.bf16.msra.mxu0 %v7697
    %10467 = vmatprep.subr.bf16.mxu0 %v7686
    %10468 = vmatpush2.bf16.msra.mxu0 %v7685
    %10469 = vmatprep.subr.bf16.mxu0 %v7674
    %10470 = vmatpush2.bf16.msra.mxu0 %v7673
    %10471 = vmatprep.mubr.bf16.mxu0 %v1794
    %10472 = vmatmul.mubr.bf16.gmra.mxu0 %v1793
    %v10473 = vpop.f32.mrf.mxu0
    %v10474 = vadd.f32 %v10431, %v10473
    %v10475 = vpop.f32.mrf.mxu0
    %v10476 = vadd.f32 %v10433, %v10475
    %v10477 = vpop.f32.mrf.mxu0
    %v10478 = vadd.f32 %v10435, %v10477
    %v10479 = vpop.f32.mrf.mxu0
    %v10480 = vadd.f32 %v10437, %v10479
    %10481 = vdwg.mxu0
    %10482 = vmatprep.subr.bf16.mxu0 %v7854
    %10483 = vmatpush1.bf16.msra.mxu0 %v7853
    %10484 = vmatprep.subr.bf16.mxu0 %v7842
    %10485 = vmatpush1.bf16.msra.mxu0 %v7841
    %10486 = vmatprep.subr.bf16.mxu0 %v7830
    %10487 = vmatpush1.bf16.msra.mxu0 %v7829
    %10488 = vmatprep.subr.bf16.mxu0 %v7818
    %10489 = vmatpush1.bf16.msra.mxu0 %v7817
    %10490 = vmatprep.subr.bf16.mxu0 %v7806
    %10491 = vmatpush1.bf16.msra.mxu0 %v7805
    %10492 = vmatprep.subr.bf16.mxu0 %v7794
    %10493 = vmatpush1.bf16.msra.mxu0 %v7793
    %10494 = vmatprep.subr.bf16.mxu0 %v7782
    %10495 = vmatpush1.bf16.msra.mxu0 %v7781
    %10496 = vmatprep.subr.bf16.mxu0 %v7770
    %10497 = vmatpush1.bf16.msra.mxu0 %v7769
    %10498 = vmatprep.subr.bf16.mxu0 %v7950
    %10499 = vmatpush2.bf16.msra.mxu0 %v7949
    %10500 = vmatprep.subr.bf16.mxu0 %v7938
    %10501 = vmatpush2.bf16.msra.mxu0 %v7937
    %10502 = vmatprep.subr.bf16.mxu0 %v7926
    %10503 = vmatpush2.bf16.msra.mxu0 %v7925
    %10504 = vmatprep.subr.bf16.mxu0 %v7914
    %10505 = vmatpush2.bf16.msra.mxu0 %v7913
    %10506 = vmatprep.subr.bf16.mxu0 %v7902
    %10507 = vmatpush2.bf16.msra.mxu0 %v7901
    %10508 = vmatprep.subr.bf16.mxu0 %v7890
    %10509 = vmatpush2.bf16.msra.mxu0 %v7889
    %10510 = vmatprep.subr.bf16.mxu0 %v7878
    %10511 = vmatpush2.bf16.msra.mxu0 %v7877
    %10512 = vmatprep.subr.bf16.mxu0 %v7866
    %10513 = vmatpush2.bf16.msra.mxu0 %v7865
    %10514 = vmatprep.mubr.bf16.mxu0 %v1796
    %10515 = vmatmul.mubr.bf16.gmra.mxu0 %v1795
    %v10516 = vpop.f32.mrf.mxu0
    %v10517 = vadd.f32 %v10474, %v10516
    %v10518 = vpop.f32.mrf.mxu0
    %v10519 = vadd.f32 %v10476, %v10518
    %v10520 = vpop.f32.mrf.mxu0
    %v10521 = vadd.f32 %v10478, %v10520
    %v10522 = vpop.f32.mrf.mxu0
    %v10523 = vadd.f32 %v10480, %v10522
    %10524 = vdwg.mxu0
    %10525 = vmatprep.subr.bf16.mxu0 %v6512
    %10526 = vmatpush1.bf16.msra.mxu0 %v6511
    %10527 = vmatprep.subr.bf16.mxu0 %v6500
    %10528 = vmatpush1.bf16.msra.mxu0 %v6499
    %10529 = vmatprep.subr.bf16.mxu0 %v6488
    %10530 = vmatpush1.bf16.msra.mxu0 %v6487
    %10531 = vmatprep.subr.bf16.mxu0 %v6476
    %10532 = vmatpush1.bf16.msra.mxu0 %v6475
    %10533 = vmatprep.subr.bf16.mxu0 %v6464
    %10534 = vmatpush1.bf16.msra.mxu0 %v6463
    %10535 = vmatprep.subr.bf16.mxu0 %v6452
    %10536 = vmatpush1.bf16.msra.mxu0 %v6451
    %10537 = vmatprep.subr.bf16.mxu0 %v6440
    %10538 = vmatpush1.bf16.msra.mxu0 %v6439
    %10539 = vmatprep.subr.bf16.mxu0 %v6428
    %10540 = vmatpush1.bf16.msra.mxu0 %v6427
    %10541 = vmatprep.subr.bf16.mxu0 %v6608
    %10542 = vmatpush2.bf16.msra.mxu0 %v6607
    %10543 = vmatprep.subr.bf16.mxu0 %v6596
    %10544 = vmatpush2.bf16.msra.mxu0 %v6595
    %10545 = vmatprep.subr.bf16.mxu0 %v6584
    %10546 = vmatpush2.bf16.msra.mxu0 %v6583
    %10547 = vmatprep.subr.bf16.mxu0 %v6572
    %10548 = vmatpush2.bf16.msra.mxu0 %v6571
    %10549 = vmatprep.subr.bf16.mxu0 %v6560
    %10550 = vmatpush2.bf16.msra.mxu0 %v6559
    %10551 = vmatprep.subr.bf16.mxu0 %v6548
    %10552 = vmatpush2.bf16.msra.mxu0 %v6547
    %10553 = vmatprep.subr.bf16.mxu0 %v6536
    %10554 = vmatpush2.bf16.msra.mxu0 %v6535
    %10555 = vmatprep.subr.bf16.mxu0 %v6524
    %10556 = vmatpush2.bf16.msra.mxu0 %v6523
    %10557 = vmatprep.mubr.bf16.mxu0 %v1782
    %10558 = vmatmul.mubr.bf16.gmra.mxu0 %v1781
    %v10559 = vpop.f32.mrf.mxu0
    %v10560 = vadd.f32 %v1700, %v10559
    %v10561 = vpop.f32.mrf.mxu0
    %v10562 = vadd.f32 %v1704, %v10561
    %v10563 = vpop.f32.mrf.mxu0
    %v10564 = vadd.f32 %v1700, %v10563
    %v10565 = vpop.f32.mrf.mxu0
    %v10566 = vadd.f32 %v1704, %v10565
    %10567 = vdwg.mxu0
    %10568 = vmatprep.subr.bf16.mxu0 %v6704
    %10569 = vmatpush1.bf16.msra.mxu0 %v6703
    %10570 = vmatprep.subr.bf16.mxu0 %v6692
    %10571 = vmatpush1.bf16.msra.mxu0 %v6691
    %10572 = vmatprep.subr.bf16.mxu0 %v6680
    %10573 = vmatpush1.bf16.msra.mxu0 %v6679
    %10574 = vmatprep.subr.bf16.mxu0 %v6668
    %10575 = vmatpush1.bf16.msra.mxu0 %v6667
    %10576 = vmatprep.subr.bf16.mxu0 %v6656
    %10577 = vmatpush1.bf16.msra.mxu0 %v6655
    %10578 = vmatprep.subr.bf16.mxu0 %v6644
    %10579 = vmatpush1.bf16.msra.mxu0 %v6643
    %10580 = vmatprep.subr.bf16.mxu0 %v6632
    %10581 = vmatpush1.bf16.msra.mxu0 %v6631
    %10582 = vmatprep.subr.bf16.mxu0 %v6620
    %10583 = vmatpush1.bf16.msra.mxu0 %v6619
    %10584 = vmatprep.subr.bf16.mxu0 %v6800
    %10585 = vmatpush2.bf16.msra.mxu0 %v6799
    %10586 = vmatprep.subr.bf16.mxu0 %v6788
    %10587 = vmatpush2.bf16.msra.mxu0 %v6787
    %10588 = vmatprep.subr.bf16.mxu0 %v6776
    %10589 = vmatpush2.bf16.msra.mxu0 %v6775
    %10590 = vmatprep.subr.bf16.mxu0 %v6764
    %10591 = vmatpush2.bf16.msra.mxu0 %v6763
    %10592 = vmatprep.subr.bf16.mxu0 %v6752
    %10593 = vmatpush2.bf16.msra.mxu0 %v6751
    %10594 = vmatprep.subr.bf16.mxu0 %v6740
    %10595 = vmatpush2.bf16.msra.mxu0 %v6739
    %10596 = vmatprep.subr.bf16.mxu0 %v6728
    %10597 = vmatpush2.bf16.msra.mxu0 %v6727
    %10598 = vmatprep.subr.bf16.mxu0 %v6716
    %10599 = vmatpush2.bf16.msra.mxu0 %v6715
    %10600 = vmatprep.mubr.bf16.mxu0 %v1784
    %10601 = vmatmul.mubr.bf16.gmra.mxu0 %v1783
    %v10602 = vpop.f32.mrf.mxu0
    %v10603 = vadd.f32 %v10560, %v10602
    %v10604 = vpop.f32.mrf.mxu0
    %v10605 = vadd.f32 %v10562, %v10604
    %v10606 = vpop.f32.mrf.mxu0
    %v10607 = vadd.f32 %v10564, %v10606
    %v10608 = vpop.f32.mrf.mxu0
    %v10609 = vadd.f32 %v10566, %v10608
    %10610 = vdwg.mxu0
    %10611 = vmatprep.subr.bf16.mxu0 %v6896
    %10612 = vmatpush1.bf16.msra.mxu0 %v6895
    %10613 = vmatprep.subr.bf16.mxu0 %v6884
    %10614 = vmatpush1.bf16.msra.mxu0 %v6883
    %10615 = vmatprep.subr.bf16.mxu0 %v6872
    %10616 = vmatpush1.bf16.msra.mxu0 %v6871
    %10617 = vmatprep.subr.bf16.mxu0 %v6860
    %10618 = vmatpush1.bf16.msra.mxu0 %v6859
    %10619 = vmatprep.subr.bf16.mxu0 %v6848
    %10620 = vmatpush1.bf16.msra.mxu0 %v6847
    %10621 = vmatprep.subr.bf16.mxu0 %v6836
    %10622 = vmatpush1.bf16.msra.mxu0 %v6835
    %10623 = vmatprep.subr.bf16.mxu0 %v6824
    %10624 = vmatpush1.bf16.msra.mxu0 %v6823
    %10625 = vmatprep.subr.bf16.mxu0 %v6812
    %10626 = vmatpush1.bf16.msra.mxu0 %v6811
    %10627 = vmatprep.subr.bf16.mxu0 %v6992
    %10628 = vmatpush2.bf16.msra.mxu0 %v6991
    %10629 = vmatprep.subr.bf16.mxu0 %v6980
    %10630 = vmatpush2.bf16.msra.mxu0 %v6979
    %10631 = vmatprep.subr.bf16.mxu0 %v6968
    %10632 = vmatpush2.bf16.msra.mxu0 %v6967
    %10633 = vmatprep.subr.bf16.mxu0 %v6956
    %10634 = vmatpush2.bf16.msra.mxu0 %v6955
    %10635 = vmatprep.subr.bf16.mxu0 %v6944
    %10636 = vmatpush2.bf16.msra.mxu0 %v6943
    %10637 = vmatprep.subr.bf16.mxu0 %v6932
    %10638 = vmatpush2.bf16.msra.mxu0 %v6931
    %10639 = vmatprep.subr.bf16.mxu0 %v6920
    %10640 = vmatpush2.bf16.msra.mxu0 %v6919
    %10641 = vmatprep.subr.bf16.mxu0 %v6908
    %10642 = vmatpush2.bf16.msra.mxu0 %v6907
    %10643 = vmatprep.mubr.bf16.mxu0 %v1786
    %10644 = vmatmul.mubr.bf16.gmra.mxu0 %v1785
    %v10645 = vpop.f32.mrf.mxu0
    %v10646 = vadd.f32 %v10603, %v10645
    %v10647 = vpop.f32.mrf.mxu0
    %v10648 = vadd.f32 %v10605, %v10647
    %v10649 = vpop.f32.mrf.mxu0
    %v10650 = vadd.f32 %v10607, %v10649
    %v10651 = vpop.f32.mrf.mxu0
    %v10652 = vadd.f32 %v10609, %v10651
    %10653 = vdwg.mxu0
    %10654 = vmatprep.subr.bf16.mxu0 %v7088
    %10655 = vmatpush1.bf16.msra.mxu0 %v7087
    %10656 = vmatprep.subr.bf16.mxu0 %v7076
    %10657 = vmatpush1.bf16.msra.mxu0 %v7075
    %10658 = vmatprep.subr.bf16.mxu0 %v7064
    %10659 = vmatpush1.bf16.msra.mxu0 %v7063
    %10660 = vmatprep.subr.bf16.mxu0 %v7052
    %10661 = vmatpush1.bf16.msra.mxu0 %v7051
    %10662 = vmatprep.subr.bf16.mxu0 %v7040
    %10663 = vmatpush1.bf16.msra.mxu0 %v7039
    %10664 = vmatprep.subr.bf16.mxu0 %v7028
    %10665 = vmatpush1.bf16.msra.mxu0 %v7027
    %10666 = vmatprep.subr.bf16.mxu0 %v7016
    %10667 = vmatpush1.bf16.msra.mxu0 %v7015
    %10668 = vmatprep.subr.bf16.mxu0 %v7004
    %10669 = vmatpush1.bf16.msra.mxu0 %v7003
    %10670 = vmatprep.subr.bf16.mxu0 %v7184
    %10671 = vmatpush2.bf16.msra.mxu0 %v7183
    %10672 = vmatprep.subr.bf16.mxu0 %v7172
    %10673 = vmatpush2.bf16.msra.mxu0 %v7171
    %10674 = vmatprep.subr.bf16.mxu0 %v7160
    %10675 = vmatpush2.bf16.msra.mxu0 %v7159
    %10676 = vmatprep.subr.bf16.mxu0 %v7148
    %10677 = vmatpush2.bf16.msra.mxu0 %v7147
    %10678 = vmatprep.subr.bf16.mxu0 %v7136
    %10679 = vmatpush2.bf16.msra.mxu0 %v7135
    %10680 = vmatprep.subr.bf16.mxu0 %v7124
    %10681 = vmatpush2.bf16.msra.mxu0 %v7123
    %10682 = vmatprep.subr.bf16.mxu0 %v7112
    %10683 = vmatpush2.bf16.msra.mxu0 %v7111
    %10684 = vmatprep.subr.bf16.mxu0 %v7100
    %10685 = vmatpush2.bf16.msra.mxu0 %v7099
    %10686 = vmatprep.mubr.bf16.mxu0 %v1788
    %10687 = vmatmul.mubr.bf16.gmra.mxu0 %v1787
    %v10688 = vpop.f32.mrf.mxu0
    %v10689 = vadd.f32 %v10646, %v10688
    %v10690 = vpop.f32.mrf.mxu0
    %v10691 = vadd.f32 %v10648, %v10690
    %v10692 = vpop.f32.mrf.mxu0
    %v10693 = vadd.f32 %v10650, %v10692
    %v10694 = vpop.f32.mrf.mxu0
    %v10695 = vadd.f32 %v10652, %v10694
    %10696 = vdwg.mxu0
    %10697 = vmatprep.subr.bf16.mxu0 %v7280
    %10698 = vmatpush1.bf16.msra.mxu0 %v7279
    %10699 = vmatprep.subr.bf16.mxu0 %v7268
    %10700 = vmatpush1.bf16.msra.mxu0 %v7267
    %10701 = vmatprep.subr.bf16.mxu0 %v7256
    %10702 = vmatpush1.bf16.msra.mxu0 %v7255
    %10703 = vmatprep.subr.bf16.mxu0 %v7244
    %10704 = vmatpush1.bf16.msra.mxu0 %v7243
    %10705 = vmatprep.subr.bf16.mxu0 %v7232
    %10706 = vmatpush1.bf16.msra.mxu0 %v7231
    %10707 = vmatprep.subr.bf16.mxu0 %v7220
    %10708 = vmatpush1.bf16.msra.mxu0 %v7219
    %10709 = vmatprep.subr.bf16.mxu0 %v7208
    %10710 = vmatpush1.bf16.msra.mxu0 %v7207
    %10711 = vmatprep.subr.bf16.mxu0 %v7196
    %10712 = vmatpush1.bf16.msra.mxu0 %v7195
    %10713 = vmatprep.subr.bf16.mxu0 %v7376
    %10714 = vmatpush2.bf16.msra.mxu0 %v7375
    %10715 = vmatprep.subr.bf16.mxu0 %v7364
    %10716 = vmatpush2.bf16.msra.mxu0 %v7363
    %10717 = vmatprep.subr.bf16.mxu0 %v7352
    %10718 = vmatpush2.bf16.msra.mxu0 %v7351
    %10719 = vmatprep.subr.bf16.mxu0 %v7340
    %10720 = vmatpush2.bf16.msra.mxu0 %v7339
    %10721 = vmatprep.subr.bf16.mxu0 %v7328
    %10722 = vmatpush2.bf16.msra.mxu0 %v7327
    %10723 = vmatprep.subr.bf16.mxu0 %v7316
    %10724 = vmatpush2.bf16.msra.mxu0 %v7315
    %10725 = vmatprep.subr.bf16.mxu0 %v7304
    %10726 = vmatpush2.bf16.msra.mxu0 %v7303
    %10727 = vmatprep.subr.bf16.mxu0 %v7292
    %10728 = vmatpush2.bf16.msra.mxu0 %v7291
    %10729 = vmatprep.mubr.bf16.mxu0 %v1790
    %10730 = vmatmul.mubr.bf16.gmra.mxu0 %v1789
    %v10731 = vpop.f32.mrf.mxu0
    %v10732 = vadd.f32 %v10689, %v10731
    %v10733 = vpop.f32.mrf.mxu0
    %v10734 = vadd.f32 %v10691, %v10733
    %v10735 = vpop.f32.mrf.mxu0
    %v10736 = vadd.f32 %v10693, %v10735
    %v10737 = vpop.f32.mrf.mxu0
    %v10738 = vadd.f32 %v10695, %v10737
    %10739 = vdwg.mxu0
    %10740 = vmatprep.subr.bf16.mxu0 %v7472
    %10741 = vmatpush1.bf16.msra.mxu0 %v7471
    %10742 = vmatprep.subr.bf16.mxu0 %v7460
    %10743 = vmatpush1.bf16.msra.mxu0 %v7459
    %10744 = vmatprep.subr.bf16.mxu0 %v7448
    %10745 = vmatpush1.bf16.msra.mxu0 %v7447
    %10746 = vmatprep.subr.bf16.mxu0 %v7436
    %10747 = vmatpush1.bf16.msra.mxu0 %v7435
    %10748 = vmatprep.subr.bf16.mxu0 %v7424
    %10749 = vmatpush1.bf16.msra.mxu0 %v7423
    %10750 = vmatprep.subr.bf16.mxu0 %v7412
    %10751 = vmatpush1.bf16.msra.mxu0 %v7411
    %10752 = vmatprep.subr.bf16.mxu0 %v7400
    %10753 = vmatpush1.bf16.msra.mxu0 %v7399
    %10754 = vmatprep.subr.bf16.mxu0 %v7388
    %10755 = vmatpush1.bf16.msra.mxu0 %v7387
    %10756 = vmatprep.subr.bf16.mxu0 %v7568
    %10757 = vmatpush2.bf16.msra.mxu0 %v7567
    %10758 = vmatprep.subr.bf16.mxu0 %v7556
    %10759 = vmatpush2.bf16.msra.mxu0 %v7555
    %10760 = vmatprep.subr.bf16.mxu0 %v7544
    %10761 = vmatpush2.bf16.msra.mxu0 %v7543
    %10762 = vmatprep.subr.bf16.mxu0 %v7532
    %10763 = vmatpush2.bf16.msra.mxu0 %v7531
    %10764 = vmatprep.subr.bf16.mxu0 %v7520
    %10765 = vmatpush2.bf16.msra.mxu0 %v7519
    %10766 = vmatprep.subr.bf16.mxu0 %v7508
    %10767 = vmatpush2.bf16.msra.mxu0 %v7507
    %10768 = vmatprep.subr.bf16.mxu0 %v7496
    %10769 = vmatpush2.bf16.msra.mxu0 %v7495
    %10770 = vmatprep.subr.bf16.mxu0 %v7484
    %10771 = vmatpush2.bf16.msra.mxu0 %v7483
    %10772 = vmatprep.mubr.bf16.mxu0 %v1792
    %10773 = vmatmul.mubr.bf16.gmra.mxu0 %v1791
    %v10774 = vpop.f32.mrf.mxu0
    %v10775 = vadd.f32 %v10732, %v10774
    %v10776 = vpop.f32.mrf.mxu0
    %v10777 = vadd.f32 %v10734, %v10776
    %v10778 = vpop.f32.mrf.mxu0
    %v10779 = vadd.f32 %v10736, %v10778
    %v10780 = vpop.f32.mrf.mxu0
    %v10781 = vadd.f32 %v10738, %v10780
    %10782 = vdwg.mxu0
    %10783 = vmatprep.subr.bf16.mxu0 %v7664
    %10784 = vmatpush1.bf16.msra.mxu0 %v7663
    %10785 = vmatprep.subr.bf16.mxu0 %v7652
    %10786 = vmatpush1.bf16.msra.mxu0 %v7651
    %10787 = vmatprep.subr.bf16.mxu0 %v7640
    %10788 = vmatpush1.bf16.msra.mxu0 %v7639
    %10789 = vmatprep.subr.bf16.mxu0 %v7628
    %10790 = vmatpush1.bf16.msra.mxu0 %v7627
    %10791 = vmatprep.subr.bf16.mxu0 %v7616
    %10792 = vmatpush1.bf16.msra.mxu0 %v7615
    %10793 = vmatprep.subr.bf16.mxu0 %v7604
    %10794 = vmatpush1.bf16.msra.mxu0 %v7603
    %10795 = vmatprep.subr.bf16.mxu0 %v7592
    %10796 = vmatpush1.bf16.msra.mxu0 %v7591
    %10797 = vmatprep.subr.bf16.mxu0 %v7580
    %10798 = vmatpush1.bf16.msra.mxu0 %v7579
    %10799 = vmatprep.subr.bf16.mxu0 %v7760
    %10800 = vmatpush2.bf16.msra.mxu0 %v7759
    %10801 = vmatprep.subr.bf16.mxu0 %v7748
    %10802 = vmatpush2.bf16.msra.mxu0 %v7747
    %10803 = vmatprep.subr.bf16.mxu0 %v7736
    %10804 = vmatpush2.bf16.msra.mxu0 %v7735
    %10805 = vmatprep.subr.bf16.mxu0 %v7724
    %10806 = vmatpush2.bf16.msra.mxu0 %v7723
    %10807 = vmatprep.subr.bf16.mxu0 %v7712
    %10808 = vmatpush2.bf16.msra.mxu0 %v7711
    %10809 = vmatprep.subr.bf16.mxu0 %v7700
    %10810 = vmatpush2.bf16.msra.mxu0 %v7699
    %10811 = vmatprep.subr.bf16.mxu0 %v7688
    %10812 = vmatpush2.bf16.msra.mxu0 %v7687
    %10813 = vmatprep.subr.bf16.mxu0 %v7676
    %10814 = vmatpush2.bf16.msra.mxu0 %v7675
    %10815 = vmatprep.mubr.bf16.mxu0 %v1794
    %10816 = vmatmul.mubr.bf16.gmra.mxu0 %v1793
    %v10817 = vpop.f32.mrf.mxu0
    %v10818 = vadd.f32 %v10775, %v10817
    %v10819 = vpop.f32.mrf.mxu0
    %v10820 = vadd.f32 %v10777, %v10819
    %v10821 = vpop.f32.mrf.mxu0
    %v10822 = vadd.f32 %v10779, %v10821
    %v10823 = vpop.f32.mrf.mxu0
    %v10824 = vadd.f32 %v10781, %v10823
    %10825 = vdwg.mxu0
    %10826 = vmatprep.subr.bf16.mxu0 %v7856
    %10827 = vmatpush1.bf16.msra.mxu0 %v7855
    %10828 = vmatprep.subr.bf16.mxu0 %v7844
    %10829 = vmatpush1.bf16.msra.mxu0 %v7843
    %10830 = vmatprep.subr.bf16.mxu0 %v7832
    %10831 = vmatpush1.bf16.msra.mxu0 %v7831
    %10832 = vmatprep.subr.bf16.mxu0 %v7820
    %10833 = vmatpush1.bf16.msra.mxu0 %v7819
    %10834 = vmatprep.subr.bf16.mxu0 %v7808
    %10835 = vmatpush1.bf16.msra.mxu0 %v7807
    %10836 = vmatprep.subr.bf16.mxu0 %v7796
    %10837 = vmatpush1.bf16.msra.mxu0 %v7795
    %10838 = vmatprep.subr.bf16.mxu0 %v7784
    %10839 = vmatpush1.bf16.msra.mxu0 %v7783
    %10840 = vmatprep.subr.bf16.mxu0 %v7772
    %10841 = vmatpush1.bf16.msra.mxu0 %v7771
    %10842 = vmatprep.subr.bf16.mxu0 %v7952
    %10843 = vmatpush2.bf16.msra.mxu0 %v7951
    %10844 = vmatprep.subr.bf16.mxu0 %v7940
    %10845 = vmatpush2.bf16.msra.mxu0 %v7939
    %10846 = vmatprep.subr.bf16.mxu0 %v7928
    %10847 = vmatpush2.bf16.msra.mxu0 %v7927
    %10848 = vmatprep.subr.bf16.mxu0 %v7916
    %10849 = vmatpush2.bf16.msra.mxu0 %v7915
    %10850 = vmatprep.subr.bf16.mxu0 %v7904
    %10851 = vmatpush2.bf16.msra.mxu0 %v7903
    %10852 = vmatprep.subr.bf16.mxu0 %v7892
    %10853 = vmatpush2.bf16.msra.mxu0 %v7891
    %10854 = vmatprep.subr.bf16.mxu0 %v7880
    %10855 = vmatpush2.bf16.msra.mxu0 %v7879
    %10856 = vmatprep.subr.bf16.mxu0 %v7868
    %10857 = vmatpush2.bf16.msra.mxu0 %v7867
    %10858 = vmatprep.mubr.bf16.mxu0 %v1796
    %10859 = vmatmul.mubr.bf16.gmra.mxu0 %v1795
    %v10860 = vpop.f32.mrf.mxu0
    %v10861 = vadd.f32 %v10818, %v10860
    %v10862 = vpop.f32.mrf.mxu0
    %v10863 = vadd.f32 %v10820, %v10862
    %v10864 = vpop.f32.mrf.mxu0
    %v10865 = vadd.f32 %v10822, %v10864
    %v10866 = vpop.f32.mrf.mxu0
    %v10867 = vadd.f32 %v10824, %v10866
    %10868 = vdwg.mxu0
    %10869 = vmatprep.subr.bf16.mxu0 %v6514
    %10870 = vmatpush1.bf16.msra.mxu0 %v6513
    %10871 = vmatprep.subr.bf16.mxu0 %v6502
    %10872 = vmatpush1.bf16.msra.mxu0 %v6501
    %10873 = vmatprep.subr.bf16.mxu0 %v6490
    %10874 = vmatpush1.bf16.msra.mxu0 %v6489
    %10875 = vmatprep.subr.bf16.mxu0 %v6478
    %10876 = vmatpush1.bf16.msra.mxu0 %v6477
    %10877 = vmatprep.subr.bf16.mxu0 %v6466
    %10878 = vmatpush1.bf16.msra.mxu0 %v6465
    %10879 = vmatprep.subr.bf16.mxu0 %v6454
    %10880 = vmatpush1.bf16.msra.mxu0 %v6453
    %10881 = vmatprep.subr.bf16.mxu0 %v6442
    %10882 = vmatpush1.bf16.msra.mxu0 %v6441
    %10883 = vmatprep.subr.bf16.mxu0 %v6430
    %10884 = vmatpush1.bf16.msra.mxu0 %v6429
    %10885 = vmatprep.subr.bf16.mxu0 %v6610
    %10886 = vmatpush2.bf16.msra.mxu0 %v6609
    %10887 = vmatprep.subr.bf16.mxu0 %v6598
    %10888 = vmatpush2.bf16.msra.mxu0 %v6597
    %10889 = vmatprep.subr.bf16.mxu0 %v6586
    %10890 = vmatpush2.bf16.msra.mxu0 %v6585
    %10891 = vmatprep.subr.bf16.mxu0 %v6574
    %10892 = vmatpush2.bf16.msra.mxu0 %v6573
    %10893 = vmatprep.subr.bf16.mxu0 %v6562
    %10894 = vmatpush2.bf16.msra.mxu0 %v6561
    %10895 = vmatprep.subr.bf16.mxu0 %v6550
    %10896 = vmatpush2.bf16.msra.mxu0 %v6549
    %10897 = vmatprep.subr.bf16.mxu0 %v6538
    %10898 = vmatpush2.bf16.msra.mxu0 %v6537
    %10899 = vmatprep.subr.bf16.mxu0 %v6526
    %10900 = vmatpush2.bf16.msra.mxu0 %v6525
    %10901 = vmatprep.mubr.bf16.mxu0 %v1782
    %10902 = vmatmul.mubr.bf16.gmra.mxu0 %v1781
    %v10903 = vpop.f32.mrf.mxu0
    %v10904 = vadd.f32 %v1708, %v10903
    %v10905 = vpop.f32.mrf.mxu0
    %v10906 = vadd.f32 %v1712, %v10905
    %v10907 = vpop.f32.mrf.mxu0
    %v10908 = vadd.f32 %v1708, %v10907
    %v10909 = vpop.f32.mrf.mxu0
    %v10910 = vadd.f32 %v1712, %v10909
    %10911 = vdwg.mxu0
    %10912 = vmatprep.subr.bf16.mxu0 %v6706
    %10913 = vmatpush1.bf16.msra.mxu0 %v6705
    %10914 = vmatprep.subr.bf16.mxu0 %v6694
    %10915 = vmatpush1.bf16.msra.mxu0 %v6693
    %10916 = vmatprep.subr.bf16.mxu0 %v6682
    %10917 = vmatpush1.bf16.msra.mxu0 %v6681
    %10918 = vmatprep.subr.bf16.mxu0 %v6670
    %10919 = vmatpush1.bf16.msra.mxu0 %v6669
    %10920 = vmatprep.subr.bf16.mxu0 %v6658
    %10921 = vmatpush1.bf16.msra.mxu0 %v6657
    %10922 = vmatprep.subr.bf16.mxu0 %v6646
    %10923 = vmatpush1.bf16.msra.mxu0 %v6645
    %10924 = vmatprep.subr.bf16.mxu0 %v6634
    %10925 = vmatpush1.bf16.msra.mxu0 %v6633
    %10926 = vmatprep.subr.bf16.mxu0 %v6622
    %10927 = vmatpush1.bf16.msra.mxu0 %v6621
    %10928 = vmatprep.subr.bf16.mxu0 %v6802
    %10929 = vmatpush2.bf16.msra.mxu0 %v6801
    %10930 = vmatprep.subr.bf16.mxu0 %v6790
    %10931 = vmatpush2.bf16.msra.mxu0 %v6789
    %10932 = vmatprep.subr.bf16.mxu0 %v6778
    %10933 = vmatpush2.bf16.msra.mxu0 %v6777
    %10934 = vmatprep.subr.bf16.mxu0 %v6766
    %10935 = vmatpush2.bf16.msra.mxu0 %v6765
    %10936 = vmatprep.subr.bf16.mxu0 %v6754
    %10937 = vmatpush2.bf16.msra.mxu0 %v6753
    %10938 = vmatprep.subr.bf16.mxu0 %v6742
    %10939 = vmatpush2.bf16.msra.mxu0 %v6741
    %10940 = vmatprep.subr.bf16.mxu0 %v6730
    %10941 = vmatpush2.bf16.msra.mxu0 %v6729
    %10942 = vmatprep.subr.bf16.mxu0 %v6718
    %10943 = vmatpush2.bf16.msra.mxu0 %v6717
    %10944 = vmatprep.mubr.bf16.mxu0 %v1784
    %10945 = vmatmul.mubr.bf16.gmra.mxu0 %v1783
    %v10946 = vpop.f32.mrf.mxu0
    %v10947 = vadd.f32 %v10904, %v10946
    %v10948 = vpop.f32.mrf.mxu0
    %v10949 = vadd.f32 %v10906, %v10948
    %v10950 = vpop.f32.mrf.mxu0
    %v10951 = vadd.f32 %v10908, %v10950
    %v10952 = vpop.f32.mrf.mxu0
    %v10953 = vadd.f32 %v10910, %v10952
    %10954 = vdwg.mxu0
    %10955 = vmatprep.subr.bf16.mxu0 %v6898
    %10956 = vmatpush1.bf16.msra.mxu0 %v6897
    %10957 = vmatprep.subr.bf16.mxu0 %v6886
    %10958 = vmatpush1.bf16.msra.mxu0 %v6885
    %10959 = vmatprep.subr.bf16.mxu0 %v6874
    %10960 = vmatpush1.bf16.msra.mxu0 %v6873
    %10961 = vmatprep.subr.bf16.mxu0 %v6862
    %10962 = vmatpush1.bf16.msra.mxu0 %v6861
    %10963 = vmatprep.subr.bf16.mxu0 %v6850
    %10964 = vmatpush1.bf16.msra.mxu0 %v6849
    %10965 = vmatprep.subr.bf16.mxu0 %v6838
    %10966 = vmatpush1.bf16.msra.mxu0 %v6837
    %10967 = vmatprep.subr.bf16.mxu0 %v6826
    %10968 = vmatpush1.bf16.msra.mxu0 %v6825
    %10969 = vmatprep.subr.bf16.mxu0 %v6814
    %10970 = vmatpush1.bf16.msra.mxu0 %v6813
    %10971 = vmatprep.subr.bf16.mxu0 %v6994
    %10972 = vmatpush2.bf16.msra.mxu0 %v6993
    %10973 = vmatprep.subr.bf16.mxu0 %v6982
    %10974 = vmatpush2.bf16.msra.mxu0 %v6981
    %10975 = vmatprep.subr.bf16.mxu0 %v6970
    %10976 = vmatpush2.bf16.msra.mxu0 %v6969
    %10977 = vmatprep.subr.bf16.mxu0 %v6958
    %10978 = vmatpush2.bf16.msra.mxu0 %v6957
    %10979 = vmatprep.subr.bf16.mxu0 %v6946
    %10980 = vmatpush2.bf16.msra.mxu0 %v6945
    %10981 = vmatprep.subr.bf16.mxu0 %v6934
    %10982 = vmatpush2.bf16.msra.mxu0 %v6933
    %10983 = vmatprep.subr.bf16.mxu0 %v6922
    %10984 = vmatpush2.bf16.msra.mxu0 %v6921
    %10985 = vmatprep.subr.bf16.mxu0 %v6910
    %10986 = vmatpush2.bf16.msra.mxu0 %v6909
    %10987 = vmatprep.mubr.bf16.mxu0 %v1786
    %10988 = vmatmul.mubr.bf16.gmra.mxu0 %v1785
    %v10989 = vpop.f32.mrf.mxu0
    %v10990 = vadd.f32 %v10947, %v10989
    %v10991 = vpop.f32.mrf.mxu0
    %v10992 = vadd.f32 %v10949, %v10991
    %v10993 = vpop.f32.mrf.mxu0
    %v10994 = vadd.f32 %v10951, %v10993
    %v10995 = vpop.f32.mrf.mxu0
    %v10996 = vadd.f32 %v10953, %v10995
    %10997 = vdwg.mxu0
    %10998 = vmatprep.subr.bf16.mxu0 %v7090
    %10999 = vmatpush1.bf16.msra.mxu0 %v7089
    %11000 = vmatprep.subr.bf16.mxu0 %v7078
    %11001 = vmatpush1.bf16.msra.mxu0 %v7077
    %11002 = vmatprep.subr.bf16.mxu0 %v7066
    %11003 = vmatpush1.bf16.msra.mxu0 %v7065
    %11004 = vmatprep.subr.bf16.mxu0 %v7054
    %11005 = vmatpush1.bf16.msra.mxu0 %v7053
    %11006 = vmatprep.subr.bf16.mxu0 %v7042
    %11007 = vmatpush1.bf16.msra.mxu0 %v7041
    %11008 = vmatprep.subr.bf16.mxu0 %v7030
    %11009 = vmatpush1.bf16.msra.mxu0 %v7029
    %11010 = vmatprep.subr.bf16.mxu0 %v7018
    %11011 = vmatpush1.bf16.msra.mxu0 %v7017
    %11012 = vmatprep.subr.bf16.mxu0 %v7006
    %11013 = vmatpush1.bf16.msra.mxu0 %v7005
    %11014 = vmatprep.subr.bf16.mxu0 %v7186
    %11015 = vmatpush2.bf16.msra.mxu0 %v7185
    %11016 = vmatprep.subr.bf16.mxu0 %v7174
    %11017 = vmatpush2.bf16.msra.mxu0 %v7173
    %11018 = vmatprep.subr.bf16.mxu0 %v7162
    %11019 = vmatpush2.bf16.msra.mxu0 %v7161
    %11020 = vmatprep.subr.bf16.mxu0 %v7150
    %11021 = vmatpush2.bf16.msra.mxu0 %v7149
    %11022 = vmatprep.subr.bf16.mxu0 %v7138
    %11023 = vmatpush2.bf16.msra.mxu0 %v7137
    %11024 = vmatprep.subr.bf16.mxu0 %v7126
    %11025 = vmatpush2.bf16.msra.mxu0 %v7125
    %11026 = vmatprep.subr.bf16.mxu0 %v7114
    %11027 = vmatpush2.bf16.msra.mxu0 %v7113
    %11028 = vmatprep.subr.bf16.mxu0 %v7102
    %11029 = vmatpush2.bf16.msra.mxu0 %v7101
    %11030 = vmatprep.mubr.bf16.mxu0 %v1788
    %11031 = vmatmul.mubr.bf16.gmra.mxu0 %v1787
    %v11032 = vpop.f32.mrf.mxu0
    %v11033 = vadd.f32 %v10990, %v11032
    %v11034 = vpop.f32.mrf.mxu0
    %v11035 = vadd.f32 %v10992, %v11034
    %v11036 = vpop.f32.mrf.mxu0
    %v11037 = vadd.f32 %v10994, %v11036
    %v11038 = vpop.f32.mrf.mxu0
    %v11039 = vadd.f32 %v10996, %v11038
    %11040 = vdwg.mxu0
    %11041 = vmatprep.subr.bf16.mxu0 %v7282
    %11042 = vmatpush1.bf16.msra.mxu0 %v7281
    %11043 = vmatprep.subr.bf16.mxu0 %v7270
    %11044 = vmatpush1.bf16.msra.mxu0 %v7269
    %11045 = vmatprep.subr.bf16.mxu0 %v7258
    %11046 = vmatpush1.bf16.msra.mxu0 %v7257
    %11047 = vmatprep.subr.bf16.mxu0 %v7246
    %11048 = vmatpush1.bf16.msra.mxu0 %v7245
    %11049 = vmatprep.subr.bf16.mxu0 %v7234
    %11050 = vmatpush1.bf16.msra.mxu0 %v7233
    %11051 = vmatprep.subr.bf16.mxu0 %v7222
    %11052 = vmatpush1.bf16.msra.mxu0 %v7221
    %11053 = vmatprep.subr.bf16.mxu0 %v7210
    %11054 = vmatpush1.bf16.msra.mxu0 %v7209
    %11055 = vmatprep.subr.bf16.mxu0 %v7198
    %11056 = vmatpush1.bf16.msra.mxu0 %v7197
    %11057 = vmatprep.subr.bf16.mxu0 %v7378
    %11058 = vmatpush2.bf16.msra.mxu0 %v7377
    %11059 = vmatprep.subr.bf16.mxu0 %v7366
    %11060 = vmatpush2.bf16.msra.mxu0 %v7365
    %11061 = vmatprep.subr.bf16.mxu0 %v7354
    %11062 = vmatpush2.bf16.msra.mxu0 %v7353
    %11063 = vmatprep.subr.bf16.mxu0 %v7342
    %11064 = vmatpush2.bf16.msra.mxu0 %v7341
    %11065 = vmatprep.subr.bf16.mxu0 %v7330
    %11066 = vmatpush2.bf16.msra.mxu0 %v7329
    %11067 = vmatprep.subr.bf16.mxu0 %v7318
    %11068 = vmatpush2.bf16.msra.mxu0 %v7317
    %11069 = vmatprep.subr.bf16.mxu0 %v7306
    %11070 = vmatpush2.bf16.msra.mxu0 %v7305
    %11071 = vmatprep.subr.bf16.mxu0 %v7294
    %11072 = vmatpush2.bf16.msra.mxu0 %v7293
    %11073 = vmatprep.mubr.bf16.mxu0 %v1790
    %11074 = vmatmul.mubr.bf16.gmra.mxu0 %v1789
    %v11075 = vpop.f32.mrf.mxu0
    %v11076 = vadd.f32 %v11033, %v11075
    %v11077 = vpop.f32.mrf.mxu0
    %v11078 = vadd.f32 %v11035, %v11077
    %v11079 = vpop.f32.mrf.mxu0
    %v11080 = vadd.f32 %v11037, %v11079
    %v11081 = vpop.f32.mrf.mxu0
    %v11082 = vadd.f32 %v11039, %v11081
    %11083 = vdwg.mxu0
    %11084 = vmatprep.subr.bf16.mxu0 %v7474
    %11085 = vmatpush1.bf16.msra.mxu0 %v7473
    %11086 = vmatprep.subr.bf16.mxu0 %v7462
    %11087 = vmatpush1.bf16.msra.mxu0 %v7461
    %11088 = vmatprep.subr.bf16.mxu0 %v7450
    %11089 = vmatpush1.bf16.msra.mxu0 %v7449
    %11090 = vmatprep.subr.bf16.mxu0 %v7438
    %11091 = vmatpush1.bf16.msra.mxu0 %v7437
    %11092 = vmatprep.subr.bf16.mxu0 %v7426
    %11093 = vmatpush1.bf16.msra.mxu0 %v7425
    %11094 = vmatprep.subr.bf16.mxu0 %v7414
    %11095 = vmatpush1.bf16.msra.mxu0 %v7413
    %11096 = vmatprep.subr.bf16.mxu0 %v7402
    %11097 = vmatpush1.bf16.msra.mxu0 %v7401
    %11098 = vmatprep.subr.bf16.mxu0 %v7390
    %11099 = vmatpush1.bf16.msra.mxu0 %v7389
    %11100 = vmatprep.subr.bf16.mxu0 %v7570
    %11101 = vmatpush2.bf16.msra.mxu0 %v7569
    %11102 = vmatprep.subr.bf16.mxu0 %v7558
    %11103 = vmatpush2.bf16.msra.mxu0 %v7557
    %11104 = vmatprep.subr.bf16.mxu0 %v7546
    %11105 = vmatpush2.bf16.msra.mxu0 %v7545
    %11106 = vmatprep.subr.bf16.mxu0 %v7534
    %11107 = vmatpush2.bf16.msra.mxu0 %v7533
    %11108 = vmatprep.subr.bf16.mxu0 %v7522
    %11109 = vmatpush2.bf16.msra.mxu0 %v7521
    %11110 = vmatprep.subr.bf16.mxu0 %v7510
    %11111 = vmatpush2.bf16.msra.mxu0 %v7509
    %11112 = vmatprep.subr.bf16.mxu0 %v7498
    %11113 = vmatpush2.bf16.msra.mxu0 %v7497
    %11114 = vmatprep.subr.bf16.mxu0 %v7486
    %11115 = vmatpush2.bf16.msra.mxu0 %v7485
    %11116 = vmatprep.mubr.bf16.mxu0 %v1792
    %11117 = vmatmul.mubr.bf16.gmra.mxu0 %v1791
    %v11118 = vpop.f32.mrf.mxu0
    %v11119 = vadd.f32 %v11076, %v11118
    %v11120 = vpop.f32.mrf.mxu0
    %v11121 = vadd.f32 %v11078, %v11120
    %v11122 = vpop.f32.mrf.mxu0
    %v11123 = vadd.f32 %v11080, %v11122
    %v11124 = vpop.f32.mrf.mxu0
    %v11125 = vadd.f32 %v11082, %v11124
    %11126 = vdwg.mxu0
    %11127 = vmatprep.subr.bf16.mxu0 %v7666
    %11128 = vmatpush1.bf16.msra.mxu0 %v7665
    %11129 = vmatprep.subr.bf16.mxu0 %v7654
    %11130 = vmatpush1.bf16.msra.mxu0 %v7653
    %11131 = vmatprep.subr.bf16.mxu0 %v7642
    %11132 = vmatpush1.bf16.msra.mxu0 %v7641
    %11133 = vmatprep.subr.bf16.mxu0 %v7630
    %11134 = vmatpush1.bf16.msra.mxu0 %v7629
    %11135 = vmatprep.subr.bf16.mxu0 %v7618
    %11136 = vmatpush1.bf16.msra.mxu0 %v7617
    %11137 = vmatprep.subr.bf16.mxu0 %v7606
    %11138 = vmatpush1.bf16.msra.mxu0 %v7605
    %11139 = vmatprep.subr.bf16.mxu0 %v7594
    %11140 = vmatpush1.bf16.msra.mxu0 %v7593
    %11141 = vmatprep.subr.bf16.mxu0 %v7582
    %11142 = vmatpush1.bf16.msra.mxu0 %v7581
    %11143 = vmatprep.subr.bf16.mxu0 %v7762
    %11144 = vmatpush2.bf16.msra.mxu0 %v7761
    %11145 = vmatprep.subr.bf16.mxu0 %v7750
    %11146 = vmatpush2.bf16.msra.mxu0 %v7749
    %11147 = vmatprep.subr.bf16.mxu0 %v7738
    %11148 = vmatpush2.bf16.msra.mxu0 %v7737
    %11149 = vmatprep.subr.bf16.mxu0 %v7726
    %11150 = vmatpush2.bf16.msra.mxu0 %v7725
    %11151 = vmatprep.subr.bf16.mxu0 %v7714
    %11152 = vmatpush2.bf16.msra.mxu0 %v7713
    %11153 = vmatprep.subr.bf16.mxu0 %v7702
    %11154 = vmatpush2.bf16.msra.mxu0 %v7701
    %11155 = vmatprep.subr.bf16.mxu0 %v7690
    %11156 = vmatpush2.bf16.msra.mxu0 %v7689
    %11157 = vmatprep.subr.bf16.mxu0 %v7678
    %11158 = vmatpush2.bf16.msra.mxu0 %v7677
    %11159 = vmatprep.mubr.bf16.mxu0 %v1794
    %11160 = vmatmul.mubr.bf16.gmra.mxu0 %v1793
    %v11161 = vpop.f32.mrf.mxu0
    %v11162 = vadd.f32 %v11119, %v11161
    %v11163 = vpop.f32.mrf.mxu0
    %v11164 = vadd.f32 %v11121, %v11163
    %v11165 = vpop.f32.mrf.mxu0
    %v11166 = vadd.f32 %v11123, %v11165
    %v11167 = vpop.f32.mrf.mxu0
    %v11168 = vadd.f32 %v11125, %v11167
    %11169 = vdwg.mxu0
    %11170 = vmatprep.subr.bf16.mxu0 %v7858
    %11171 = vmatpush1.bf16.msra.mxu0 %v7857
    %11172 = vmatprep.subr.bf16.mxu0 %v7846
    %11173 = vmatpush1.bf16.msra.mxu0 %v7845
    %11174 = vmatprep.subr.bf16.mxu0 %v7834
    %11175 = vmatpush1.bf16.msra.mxu0 %v7833
    %11176 = vmatprep.subr.bf16.mxu0 %v7822
    %11177 = vmatpush1.bf16.msra.mxu0 %v7821
    %11178 = vmatprep.subr.bf16.mxu0 %v7810
    %11179 = vmatpush1.bf16.msra.mxu0 %v7809
    %11180 = vmatprep.subr.bf16.mxu0 %v7798
    %11181 = vmatpush1.bf16.msra.mxu0 %v7797
    %11182 = vmatprep.subr.bf16.mxu0 %v7786
    %11183 = vmatpush1.bf16.msra.mxu0 %v7785
    %11184 = vmatprep.subr.bf16.mxu0 %v7774
    %11185 = vmatpush1.bf16.msra.mxu0 %v7773
    %11186 = vmatprep.subr.bf16.mxu0 %v7954
    %11187 = vmatpush2.bf16.msra.mxu0 %v7953
    %11188 = vmatprep.subr.bf16.mxu0 %v7942
    %11189 = vmatpush2.bf16.msra.mxu0 %v7941
    %11190 = vmatprep.subr.bf16.mxu0 %v7930
    %11191 = vmatpush2.bf16.msra.mxu0 %v7929
    %11192 = vmatprep.subr.bf16.mxu0 %v7918
    %11193 = vmatpush2.bf16.msra.mxu0 %v7917
    %11194 = vmatprep.subr.bf16.mxu0 %v7906
    %11195 = vmatpush2.bf16.msra.mxu0 %v7905
    %11196 = vmatprep.subr.bf16.mxu0 %v7894
    %11197 = vmatpush2.bf16.msra.mxu0 %v7893
    %11198 = vmatprep.subr.bf16.mxu0 %v7882
    %11199 = vmatpush2.bf16.msra.mxu0 %v7881
    %11200 = vmatprep.subr.bf16.mxu0 %v7870
    %11201 = vmatpush2.bf16.msra.mxu0 %v7869
    %11202 = vmatprep.mubr.bf16.mxu0 %v1796
    %11203 = vmatmul.mubr.bf16.gmra.mxu0 %v1795
    %v11204 = vpop.f32.mrf.mxu0
    %v11205 = vadd.f32 %v11162, %v11204
    %v11206 = vpop.f32.mrf.mxu0
    %v11207 = vadd.f32 %v11164, %v11206
    %v11208 = vpop.f32.mrf.mxu0
    %v11209 = vadd.f32 %v11166, %v11208
    %v11210 = vpop.f32.mrf.mxu0
    %v11211 = vadd.f32 %v11168, %v11210
    %11212 = vdwg.mxu0
    %11213 = vmatprep.subr.bf16.mxu0 %v6516
    %11214 = vmatpush1.bf16.msra.mxu0 %v6515
    %11215 = vmatprep.subr.bf16.mxu0 %v6504
    %11216 = vmatpush1.bf16.msra.mxu0 %v6503
    %11217 = vmatprep.subr.bf16.mxu0 %v6492
    %11218 = vmatpush1.bf16.msra.mxu0 %v6491
    %11219 = vmatprep.subr.bf16.mxu0 %v6480
    %11220 = vmatpush1.bf16.msra.mxu0 %v6479
    %11221 = vmatprep.subr.bf16.mxu0 %v6468
    %11222 = vmatpush1.bf16.msra.mxu0 %v6467
    %11223 = vmatprep.subr.bf16.mxu0 %v6456
    %11224 = vmatpush1.bf16.msra.mxu0 %v6455
    %11225 = vmatprep.subr.bf16.mxu0 %v6444
    %11226 = vmatpush1.bf16.msra.mxu0 %v6443
    %11227 = vmatprep.subr.bf16.mxu0 %v6432
    %11228 = vmatpush1.bf16.msra.mxu0 %v6431
    %11229 = vmatprep.subr.bf16.mxu0 %v6612
    %11230 = vmatpush2.bf16.msra.mxu0 %v6611
    %11231 = vmatprep.subr.bf16.mxu0 %v6600
    %11232 = vmatpush2.bf16.msra.mxu0 %v6599
    %11233 = vmatprep.subr.bf16.mxu0 %v6588
    %11234 = vmatpush2.bf16.msra.mxu0 %v6587
    %11235 = vmatprep.subr.bf16.mxu0 %v6576
    %11236 = vmatpush2.bf16.msra.mxu0 %v6575
    %11237 = vmatprep.subr.bf16.mxu0 %v6564
    %11238 = vmatpush2.bf16.msra.mxu0 %v6563
    %11239 = vmatprep.subr.bf16.mxu0 %v6552
    %11240 = vmatpush2.bf16.msra.mxu0 %v6551
    %11241 = vmatprep.subr.bf16.mxu0 %v6540
    %11242 = vmatpush2.bf16.msra.mxu0 %v6539
    %11243 = vmatprep.subr.bf16.mxu0 %v6528
    %11244 = vmatpush2.bf16.msra.mxu0 %v6527
    %11245 = vmatprep.mubr.bf16.mxu0 %v1782
    %11246 = vmatmul.mubr.bf16.gmra.mxu0 %v1781
    %v11247 = vpop.f32.mrf.mxu0
    %v11248 = vadd.f32 %v1716, %v11247
    %v11249 = vpop.f32.mrf.mxu0
    %v11250 = vadd.f32 %v1720, %v11249
    %v11251 = vpop.f32.mrf.mxu0
    %v11252 = vadd.f32 %v1716, %v11251
    %v11253 = vpop.f32.mrf.mxu0
    %v11254 = vadd.f32 %v1720, %v11253
    %11255 = vdwg.mxu0
    %11256 = vmatprep.subr.bf16.mxu0 %v6708
    %11257 = vmatpush1.bf16.msra.mxu0 %v6707
    %11258 = vmatprep.subr.bf16.mxu0 %v6696
    %11259 = vmatpush1.bf16.msra.mxu0 %v6695
    %11260 = vmatprep.subr.bf16.mxu0 %v6684
    %11261 = vmatpush1.bf16.msra.mxu0 %v6683
    %11262 = vmatprep.subr.bf16.mxu0 %v6672
    %11263 = vmatpush1.bf16.msra.mxu0 %v6671
    %11264 = vmatprep.subr.bf16.mxu0 %v6660
    %11265 = vmatpush1.bf16.msra.mxu0 %v6659
    %11266 = vmatprep.subr.bf16.mxu0 %v6648
    %11267 = vmatpush1.bf16.msra.mxu0 %v6647
    %11268 = vmatprep.subr.bf16.mxu0 %v6636
    %11269 = vmatpush1.bf16.msra.mxu0 %v6635
    %11270 = vmatprep.subr.bf16.mxu0 %v6624
    %11271 = vmatpush1.bf16.msra.mxu0 %v6623
    %11272 = vmatprep.subr.bf16.mxu0 %v6804
    %11273 = vmatpush2.bf16.msra.mxu0 %v6803
    %11274 = vmatprep.subr.bf16.mxu0 %v6792
    %11275 = vmatpush2.bf16.msra.mxu0 %v6791
    %11276 = vmatprep.subr.bf16.mxu0 %v6780
    %11277 = vmatpush2.bf16.msra.mxu0 %v6779
    %11278 = vmatprep.subr.bf16.mxu0 %v6768
    %11279 = vmatpush2.bf16.msra.mxu0 %v6767
    %11280 = vmatprep.subr.bf16.mxu0 %v6756
    %11281 = vmatpush2.bf16.msra.mxu0 %v6755
    %11282 = vmatprep.subr.bf16.mxu0 %v6744
    %11283 = vmatpush2.bf16.msra.mxu0 %v6743
    %11284 = vmatprep.subr.bf16.mxu0 %v6732
    %11285 = vmatpush2.bf16.msra.mxu0 %v6731
    %11286 = vmatprep.subr.bf16.mxu0 %v6720
    %11287 = vmatpush2.bf16.msra.mxu0 %v6719
    %11288 = vmatprep.mubr.bf16.mxu0 %v1784
    %11289 = vmatmul.mubr.bf16.gmra.mxu0 %v1783
    %v11290 = vpop.f32.mrf.mxu0
    %v11291 = vadd.f32 %v11248, %v11290
    %v11292 = vpop.f32.mrf.mxu0
    %v11293 = vadd.f32 %v11250, %v11292
    %v11294 = vpop.f32.mrf.mxu0
    %v11295 = vadd.f32 %v11252, %v11294
    %v11296 = vpop.f32.mrf.mxu0
    %v11297 = vadd.f32 %v11254, %v11296
    %11298 = vdwg.mxu0
    %11299 = vmatprep.subr.bf16.mxu0 %v6900
    %11300 = vmatpush1.bf16.msra.mxu0 %v6899
    %11301 = vmatprep.subr.bf16.mxu0 %v6888
    %11302 = vmatpush1.bf16.msra.mxu0 %v6887
    %11303 = vmatprep.subr.bf16.mxu0 %v6876
    %11304 = vmatpush1.bf16.msra.mxu0 %v6875
    %11305 = vmatprep.subr.bf16.mxu0 %v6864
    %11306 = vmatpush1.bf16.msra.mxu0 %v6863
    %11307 = vmatprep.subr.bf16.mxu0 %v6852
    %11308 = vmatpush1.bf16.msra.mxu0 %v6851
    %11309 = vmatprep.subr.bf16.mxu0 %v6840
    %11310 = vmatpush1.bf16.msra.mxu0 %v6839
    %11311 = vmatprep.subr.bf16.mxu0 %v6828
    %11312 = vmatpush1.bf16.msra.mxu0 %v6827
    %11313 = vmatprep.subr.bf16.mxu0 %v6816
    %11314 = vmatpush1.bf16.msra.mxu0 %v6815
    %11315 = vmatprep.subr.bf16.mxu0 %v6996
    %11316 = vmatpush2.bf16.msra.mxu0 %v6995
    %11317 = vmatprep.subr.bf16.mxu0 %v6984
    %11318 = vmatpush2.bf16.msra.mxu0 %v6983
    %11319 = vmatprep.subr.bf16.mxu0 %v6972
    %11320 = vmatpush2.bf16.msra.mxu0 %v6971
    %11321 = vmatprep.subr.bf16.mxu0 %v6960
    %11322 = vmatpush2.bf16.msra.mxu0 %v6959
    %11323 = vmatprep.subr.bf16.mxu0 %v6948
    %11324 = vmatpush2.bf16.msra.mxu0 %v6947
    %11325 = vmatprep.subr.bf16.mxu0 %v6936
    %11326 = vmatpush2.bf16.msra.mxu0 %v6935
    %11327 = vmatprep.subr.bf16.mxu0 %v6924
    %11328 = vmatpush2.bf16.msra.mxu0 %v6923
    %11329 = vmatprep.subr.bf16.mxu0 %v6912
    %11330 = vmatpush2.bf16.msra.mxu0 %v6911
    %11331 = vmatprep.mubr.bf16.mxu0 %v1786
    %11332 = vmatmul.mubr.bf16.gmra.mxu0 %v1785
    %v11333 = vpop.f32.mrf.mxu0
    %v11334 = vadd.f32 %v11291, %v11333
    %v11335 = vpop.f32.mrf.mxu0
    %v11336 = vadd.f32 %v11293, %v11335
    %v11337 = vpop.f32.mrf.mxu0
    %v11338 = vadd.f32 %v11295, %v11337
    %v11339 = vpop.f32.mrf.mxu0
    %v11340 = vadd.f32 %v11297, %v11339
    %11341 = vdwg.mxu0
    %11342 = vmatprep.subr.bf16.mxu0 %v7092
    %11343 = vmatpush1.bf16.msra.mxu0 %v7091
    %11344 = vmatprep.subr.bf16.mxu0 %v7080
    %11345 = vmatpush1.bf16.msra.mxu0 %v7079
    %11346 = vmatprep.subr.bf16.mxu0 %v7068
    %11347 = vmatpush1.bf16.msra.mxu0 %v7067
    %11348 = vmatprep.subr.bf16.mxu0 %v7056
    %11349 = vmatpush1.bf16.msra.mxu0 %v7055
    %11350 = vmatprep.subr.bf16.mxu0 %v7044
    %11351 = vmatpush1.bf16.msra.mxu0 %v7043
    %11352 = vmatprep.subr.bf16.mxu0 %v7032
    %11353 = vmatpush1.bf16.msra.mxu0 %v7031
    %11354 = vmatprep.subr.bf16.mxu0 %v7020
    %11355 = vmatpush1.bf16.msra.mxu0 %v7019
    %11356 = vmatprep.subr.bf16.mxu0 %v7008
    %11357 = vmatpush1.bf16.msra.mxu0 %v7007
    %11358 = vmatprep.subr.bf16.mxu0 %v7188
    %11359 = vmatpush2.bf16.msra.mxu0 %v7187
    %11360 = vmatprep.subr.bf16.mxu0 %v7176
    %11361 = vmatpush2.bf16.msra.mxu0 %v7175
    %11362 = vmatprep.subr.bf16.mxu0 %v7164
    %11363 = vmatpush2.bf16.msra.mxu0 %v7163
    %11364 = vmatprep.subr.bf16.mxu0 %v7152
    %11365 = vmatpush2.bf16.msra.mxu0 %v7151
    %11366 = vmatprep.subr.bf16.mxu0 %v7140
    %11367 = vmatpush2.bf16.msra.mxu0 %v7139
    %11368 = vmatprep.subr.bf16.mxu0 %v7128
    %11369 = vmatpush2.bf16.msra.mxu0 %v7127
    %11370 = vmatprep.subr.bf16.mxu0 %v7116
    %11371 = vmatpush2.bf16.msra.mxu0 %v7115
    %11372 = vmatprep.subr.bf16.mxu0 %v7104
    %11373 = vmatpush2.bf16.msra.mxu0 %v7103
    %11374 = vmatprep.mubr.bf16.mxu0 %v1788
    %11375 = vmatmul.mubr.bf16.gmra.mxu0 %v1787
    %v11376 = vpop.f32.mrf.mxu0
    %v11377 = vadd.f32 %v11334, %v11376
    %v11378 = vpop.f32.mrf.mxu0
    %v11379 = vadd.f32 %v11336, %v11378
    %v11380 = vpop.f32.mrf.mxu0
    %v11381 = vadd.f32 %v11338, %v11380
    %v11382 = vpop.f32.mrf.mxu0
    %v11383 = vadd.f32 %v11340, %v11382
    %11384 = vdwg.mxu0
    %11385 = vmatprep.subr.bf16.mxu0 %v7284
    %11386 = vmatpush1.bf16.msra.mxu0 %v7283
    %11387 = vmatprep.subr.bf16.mxu0 %v7272
    %11388 = vmatpush1.bf16.msra.mxu0 %v7271
    %11389 = vmatprep.subr.bf16.mxu0 %v7260
    %11390 = vmatpush1.bf16.msra.mxu0 %v7259
    %11391 = vmatprep.subr.bf16.mxu0 %v7248
    %11392 = vmatpush1.bf16.msra.mxu0 %v7247
    %11393 = vmatprep.subr.bf16.mxu0 %v7236
    %11394 = vmatpush1.bf16.msra.mxu0 %v7235
    %11395 = vmatprep.subr.bf16.mxu0 %v7224
    %11396 = vmatpush1.bf16.msra.mxu0 %v7223
    %11397 = vmatprep.subr.bf16.mxu0 %v7212
    %11398 = vmatpush1.bf16.msra.mxu0 %v7211
    %11399 = vmatprep.subr.bf16.mxu0 %v7200
    %11400 = vmatpush1.bf16.msra.mxu0 %v7199
    %11401 = vmatprep.subr.bf16.mxu0 %v7380
    %11402 = vmatpush2.bf16.msra.mxu0 %v7379
    %11403 = vmatprep.subr.bf16.mxu0 %v7368
    %11404 = vmatpush2.bf16.msra.mxu0 %v7367
    %11405 = vmatprep.subr.bf16.mxu0 %v7356
    %11406 = vmatpush2.bf16.msra.mxu0 %v7355
    %11407 = vmatprep.subr.bf16.mxu0 %v7344
    %11408 = vmatpush2.bf16.msra.mxu0 %v7343
    %11409 = vmatprep.subr.bf16.mxu0 %v7332
    %11410 = vmatpush2.bf16.msra.mxu0 %v7331
    %11411 = vmatprep.subr.bf16.mxu0 %v7320
    %11412 = vmatpush2.bf16.msra.mxu0 %v7319
    %11413 = vmatprep.subr.bf16.mxu0 %v7308
    %11414 = vmatpush2.bf16.msra.mxu0 %v7307
    %11415 = vmatprep.subr.bf16.mxu0 %v7296
    %11416 = vmatpush2.bf16.msra.mxu0 %v7295
    %11417 = vmatprep.mubr.bf16.mxu0 %v1790
    %11418 = vmatmul.mubr.bf16.gmra.mxu0 %v1789
    %v11419 = vpop.f32.mrf.mxu0
    %v11420 = vadd.f32 %v11377, %v11419
    %v11421 = vpop.f32.mrf.mxu0
    %v11422 = vadd.f32 %v11379, %v11421
    %v11423 = vpop.f32.mrf.mxu0
    %v11424 = vadd.f32 %v11381, %v11423
    %v11425 = vpop.f32.mrf.mxu0
    %v11426 = vadd.f32 %v11383, %v11425
    %11427 = vdwg.mxu0
    %11428 = vmatprep.subr.bf16.mxu0 %v7476
    %11429 = vmatpush1.bf16.msra.mxu0 %v7475
    %11430 = vmatprep.subr.bf16.mxu0 %v7464
    %11431 = vmatpush1.bf16.msra.mxu0 %v7463
    %11432 = vmatprep.subr.bf16.mxu0 %v7452
    %11433 = vmatpush1.bf16.msra.mxu0 %v7451
    %11434 = vmatprep.subr.bf16.mxu0 %v7440
    %11435 = vmatpush1.bf16.msra.mxu0 %v7439
    %11436 = vmatprep.subr.bf16.mxu0 %v7428
    %11437 = vmatpush1.bf16.msra.mxu0 %v7427
    %11438 = vmatprep.subr.bf16.mxu0 %v7416
    %11439 = vmatpush1.bf16.msra.mxu0 %v7415
    %11440 = vmatprep.subr.bf16.mxu0 %v7404
    %11441 = vmatpush1.bf16.msra.mxu0 %v7403
    %11442 = vmatprep.subr.bf16.mxu0 %v7392
    %11443 = vmatpush1.bf16.msra.mxu0 %v7391
    %11444 = vmatprep.subr.bf16.mxu0 %v7572
    %11445 = vmatpush2.bf16.msra.mxu0 %v7571
    %11446 = vmatprep.subr.bf16.mxu0 %v7560
    %11447 = vmatpush2.bf16.msra.mxu0 %v7559
    %11448 = vmatprep.subr.bf16.mxu0 %v7548
    %11449 = vmatpush2.bf16.msra.mxu0 %v7547
    %11450 = vmatprep.subr.bf16.mxu0 %v7536
    %11451 = vmatpush2.bf16.msra.mxu0 %v7535
    %11452 = vmatprep.subr.bf16.mxu0 %v7524
    %11453 = vmatpush2.bf16.msra.mxu0 %v7523
    %11454 = vmatprep.subr.bf16.mxu0 %v7512
    %11455 = vmatpush2.bf16.msra.mxu0 %v7511
    %11456 = vmatprep.subr.bf16.mxu0 %v7500
    %11457 = vmatpush2.bf16.msra.mxu0 %v7499
    %11458 = vmatprep.subr.bf16.mxu0 %v7488
    %11459 = vmatpush2.bf16.msra.mxu0 %v7487
    %11460 = vmatprep.mubr.bf16.mxu0 %v1792
    %11461 = vmatmul.mubr.bf16.gmra.mxu0 %v1791
    %v11462 = vpop.f32.mrf.mxu0
    %v11463 = vadd.f32 %v11420, %v11462
    %v11464 = vpop.f32.mrf.mxu0
    %v11465 = vadd.f32 %v11422, %v11464
    %v11466 = vpop.f32.mrf.mxu0
    %v11467 = vadd.f32 %v11424, %v11466
    %v11468 = vpop.f32.mrf.mxu0
    %v11469 = vadd.f32 %v11426, %v11468
    %11470 = vdwg.mxu0
    %11471 = vmatprep.subr.bf16.mxu0 %v7668
    %11472 = vmatpush1.bf16.msra.mxu0 %v7667
    %11473 = vmatprep.subr.bf16.mxu0 %v7656
    %11474 = vmatpush1.bf16.msra.mxu0 %v7655
    %11475 = vmatprep.subr.bf16.mxu0 %v7644
    %11476 = vmatpush1.bf16.msra.mxu0 %v7643
    %11477 = vmatprep.subr.bf16.mxu0 %v7632
    %11478 = vmatpush1.bf16.msra.mxu0 %v7631
    %11479 = vmatprep.subr.bf16.mxu0 %v7620
    %11480 = vmatpush1.bf16.msra.mxu0 %v7619
    %11481 = vmatprep.subr.bf16.mxu0 %v7608
    %11482 = vmatpush1.bf16.msra.mxu0 %v7607
    %11483 = vmatprep.subr.bf16.mxu0 %v7596
    %11484 = vmatpush1.bf16.msra.mxu0 %v7595
    %11485 = vmatprep.subr.bf16.mxu0 %v7584
    %11486 = vmatpush1.bf16.msra.mxu0 %v7583
    %11487 = vmatprep.subr.bf16.mxu0 %v7764
    %11488 = vmatpush2.bf16.msra.mxu0 %v7763
    %11489 = vmatprep.subr.bf16.mxu0 %v7752
    %11490 = vmatpush2.bf16.msra.mxu0 %v7751
    %11491 = vmatprep.subr.bf16.mxu0 %v7740
    %11492 = vmatpush2.bf16.msra.mxu0 %v7739
    %11493 = vmatprep.subr.bf16.mxu0 %v7728
    %11494 = vmatpush2.bf16.msra.mxu0 %v7727
    %11495 = vmatprep.subr.bf16.mxu0 %v7716
    %11496 = vmatpush2.bf16.msra.mxu0 %v7715
    %11497 = vmatprep.subr.bf16.mxu0 %v7704
    %11498 = vmatpush2.bf16.msra.mxu0 %v7703
    %11499 = vmatprep.subr.bf16.mxu0 %v7692
    %11500 = vmatpush2.bf16.msra.mxu0 %v7691
    %11501 = vmatprep.subr.bf16.mxu0 %v7680
    %11502 = vmatpush2.bf16.msra.mxu0 %v7679
    %11503 = vmatprep.mubr.bf16.mxu0 %v1794
    %11504 = vmatmul.mubr.bf16.gmra.mxu0 %v1793
    %v11505 = vpop.f32.mrf.mxu0
    %v11506 = vadd.f32 %v11463, %v11505
    %v11507 = vpop.f32.mrf.mxu0
    %v11508 = vadd.f32 %v11465, %v11507
    %v11509 = vpop.f32.mrf.mxu0
    %v11510 = vadd.f32 %v11467, %v11509
    %v11511 = vpop.f32.mrf.mxu0
    %v11512 = vadd.f32 %v11469, %v11511
    %11513 = vdwg.mxu0
    %11514 = vmatprep.subr.bf16.mxu0 %v7860
    %11515 = vmatpush1.bf16.msra.mxu0 %v7859
    %11516 = vmatprep.subr.bf16.mxu0 %v7848
    %11517 = vmatpush1.bf16.msra.mxu0 %v7847
    %11518 = vmatprep.subr.bf16.mxu0 %v7836
    %11519 = vmatpush1.bf16.msra.mxu0 %v7835
    %11520 = vmatprep.subr.bf16.mxu0 %v7824
    %11521 = vmatpush1.bf16.msra.mxu0 %v7823
    %11522 = vmatprep.subr.bf16.mxu0 %v7812
    %11523 = vmatpush1.bf16.msra.mxu0 %v7811
    %11524 = vmatprep.subr.bf16.mxu0 %v7800
    %11525 = vmatpush1.bf16.msra.mxu0 %v7799
    %11526 = vmatprep.subr.bf16.mxu0 %v7788
    %11527 = vmatpush1.bf16.msra.mxu0 %v7787
    %11528 = vmatprep.subr.bf16.mxu0 %v7776
    %11529 = vmatpush1.bf16.msra.mxu0 %v7775
    %11530 = vmatprep.subr.bf16.mxu0 %v7956
    %11531 = vmatpush2.bf16.msra.mxu0 %v7955
    %11532 = vmatprep.subr.bf16.mxu0 %v7944
    %11533 = vmatpush2.bf16.msra.mxu0 %v7943
    %11534 = vmatprep.subr.bf16.mxu0 %v7932
    %11535 = vmatpush2.bf16.msra.mxu0 %v7931
    %11536 = vmatprep.subr.bf16.mxu0 %v7920
    %11537 = vmatpush2.bf16.msra.mxu0 %v7919
    %11538 = vmatprep.subr.bf16.mxu0 %v7908
    %11539 = vmatpush2.bf16.msra.mxu0 %v7907
    %11540 = vmatprep.subr.bf16.mxu0 %v7896
    %11541 = vmatpush2.bf16.msra.mxu0 %v7895
    %11542 = vmatprep.subr.bf16.mxu0 %v7884
    %11543 = vmatpush2.bf16.msra.mxu0 %v7883
    %11544 = vmatprep.subr.bf16.mxu0 %v7872
    %11545 = vmatpush2.bf16.msra.mxu0 %v7871
    %11546 = vmatprep.mubr.bf16.mxu0 %v1796
    %11547 = vmatmul.mubr.bf16.gmra.mxu0 %v1795
    %v11548 = vpop.f32.mrf.mxu0
    %v11549 = vadd.f32 %v11506, %v11548
    %v11550 = vpop.f32.mrf.mxu0
    %v11551 = vadd.f32 %v11508, %v11550
    %v11552 = vpop.f32.mrf.mxu0
    %v11553 = vadd.f32 %v11510, %v11552
    %v11554 = vpop.f32.mrf.mxu0
    %v11555 = vadd.f32 %v11512, %v11554
    %11556 = vdwg.mxu0
    %v11557 = vpack.c.bf16 %v9833, %v9829
    %v11558 = vpack.c.bf16 %v9835, %v9831
    %v11559 = vpack.c.bf16 %v10177, %v10173
    %v11560 = vpack.c.bf16 %v10179, %v10175
    %v11561 = vpack.c.bf16 %v10521, %v10517
    %v11562 = vpack.c.bf16 %v10523, %v10519
    %v11563 = vpack.c.bf16 %v10865, %v10861
    %v11564 = vpack.c.bf16 %v10867, %v10863
    %v11565 = vpack.c.bf16 %v11209, %v11205
    %v11566 = vpack.c.bf16 %v11211, %v11207
    %v11567 = vpack.c.bf16 %v11553, %v11549
    %v11568 = vpack.c.bf16 %v11555, %v11551
    %v11569 = vld [vmem:[#allocation8] sm:$0xff]
    %v11570 = vld [vmem:[#allocation8 + $0x8] sm:$0xf]
    %v11571 = vld [vmem:[#allocation8 + $0xc] sm:$0xff]
    %v11572 = vld [vmem:[#allocation8 + $0x14] sm:$0xf]
    %v11573 = vld [vmem:[#allocation8 + $0x18] sm:$0xff]
    %v11574 = vld [vmem:[#allocation8 + $0x20] sm:$0xf]
    %v11575 = vld [vmem:[#allocation8 + $0x24] sm:$0xff]
    %v11576 = vld [vmem:[#allocation8 + $0x2c] sm:$0xf]
    %v11577 = vld [vmem:[#allocation8 + $0x30] sm:$0xff]
    %v11578 = vld [vmem:[#allocation8 + $0x38] sm:$0xf]
    %v11579 = vld [vmem:[#allocation8 + $0x3c] sm:$0xff]
    %v11580 = vld [vmem:[#allocation8 + $0x44] sm:$0xf]
    %v11581 = vld [vmem:[#allocation8 + $0x48] sm:$0xff]
    %v11582 = vld [vmem:[#allocation8 + $0x50] sm:$0xf]
    %v11583 = vld [vmem:[#allocation8 + $0x54] sm:$0xff]
    %v11584 = vld [vmem:[#allocation8 + $0x5c] sm:$0xf]
    %v11585 = vld [vmem:[#allocation8 + $0x60] sm:$0xff]
    %v11586 = vld [vmem:[#allocation8 + $0x68] sm:$0xf]
    %v11587 = vld [vmem:[#allocation8 + $0x6c] sm:$0xff]
    %v11588 = vld [vmem:[#allocation8 + $0x74] sm:$0xf]
    %v11589 = vld [vmem:[#allocation8 + $0x78] sm:$0xff]
    %v11590 = vld [vmem:[#allocation8 + $0x80] sm:$0xf]
    %v11591 = vld [vmem:[#allocation8 + $0x84] sm:$0xff]
    %v11592 = vld [vmem:[#allocation8 + $0x8c] sm:$0xf]
    %v11593 = vld [vmem:[#allocation8 + $0x90] sm:$0xff]
    %v11594 = vld [vmem:[#allocation8 + $0x98] sm:$0xf]
    %v11595 = vld [vmem:[#allocation8 + $0x9c] sm:$0xff]
    %v11596 = vld [vmem:[#allocation8 + $0xa4] sm:$0xf]
    %v11597 = vld [vmem:[#allocation8 + $0xa8] sm:$0xff]
    %v11598 = vld [vmem:[#allocation8 + $0xb0] sm:$0xf]
    %v11599 = vld [vmem:[#allocation8 + $0xb4] sm:$0xff]
    %v11600 = vld [vmem:[#allocation8 + $0xbc] sm:$0xf]
    %v11601 = vld [vmem:[#allocation8 + $0xc0] sm:$0xff]
    %v11602 = vld [vmem:[#allocation8 + $0xc8] sm:$0xf]
    %v11603 = vld [vmem:[#allocation8 + $0xcc] sm:$0xff]
    %v11604 = vld [vmem:[#allocation8 + $0xd4] sm:$0xf]
    %v11605 = vld [vmem:[#allocation8 + $0xd8] sm:$0xff]
    %v11606 = vld [vmem:[#allocation8 + $0xe0] sm:$0xf]
    %v11607 = vld [vmem:[#allocation8 + $0xe4] sm:$0xff]
    %v11608 = vld [vmem:[#allocation8 + $0xec] sm:$0xf]
    %v11609 = vld [vmem:[#allocation8 + $0xf0] sm:$0xff]
    %v11610 = vld [vmem:[#allocation8 + $0xf8] sm:$0xf]
    %v11611 = vld [vmem:[#allocation8 + $0xfc] sm:$0xff]
    %v11612 = vld [vmem:[#allocation8 + $0x104] sm:$0xf]
    %v11613 = vld [vmem:[#allocation8 + $0x108] sm:$0xff]
    %v11614 = vld [vmem:[#allocation8 + $0x110] sm:$0xf]
    %v11615 = vld [vmem:[#allocation8 + $0x114] sm:$0xff]
    %v11616 = vld [vmem:[#allocation8 + $0x11c] sm:$0xf]
    %v11617 = vld [vmem:[#allocation8 + $0x120] sm:$0xff]
    %v11618 = vld [vmem:[#allocation8 + $0x128] sm:$0xf]
    %v11619 = vld [vmem:[#allocation8 + $0x12c] sm:$0xff]
    %v11620 = vld [vmem:[#allocation8 + $0x134] sm:$0xf]
    %v11621 = vld [vmem:[#allocation8 + $0x138] sm:$0xff]
    %v11622 = vld [vmem:[#allocation8 + $0x140] sm:$0xf]
    %v11623 = vld [vmem:[#allocation8 + $0x144] sm:$0xff]
    %v11624 = vld [vmem:[#allocation8 + $0x14c] sm:$0xf]
    %v11625 = vld [vmem:[#allocation8 + $0x150] sm:$0xff]
    %v11626 = vld [vmem:[#allocation8 + $0x158] sm:$0xf]
    %v11627 = vld [vmem:[#allocation8 + $0x15c] sm:$0xff]
    %v11628 = vld [vmem:[#allocation8 + $0x164] sm:$0xf]
    %v11629 = vld [vmem:[#allocation8 + $0x168] sm:$0xff]
    %v11630 = vld [vmem:[#allocation8 + $0x170] sm:$0xf]
    %v11631 = vld [vmem:[#allocation8 + $0x174] sm:$0xff]
    %v11632 = vld [vmem:[#allocation8 + $0x17c] sm:$0xf]
    %v11633 = vld [vmem:[#allocation8 + $0x180] sm:$0xff]
    %v11634 = vld [vmem:[#allocation8 + $0x188] sm:$0xf]
    %v11635 = vld [vmem:[#allocation8 + $0x18c] sm:$0xff]
    %v11636 = vld [vmem:[#allocation8 + $0x194] sm:$0xf]
    %v11637 = vld [vmem:[#allocation8 + $0x198] sm:$0xff]
    %v11638 = vld [vmem:[#allocation8 + $0x1a0] sm:$0xf]
    %v11639 = vld [vmem:[#allocation8 + $0x1a4] sm:$0xff]
    %v11640 = vld [vmem:[#allocation8 + $0x1ac] sm:$0xf]
    %v11641 = vld [vmem:[#allocation8 + $0x1b0] sm:$0xff]
    %v11642 = vld [vmem:[#allocation8 + $0x1b8] sm:$0xf]
    %v11643 = vld [vmem:[#allocation8 + $0x1bc] sm:$0xff]
    %v11644 = vld [vmem:[#allocation8 + $0x1c4] sm:$0xf]
    %v11645 = vld [vmem:[#allocation8 + $0x1c8] sm:$0xff]
    %v11646 = vld [vmem:[#allocation8 + $0x1d0] sm:$0xf]
    %v11647 = vld [vmem:[#allocation8 + $0x1d4] sm:$0xff]
    %v11648 = vld [vmem:[#allocation8 + $0x1dc] sm:$0xf]
    %v11649 = vld [vmem:[#allocation8 + $0x1e0] sm:$0xff]
    %v11650 = vld [vmem:[#allocation8 + $0x1e8] sm:$0xf]
    %v11651 = vld [vmem:[#allocation8 + $0x1ec] sm:$0xff]
    %v11652 = vld [vmem:[#allocation8 + $0x1f4] sm:$0xf]
    %v11653 = vld [vmem:[#allocation8 + $0x1f8] sm:$0xff]
    %v11654 = vld [vmem:[#allocation8 + $0x200] sm:$0xf]
    %v11655 = vld [vmem:[#allocation8 + $0x204] sm:$0xff]
    %v11656 = vld [vmem:[#allocation8 + $0x20c] sm:$0xf]
    %v11657 = vld [vmem:[#allocation8 + $0x210] sm:$0xff]
    %v11658 = vld [vmem:[#allocation8 + $0x218] sm:$0xf]
    %v11659 = vld [vmem:[#allocation8 + $0x21c] sm:$0xff]
    %v11660 = vld [vmem:[#allocation8 + $0x224] sm:$0xf]
    %v11661 = vld [vmem:[#allocation8 + $0x228] sm:$0xff]
    %v11662 = vld [vmem:[#allocation8 + $0x230] sm:$0xf]
    %v11663 = vld [vmem:[#allocation8 + $0x234] sm:$0xff]
    %v11664 = vld [vmem:[#allocation8 + $0x23c] sm:$0xf]
    %v11665 = vld [vmem:[#allocation8 + $0x240] sm:$0xff]
    %v11666 = vld [vmem:[#allocation8 + $0x248] sm:$0xf]
    %v11667 = vld [vmem:[#allocation8 + $0x24c] sm:$0xff]
    %v11668 = vld [vmem:[#allocation8 + $0x254] sm:$0xf]
    %v11669 = vld [vmem:[#allocation8 + $0x258] sm:$0xff]
    %v11670 = vld [vmem:[#allocation8 + $0x260] sm:$0xf]
    %v11671 = vld [vmem:[#allocation8 + $0x264] sm:$0xff]
    %v11672 = vld [vmem:[#allocation8 + $0x26c] sm:$0xf]
    %v11673 = vld [vmem:[#allocation8 + $0x270] sm:$0xff]
    %v11674 = vld [vmem:[#allocation8 + $0x278] sm:$0xf]
    %v11675 = vld [vmem:[#allocation8 + $0x27c] sm:$0xff]
    %v11676 = vld [vmem:[#allocation8 + $0x284] sm:$0xf]
    %v11677 = vld [vmem:[#allocation8 + $0x288] sm:$0xff]
    %v11678 = vld [vmem:[#allocation8 + $0x290] sm:$0xf]
    %v11679 = vld [vmem:[#allocation8 + $0x294] sm:$0xff]
    %v11680 = vld [vmem:[#allocation8 + $0x29c] sm:$0xf]
    %v11681 = vld [vmem:[#allocation8 + $0x2a0] sm:$0xff]
    %v11682 = vld [vmem:[#allocation8 + $0x2a8] sm:$0xf]
    %v11683 = vld [vmem:[#allocation8 + $0x2ac] sm:$0xff]
    %v11684 = vld [vmem:[#allocation8 + $0x2b4] sm:$0xf]
    %v11685 = vld [vmem:[#allocation8 + $0x2b8] sm:$0xff]
    %v11686 = vld [vmem:[#allocation8 + $0x2c0] sm:$0xf]
    %v11687 = vld [vmem:[#allocation8 + $0x2c4] sm:$0xff]
    %v11688 = vld [vmem:[#allocation8 + $0x2cc] sm:$0xf]
    %v11689 = vld [vmem:[#allocation8 + $0x2d0] sm:$0xff]
    %v11690 = vld [vmem:[#allocation8 + $0x2d8] sm:$0xf]
    %v11691 = vld [vmem:[#allocation8 + $0x2dc] sm:$0xff]
    %v11692 = vld [vmem:[#allocation8 + $0x2e4] sm:$0xf]
    %v11693 = vld [vmem:[#allocation8 + $0x2e8] sm:$0xff]
    %v11694 = vld [vmem:[#allocation8 + $0x2f0] sm:$0xf]
    %v11695 = vld [vmem:[#allocation8 + $0x2f4] sm:$0xff]
    %v11696 = vld [vmem:[#allocation8 + $0x2fc] sm:$0xf]
    %v11697 = vld [vmem:[#allocation8 + $0x300] sm:$0xff]
    %v11698 = vld [vmem:[#allocation8 + $0x308] sm:$0xf]
    %v11699 = vld [vmem:[#allocation8 + $0x30c] sm:$0xff]
    %v11700 = vld [vmem:[#allocation8 + $0x314] sm:$0xf]
    %v11701 = vld [vmem:[#allocation8 + $0x318] sm:$0xff]
    %v11702 = vld [vmem:[#allocation8 + $0x320] sm:$0xf]
    %v11703 = vld [vmem:[#allocation8 + $0x324] sm:$0xff]
    %v11704 = vld [vmem:[#allocation8 + $0x32c] sm:$0xf]
    %v11705 = vld [vmem:[#allocation8 + $0x330] sm:$0xff]
    %v11706 = vld [vmem:[#allocation8 + $0x338] sm:$0xf]
    %v11707 = vld [vmem:[#allocation8 + $0x33c] sm:$0xff]
    %v11708 = vld [vmem:[#allocation8 + $0x344] sm:$0xf]
    %v11709 = vld [vmem:[#allocation8 + $0x348] sm:$0xff]
    %v11710 = vld [vmem:[#allocation8 + $0x350] sm:$0xf]
    %v11711 = vld [vmem:[#allocation8 + $0x354] sm:$0xff]
    %v11712 = vld [vmem:[#allocation8 + $0x35c] sm:$0xf]
    %v11713 = vld [vmem:[#allocation8 + $0x360] sm:$0xff]
    %v11714 = vld [vmem:[#allocation8 + $0x368] sm:$0xf]
    %v11715 = vld [vmem:[#allocation8 + $0x36c] sm:$0xff]
    %v11716 = vld [vmem:[#allocation8 + $0x374] sm:$0xf]
    %v11717 = vld [vmem:[#allocation8 + $0x378] sm:$0xff]
    %v11718 = vld [vmem:[#allocation8 + $0x380] sm:$0xf]
    %v11719 = vld [vmem:[#allocation8 + $0x384] sm:$0xff]
    %v11720 = vld [vmem:[#allocation8 + $0x38c] sm:$0xf]
    %v11721 = vld [vmem:[#allocation8 + $0x390] sm:$0xff]
    %v11722 = vld [vmem:[#allocation8 + $0x398] sm:$0xf]
    %v11723 = vld [vmem:[#allocation8 + $0x39c] sm:$0xff]
    %v11724 = vld [vmem:[#allocation8 + $0x3a4] sm:$0xf]
    %v11725 = vld [vmem:[#allocation8 + $0x3a8] sm:$0xff]
    %v11726 = vld [vmem:[#allocation8 + $0x3b0] sm:$0xf]
    %v11727 = vld [vmem:[#allocation8 + $0x3b4] sm:$0xff]
    %v11728 = vld [vmem:[#allocation8 + $0x3bc] sm:$0xf]
    %v11729 = vld [vmem:[#allocation8 + $0x3c0] sm:$0xff]
    %v11730 = vld [vmem:[#allocation8 + $0x3c8] sm:$0xf]
    %v11731 = vld [vmem:[#allocation8 + $0x3cc] sm:$0xff]
    %v11732 = vld [vmem:[#allocation8 + $0x3d4] sm:$0xf]
    %v11733 = vld [vmem:[#allocation8 + $0x3d8] sm:$0xff]
    %v11734 = vld [vmem:[#allocation8 + $0x3e0] sm:$0xf]
    %v11735 = vld [vmem:[#allocation8 + $0x3e4] sm:$0xff]
    %v11736 = vld [vmem:[#allocation8 + $0x3ec] sm:$0xf]
    %v11737 = vld [vmem:[#allocation8 + $0x3f0] sm:$0xff]
    %v11738 = vld [vmem:[#allocation8 + $0x3f8] sm:$0xf]
    %v11739 = vld [vmem:[#allocation8 + $0x3fc] sm:$0xff]
    %v11740 = vld [vmem:[#allocation8 + $0x404] sm:$0xf]
    %v11741 = vld [vmem:[#allocation8 + $0x408] sm:$0xff]
    %v11742 = vld [vmem:[#allocation8 + $0x410] sm:$0xf]
    %v11743 = vld [vmem:[#allocation8 + $0x414] sm:$0xff]
    %v11744 = vld [vmem:[#allocation8 + $0x41c] sm:$0xf]
    %v11745 = vld [vmem:[#allocation8 + $0x420] sm:$0xff]
    %v11746 = vld [vmem:[#allocation8 + $0x428] sm:$0xf]
    %v11747 = vld [vmem:[#allocation8 + $0x42c] sm:$0xff]
    %v11748 = vld [vmem:[#allocation8 + $0x434] sm:$0xf]
    %v11749 = vld [vmem:[#allocation8 + $0x438] sm:$0xff]
    %v11750 = vld [vmem:[#allocation8 + $0x440] sm:$0xf]
    %v11751 = vld [vmem:[#allocation8 + $0x444] sm:$0xff]
    %v11752 = vld [vmem:[#allocation8 + $0x44c] sm:$0xf]
    %v11753 = vld [vmem:[#allocation8 + $0x450] sm:$0xff]
    %v11754 = vld [vmem:[#allocation8 + $0x458] sm:$0xf]
    %v11755 = vld [vmem:[#allocation8 + $0x45c] sm:$0xff]
    %v11756 = vld [vmem:[#allocation8 + $0x464] sm:$0xf]
    %v11757 = vld [vmem:[#allocation8 + $0x468] sm:$0xff]
    %v11758 = vld [vmem:[#allocation8 + $0x470] sm:$0xf]
    %v11759 = vld [vmem:[#allocation8 + $0x474] sm:$0xff]
    %v11760 = vld [vmem:[#allocation8 + $0x47c] sm:$0xf]
    %v11761 = vld [vmem:[#allocation8 + $0x480] sm:$0xff]
    %v11762 = vld [vmem:[#allocation8 + $0x488] sm:$0xf]
    %v11763 = vld [vmem:[#allocation8 + $0x48c] sm:$0xff]
    %v11764 = vld [vmem:[#allocation8 + $0x494] sm:$0xf]
    %v11765 = vld [vmem:[#allocation8 + $0x498] sm:$0xff]
    %v11766 = vld [vmem:[#allocation8 + $0x4a0] sm:$0xf]
    %v11767 = vld [vmem:[#allocation8 + $0x4a4] sm:$0xff]
    %v11768 = vld [vmem:[#allocation8 + $0x4ac] sm:$0xf]
    %v11769 = vld [vmem:[#allocation8 + $0x4b0] sm:$0xff]
    %v11770 = vld [vmem:[#allocation8 + $0x4b8] sm:$0xf]
    %v11771 = vld [vmem:[#allocation8 + $0x4bc] sm:$0xff]
    %v11772 = vld [vmem:[#allocation8 + $0x4c4] sm:$0xf]
    %v11773 = vld [vmem:[#allocation8 + $0x4c8] sm:$0xff]
    %v11774 = vld [vmem:[#allocation8 + $0x4d0] sm:$0xf]
    %v11775 = vld [vmem:[#allocation8 + $0x4d4] sm:$0xff]
    %v11776 = vld [vmem:[#allocation8 + $0x4dc] sm:$0xf]
    %v11777 = vld [vmem:[#allocation8 + $0x4e0] sm:$0xff]
    %v11778 = vld [vmem:[#allocation8 + $0x4e8] sm:$0xf]
    %v11779 = vld [vmem:[#allocation8 + $0x4ec] sm:$0xff]
    %v11780 = vld [vmem:[#allocation8 + $0x4f4] sm:$0xf]
    %v11781 = vld [vmem:[#allocation8 + $0x4f8] sm:$0xff]
    %v11782 = vld [vmem:[#allocation8 + $0x500] sm:$0xf]
    %v11783 = vld [vmem:[#allocation8 + $0x504] sm:$0xff]
    %v11784 = vld [vmem:[#allocation8 + $0x50c] sm:$0xf]
    %v11785 = vld [vmem:[#allocation8 + $0x510] sm:$0xff]
    %v11786 = vld [vmem:[#allocation8 + $0x518] sm:$0xf]
    %v11787 = vld [vmem:[#allocation8 + $0x51c] sm:$0xff]
    %v11788 = vld [vmem:[#allocation8 + $0x524] sm:$0xf]
    %v11789 = vld [vmem:[#allocation8 + $0x528] sm:$0xff]
    %v11790 = vld [vmem:[#allocation8 + $0x530] sm:$0xf]
    %v11791 = vld [vmem:[#allocation8 + $0x534] sm:$0xff]
    %v11792 = vld [vmem:[#allocation8 + $0x53c] sm:$0xf]
    %v11793 = vld [vmem:[#allocation8 + $0x540] sm:$0xff]
    %v11794 = vld [vmem:[#allocation8 + $0x548] sm:$0xf]
    %v11795 = vld [vmem:[#allocation8 + $0x54c] sm:$0xff]
    %v11796 = vld [vmem:[#allocation8 + $0x554] sm:$0xf]
    %v11797 = vld [vmem:[#allocation8 + $0x558] sm:$0xff]
    %v11798 = vld [vmem:[#allocation8 + $0x560] sm:$0xf]
    %v11799 = vld [vmem:[#allocation8 + $0x564] sm:$0xff]
    %v11800 = vld [vmem:[#allocation8 + $0x56c] sm:$0xf]
    %v11801 = vld [vmem:[#allocation8 + $0x570] sm:$0xff]
    %v11802 = vld [vmem:[#allocation8 + $0x578] sm:$0xf]
    %v11803 = vld [vmem:[#allocation8 + $0x57c] sm:$0xff]
    %v11804 = vld [vmem:[#allocation8 + $0x584] sm:$0xf]
    %v11805 = vld [vmem:[#allocation8 + $0x588] sm:$0xff]
    %v11806 = vld [vmem:[#allocation8 + $0x590] sm:$0xf]
    %v11807 = vld [vmem:[#allocation8 + $0x594] sm:$0xff]
    %v11808 = vld [vmem:[#allocation8 + $0x59c] sm:$0xf]
    %v11809 = vld [vmem:[#allocation8 + $0x5a0] sm:$0xff]
    %v11810 = vld [vmem:[#allocation8 + $0x5a8] sm:$0xf]
    %v11811 = vld [vmem:[#allocation8 + $0x5ac] sm:$0xff]
    %v11812 = vld [vmem:[#allocation8 + $0x5b4] sm:$0xf]
    %v11813 = vld [vmem:[#allocation8 + $0x5b8] sm:$0xff]
    %v11814 = vld [vmem:[#allocation8 + $0x5c0] sm:$0xf]
    %v11815 = vld [vmem:[#allocation8 + $0x5c4] sm:$0xff]
    %v11816 = vld [vmem:[#allocation8 + $0x5cc] sm:$0xf]
    %v11817 = vld [vmem:[#allocation8 + $0x5d0] sm:$0xff]
    %v11818 = vld [vmem:[#allocation8 + $0x5d8] sm:$0xf]
    %v11819 = vld [vmem:[#allocation8 + $0x5dc] sm:$0xff]
    %v11820 = vld [vmem:[#allocation8 + $0x5e4] sm:$0xf]
    %v11821 = vld [vmem:[#allocation8 + $0x5e8] sm:$0xff]
    %v11822 = vld [vmem:[#allocation8 + $0x5f0] sm:$0xf]
    %v11823 = vld [vmem:[#allocation8 + $0x5f4] sm:$0xff]
    %v11824 = vld [vmem:[#allocation8 + $0x5fc] sm:$0xf]
    %v11825 = vld [vmem:[#allocation8 + $0x600] sm:$0xff]
    %v11826 = vld [vmem:[#allocation8 + $0x608] sm:$0xf]
    %v11827 = vld [vmem:[#allocation8 + $0x60c] sm:$0xff]
    %v11828 = vld [vmem:[#allocation8 + $0x614] sm:$0xf]
    %v11829 = vld [vmem:[#allocation8 + $0x618] sm:$0xff]
    %v11830 = vld [vmem:[#allocation8 + $0x620] sm:$0xf]
    %v11831 = vld [vmem:[#allocation8 + $0x624] sm:$0xff]
    %v11832 = vld [vmem:[#allocation8 + $0x62c] sm:$0xf]
    %v11833 = vld [vmem:[#allocation8 + $0x630] sm:$0xff]
    %v11834 = vld [vmem:[#allocation8 + $0x638] sm:$0xf]
    %v11835 = vld [vmem:[#allocation8 + $0x63c] sm:$0xff]
    %v11836 = vld [vmem:[#allocation8 + $0x644] sm:$0xf]
    %v11837 = vld [vmem:[#allocation8 + $0x648] sm:$0xff]
    %v11838 = vld [vmem:[#allocation8 + $0x650] sm:$0xf]
    %v11839 = vld [vmem:[#allocation8 + $0x654] sm:$0xff]
    %v11840 = vld [vmem:[#allocation8 + $0x65c] sm:$0xf]
    %v11841 = vld [vmem:[#allocation8 + $0x660] sm:$0xff]
    %v11842 = vld [vmem:[#allocation8 + $0x668] sm:$0xf]
    %v11843 = vld [vmem:[#allocation8 + $0x66c] sm:$0xff]
    %v11844 = vld [vmem:[#allocation8 + $0x674] sm:$0xf]
    %v11845 = vld [vmem:[#allocation8 + $0x678] sm:$0xff]
    %v11846 = vld [vmem:[#allocation8 + $0x680] sm:$0xf]
    %v11847 = vld [vmem:[#allocation8 + $0x684] sm:$0xff]
    %v11848 = vld [vmem:[#allocation8 + $0x68c] sm:$0xf]
    %v11849 = vld [vmem:[#allocation8 + $0x690] sm:$0xff]
    %v11850 = vld [vmem:[#allocation8 + $0x698] sm:$0xf]
    %v11851 = vld [vmem:[#allocation8 + $0x69c] sm:$0xff]
    %v11852 = vld [vmem:[#allocation8 + $0x6a4] sm:$0xf]
    %v11853 = vld [vmem:[#allocation8 + $0x6a8] sm:$0xff]
    %v11854 = vld [vmem:[#allocation8 + $0x6b0] sm:$0xf]
    %v11855 = vld [vmem:[#allocation8 + $0x6b4] sm:$0xff]
    %v11856 = vld [vmem:[#allocation8 + $0x6bc] sm:$0xf]
    %v11857 = vld [vmem:[#allocation8 + $0x6c0] sm:$0xff]
    %v11858 = vld [vmem:[#allocation8 + $0x6c8] sm:$0xf]
    %v11859 = vld [vmem:[#allocation8 + $0x6cc] sm:$0xff]
    %v11860 = vld [vmem:[#allocation8 + $0x6d4] sm:$0xf]
    %v11861 = vld [vmem:[#allocation8 + $0x6d8] sm:$0xff]
    %v11862 = vld [vmem:[#allocation8 + $0x6e0] sm:$0xf]
    %v11863 = vld [vmem:[#allocation8 + $0x6e4] sm:$0xff]
    %v11864 = vld [vmem:[#allocation8 + $0x6ec] sm:$0xf]
    %v11865 = vld [vmem:[#allocation8 + $0x6f0] sm:$0xff]
    %v11866 = vld [vmem:[#allocation8 + $0x6f8] sm:$0xf]
    %v11867 = vld [vmem:[#allocation8 + $0x6fc] sm:$0xff]
    %v11868 = vld [vmem:[#allocation8 + $0x704] sm:$0xf]
    %v11869 = vld [vmem:[#allocation8 + $0x708] sm:$0xff]
    %v11870 = vld [vmem:[#allocation8 + $0x710] sm:$0xf]
    %v11871 = vld [vmem:[#allocation8 + $0x714] sm:$0xff]
    %v11872 = vld [vmem:[#allocation8 + $0x71c] sm:$0xf]
    %v11873 = vld [vmem:[#allocation8 + $0x720] sm:$0xff]
    %v11874 = vld [vmem:[#allocation8 + $0x728] sm:$0xf]
    %v11875 = vld [vmem:[#allocation8 + $0x72c] sm:$0xff]
    %v11876 = vld [vmem:[#allocation8 + $0x734] sm:$0xf]
    %v11877 = vld [vmem:[#allocation8 + $0x738] sm:$0xff]
    %v11878 = vld [vmem:[#allocation8 + $0x740] sm:$0xf]
    %v11879 = vld [vmem:[#allocation8 + $0x744] sm:$0xff]
    %v11880 = vld [vmem:[#allocation8 + $0x74c] sm:$0xf]
    %v11881 = vld [vmem:[#allocation8 + $0x750] sm:$0xff]
    %v11882 = vld [vmem:[#allocation8 + $0x758] sm:$0xf]
    %v11883 = vld [vmem:[#allocation8 + $0x75c] sm:$0xff]
    %v11884 = vld [vmem:[#allocation8 + $0x764] sm:$0xf]
    %v11885 = vld [vmem:[#allocation8 + $0x768] sm:$0xff]
    %v11886 = vld [vmem:[#allocation8 + $0x770] sm:$0xf]
    %v11887 = vld [vmem:[#allocation8 + $0x774] sm:$0xff]
    %v11888 = vld [vmem:[#allocation8 + $0x77c] sm:$0xf]
    %v11889 = vld [vmem:[#allocation8 + $0x780] sm:$0xff]
    %v11890 = vld [vmem:[#allocation8 + $0x788] sm:$0xf]
    %v11891 = vld [vmem:[#allocation8 + $0x78c] sm:$0xff]
    %v11892 = vld [vmem:[#allocation8 + $0x794] sm:$0xf]
    %v11893 = vld [vmem:[#allocation8 + $0x798] sm:$0xff]
    %v11894 = vld [vmem:[#allocation8 + $0x7a0] sm:$0xf]
    %v11895 = vld [vmem:[#allocation8 + $0x7a4] sm:$0xff]
    %v11896 = vld [vmem:[#allocation8 + $0x7ac] sm:$0xf]
    %v11897 = vld [vmem:[#allocation8 + $0x7b0] sm:$0xff]
    %v11898 = vld [vmem:[#allocation8 + $0x7b8] sm:$0xf]
    %v11899 = vld [vmem:[#allocation8 + $0x7bc] sm:$0xff]
    %v11900 = vld [vmem:[#allocation8 + $0x7c4] sm:$0xf]
    %v11901 = vld [vmem:[#allocation8 + $0x7c8] sm:$0xff]
    %v11902 = vld [vmem:[#allocation8 + $0x7d0] sm:$0xf]
    %v11903 = vld [vmem:[#allocation8 + $0x7d4] sm:$0xff]
    %v11904 = vld [vmem:[#allocation8 + $0x7dc] sm:$0xf]
    %v11905 = vld [vmem:[#allocation8 + $0x7e0] sm:$0xff]
    %v11906 = vld [vmem:[#allocation8 + $0x7e8] sm:$0xf]
    %v11907 = vld [vmem:[#allocation8 + $0x7ec] sm:$0xff]
    %v11908 = vld [vmem:[#allocation8 + $0x7f4] sm:$0xf]
    %v11909 = vld [vmem:[#allocation8 + $0x7f8] sm:$0xff]
    %v11910 = vld [vmem:[#allocation8 + $0x800] sm:$0xf]
    %v11911 = vld [vmem:[#allocation8 + $0x804] sm:$0xff]
    %v11912 = vld [vmem:[#allocation8 + $0x80c] sm:$0xf]
    %v11913 = vld [vmem:[#allocation8 + $0x810] sm:$0xff]
    %v11914 = vld [vmem:[#allocation8 + $0x818] sm:$0xf]
    %v11915 = vld [vmem:[#allocation8 + $0x81c] sm:$0xff]
    %v11916 = vld [vmem:[#allocation8 + $0x824] sm:$0xf]
    %v11917 = vld [vmem:[#allocation8 + $0x828] sm:$0xff]
    %v11918 = vld [vmem:[#allocation8 + $0x830] sm:$0xf]
    %v11919 = vld [vmem:[#allocation8 + $0x834] sm:$0xff]
    %v11920 = vld [vmem:[#allocation8 + $0x83c] sm:$0xf]
    %v11921 = vld [vmem:[#allocation8 + $0x840] sm:$0xff]
    %v11922 = vld [vmem:[#allocation8 + $0x848] sm:$0xf]
    %v11923 = vld [vmem:[#allocation8 + $0x84c] sm:$0xff]
    %v11924 = vld [vmem:[#allocation8 + $0x854] sm:$0xf]
    %v11925 = vld [vmem:[#allocation8 + $0x858] sm:$0xff]
    %v11926 = vld [vmem:[#allocation8 + $0x860] sm:$0xf]
    %v11927 = vld [vmem:[#allocation8 + $0x864] sm:$0xff]
    %v11928 = vld [vmem:[#allocation8 + $0x86c] sm:$0xf]
    %v11929 = vld [vmem:[#allocation8 + $0x870] sm:$0xff]
    %v11930 = vld [vmem:[#allocation8 + $0x878] sm:$0xf]
    %v11931 = vld [vmem:[#allocation8 + $0x87c] sm:$0xff]
    %v11932 = vld [vmem:[#allocation8 + $0x884] sm:$0xf]
    %v11933 = vld [vmem:[#allocation8 + $0x888] sm:$0xff]
    %v11934 = vld [vmem:[#allocation8 + $0x890] sm:$0xf]
    %v11935 = vld [vmem:[#allocation8 + $0x894] sm:$0xff]
    %v11936 = vld [vmem:[#allocation8 + $0x89c] sm:$0xf]
    %v11937 = vld [vmem:[#allocation8 + $0x8a0] sm:$0xff]
    %v11938 = vld [vmem:[#allocation8 + $0x8a8] sm:$0xf]
    %v11939 = vld [vmem:[#allocation8 + $0x8ac] sm:$0xff]
    %v11940 = vld [vmem:[#allocation8 + $0x8b4] sm:$0xf]
    %v11941 = vld [vmem:[#allocation8 + $0x8b8] sm:$0xff]
    %v11942 = vld [vmem:[#allocation8 + $0x8c0] sm:$0xf]
    %v11943 = vld [vmem:[#allocation8 + $0x8c4] sm:$0xff]
    %v11944 = vld [vmem:[#allocation8 + $0x8cc] sm:$0xf]
    %v11945 = vld [vmem:[#allocation8 + $0x8d0] sm:$0xff]
    %v11946 = vld [vmem:[#allocation8 + $0x8d8] sm:$0xf]
    %v11947 = vld [vmem:[#allocation8 + $0x8dc] sm:$0xff]
    %v11948 = vld [vmem:[#allocation8 + $0x8e4] sm:$0xf]
    %v11949 = vld [vmem:[#allocation8 + $0x8e8] sm:$0xff]
    %v11950 = vld [vmem:[#allocation8 + $0x8f0] sm:$0xf]
    %v11951 = vld [vmem:[#allocation8 + $0x8f4] sm:$0xff]
    %v11952 = vld [vmem:[#allocation8 + $0x8fc] sm:$0xf]
    %v11953 = vld [vmem:[#allocation10] sm:$0x7]
    %v11955 = vlaneseq
    %v11956 = vshrl.u32 %v11955, 7
    %v11957 = vsub.s32 0, %v11956
    %v11958 = vrot.slane %v11953, %v11957
    %v11959 = vlaneseq
    %v11960 = vshrl.u32 %v11959, 7
    %v11961 = vsub.s32 1, %v11960
    %v11962 = vrot.slane %v11953, %v11961
    %v11963 = vlaneseq
    %v11964 = vshrl.u32 %v11963, 7
    %v11965 = vsub.s32 2, %v11964
    %v11966 = vrot.slane %v11953, %v11965
    %v12354 = vunpack.c.l.b16 %v11569
    %v12355 = vunpack.c.h.b16 %v11569
    %v12356 = vunpack.c.l.b16 %v11570
    %v12357 = vunpack.c.l.b16 %v11571
    %v12358 = vunpack.c.h.b16 %v11571
    %v12359 = vunpack.c.l.b16 %v11572
    %v12360 = vunpack.c.l.b16 %v11573
    %v12361 = vunpack.c.h.b16 %v11573
    %v12362 = vunpack.c.l.b16 %v11574
    %v12363 = vunpack.c.l.b16 %v11575
    %v12364 = vunpack.c.h.b16 %v11575
    %v12365 = vunpack.c.l.b16 %v11576
    %v12366 = vunpack.c.l.b16 %v11577
    %v12367 = vunpack.c.h.b16 %v11577
    %v12368 = vunpack.c.l.b16 %v11578
    %v12369 = vunpack.c.l.b16 %v11579
    %v12370 = vunpack.c.h.b16 %v11579
    %v12371 = vunpack.c.l.b16 %v11580
    %v12372 = vunpack.c.l.b16 %v11581
    %v12373 = vunpack.c.h.b16 %v11581
    %v12374 = vunpack.c.l.b16 %v11582
    %v12375 = vunpack.c.l.b16 %v11583
    %v12376 = vunpack.c.h.b16 %v11583
    %v12377 = vunpack.c.l.b16 %v11584
    %v12378 = vunpack.c.l.b16 %v11585
    %v12379 = vunpack.c.h.b16 %v11585
    %v12380 = vunpack.c.l.b16 %v11586
    %v12381 = vunpack.c.l.b16 %v11587
    %v12382 = vunpack.c.h.b16 %v11587
    %v12383 = vunpack.c.l.b16 %v11588
    %v12384 = vunpack.c.l.b16 %v11589
    %v12385 = vunpack.c.h.b16 %v11589
    %v12386 = vunpack.c.l.b16 %v11590
    %v12387 = vunpack.c.l.b16 %v11591
    %v12388 = vunpack.c.h.b16 %v11591
    %v12389 = vunpack.c.l.b16 %v11592
    %v12390 = vunpack.c.l.b16 %v11593
    %v12391 = vunpack.c.h.b16 %v11593
    %v12392 = vunpack.c.l.b16 %v11594
    %v12393 = vunpack.c.l.b16 %v11595
    %v12394 = vunpack.c.h.b16 %v11595
    %v12395 = vunpack.c.l.b16 %v11596
    %v12396 = vunpack.c.l.b16 %v11597
    %v12397 = vunpack.c.h.b16 %v11597
    %v12398 = vunpack.c.l.b16 %v11598
    %v12399 = vunpack.c.l.b16 %v11599
    %v12400 = vunpack.c.h.b16 %v11599
    %v12401 = vunpack.c.l.b16 %v11600
    %v12402 = vunpack.c.l.b16 %v11601
    %v12403 = vunpack.c.h.b16 %v11601
    %v12404 = vunpack.c.l.b16 %v11602
    %v12405 = vunpack.c.l.b16 %v11603
    %v12406 = vunpack.c.h.b16 %v11603
    %v12407 = vunpack.c.l.b16 %v11604
    %v12408 = vunpack.c.l.b16 %v11605
    %v12409 = vunpack.c.h.b16 %v11605
    %v12410 = vunpack.c.l.b16 %v11606
    %v12411 = vunpack.c.l.b16 %v11607
    %v12412 = vunpack.c.h.b16 %v11607
    %v12413 = vunpack.c.l.b16 %v11608
    %v12414 = vunpack.c.l.b16 %v11609
    %v12415 = vunpack.c.h.b16 %v11609
    %v12416 = vunpack.c.l.b16 %v11610
    %v12417 = vunpack.c.l.b16 %v11611
    %v12418 = vunpack.c.h.b16 %v11611
    %v12419 = vunpack.c.l.b16 %v11612
    %v12420 = vunpack.c.l.b16 %v11613
    %v12421 = vunpack.c.h.b16 %v11613
    %v12422 = vunpack.c.l.b16 %v11614
    %v12423 = vunpack.c.l.b16 %v11615
    %v12424 = vunpack.c.h.b16 %v11615
    %v12425 = vunpack.c.l.b16 %v11616
    %v12426 = vunpack.c.l.b16 %v11617
    %v12427 = vunpack.c.h.b16 %v11617
    %v12428 = vunpack.c.l.b16 %v11618
    %v12429 = vunpack.c.l.b16 %v11619
    %v12430 = vunpack.c.h.b16 %v11619
    %v12431 = vunpack.c.l.b16 %v11620
    %v12432 = vunpack.c.l.b16 %v11621
    %v12433 = vunpack.c.h.b16 %v11621
    %v12434 = vunpack.c.l.b16 %v11622
    %v12435 = vunpack.c.l.b16 %v11623
    %v12436 = vunpack.c.h.b16 %v11623
    %v12437 = vunpack.c.l.b16 %v11624
    %v12438 = vunpack.c.l.b16 %v11625
    %v12439 = vunpack.c.h.b16 %v11625
    %v12440 = vunpack.c.l.b16 %v11626
    %v12441 = vunpack.c.l.b16 %v11627
    %v12442 = vunpack.c.h.b16 %v11627
    %v12443 = vunpack.c.l.b16 %v11628
    %v12444 = vunpack.c.l.b16 %v11629
    %v12445 = vunpack.c.h.b16 %v11629
    %v12446 = vunpack.c.l.b16 %v11630
    %v12447 = vunpack.c.l.b16 %v11631
    %v12448 = vunpack.c.h.b16 %v11631
    %v12449 = vunpack.c.l.b16 %v11632
    %v12450 = vunpack.c.l.b16 %v11633
    %v12451 = vunpack.c.h.b16 %v11633
    %v12452 = vunpack.c.l.b16 %v11634
    %v12453 = vunpack.c.l.b16 %v11635
    %v12454 = vunpack.c.h.b16 %v11635
    %v12455 = vunpack.c.l.b16 %v11636
    %v12456 = vunpack.c.l.b16 %v11637
    %v12457 = vunpack.c.h.b16 %v11637
    %v12458 = vunpack.c.l.b16 %v11638
    %v12459 = vunpack.c.l.b16 %v11639
    %v12460 = vunpack.c.h.b16 %v11639
    %v12461 = vunpack.c.l.b16 %v11640
    %v12462 = vunpack.c.l.b16 %v11641
    %v12463 = vunpack.c.h.b16 %v11641
    %v12464 = vunpack.c.l.b16 %v11642
    %v12465 = vunpack.c.l.b16 %v11643
    %v12466 = vunpack.c.h.b16 %v11643
    %v12467 = vunpack.c.l.b16 %v11644
    %v12468 = vunpack.c.l.b16 %v11645
    %v12469 = vunpack.c.h.b16 %v11645
    %v12470 = vunpack.c.l.b16 %v11646
    %v12471 = vunpack.c.l.b16 %v11647
    %v12472 = vunpack.c.h.b16 %v11647
    %v12473 = vunpack.c.l.b16 %v11648
    %v12474 = vunpack.c.l.b16 %v11649
    %v12475 = vunpack.c.h.b16 %v11649
    %v12476 = vunpack.c.l.b16 %v11650
    %v12477 = vunpack.c.l.b16 %v11651
    %v12478 = vunpack.c.h.b16 %v11651
    %v12479 = vunpack.c.l.b16 %v11652
    %v12480 = vunpack.c.l.b16 %v11653
    %v12481 = vunpack.c.h.b16 %v11653
    %v12482 = vunpack.c.l.b16 %v11654
    %v12483 = vunpack.c.l.b16 %v11655
    %v12484 = vunpack.c.h.b16 %v11655
    %v12485 = vunpack.c.l.b16 %v11656
    %v12486 = vunpack.c.l.b16 %v11657
    %v12487 = vunpack.c.h.b16 %v11657
    %v12488 = vunpack.c.l.b16 %v11658
    %v12489 = vunpack.c.l.b16 %v11659
    %v12490 = vunpack.c.h.b16 %v11659
    %v12491 = vunpack.c.l.b16 %v11660
    %v12492 = vunpack.c.l.b16 %v11661
    %v12493 = vunpack.c.h.b16 %v11661
    %v12494 = vunpack.c.l.b16 %v11662
    %v12495 = vunpack.c.l.b16 %v11663
    %v12496 = vunpack.c.h.b16 %v11663
    %v12497 = vunpack.c.l.b16 %v11664
    %v12498 = vunpack.c.l.b16 %v11665
    %v12499 = vunpack.c.h.b16 %v11665
    %v12500 = vunpack.c.l.b16 %v11666
    %v12501 = vunpack.c.l.b16 %v11667
    %v12502 = vunpack.c.h.b16 %v11667
    %v12503 = vunpack.c.l.b16 %v11668
    %v12504 = vunpack.c.l.b16 %v11669
    %v12505 = vunpack.c.h.b16 %v11669
    %v12506 = vunpack.c.l.b16 %v11670
    %v12507 = vunpack.c.l.b16 %v11671
    %v12508 = vunpack.c.h.b16 %v11671
    %v12509 = vunpack.c.l.b16 %v11672
    %v12510 = vunpack.c.l.b16 %v11673
    %v12511 = vunpack.c.h.b16 %v11673
    %v12512 = vunpack.c.l.b16 %v11674
    %v12513 = vunpack.c.l.b16 %v11675
    %v12514 = vunpack.c.h.b16 %v11675
    %v12515 = vunpack.c.l.b16 %v11676
    %v12516 = vunpack.c.l.b16 %v11677
    %v12517 = vunpack.c.h.b16 %v11677
    %v12518 = vunpack.c.l.b16 %v11678
    %v12519 = vunpack.c.l.b16 %v11679
    %v12520 = vunpack.c.h.b16 %v11679
    %v12521 = vunpack.c.l.b16 %v11680
    %v12522 = vunpack.c.l.b16 %v11681
    %v12523 = vunpack.c.h.b16 %v11681
    %v12524 = vunpack.c.l.b16 %v11682
    %v12525 = vunpack.c.l.b16 %v11683
    %v12526 = vunpack.c.h.b16 %v11683
    %v12527 = vunpack.c.l.b16 %v11684
    %v12528 = vunpack.c.l.b16 %v11685
    %v12529 = vunpack.c.h.b16 %v11685
    %v12530 = vunpack.c.l.b16 %v11686
    %v12531 = vunpack.c.l.b16 %v11687
    %v12532 = vunpack.c.h.b16 %v11687
    %v12533 = vunpack.c.l.b16 %v11688
    %v12534 = vunpack.c.l.b16 %v11689
    %v12535 = vunpack.c.h.b16 %v11689
    %v12536 = vunpack.c.l.b16 %v11690
    %v12537 = vunpack.c.l.b16 %v11691
    %v12538 = vunpack.c.h.b16 %v11691
    %v12539 = vunpack.c.l.b16 %v11692
    %v12540 = vunpack.c.l.b16 %v11693
    %v12541 = vunpack.c.h.b16 %v11693
    %v12542 = vunpack.c.l.b16 %v11694
    %v12543 = vunpack.c.l.b16 %v11695
    %v12544 = vunpack.c.h.b16 %v11695
    %v12545 = vunpack.c.l.b16 %v11696
    %v12546 = vunpack.c.l.b16 %v11697
    %v12547 = vunpack.c.h.b16 %v11697
    %v12548 = vunpack.c.l.b16 %v11698
    %v12549 = vunpack.c.l.b16 %v11699
    %v12550 = vunpack.c.h.b16 %v11699
    %v12551 = vunpack.c.l.b16 %v11700
    %v12552 = vunpack.c.l.b16 %v11701
    %v12553 = vunpack.c.h.b16 %v11701
    %v12554 = vunpack.c.l.b16 %v11702
    %v12555 = vunpack.c.l.b16 %v11703
    %v12556 = vunpack.c.h.b16 %v11703
    %v12557 = vunpack.c.l.b16 %v11704
    %v12558 = vunpack.c.l.b16 %v11705
    %v12559 = vunpack.c.h.b16 %v11705
    %v12560 = vunpack.c.l.b16 %v11706
    %v12561 = vunpack.c.l.b16 %v11707
    %v12562 = vunpack.c.h.b16 %v11707
    %v12563 = vunpack.c.l.b16 %v11708
    %v12564 = vunpack.c.l.b16 %v11709
    %v12565 = vunpack.c.h.b16 %v11709
    %v12566 = vunpack.c.l.b16 %v11710
    %v12567 = vunpack.c.l.b16 %v11711
    %v12568 = vunpack.c.h.b16 %v11711
    %v12569 = vunpack.c.l.b16 %v11712
    %v12570 = vunpack.c.l.b16 %v11713
    %v12571 = vunpack.c.h.b16 %v11713
    %v12572 = vunpack.c.l.b16 %v11714
    %v12573 = vunpack.c.l.b16 %v11715
    %v12574 = vunpack.c.h.b16 %v11715
    %v12575 = vunpack.c.l.b16 %v11716
    %v12576 = vunpack.c.l.b16 %v11717
    %v12577 = vunpack.c.h.b16 %v11717
    %v12578 = vunpack.c.l.b16 %v11718
    %v12579 = vunpack.c.l.b16 %v11719
    %v12580 = vunpack.c.h.b16 %v11719
    %v12581 = vunpack.c.l.b16 %v11720
    %v12582 = vunpack.c.l.b16 %v11721
    %v12583 = vunpack.c.h.b16 %v11721
    %v12584 = vunpack.c.l.b16 %v11722
    %v12585 = vunpack.c.l.b16 %v11723
    %v12586 = vunpack.c.h.b16 %v11723
    %v12587 = vunpack.c.l.b16 %v11724
    %v12588 = vunpack.c.l.b16 %v11725
    %v12589 = vunpack.c.h.b16 %v11725
    %v12590 = vunpack.c.l.b16 %v11726
    %v12591 = vunpack.c.l.b16 %v11727
    %v12592 = vunpack.c.h.b16 %v11727
    %v12593 = vunpack.c.l.b16 %v11728
    %v12594 = vunpack.c.l.b16 %v11729
    %v12595 = vunpack.c.h.b16 %v11729
    %v12596 = vunpack.c.l.b16 %v11730
    %v12597 = vunpack.c.l.b16 %v11731
    %v12598 = vunpack.c.h.b16 %v11731
    %v12599 = vunpack.c.l.b16 %v11732
    %v12600 = vunpack.c.l.b16 %v11733
    %v12601 = vunpack.c.h.b16 %v11733
    %v12602 = vunpack.c.l.b16 %v11734
    %v12603 = vunpack.c.l.b16 %v11735
    %v12604 = vunpack.c.h.b16 %v11735
    %v12605 = vunpack.c.l.b16 %v11736
    %v12606 = vunpack.c.l.b16 %v11737
    %v12607 = vunpack.c.h.b16 %v11737
    %v12608 = vunpack.c.l.b16 %v11738
    %v12609 = vunpack.c.l.b16 %v11739
    %v12610 = vunpack.c.h.b16 %v11739
    %v12611 = vunpack.c.l.b16 %v11740
    %v12612 = vunpack.c.l.b16 %v11741
    %v12613 = vunpack.c.h.b16 %v11741
    %v12614 = vunpack.c.l.b16 %v11742
    %v12615 = vunpack.c.l.b16 %v11743
    %v12616 = vunpack.c.h.b16 %v11743
    %v12617 = vunpack.c.l.b16 %v11744
    %v12618 = vunpack.c.l.b16 %v11745
    %v12619 = vunpack.c.h.b16 %v11745
    %v12620 = vunpack.c.l.b16 %v11746
    %v12621 = vunpack.c.l.b16 %v11747
    %v12622 = vunpack.c.h.b16 %v11747
    %v12623 = vunpack.c.l.b16 %v11748
    %v12624 = vunpack.c.l.b16 %v11749
    %v12625 = vunpack.c.h.b16 %v11749
    %v12626 = vunpack.c.l.b16 %v11750
    %v12627 = vunpack.c.l.b16 %v11751
    %v12628 = vunpack.c.h.b16 %v11751
    %v12629 = vunpack.c.l.b16 %v11752
    %v12630 = vunpack.c.l.b16 %v11753
    %v12631 = vunpack.c.h.b16 %v11753
    %v12632 = vunpack.c.l.b16 %v11754
    %v12633 = vunpack.c.l.b16 %v11755
    %v12634 = vunpack.c.h.b16 %v11755
    %v12635 = vunpack.c.l.b16 %v11756
    %v12636 = vunpack.c.l.b16 %v11757
    %v12637 = vunpack.c.h.b16 %v11757
    %v12638 = vunpack.c.l.b16 %v11758
    %v12639 = vunpack.c.l.b16 %v11759
    %v12640 = vunpack.c.h.b16 %v11759
    %v12641 = vunpack.c.l.b16 %v11760
    %v12642 = vunpack.c.l.b16 %v11761
    %v12643 = vunpack.c.h.b16 %v11761
    %v12644 = vunpack.c.l.b16 %v11762
    %v12645 = vunpack.c.l.b16 %v11763
    %v12646 = vunpack.c.h.b16 %v11763
    %v12647 = vunpack.c.l.b16 %v11764
    %v12648 = vunpack.c.l.b16 %v11765
    %v12649 = vunpack.c.h.b16 %v11765
    %v12650 = vunpack.c.l.b16 %v11766
    %v12651 = vunpack.c.l.b16 %v11767
    %v12652 = vunpack.c.h.b16 %v11767
    %v12653 = vunpack.c.l.b16 %v11768
    %v12654 = vunpack.c.l.b16 %v11769
    %v12655 = vunpack.c.h.b16 %v11769
    %v12656 = vunpack.c.l.b16 %v11770
    %v12657 = vunpack.c.l.b16 %v11771
    %v12658 = vunpack.c.h.b16 %v11771
    %v12659 = vunpack.c.l.b16 %v11772
    %v12660 = vunpack.c.l.b16 %v11773
    %v12661 = vunpack.c.h.b16 %v11773
    %v12662 = vunpack.c.l.b16 %v11774
    %v12663 = vunpack.c.l.b16 %v11775
    %v12664 = vunpack.c.h.b16 %v11775
    %v12665 = vunpack.c.l.b16 %v11776
    %v12666 = vunpack.c.l.b16 %v11777
    %v12667 = vunpack.c.h.b16 %v11777
    %v12668 = vunpack.c.l.b16 %v11778
    %v12669 = vunpack.c.l.b16 %v11779
    %v12670 = vunpack.c.h.b16 %v11779
    %v12671 = vunpack.c.l.b16 %v11780
    %v12672 = vunpack.c.l.b16 %v11781
    %v12673 = vunpack.c.h.b16 %v11781
    %v12674 = vunpack.c.l.b16 %v11782
    %v12675 = vunpack.c.l.b16 %v11783
    %v12676 = vunpack.c.h.b16 %v11783
    %v12677 = vunpack.c.l.b16 %v11784
    %v12678 = vunpack.c.l.b16 %v11785
    %v12679 = vunpack.c.h.b16 %v11785
    %v12680 = vunpack.c.l.b16 %v11786
    %v12681 = vunpack.c.l.b16 %v11787
    %v12682 = vunpack.c.h.b16 %v11787
    %v12683 = vunpack.c.l.b16 %v11788
    %v12684 = vunpack.c.l.b16 %v11789
    %v12685 = vunpack.c.h.b16 %v11789
    %v12686 = vunpack.c.l.b16 %v11790
    %v12687 = vunpack.c.l.b16 %v11791
    %v12688 = vunpack.c.h.b16 %v11791
    %v12689 = vunpack.c.l.b16 %v11792
    %v12690 = vunpack.c.l.b16 %v11793
    %v12691 = vunpack.c.h.b16 %v11793
    %v12692 = vunpack.c.l.b16 %v11794
    %v12693 = vunpack.c.l.b16 %v11795
    %v12694 = vunpack.c.h.b16 %v11795
    %v12695 = vunpack.c.l.b16 %v11796
    %v12696 = vunpack.c.l.b16 %v11797
    %v12697 = vunpack.c.h.b16 %v11797
    %v12698 = vunpack.c.l.b16 %v11798
    %v12699 = vunpack.c.l.b16 %v11799
    %v12700 = vunpack.c.h.b16 %v11799
    %v12701 = vunpack.c.l.b16 %v11800
    %v12702 = vunpack.c.l.b16 %v11801
    %v12703 = vunpack.c.h.b16 %v11801
    %v12704 = vunpack.c.l.b16 %v11802
    %v12705 = vunpack.c.l.b16 %v11803
    %v12706 = vunpack.c.h.b16 %v11803
    %v12707 = vunpack.c.l.b16 %v11804
    %v12708 = vunpack.c.l.b16 %v11805
    %v12709 = vunpack.c.h.b16 %v11805
    %v12710 = vunpack.c.l.b16 %v11806
    %v12711 = vunpack.c.l.b16 %v11807
    %v12712 = vunpack.c.h.b16 %v11807
    %v12713 = vunpack.c.l.b16 %v11808
    %v12714 = vunpack.c.l.b16 %v11809
    %v12715 = vunpack.c.h.b16 %v11809
    %v12716 = vunpack.c.l.b16 %v11810
    %v12717 = vunpack.c.l.b16 %v11811
    %v12718 = vunpack.c.h.b16 %v11811
    %v12719 = vunpack.c.l.b16 %v11812
    %v12720 = vunpack.c.l.b16 %v11813
    %v12721 = vunpack.c.h.b16 %v11813
    %v12722 = vunpack.c.l.b16 %v11814
    %v12723 = vunpack.c.l.b16 %v11815
    %v12724 = vunpack.c.h.b16 %v11815
    %v12725 = vunpack.c.l.b16 %v11816
    %v12726 = vunpack.c.l.b16 %v11817
    %v12727 = vunpack.c.h.b16 %v11817
    %v12728 = vunpack.c.l.b16 %v11818
    %v12729 = vunpack.c.l.b16 %v11819
    %v12730 = vunpack.c.h.b16 %v11819
    %v12731 = vunpack.c.l.b16 %v11820
    %v12732 = vunpack.c.l.b16 %v11821
    %v12733 = vunpack.c.h.b16 %v11821
    %v12734 = vunpack.c.l.b16 %v11822
    %v12735 = vunpack.c.l.b16 %v11823
    %v12736 = vunpack.c.h.b16 %v11823
    %v12737 = vunpack.c.l.b16 %v11824
    %v12738 = vunpack.c.l.b16 %v11825
    %v12739 = vunpack.c.h.b16 %v11825
    %v12740 = vunpack.c.l.b16 %v11826
    %v12741 = vunpack.c.l.b16 %v11827
    %v12742 = vunpack.c.h.b16 %v11827
    %v12743 = vunpack.c.l.b16 %v11828
    %v12744 = vunpack.c.l.b16 %v11829
    %v12745 = vunpack.c.h.b16 %v11829
    %v12746 = vunpack.c.l.b16 %v11830
    %v12747 = vunpack.c.l.b16 %v11831
    %v12748 = vunpack.c.h.b16 %v11831
    %v12749 = vunpack.c.l.b16 %v11832
    %v12750 = vunpack.c.l.b16 %v11833
    %v12751 = vunpack.c.h.b16 %v11833
    %v12752 = vunpack.c.l.b16 %v11834
    %v12753 = vunpack.c.l.b16 %v11835
    %v12754 = vunpack.c.h.b16 %v11835
    %v12755 = vunpack.c.l.b16 %v11836
    %v12756 = vunpack.c.l.b16 %v11837
    %v12757 = vunpack.c.h.b16 %v11837
    %v12758 = vunpack.c.l.b16 %v11838
    %v12759 = vunpack.c.l.b16 %v11839
    %v12760 = vunpack.c.h.b16 %v11839
    %v12761 = vunpack.c.l.b16 %v11840
    %v12762 = vunpack.c.l.b16 %v11841
    %v12763 = vunpack.c.h.b16 %v11841
    %v12764 = vunpack.c.l.b16 %v11842
    %v12765 = vunpack.c.l.b16 %v11843
    %v12766 = vunpack.c.h.b16 %v11843
    %v12767 = vunpack.c.l.b16 %v11844
    %v12768 = vunpack.c.l.b16 %v11845
    %v12769 = vunpack.c.h.b16 %v11845
    %v12770 = vunpack.c.l.b16 %v11846
    %v12771 = vunpack.c.l.b16 %v11847
    %v12772 = vunpack.c.h.b16 %v11847
    %v12773 = vunpack.c.l.b16 %v11848
    %v12774 = vunpack.c.l.b16 %v11849
    %v12775 = vunpack.c.h.b16 %v11849
    %v12776 = vunpack.c.l.b16 %v11850
    %v12777 = vunpack.c.l.b16 %v11851
    %v12778 = vunpack.c.h.b16 %v11851
    %v12779 = vunpack.c.l.b16 %v11852
    %v12780 = vunpack.c.l.b16 %v11853
    %v12781 = vunpack.c.h.b16 %v11853
    %v12782 = vunpack.c.l.b16 %v11854
    %v12783 = vunpack.c.l.b16 %v11855
    %v12784 = vunpack.c.h.b16 %v11855
    %v12785 = vunpack.c.l.b16 %v11856
    %v12786 = vunpack.c.l.b16 %v11857
    %v12787 = vunpack.c.h.b16 %v11857
    %v12788 = vunpack.c.l.b16 %v11858
    %v12789 = vunpack.c.l.b16 %v11859
    %v12790 = vunpack.c.h.b16 %v11859
    %v12791 = vunpack.c.l.b16 %v11860
    %v12792 = vunpack.c.l.b16 %v11861
    %v12793 = vunpack.c.h.b16 %v11861
    %v12794 = vunpack.c.l.b16 %v11862
    %v12795 = vunpack.c.l.b16 %v11863
    %v12796 = vunpack.c.h.b16 %v11863
    %v12797 = vunpack.c.l.b16 %v11864
    %v12798 = vunpack.c.l.b16 %v11865
    %v12799 = vunpack.c.h.b16 %v11865
    %v12800 = vunpack.c.l.b16 %v11866
    %v12801 = vunpack.c.l.b16 %v11867
    %v12802 = vunpack.c.h.b16 %v11867
    %v12803 = vunpack.c.l.b16 %v11868
    %v12804 = vunpack.c.l.b16 %v11869
    %v12805 = vunpack.c.h.b16 %v11869
    %v12806 = vunpack.c.l.b16 %v11870
    %v12807 = vunpack.c.l.b16 %v11871
    %v12808 = vunpack.c.h.b16 %v11871
    %v12809 = vunpack.c.l.b16 %v11872
    %v12810 = vunpack.c.l.b16 %v11873
    %v12811 = vunpack.c.h.b16 %v11873
    %v12812 = vunpack.c.l.b16 %v11874
    %v12813 = vunpack.c.l.b16 %v11875
    %v12814 = vunpack.c.h.b16 %v11875
    %v12815 = vunpack.c.l.b16 %v11876
    %v12816 = vunpack.c.l.b16 %v11877
    %v12817 = vunpack.c.h.b16 %v11877
    %v12818 = vunpack.c.l.b16 %v11878
    %v12819 = vunpack.c.l.b16 %v11879
    %v12820 = vunpack.c.h.b16 %v11879
    %v12821 = vunpack.c.l.b16 %v11880
    %v12822 = vunpack.c.l.b16 %v11881
    %v12823 = vunpack.c.h.b16 %v11881
    %v12824 = vunpack.c.l.b16 %v11882
    %v12825 = vunpack.c.l.b16 %v11883
    %v12826 = vunpack.c.h.b16 %v11883
    %v12827 = vunpack.c.l.b16 %v11884
    %v12828 = vunpack.c.l.b16 %v11885
    %v12829 = vunpack.c.h.b16 %v11885
    %v12830 = vunpack.c.l.b16 %v11886
    %v12831 = vunpack.c.l.b16 %v11887
    %v12832 = vunpack.c.h.b16 %v11887
    %v12833 = vunpack.c.l.b16 %v11888
    %v12834 = vunpack.c.l.b16 %v11889
    %v12835 = vunpack.c.h.b16 %v11889
    %v12836 = vunpack.c.l.b16 %v11890
    %v12837 = vunpack.c.l.b16 %v11891
    %v12838 = vunpack.c.h.b16 %v11891
    %v12839 = vunpack.c.l.b16 %v11892
    %v12840 = vunpack.c.l.b16 %v11893
    %v12841 = vunpack.c.h.b16 %v11893
    %v12842 = vunpack.c.l.b16 %v11894
    %v12843 = vunpack.c.l.b16 %v11895
    %v12844 = vunpack.c.h.b16 %v11895
    %v12845 = vunpack.c.l.b16 %v11896
    %v12846 = vunpack.c.l.b16 %v11897
    %v12847 = vunpack.c.h.b16 %v11897
    %v12848 = vunpack.c.l.b16 %v11898
    %v12849 = vunpack.c.l.b16 %v11899
    %v12850 = vunpack.c.h.b16 %v11899
    %v12851 = vunpack.c.l.b16 %v11900
    %v12852 = vunpack.c.l.b16 %v11901
    %v12853 = vunpack.c.h.b16 %v11901
    %v12854 = vunpack.c.l.b16 %v11902
    %v12855 = vunpack.c.l.b16 %v11903
    %v12856 = vunpack.c.h.b16 %v11903
    %v12857 = vunpack.c.l.b16 %v11904
    %v12858 = vunpack.c.l.b16 %v11905
    %v12859 = vunpack.c.h.b16 %v11905
    %v12860 = vunpack.c.l.b16 %v11906
    %v12861 = vunpack.c.l.b16 %v11907
    %v12862 = vunpack.c.h.b16 %v11907
    %v12863 = vunpack.c.l.b16 %v11908
    %v12864 = vunpack.c.l.b16 %v11909
    %v12865 = vunpack.c.h.b16 %v11909
    %v12866 = vunpack.c.l.b16 %v11910
    %v12867 = vunpack.c.l.b16 %v11911
    %v12868 = vunpack.c.h.b16 %v11911
    %v12869 = vunpack.c.l.b16 %v11912
    %v12870 = vunpack.c.l.b16 %v11913
    %v12871 = vunpack.c.h.b16 %v11913
    %v12872 = vunpack.c.l.b16 %v11914
    %v12873 = vunpack.c.l.b16 %v11915
    %v12874 = vunpack.c.h.b16 %v11915
    %v12875 = vunpack.c.l.b16 %v11916
    %v12876 = vunpack.c.l.b16 %v11917
    %v12877 = vunpack.c.h.b16 %v11917
    %v12878 = vunpack.c.l.b16 %v11918
    %v12879 = vunpack.c.l.b16 %v11919
    %v12880 = vunpack.c.h.b16 %v11919
    %v12881 = vunpack.c.l.b16 %v11920
    %v12882 = vunpack.c.l.b16 %v11921
    %v12883 = vunpack.c.h.b16 %v11921
    %v12884 = vunpack.c.l.b16 %v11922
    %v12885 = vunpack.c.l.b16 %v11923
    %v12886 = vunpack.c.h.b16 %v11923
    %v12887 = vunpack.c.l.b16 %v11924
    %v12888 = vunpack.c.l.b16 %v11925
    %v12889 = vunpack.c.h.b16 %v11925
    %v12890 = vunpack.c.l.b16 %v11926
    %v12891 = vunpack.c.l.b16 %v11927
    %v12892 = vunpack.c.h.b16 %v11927
    %v12893 = vunpack.c.l.b16 %v11928
    %v12894 = vunpack.c.l.b16 %v11929
    %v12895 = vunpack.c.h.b16 %v11929
    %v12896 = vunpack.c.l.b16 %v11930
    %v12897 = vunpack.c.l.b16 %v11931
    %v12898 = vunpack.c.h.b16 %v11931
    %v12899 = vunpack.c.l.b16 %v11932
    %v12900 = vunpack.c.l.b16 %v11933
    %v12901 = vunpack.c.h.b16 %v11933
    %v12902 = vunpack.c.l.b16 %v11934
    %v12903 = vunpack.c.l.b16 %v11935
    %v12904 = vunpack.c.h.b16 %v11935
    %v12905 = vunpack.c.l.b16 %v11936
    %v12906 = vunpack.c.l.b16 %v11937
    %v12907 = vunpack.c.h.b16 %v11937
    %v12908 = vunpack.c.l.b16 %v11938
    %v12909 = vunpack.c.l.b16 %v11939
    %v12910 = vunpack.c.h.b16 %v11939
    %v12911 = vunpack.c.l.b16 %v11940
    %v12912 = vunpack.c.l.b16 %v11941
    %v12913 = vunpack.c.h.b16 %v11941
    %v12914 = vunpack.c.l.b16 %v11942
    %v12915 = vunpack.c.l.b16 %v11943
    %v12916 = vunpack.c.h.b16 %v11943
    %v12917 = vunpack.c.l.b16 %v11944
    %v12918 = vunpack.c.l.b16 %v11945
    %v12919 = vunpack.c.h.b16 %v11945
    %v12920 = vunpack.c.l.b16 %v11946
    %v12921 = vunpack.c.l.b16 %v11947
    %v12922 = vunpack.c.h.b16 %v11947
    %v12923 = vunpack.c.l.b16 %v11948
    %v12924 = vunpack.c.l.b16 %v11949
    %v12925 = vunpack.c.h.b16 %v11949
    %v12926 = vunpack.c.l.b16 %v11950
    %v12927 = vunpack.c.l.b16 %v11951
    %v12928 = vunpack.c.h.b16 %v11951
    %v12929 = vunpack.c.l.b16 %v11952
    %v12930 = vpack.c.b16 %v12357, %v12354
    %v12931 = vpack.c.b16 %v12358, %v12355
    %v12932 = vpack.c.b16 %v12359, %v12356
    %v12933 = vpack.c.b16 %v12363, %v12360
    %v12934 = vpack.c.b16 %v12364, %v12361
    %v12935 = vpack.c.b16 %v12365, %v12362
    %v12936 = vpack.c.b16 %v12369, %v12366
    %v12937 = vpack.c.b16 %v12370, %v12367
    %v12938 = vpack.c.b16 %v12371, %v12368
    %v12939 = vpack.c.b16 %v12375, %v12372
    %v12940 = vpack.c.b16 %v12376, %v12373
    %v12941 = vpack.c.b16 %v12377, %v12374
    %v12942 = vpack.c.b16 %v12381, %v12378
    %v12943 = vpack.c.b16 %v12382, %v12379
    %v12944 = vpack.c.b16 %v12383, %v12380
    %v12945 = vpack.c.b16 %v12387, %v12384
    %v12946 = vpack.c.b16 %v12388, %v12385
    %v12947 = vpack.c.b16 %v12389, %v12386
    %v12948 = vpack.c.b16 %v12393, %v12390
    %v12949 = vpack.c.b16 %v12394, %v12391
    %v12950 = vpack.c.b16 %v12395, %v12392
    %v12951 = vpack.c.b16 %v12399, %v12396
    %v12952 = vpack.c.b16 %v12400, %v12397
    %v12953 = vpack.c.b16 %v12401, %v12398
    %v12954 = vpack.c.b16 %v12405, %v12402
    %v12955 = vpack.c.b16 %v12406, %v12403
    %v12956 = vpack.c.b16 %v12407, %v12404
    %v12957 = vpack.c.b16 %v12411, %v12408
    %v12958 = vpack.c.b16 %v12412, %v12409
    %v12959 = vpack.c.b16 %v12413, %v12410
    %v12960 = vpack.c.b16 %v12417, %v12414
    %v12961 = vpack.c.b16 %v12418, %v12415
    %v12962 = vpack.c.b16 %v12419, %v12416
    %v12963 = vpack.c.b16 %v12423, %v12420
    %v12964 = vpack.c.b16 %v12424, %v12421
    %v12965 = vpack.c.b16 %v12425, %v12422
    %v12966 = vpack.c.b16 %v12429, %v12426
    %v12967 = vpack.c.b16 %v12430, %v12427
    %v12968 = vpack.c.b16 %v12431, %v12428
    %v12969 = vpack.c.b16 %v12435, %v12432
    %v12970 = vpack.c.b16 %v12436, %v12433
    %v12971 = vpack.c.b16 %v12437, %v12434
    %v12972 = vpack.c.b16 %v12441, %v12438
    %v12973 = vpack.c.b16 %v12442, %v12439
    %v12974 = vpack.c.b16 %v12443, %v12440
    %v12975 = vpack.c.b16 %v12447, %v12444
    %v12976 = vpack.c.b16 %v12448, %v12445
    %v12977 = vpack.c.b16 %v12449, %v12446
    %v12978 = vpack.c.b16 %v12453, %v12450
    %v12979 = vpack.c.b16 %v12454, %v12451
    %v12980 = vpack.c.b16 %v12455, %v12452
    %v12981 = vpack.c.b16 %v12459, %v12456
    %v12982 = vpack.c.b16 %v12460, %v12457
    %v12983 = vpack.c.b16 %v12461, %v12458
    %v12984 = vpack.c.b16 %v12465, %v12462
    %v12985 = vpack.c.b16 %v12466, %v12463
    %v12986 = vpack.c.b16 %v12467, %v12464
    %v12987 = vpack.c.b16 %v12471, %v12468
    %v12988 = vpack.c.b16 %v12472, %v12469
    %v12989 = vpack.c.b16 %v12473, %v12470
    %v12990 = vpack.c.b16 %v12477, %v12474
    %v12991 = vpack.c.b16 %v12478, %v12475
    %v12992 = vpack.c.b16 %v12479, %v12476
    %v12993 = vpack.c.b16 %v12483, %v12480
    %v12994 = vpack.c.b16 %v12484, %v12481
    %v12995 = vpack.c.b16 %v12485, %v12482
    %v12996 = vpack.c.b16 %v12489, %v12486
    %v12997 = vpack.c.b16 %v12490, %v12487
    %v12998 = vpack.c.b16 %v12491, %v12488
    %v12999 = vpack.c.b16 %v12495, %v12492
    %v13000 = vpack.c.b16 %v12496, %v12493
    %v13001 = vpack.c.b16 %v12497, %v12494
    %v13002 = vpack.c.b16 %v12501, %v12498
    %v13003 = vpack.c.b16 %v12502, %v12499
    %v13004 = vpack.c.b16 %v12503, %v12500
    %v13005 = vpack.c.b16 %v12507, %v12504
    %v13006 = vpack.c.b16 %v12508, %v12505
    %v13007 = vpack.c.b16 %v12509, %v12506
    %v13008 = vpack.c.b16 %v12513, %v12510
    %v13009 = vpack.c.b16 %v12514, %v12511
    %v13010 = vpack.c.b16 %v12515, %v12512
    %v13011 = vpack.c.b16 %v12519, %v12516
    %v13012 = vpack.c.b16 %v12520, %v12517
    %v13013 = vpack.c.b16 %v12521, %v12518
    %v13014 = vpack.c.b16 %v12525, %v12522
    %v13015 = vpack.c.b16 %v12526, %v12523
    %v13016 = vpack.c.b16 %v12527, %v12524
    %v13017 = vpack.c.b16 %v12531, %v12528
    %v13018 = vpack.c.b16 %v12532, %v12529
    %v13019 = vpack.c.b16 %v12533, %v12530
    %v13020 = vpack.c.b16 %v12537, %v12534
    %v13021 = vpack.c.b16 %v12538, %v12535
    %v13022 = vpack.c.b16 %v12539, %v12536
    %v13023 = vpack.c.b16 %v12543, %v12540
    %v13024 = vpack.c.b16 %v12544, %v12541
    %v13025 = vpack.c.b16 %v12545, %v12542
    %v13026 = vpack.c.b16 %v12549, %v12546
    %v13027 = vpack.c.b16 %v12550, %v12547
    %v13028 = vpack.c.b16 %v12551, %v12548
    %v13029 = vpack.c.b16 %v12555, %v12552
    %v13030 = vpack.c.b16 %v12556, %v12553
    %v13031 = vpack.c.b16 %v12557, %v12554
    %v13032 = vpack.c.b16 %v12561, %v12558
    %v13033 = vpack.c.b16 %v12562, %v12559
    %v13034 = vpack.c.b16 %v12563, %v12560
    %v13035 = vpack.c.b16 %v12567, %v12564
    %v13036 = vpack.c.b16 %v12568, %v12565
    %v13037 = vpack.c.b16 %v12569, %v12566
    %v13038 = vpack.c.b16 %v12573, %v12570
    %v13039 = vpack.c.b16 %v12574, %v12571
    %v13040 = vpack.c.b16 %v12575, %v12572
    %v13041 = vpack.c.b16 %v12579, %v12576
    %v13042 = vpack.c.b16 %v12580, %v12577
    %v13043 = vpack.c.b16 %v12581, %v12578
    %v13044 = vpack.c.b16 %v12585, %v12582
    %v13045 = vpack.c.b16 %v12586, %v12583
    %v13046 = vpack.c.b16 %v12587, %v12584
    %v13047 = vpack.c.b16 %v12591, %v12588
    %v13048 = vpack.c.b16 %v12592, %v12589
    %v13049 = vpack.c.b16 %v12593, %v12590
    %v13050 = vpack.c.b16 %v12597, %v12594
    %v13051 = vpack.c.b16 %v12598, %v12595
    %v13052 = vpack.c.b16 %v12599, %v12596
    %v13053 = vpack.c.b16 %v12603, %v12600
    %v13054 = vpack.c.b16 %v12604, %v12601
    %v13055 = vpack.c.b16 %v12605, %v12602
    %v13056 = vpack.c.b16 %v12609, %v12606
    %v13057 = vpack.c.b16 %v12610, %v12607
    %v13058 = vpack.c.b16 %v12611, %v12608
    %v13059 = vpack.c.b16 %v12615, %v12612
    %v13060 = vpack.c.b16 %v12616, %v12613
    %v13061 = vpack.c.b16 %v12617, %v12614
    %v13062 = vpack.c.b16 %v12621, %v12618
    %v13063 = vpack.c.b16 %v12622, %v12619
    %v13064 = vpack.c.b16 %v12623, %v12620
    %v13065 = vpack.c.b16 %v12627, %v12624
    %v13066 = vpack.c.b16 %v12628, %v12625
    %v13067 = vpack.c.b16 %v12629, %v12626
    %v13068 = vpack.c.b16 %v12633, %v12630
    %v13069 = vpack.c.b16 %v12634, %v12631
    %v13070 = vpack.c.b16 %v12635, %v12632
    %v13071 = vpack.c.b16 %v12639, %v12636
    %v13072 = vpack.c.b16 %v12640, %v12637
    %v13073 = vpack.c.b16 %v12641, %v12638
    %v13074 = vpack.c.b16 %v12645, %v12642
    %v13075 = vpack.c.b16 %v12646, %v12643
    %v13076 = vpack.c.b16 %v12647, %v12644
    %v13077 = vpack.c.b16 %v12651, %v12648
    %v13078 = vpack.c.b16 %v12652, %v12649
    %v13079 = vpack.c.b16 %v12653, %v12650
    %v13080 = vpack.c.b16 %v12657, %v12654
    %v13081 = vpack.c.b16 %v12658, %v12655
    %v13082 = vpack.c.b16 %v12659, %v12656
    %v13083 = vpack.c.b16 %v12663, %v12660
    %v13084 = vpack.c.b16 %v12664, %v12661
    %v13085 = vpack.c.b16 %v12665, %v12662
    %v13086 = vpack.c.b16 %v12669, %v12666
    %v13087 = vpack.c.b16 %v12670, %v12667
    %v13088 = vpack.c.b16 %v12671, %v12668
    %v13089 = vpack.c.b16 %v12675, %v12672
    %v13090 = vpack.c.b16 %v12676, %v12673
    %v13091 = vpack.c.b16 %v12677, %v12674
    %v13092 = vpack.c.b16 %v12681, %v12678
    %v13093 = vpack.c.b16 %v12682, %v12679
    %v13094 = vpack.c.b16 %v12683, %v12680
    %v13095 = vpack.c.b16 %v12687, %v12684
    %v13096 = vpack.c.b16 %v12688, %v12685
    %v13097 = vpack.c.b16 %v12689, %v12686
    %v13098 = vpack.c.b16 %v12693, %v12690
    %v13099 = vpack.c.b16 %v12694, %v12691
    %v13100 = vpack.c.b16 %v12695, %v12692
    %v13101 = vpack.c.b16 %v12699, %v12696
    %v13102 = vpack.c.b16 %v12700, %v12697
    %v13103 = vpack.c.b16 %v12701, %v12698
    %v13104 = vpack.c.b16 %v12705, %v12702
    %v13105 = vpack.c.b16 %v12706, %v12703
    %v13106 = vpack.c.b16 %v12707, %v12704
    %v13107 = vpack.c.b16 %v12711, %v12708
    %v13108 = vpack.c.b16 %v12712, %v12709
    %v13109 = vpack.c.b16 %v12713, %v12710
    %v13110 = vpack.c.b16 %v12717, %v12714
    %v13111 = vpack.c.b16 %v12718, %v12715
    %v13112 = vpack.c.b16 %v12719, %v12716
    %v13113 = vpack.c.b16 %v12723, %v12720
    %v13114 = vpack.c.b16 %v12724, %v12721
    %v13115 = vpack.c.b16 %v12725, %v12722
    %v13116 = vpack.c.b16 %v12729, %v12726
    %v13117 = vpack.c.b16 %v12730, %v12727
    %v13118 = vpack.c.b16 %v12731, %v12728
    %v13119 = vpack.c.b16 %v12735, %v12732
    %v13120 = vpack.c.b16 %v12736, %v12733
    %v13121 = vpack.c.b16 %v12737, %v12734
    %v13122 = vpack.c.b16 %v12741, %v12738
    %v13123 = vpack.c.b16 %v12742, %v12739
    %v13124 = vpack.c.b16 %v12743, %v12740
    %v13125 = vpack.c.b16 %v12747, %v12744
    %v13126 = vpack.c.b16 %v12748, %v12745
    %v13127 = vpack.c.b16 %v12749, %v12746
    %v13128 = vpack.c.b16 %v12753, %v12750
    %v13129 = vpack.c.b16 %v12754, %v12751
    %v13130 = vpack.c.b16 %v12755, %v12752
    %v13131 = vpack.c.b16 %v12759, %v12756
    %v13132 = vpack.c.b16 %v12760, %v12757
    %v13133 = vpack.c.b16 %v12761, %v12758
    %v13134 = vpack.c.b16 %v12765, %v12762
    %v13135 = vpack.c.b16 %v12766, %v12763
    %v13136 = vpack.c.b16 %v12767, %v12764
    %v13137 = vpack.c.b16 %v12771, %v12768
    %v13138 = vpack.c.b16 %v12772, %v12769
    %v13139 = vpack.c.b16 %v12773, %v12770
    %v13140 = vpack.c.b16 %v12777, %v12774
    %v13141 = vpack.c.b16 %v12778, %v12775
    %v13142 = vpack.c.b16 %v12779, %v12776
    %v13143 = vpack.c.b16 %v12783, %v12780
    %v13144 = vpack.c.b16 %v12784, %v12781
    %v13145 = vpack.c.b16 %v12785, %v12782
    %v13146 = vpack.c.b16 %v12789, %v12786
    %v13147 = vpack.c.b16 %v12790, %v12787
    %v13148 = vpack.c.b16 %v12791, %v12788
    %v13149 = vpack.c.b16 %v12795, %v12792
    %v13150 = vpack.c.b16 %v12796, %v12793
    %v13151 = vpack.c.b16 %v12797, %v12794
    %v13152 = vpack.c.b16 %v12801, %v12798
    %v13153 = vpack.c.b16 %v12802, %v12799
    %v13154 = vpack.c.b16 %v12803, %v12800
    %v13155 = vpack.c.b16 %v12807, %v12804
    %v13156 = vpack.c.b16 %v12808, %v12805
    %v13157 = vpack.c.b16 %v12809, %v12806
    %v13158 = vpack.c.b16 %v12813, %v12810
    %v13159 = vpack.c.b16 %v12814, %v12811
    %v13160 = vpack.c.b16 %v12815, %v12812
    %v13161 = vpack.c.b16 %v12819, %v12816
    %v13162 = vpack.c.b16 %v12820, %v12817
    %v13163 = vpack.c.b16 %v12821, %v12818
    %v13164 = vpack.c.b16 %v12825, %v12822
    %v13165 = vpack.c.b16 %v12826, %v12823
    %v13166 = vpack.c.b16 %v12827, %v12824
    %v13167 = vpack.c.b16 %v12831, %v12828
    %v13168 = vpack.c.b16 %v12832, %v12829
    %v13169 = vpack.c.b16 %v12833, %v12830
    %v13170 = vpack.c.b16 %v12837, %v12834
    %v13171 = vpack.c.b16 %v12838, %v12835
    %v13172 = vpack.c.b16 %v12839, %v12836
    %v13173 = vpack.c.b16 %v12843, %v12840
    %v13174 = vpack.c.b16 %v12844, %v12841
    %v13175 = vpack.c.b16 %v12845, %v12842
    %v13176 = vpack.c.b16 %v12849, %v12846
    %v13177 = vpack.c.b16 %v12850, %v12847
    %v13178 = vpack.c.b16 %v12851, %v12848
    %v13179 = vpack.c.b16 %v12855, %v12852
    %v13180 = vpack.c.b16 %v12856, %v12853
    %v13181 = vpack.c.b16 %v12857, %v12854
    %v13182 = vpack.c.b16 %v12861, %v12858
    %v13183 = vpack.c.b16 %v12862, %v12859
    %v13184 = vpack.c.b16 %v12863, %v12860
    %v13185 = vpack.c.b16 %v12867, %v12864
    %v13186 = vpack.c.b16 %v12868, %v12865
    %v13187 = vpack.c.b16 %v12869, %v12866
    %v13188 = vpack.c.b16 %v12873, %v12870
    %v13189 = vpack.c.b16 %v12874, %v12871
    %v13190 = vpack.c.b16 %v12875, %v12872
    %v13191 = vpack.c.b16 %v12879, %v12876
    %v13192 = vpack.c.b16 %v12880, %v12877
    %v13193 = vpack.c.b16 %v12881, %v12878
    %v13194 = vpack.c.b16 %v12885, %v12882
    %v13195 = vpack.c.b16 %v12886, %v12883
    %v13196 = vpack.c.b16 %v12887, %v12884
    %v13197 = vpack.c.b16 %v12891, %v12888
    %v13198 = vpack.c.b16 %v12892, %v12889
    %v13199 = vpack.c.b16 %v12893, %v12890
    %v13200 = vpack.c.b16 %v12897, %v12894
    %v13201 = vpack.c.b16 %v12898, %v12895
    %v13202 = vpack.c.b16 %v12899, %v12896
    %v13203 = vpack.c.b16 %v12903, %v12900
    %v13204 = vpack.c.b16 %v12904, %v12901
    %v13205 = vpack.c.b16 %v12905, %v12902
    %v13206 = vpack.c.b16 %v12909, %v12906
    %v13207 = vpack.c.b16 %v12910, %v12907
    %v13208 = vpack.c.b16 %v12911, %v12908
    %v13209 = vpack.c.b16 %v12915, %v12912
    %v13210 = vpack.c.b16 %v12916, %v12913
    %v13211 = vpack.c.b16 %v12917, %v12914
    %v13212 = vpack.c.b16 %v12921, %v12918
    %v13213 = vpack.c.b16 %v12922, %v12919
    %v13214 = vpack.c.b16 %v12923, %v12920
    %v13215 = vpack.c.b16 %v12927, %v12924
    %v13216 = vpack.c.b16 %v12928, %v12925
    %v13217 = vpack.c.b16 %v12929, %v12926
    %13506 = vmatprep.subr.bf16.mxu0 %v12952
    %13507 = vmatpush1.bf16.msra.mxu0 %v12951
    %13508 = vmatprep.subr.bf16.mxu0 %v12949
    %13509 = vmatpush1.bf16.msra.mxu0 %v12948
    %13510 = vmatprep.subr.bf16.mxu0 %v12946
    %13511 = vmatpush1.bf16.msra.mxu0 %v12945
    %13512 = vmatprep.subr.bf16.mxu0 %v12943
    %13513 = vmatpush1.bf16.msra.mxu0 %v12942
    %13514 = vmatprep.subr.bf16.mxu0 %v12940
    %13515 = vmatpush1.bf16.msra.mxu0 %v12939
    %13516 = vmatprep.subr.bf16.mxu0 %v12937
    %13517 = vmatpush1.bf16.msra.mxu0 %v12936
    %13518 = vmatprep.subr.bf16.mxu0 %v12934
    %13519 = vmatpush1.bf16.msra.mxu0 %v12933
    %13520 = vmatprep.subr.bf16.mxu0 %v12931
    %13521 = vmatpush1.bf16.msra.mxu0 %v12930
    %13522 = vmatprep.subr.bf16.mxu0 %v12976
    %13523 = vmatpush2.bf16.msra.mxu0 %v12975
    %13524 = vmatprep.subr.bf16.mxu0 %v12973
    %13525 = vmatpush2.bf16.msra.mxu0 %v12972
    %13526 = vmatprep.subr.bf16.mxu0 %v12970
    %13527 = vmatpush2.bf16.msra.mxu0 %v12969
    %13528 = vmatprep.subr.bf16.mxu0 %v12967
    %13529 = vmatpush2.bf16.msra.mxu0 %v12966
    %13530 = vmatprep.subr.bf16.mxu0 %v12964
    %13531 = vmatpush2.bf16.msra.mxu0 %v12963
    %13532 = vmatprep.subr.bf16.mxu0 %v12961
    %13533 = vmatpush2.bf16.msra.mxu0 %v12960
    %13534 = vmatprep.subr.bf16.mxu0 %v12958
    %13535 = vmatpush2.bf16.msra.mxu0 %v12957
    %13536 = vmatprep.subr.bf16.mxu0 %v12955
    %13537 = vmatpush2.bf16.msra.mxu0 %v12954
    %13538 = vmatprep.mubr.bf16.mxu0 %v11558
    %13539 = vmatmul.mubr.bf16.gmra.mxu0 %v11557
    %v13540 = vpop.f32.mrf.mxu0
    %v13541 = vadd.f32 %v11958, %v13540
    %v13542 = vpop.f32.mrf.mxu0
    %v13543 = vadd.f32 %v11962, %v13542
    %v13544 = vpop.f32.mrf.mxu0
    %v13545 = vadd.f32 %v11958, %v13544
    %v13546 = vpop.f32.mrf.mxu0
    %v13547 = vadd.f32 %v11962, %v13546
    %13548 = vdwg.mxu0
    %13549 = vmatprep.subr.bf16.mxu0 %v13000
    %13550 = vmatpush1.bf16.msra.mxu0 %v12999
    %13551 = vmatprep.subr.bf16.mxu0 %v12997
    %13552 = vmatpush1.bf16.msra.mxu0 %v12996
    %13553 = vmatprep.subr.bf16.mxu0 %v12994
    %13554 = vmatpush1.bf16.msra.mxu0 %v12993
    %13555 = vmatprep.subr.bf16.mxu0 %v12991
    %13556 = vmatpush1.bf16.msra.mxu0 %v12990
    %13557 = vmatprep.subr.bf16.mxu0 %v12988
    %13558 = vmatpush1.bf16.msra.mxu0 %v12987
    %13559 = vmatprep.subr.bf16.mxu0 %v12985
    %13560 = vmatpush1.bf16.msra.mxu0 %v12984
    %13561 = vmatprep.subr.bf16.mxu0 %v12982
    %13562 = vmatpush1.bf16.msra.mxu0 %v12981
    %13563 = vmatprep.subr.bf16.mxu0 %v12979
    %13564 = vmatpush1.bf16.msra.mxu0 %v12978
    %13565 = vmatprep.subr.bf16.mxu0 %v13024
    %13566 = vmatpush2.bf16.msra.mxu0 %v13023
    %13567 = vmatprep.subr.bf16.mxu0 %v13021
    %13568 = vmatpush2.bf16.msra.mxu0 %v13020
    %13569 = vmatprep.subr.bf16.mxu0 %v13018
    %13570 = vmatpush2.bf16.msra.mxu0 %v13017
    %13571 = vmatprep.subr.bf16.mxu0 %v13015
    %13572 = vmatpush2.bf16.msra.mxu0 %v13014
    %13573 = vmatprep.subr.bf16.mxu0 %v13012
    %13574 = vmatpush2.bf16.msra.mxu0 %v13011
    %13575 = vmatprep.subr.bf16.mxu0 %v13009
    %13576 = vmatpush2.bf16.msra.mxu0 %v13008
    %13577 = vmatprep.subr.bf16.mxu0 %v13006
    %13578 = vmatpush2.bf16.msra.mxu0 %v13005
    %13579 = vmatprep.subr.bf16.mxu0 %v13003
    %13580 = vmatpush2.bf16.msra.mxu0 %v13002
    %13581 = vmatprep.mubr.bf16.mxu0 %v11560
    %13582 = vmatmul.mubr.bf16.gmra.mxu0 %v11559
    %v13583 = vpop.f32.mrf.mxu0
    %v13584 = vadd.f32 %v13541, %v13583
    %v13585 = vpop.f32.mrf.mxu0
    %v13586 = vadd.f32 %v13543, %v13585
    %v13587 = vpop.f32.mrf.mxu0
    %v13588 = vadd.f32 %v13545, %v13587
    %v13589 = vpop.f32.mrf.mxu0
    %v13590 = vadd.f32 %v13547, %v13589
    %13591 = vdwg.mxu0
    %13592 = vmatprep.subr.bf16.mxu0 %v13048
    %13593 = vmatpush1.bf16.msra.mxu0 %v13047
    %13594 = vmatprep.subr.bf16.mxu0 %v13045
    %13595 = vmatpush1.bf16.msra.mxu0 %v13044
    %13596 = vmatprep.subr.bf16.mxu0 %v13042
    %13597 = vmatpush1.bf16.msra.mxu0 %v13041
    %13598 = vmatprep.subr.bf16.mxu0 %v13039
    %13599 = vmatpush1.bf16.msra.mxu0 %v13038
    %13600 = vmatprep.subr.bf16.mxu0 %v13036
    %13601 = vmatpush1.bf16.msra.mxu0 %v13035
    %13602 = vmatprep.subr.bf16.mxu0 %v13033
    %13603 = vmatpush1.bf16.msra.mxu0 %v13032
    %13604 = vmatprep.subr.bf16.mxu0 %v13030
    %13605 = vmatpush1.bf16.msra.mxu0 %v13029
    %13606 = vmatprep.subr.bf16.mxu0 %v13027
    %13607 = vmatpush1.bf16.msra.mxu0 %v13026
    %13608 = vmatprep.subr.bf16.mxu0 %v13072
    %13609 = vmatpush2.bf16.msra.mxu0 %v13071
    %13610 = vmatprep.subr.bf16.mxu0 %v13069
    %13611 = vmatpush2.bf16.msra.mxu0 %v13068
    %13612 = vmatprep.subr.bf16.mxu0 %v13066
    %13613 = vmatpush2.bf16.msra.mxu0 %v13065
    %13614 = vmatprep.subr.bf16.mxu0 %v13063
    %13615 = vmatpush2.bf16.msra.mxu0 %v13062
    %13616 = vmatprep.subr.bf16.mxu0 %v13060
    %13617 = vmatpush2.bf16.msra.mxu0 %v13059
    %13618 = vmatprep.subr.bf16.mxu0 %v13057
    %13619 = vmatpush2.bf16.msra.mxu0 %v13056
    %13620 = vmatprep.subr.bf16.mxu0 %v13054
    %13621 = vmatpush2.bf16.msra.mxu0 %v13053
    %13622 = vmatprep.subr.bf16.mxu0 %v13051
    %13623 = vmatpush2.bf16.msra.mxu0 %v13050
    %13624 = vmatprep.mubr.bf16.mxu0 %v11562
    %13625 = vmatmul.mubr.bf16.gmra.mxu0 %v11561
    %v13626 = vpop.f32.mrf.mxu0
    %v13627 = vadd.f32 %v13584, %v13626
    %v13628 = vpop.f32.mrf.mxu0
    %v13629 = vadd.f32 %v13586, %v13628
    %v13630 = vpop.f32.mrf.mxu0
    %v13631 = vadd.f32 %v13588, %v13630
    %v13632 = vpop.f32.mrf.mxu0
    %v13633 = vadd.f32 %v13590, %v13632
    %13634 = vdwg.mxu0
    %13635 = vmatprep.subr.bf16.mxu0 %v13096
    %13636 = vmatpush1.bf16.msra.mxu0 %v13095
    %13637 = vmatprep.subr.bf16.mxu0 %v13093
    %13638 = vmatpush1.bf16.msra.mxu0 %v13092
    %13639 = vmatprep.subr.bf16.mxu0 %v13090
    %13640 = vmatpush1.bf16.msra.mxu0 %v13089
    %13641 = vmatprep.subr.bf16.mxu0 %v13087
    %13642 = vmatpush1.bf16.msra.mxu0 %v13086
    %13643 = vmatprep.subr.bf16.mxu0 %v13084
    %13644 = vmatpush1.bf16.msra.mxu0 %v13083
    %13645 = vmatprep.subr.bf16.mxu0 %v13081
    %13646 = vmatpush1.bf16.msra.mxu0 %v13080
    %13647 = vmatprep.subr.bf16.mxu0 %v13078
    %13648 = vmatpush1.bf16.msra.mxu0 %v13077
    %13649 = vmatprep.subr.bf16.mxu0 %v13075
    %13650 = vmatpush1.bf16.msra.mxu0 %v13074
    %13651 = vmatprep.subr.bf16.mxu0 %v13120
    %13652 = vmatpush2.bf16.msra.mxu0 %v13119
    %13653 = vmatprep.subr.bf16.mxu0 %v13117
    %13654 = vmatpush2.bf16.msra.mxu0 %v13116
    %13655 = vmatprep.subr.bf16.mxu0 %v13114
    %13656 = vmatpush2.bf16.msra.mxu0 %v13113
    %13657 = vmatprep.subr.bf16.mxu0 %v13111
    %13658 = vmatpush2.bf16.msra.mxu0 %v13110
    %13659 = vmatprep.subr.bf16.mxu0 %v13108
    %13660 = vmatpush2.bf16.msra.mxu0 %v13107
    %13661 = vmatprep.subr.bf16.mxu0 %v13105
    %13662 = vmatpush2.bf16.msra.mxu0 %v13104
    %13663 = vmatprep.subr.bf16.mxu0 %v13102
    %13664 = vmatpush2.bf16.msra.mxu0 %v13101
    %13665 = vmatprep.subr.bf16.mxu0 %v13099
    %13666 = vmatpush2.bf16.msra.mxu0 %v13098
    %13667 = vmatprep.mubr.bf16.mxu0 %v11564
    %13668 = vmatmul.mubr.bf16.gmra.mxu0 %v11563
    %v13669 = vpop.f32.mrf.mxu0
    %v13670 = vadd.f32 %v13627, %v13669
    %v13671 = vpop.f32.mrf.mxu0
    %v13672 = vadd.f32 %v13629, %v13671
    %v13673 = vpop.f32.mrf.mxu0
    %v13674 = vadd.f32 %v13631, %v13673
    %v13675 = vpop.f32.mrf.mxu0
    %v13676 = vadd.f32 %v13633, %v13675
    %13677 = vdwg.mxu0
    %13678 = vmatprep.subr.bf16.mxu0 %v13144
    %13679 = vmatpush1.bf16.msra.mxu0 %v13143
    %13680 = vmatprep.subr.bf16.mxu0 %v13141
    %13681 = vmatpush1.bf16.msra.mxu0 %v13140
    %13682 = vmatprep.subr.bf16.mxu0 %v13138
    %13683 = vmatpush1.bf16.msra.mxu0 %v13137
    %13684 = vmatprep.subr.bf16.mxu0 %v13135
    %13685 = vmatpush1.bf16.msra.mxu0 %v13134
    %13686 = vmatprep.subr.bf16.mxu0 %v13132
    %13687 = vmatpush1.bf16.msra.mxu0 %v13131
    %13688 = vmatprep.subr.bf16.mxu0 %v13129
    %13689 = vmatpush1.bf16.msra.mxu0 %v13128
    %13690 = vmatprep.subr.bf16.mxu0 %v13126
    %13691 = vmatpush1.bf16.msra.mxu0 %v13125
    %13692 = vmatprep.subr.bf16.mxu0 %v13123
    %13693 = vmatpush1.bf16.msra.mxu0 %v13122
    %13694 = vmatprep.subr.bf16.mxu0 %v13168
    %13695 = vmatpush2.bf16.msra.mxu0 %v13167
    %13696 = vmatprep.subr.bf16.mxu0 %v13165
    %13697 = vmatpush2.bf16.msra.mxu0 %v13164
    %13698 = vmatprep.subr.bf16.mxu0 %v13162
    %13699 = vmatpush2.bf16.msra.mxu0 %v13161
    %13700 = vmatprep.subr.bf16.mxu0 %v13159
    %13701 = vmatpush2.bf16.msra.mxu0 %v13158
    %13702 = vmatprep.subr.bf16.mxu0 %v13156
    %13703 = vmatpush2.bf16.msra.mxu0 %v13155
    %13704 = vmatprep.subr.bf16.mxu0 %v13153
    %13705 = vmatpush2.bf16.msra.mxu0 %v13152
    %13706 = vmatprep.subr.bf16.mxu0 %v13150
    %13707 = vmatpush2.bf16.msra.mxu0 %v13149
    %13708 = vmatprep.subr.bf16.mxu0 %v13147
    %13709 = vmatpush2.bf16.msra.mxu0 %v13146
    %13710 = vmatprep.mubr.bf16.mxu0 %v11566
    %13711 = vmatmul.mubr.bf16.gmra.mxu0 %v11565
    %v13712 = vpop.f32.mrf.mxu0
    %v13713 = vadd.f32 %v13670, %v13712
    %v13714 = vpop.f32.mrf.mxu0
    %v13715 = vadd.f32 %v13672, %v13714
    %v13716 = vpop.f32.mrf.mxu0
    %v13717 = vadd.f32 %v13674, %v13716
    %v13718 = vpop.f32.mrf.mxu0
    %v13719 = vadd.f32 %v13676, %v13718
    %13720 = vdwg.mxu0
    %13721 = vmatprep.subr.bf16.mxu0 %v13192
    %13722 = vmatpush1.bf16.msra.mxu0 %v13191
    %13723 = vmatprep.subr.bf16.mxu0 %v13189
    %13724 = vmatpush1.bf16.msra.mxu0 %v13188
    %13725 = vmatprep.subr.bf16.mxu0 %v13186
    %13726 = vmatpush1.bf16.msra.mxu0 %v13185
    %13727 = vmatprep.subr.bf16.mxu0 %v13183
    %13728 = vmatpush1.bf16.msra.mxu0 %v13182
    %13729 = vmatprep.subr.bf16.mxu0 %v13180
    %13730 = vmatpush1.bf16.msra.mxu0 %v13179
    %13731 = vmatprep.subr.bf16.mxu0 %v13177
    %13732 = vmatpush1.bf16.msra.mxu0 %v13176
    %13733 = vmatprep.subr.bf16.mxu0 %v13174
    %13734 = vmatpush1.bf16.msra.mxu0 %v13173
    %13735 = vmatprep.subr.bf16.mxu0 %v13171
    %13736 = vmatpush1.bf16.msra.mxu0 %v13170
    %13737 = vmatprep.subr.bf16.mxu0 %v13216
    %13738 = vmatpush2.bf16.msra.mxu0 %v13215
    %13739 = vmatprep.subr.bf16.mxu0 %v13213
    %13740 = vmatpush2.bf16.msra.mxu0 %v13212
    %13741 = vmatprep.subr.bf16.mxu0 %v13210
    %13742 = vmatpush2.bf16.msra.mxu0 %v13209
    %13743 = vmatprep.subr.bf16.mxu0 %v13207
    %13744 = vmatpush2.bf16.msra.mxu0 %v13206
    %13745 = vmatprep.subr.bf16.mxu0 %v13204
    %13746 = vmatpush2.bf16.msra.mxu0 %v13203
    %13747 = vmatprep.subr.bf16.mxu0 %v13201
    %13748 = vmatpush2.bf16.msra.mxu0 %v13200
    %13749 = vmatprep.subr.bf16.mxu0 %v13198
    %13750 = vmatpush2.bf16.msra.mxu0 %v13197
    %13751 = vmatprep.subr.bf16.mxu0 %v13195
    %13752 = vmatpush2.bf16.msra.mxu0 %v13194
    %13753 = vmatprep.mubr.bf16.mxu0 %v11568
    %13754 = vmatmul.mubr.bf16.gmra.mxu0 %v11567
    %v13755 = vpop.f32.mrf.mxu0
    %v13756 = vadd.f32 %v13713, %v13755
    %v13757 = vpop.f32.mrf.mxu0
    %v13758 = vadd.f32 %v13715, %v13757
    %v13759 = vpop.f32.mrf.mxu0
    %v13760 = vadd.f32 %v13717, %v13759
    %v13761 = vpop.f32.mrf.mxu0
    %v13762 = vadd.f32 %v13719, %v13761
    %13763 = vdwg.mxu0
    %13764 = vmatprep.subr.bf16.mxu0 0
    %13765 = vmatpush1.bf16.msra.mxu0 %v12953
    %13766 = vmatprep.subr.bf16.mxu0 0
    %13767 = vmatpush1.bf16.msra.mxu0 %v12950
    %13768 = vmatprep.subr.bf16.mxu0 0
    %13769 = vmatpush1.bf16.msra.mxu0 %v12947
    %13770 = vmatprep.subr.bf16.mxu0 0
    %13771 = vmatpush1.bf16.msra.mxu0 %v12944
    %13772 = vmatprep.subr.bf16.mxu0 0
    %13773 = vmatpush1.bf16.msra.mxu0 %v12941
    %13774 = vmatprep.subr.bf16.mxu0 0
    %13775 = vmatpush1.bf16.msra.mxu0 %v12938
    %13776 = vmatprep.subr.bf16.mxu0 0
    %13777 = vmatpush1.bf16.msra.mxu0 %v12935
    %13778 = vmatprep.subr.bf16.mxu0 0
    %13779 = vmatpush1.bf16.msra.mxu0 %v12932
    %13780 = vmatprep.subr.bf16.mxu0 0
    %13781 = vmatpush2.bf16.msra.mxu0 %v12977
    %13782 = vmatprep.subr.bf16.mxu0 0
    %13783 = vmatpush2.bf16.msra.mxu0 %v12974
    %13784 = vmatprep.subr.bf16.mxu0 0
    %13785 = vmatpush2.bf16.msra.mxu0 %v12971
    %13786 = vmatprep.subr.bf16.mxu0 0
    %13787 = vmatpush2.bf16.msra.mxu0 %v12968
    %13788 = vmatprep.subr.bf16.mxu0 0
    %13789 = vmatpush2.bf16.msra.mxu0 %v12965
    %13790 = vmatprep.subr.bf16.mxu0 0
    %13791 = vmatpush2.bf16.msra.mxu0 %v12962
    %13792 = vmatprep.subr.bf16.mxu0 0
    %13793 = vmatpush2.bf16.msra.mxu0 %v12959
    %13794 = vmatprep.subr.bf16.mxu0 0
    %13795 = vmatpush2.bf16.msra.mxu0 %v12956
    %13796 = vmatprep.mubr.bf16.mxu0 %v11558
    %13797 = vmatmul.mubr.bf16.gmra.mxu0 %v11557
    %v13798 = vpop.f32.mrf.mxu0
    %v13799 = vadd.f32 %v11966, %v13798
    %v13800 = vpop.f32.mrf.mxu0
    %v13801 = vpop.f32.mrf.mxu0
    %v13802 = vadd.f32 %v11966, %v13801
    %v13803 = vpop.f32.mrf.mxu0
    %13804 = vdwg.mxu0
    %13805 = vmatprep.subr.bf16.mxu0 0
    %13806 = vmatpush1.bf16.msra.mxu0 %v13001
    %13807 = vmatprep.subr.bf16.mxu0 0
    %13808 = vmatpush1.bf16.msra.mxu0 %v12998
    %13809 = vmatprep.subr.bf16.mxu0 0
    %13810 = vmatpush1.bf16.msra.mxu0 %v12995
    %13811 = vmatprep.subr.bf16.mxu0 0
    %13812 = vmatpush1.bf16.msra.mxu0 %v12992
    %13813 = vmatprep.subr.bf16.mxu0 0
    %13814 = vmatpush1.bf16.msra.mxu0 %v12989
    %13815 = vmatprep.subr.bf16.mxu0 0
    %13816 = vmatpush1.bf16.msra.mxu0 %v12986
    %13817 = vmatprep.subr.bf16.mxu0 0
    %13818 = vmatpush1.bf16.msra.mxu0 %v12983
    %13819 = vmatprep.subr.bf16.mxu0 0
    %13820 = vmatpush1.bf16.msra.mxu0 %v12980
    %13821 = vmatprep.subr.bf16.mxu0 0
    %13822 = vmatpush2.bf16.msra.mxu0 %v13025
    %13823 = vmatprep.subr.bf16.mxu0 0
    %13824 = vmatpush2.bf16.msra.mxu0 %v13022
    %13825 = vmatprep.subr.bf16.mxu0 0
    %13826 = vmatpush2.bf16.msra.mxu0 %v13019
    %13827 = vmatprep.subr.bf16.mxu0 0
    %13828 = vmatpush2.bf16.msra.mxu0 %v13016
    %13829 = vmatprep.subr.bf16.mxu0 0
    %13830 = vmatpush2.bf16.msra.mxu0 %v13013
    %13831 = vmatprep.subr.bf16.mxu0 0
    %13832 = vmatpush2.bf16.msra.mxu0 %v13010
    %13833 = vmatprep.subr.bf16.mxu0 0
    %13834 = vmatpush2.bf16.msra.mxu0 %v13007
    %13835 = vmatprep.subr.bf16.mxu0 0
    %13836 = vmatpush2.bf16.msra.mxu0 %v13004
    %13837 = vmatprep.mubr.bf16.mxu0 %v11560
    %13838 = vmatmul.mubr.bf16.gmra.mxu0 %v11559
    %v13839 = vpop.f32.mrf.mxu0
    %v13840 = vadd.f32 %v13799, %v13839
    %v13841 = vpop.f32.mrf.mxu0
    %v13842 = vpop.f32.mrf.mxu0
    %v13843 = vadd.f32 %v13802, %v13842
    %v13844 = vpop.f32.mrf.mxu0
    %13845 = vdwg.mxu0
    %13846 = vmatprep.subr.bf16.mxu0 0
    %13847 = vmatpush1.bf16.msra.mxu0 %v13049
    %13848 = vmatprep.subr.bf16.mxu0 0
    %13849 = vmatpush1.bf16.msra.mxu0 %v13046
    %13850 = vmatprep.subr.bf16.mxu0 0
    %13851 = vmatpush1.bf16.msra.mxu0 %v13043
    %13852 = vmatprep.subr.bf16.mxu0 0
    %13853 = vmatpush1.bf16.msra.mxu0 %v13040
    %13854 = vmatprep.subr.bf16.mxu0 0
    %13855 = vmatpush1.bf16.msra.mxu0 %v13037
    %13856 = vmatprep.subr.bf16.mxu0 0
    %13857 = vmatpush1.bf16.msra.mxu0 %v13034
    %13858 = vmatprep.subr.bf16.mxu0 0
    %13859 = vmatpush1.bf16.msra.mxu0 %v13031
    %13860 = vmatprep.subr.bf16.mxu0 0
    %13861 = vmatpush1.bf16.msra.mxu0 %v13028
    %13862 = vmatprep.subr.bf16.mxu0 0
    %13863 = vmatpush2.bf16.msra.mxu0 %v13073
    %13864 = vmatprep.subr.bf16.mxu0 0
    %13865 = vmatpush2.bf16.msra.mxu0 %v13070
    %13866 = vmatprep.subr.bf16.mxu0 0
    %13867 = vmatpush2.bf16.msra.mxu0 %v13067
    %13868 = vmatprep.subr.bf16.mxu0 0
    %13869 = vmatpush2.bf16.msra.mxu0 %v13064
    %13870 = vmatprep.subr.bf16.mxu0 0
    %13871 = vmatpush2.bf16.msra.mxu0 %v13061
    %13872 = vmatprep.subr.bf16.mxu0 0
    %13873 = vmatpush2.bf16.msra.mxu0 %v13058
    %13874 = vmatprep.subr.bf16.mxu0 0
    %13875 = vmatpush2.bf16.msra.mxu0 %v13055
    %13876 = vmatprep.subr.bf16.mxu0 0
    %13877 = vmatpush2.bf16.msra.mxu0 %v13052
    %13878 = vmatprep.mubr.bf16.mxu0 %v11562
    %13879 = vmatmul.mubr.bf16.gmra.mxu0 %v11561
    %v13880 = vpop.f32.mrf.mxu0
    %v13881 = vadd.f32 %v13840, %v13880
    %v13882 = vpop.f32.mrf.mxu0
    %v13883 = vpop.f32.mrf.mxu0
    %v13884 = vadd.f32 %v13843, %v13883
    %v13885 = vpop.f32.mrf.mxu0
    %13886 = vdwg.mxu0
    %13887 = vmatprep.subr.bf16.mxu0 0
    %13888 = vmatpush1.bf16.msra.mxu0 %v13097
    %13889 = vmatprep.subr.bf16.mxu0 0
    %13890 = vmatpush1.bf16.msra.mxu0 %v13094
    %13891 = vmatprep.subr.bf16.mxu0 0
    %13892 = vmatpush1.bf16.msra.mxu0 %v13091
    %13893 = vmatprep.subr.bf16.mxu0 0
    %13894 = vmatpush1.bf16.msra.mxu0 %v13088
    %13895 = vmatprep.subr.bf16.mxu0 0
    %13896 = vmatpush1.bf16.msra.mxu0 %v13085
    %13897 = vmatprep.subr.bf16.mxu0 0
    %13898 = vmatpush1.bf16.msra.mxu0 %v13082
    %13899 = vmatprep.subr.bf16.mxu0 0
    %13900 = vmatpush1.bf16.msra.mxu0 %v13079
    %13901 = vmatprep.subr.bf16.mxu0 0
    %13902 = vmatpush1.bf16.msra.mxu0 %v13076
    %13903 = vmatprep.subr.bf16.mxu0 0
    %13904 = vmatpush2.bf16.msra.mxu0 %v13121
    %13905 = vmatprep.subr.bf16.mxu0 0
    %13906 = vmatpush2.bf16.msra.mxu0 %v13118
    %13907 = vmatprep.subr.bf16.mxu0 0
    %13908 = vmatpush2.bf16.msra.mxu0 %v13115
    %13909 = vmatprep.subr.bf16.mxu0 0
    %13910 = vmatpush2.bf16.msra.mxu0 %v13112
    %13911 = vmatprep.subr.bf16.mxu0 0
    %13912 = vmatpush2.bf16.msra.mxu0 %v13109
    %13913 = vmatprep.subr.bf16.mxu0 0
    %13914 = vmatpush2.bf16.msra.mxu0 %v13106
    %13915 = vmatprep.subr.bf16.mxu0 0
    %13916 = vmatpush2.bf16.msra.mxu0 %v13103
    %13917 = vmatprep.subr.bf16.mxu0 0
    %13918 = vmatpush2.bf16.msra.mxu0 %v13100
    %13919 = vmatprep.mubr.bf16.mxu0 %v11564
    %13920 = vmatmul.mubr.bf16.gmra.mxu0 %v11563
    %v13921 = vpop.f32.mrf.mxu0
    %v13922 = vadd.f32 %v13881, %v13921
    %v13923 = vpop.f32.mrf.mxu0
    %v13924 = vpop.f32.mrf.mxu0
    %v13925 = vadd.f32 %v13884, %v13924
    %v13926 = vpop.f32.mrf.mxu0
    %13927 = vdwg.mxu0
    %13928 = vmatprep.subr.bf16.mxu0 0
    %13929 = vmatpush1.bf16.msra.mxu0 %v13145
    %13930 = vmatprep.subr.bf16.mxu0 0
    %13931 = vmatpush1.bf16.msra.mxu0 %v13142
    %13932 = vmatprep.subr.bf16.mxu0 0
    %13933 = vmatpush1.bf16.msra.mxu0 %v13139
    %13934 = vmatprep.subr.bf16.mxu0 0
    %13935 = vmatpush1.bf16.msra.mxu0 %v13136
    %13936 = vmatprep.subr.bf16.mxu0 0
    %13937 = vmatpush1.bf16.msra.mxu0 %v13133
    %13938 = vmatprep.subr.bf16.mxu0 0
    %13939 = vmatpush1.bf16.msra.mxu0 %v13130
    %13940 = vmatprep.subr.bf16.mxu0 0
    %13941 = vmatpush1.bf16.msra.mxu0 %v13127
    %13942 = vmatprep.subr.bf16.mxu0 0
    %13943 = vmatpush1.bf16.msra.mxu0 %v13124
    %13944 = vmatprep.subr.bf16.mxu0 0
    %13945 = vmatpush2.bf16.msra.mxu0 %v13169
    %13946 = vmatprep.subr.bf16.mxu0 0
    %13947 = vmatpush2.bf16.msra.mxu0 %v13166
    %13948 = vmatprep.subr.bf16.mxu0 0
    %13949 = vmatpush2.bf16.msra.mxu0 %v13163
    %13950 = vmatprep.subr.bf16.mxu0 0
    %13951 = vmatpush2.bf16.msra.mxu0 %v13160
    %13952 = vmatprep.subr.bf16.mxu0 0
    %13953 = vmatpush2.bf16.msra.mxu0 %v13157
    %13954 = vmatprep.subr.bf16.mxu0 0
    %13955 = vmatpush2.bf16.msra.mxu0 %v13154
    %13956 = vmatprep.subr.bf16.mxu0 0
    %13957 = vmatpush2.bf16.msra.mxu0 %v13151
    %13958 = vmatprep.subr.bf16.mxu0 0
    %13959 = vmatpush2.bf16.msra.mxu0 %v13148
    %13960 = vmatprep.mubr.bf16.mxu0 %v11566
    %13961 = vmatmul.mubr.bf16.gmra.mxu0 %v11565
    %v13962 = vpop.f32.mrf.mxu0
    %v13963 = vadd.f32 %v13922, %v13962
    %v13964 = vpop.f32.mrf.mxu0
    %v13965 = vpop.f32.mrf.mxu0
    %v13966 = vadd.f32 %v13925, %v13965
    %v13967 = vpop.f32.mrf.mxu0
    %13968 = vdwg.mxu0
    %13969 = vmatprep.subr.bf16.mxu0 0
    %13970 = vmatpush1.bf16.msra.mxu0 %v13193
    %13971 = vmatprep.subr.bf16.mxu0 0
    %13972 = vmatpush1.bf16.msra.mxu0 %v13190
    %13973 = vmatprep.subr.bf16.mxu0 0
    %13974 = vmatpush1.bf16.msra.mxu0 %v13187
    %13975 = vmatprep.subr.bf16.mxu0 0
    %13976 = vmatpush1.bf16.msra.mxu0 %v13184
    %13977 = vmatprep.subr.bf16.mxu0 0
    %13978 = vmatpush1.bf16.msra.mxu0 %v13181
    %13979 = vmatprep.subr.bf16.mxu0 0
    %13980 = vmatpush1.bf16.msra.mxu0 %v13178
    %13981 = vmatprep.subr.bf16.mxu0 0
    %13982 = vmatpush1.bf16.msra.mxu0 %v13175
    %13983 = vmatprep.subr.bf16.mxu0 0
    %13984 = vmatpush1.bf16.msra.mxu0 %v13172
    %13985 = vmatprep.subr.bf16.mxu0 0
    %13986 = vmatpush2.bf16.msra.mxu0 %v13217
    %13987 = vmatprep.subr.bf16.mxu0 0
    %13988 = vmatpush2.bf16.msra.mxu0 %v13214
    %13989 = vmatprep.subr.bf16.mxu0 0
    %13990 = vmatpush2.bf16.msra.mxu0 %v13211
    %13991 = vmatprep.subr.bf16.mxu0 0
    %13992 = vmatpush2.bf16.msra.mxu0 %v13208
    %13993 = vmatprep.subr.bf16.mxu0 0
    %13994 = vmatpush2.bf16.msra.mxu0 %v13205
    %13995 = vmatprep.subr.bf16.mxu0 0
    %13996 = vmatpush2.bf16.msra.mxu0 %v13202
    %13997 = vmatprep.subr.bf16.mxu0 0
    %13998 = vmatpush2.bf16.msra.mxu0 %v13199
    %13999 = vmatprep.subr.bf16.mxu0 0
    %14000 = vmatpush2.bf16.msra.mxu0 %v13196
    %14001 = vmatprep.mubr.bf16.mxu0 %v11568
    %14002 = vmatmul.mubr.bf16.gmra.mxu0 %v11567
    %v14003 = vpop.f32.mrf.mxu0
    %v14004 = vadd.f32 %v13963, %v14003
    %v14005 = vpop.f32.mrf.mxu0
    %v14006 = vpop.f32.mrf.mxu0
    %v14007 = vadd.f32 %v13966, %v14006
    %v14008 = vpop.f32.mrf.mxu0
    %14009 = vdwg.mxu0
    %v14010 = vpack.c.bf16 %v13760, %v13756
    %v14011 = vpack.c.bf16 %v13762, %v13758
    %v14012 = vpack.c.bf16 %v14007, %v14004
    %v14013 = vld [vmem:[#allocation11] sm:$0xf]
    %v14014 = vld [vmem:[#allocation11 + $0x4] sm:$0xf]
    %v14015 = vld [vmem:[#allocation11 + $0x8] sm:$0xf]
    %v14016 = vld [vmem:[#allocation11 + $0xc] sm:$0xf]
    %v14017 = vld [vmem:[#allocation11 + $0x10] sm:$0xf]
    %v14018 = vld [vmem:[#allocation11 + $0x14] sm:$0xf]
    %v14019 = vld [vmem:[#allocation11 + $0x18] sm:$0xf]
    %v14020 = vld [vmem:[#allocation11 + $0x1c] sm:$0xf]
    %v14021 = vld [vmem:[#allocation11 + $0x20] sm:$0xf]
    %v14022 = vld [vmem:[#allocation11 + $0x24] sm:$0xf]
    %v14023 = vld [vmem:[#allocation11 + $0x28] sm:$0xf]
    %v14024 = vld [vmem:[#allocation11 + $0x2c] sm:$0xf]
    %v14025 = vld [vmem:[#allocation11 + $0x30] sm:$0xf]
    %v14026 = vld [vmem:[#allocation11 + $0x34] sm:$0xf]
    %v14027 = vld [vmem:[#allocation11 + $0x38] sm:$0xf]
    %v14028 = vld [vmem:[#allocation11 + $0x3c] sm:$0xf]
    %v14029 = vld [vmem:[#allocation11 + $0x40] sm:$0xf]
    %v14030 = vld [vmem:[#allocation11 + $0x44] sm:$0xf]
    %v14031 = vld [vmem:[#allocation11 + $0x48] sm:$0xf]
    %v14032 = vld [vmem:[#allocation11 + $0x4c] sm:$0xf]
    %v14033 = vld [vmem:[#allocation11 + $0x50] sm:$0xf]
    %v14034 = vld [vmem:[#allocation11 + $0x54] sm:$0xf]
    %v14035 = vld [vmem:[#allocation11 + $0x58] sm:$0xf]
    %v14036 = vld [vmem:[#allocation11 + $0x5c] sm:$0xf]
    %v14037 = vld [vmem:[#allocation11 + $0x60] sm:$0xf]
    %v14038 = vld [vmem:[#allocation11 + $0x64] sm:$0xf]
    %v14039 = vld [vmem:[#allocation11 + $0x68] sm:$0xf]
    %v14040 = vld [vmem:[#allocation11 + $0x6c] sm:$0xf]
    %v14041 = vld [vmem:[#allocation11 + $0x70] sm:$0xf]
    %v14042 = vld [vmem:[#allocation11 + $0x74] sm:$0xf]
    %v14043 = vld [vmem:[#allocation11 + $0x78] sm:$0xf]
    %v14044 = vld [vmem:[#allocation11 + $0x7c] sm:$0xf]
    %v14045 = vld [vmem:[#allocation11 + $0x80] sm:$0xf]
    %v14046 = vld [vmem:[#allocation11 + $0x84] sm:$0xf]
    %v14047 = vld [vmem:[#allocation11 + $0x88] sm:$0xf]
    %v14048 = vld [vmem:[#allocation11 + $0x8c] sm:$0xf]
    %v14049 = vld [vmem:[#allocation11 + $0x90] sm:$0xf]
    %v14050 = vld [vmem:[#allocation11 + $0x94] sm:$0xf]
    %v14051 = vld [vmem:[#allocation11 + $0x98] sm:$0xf]
    %v14052 = vld [vmem:[#allocation11 + $0x9c] sm:$0xf]
    %v14053 = vld [vmem:[#allocation11 + $0xa0] sm:$0xf]
    %v14054 = vld [vmem:[#allocation11 + $0xa4] sm:$0xf]
    %v14055 = vld [vmem:[#allocation11 + $0xa8] sm:$0xf]
    %v14056 = vld [vmem:[#allocation11 + $0xac] sm:$0xf]
    %v14057 = vld [vmem:[#allocation11 + $0xb0] sm:$0xf]
    %v14058 = vld [vmem:[#allocation11 + $0xb4] sm:$0xf]
    %v14059 = vld [vmem:[#allocation11 + $0xb8] sm:$0xf]
    %v14060 = vld [vmem:[#allocation11 + $0xbc] sm:$0xf]
    %v14061 = vld [vmem:[#allocation13] sm:$0x1]
    %v14063 = vlaneseq
    %v14064 = vshrl.u32 %v14063, 7
    %v14065 = vsub.s32 0, %v14064
    %v14066 = vrot.slane %v14061, %v14065
    %v14116 = vunpack.c.l.b16 %v14013
    %v14117 = vunpack.c.l.b16 %v14014
    %v14118 = vunpack.c.l.b16 %v14015
    %v14119 = vunpack.c.l.b16 %v14016
    %v14120 = vunpack.c.l.b16 %v14017
    %v14121 = vunpack.c.l.b16 %v14018
    %v14122 = vunpack.c.l.b16 %v14019
    %v14123 = vunpack.c.l.b16 %v14020
    %v14124 = vunpack.c.l.b16 %v14021
    %v14125 = vunpack.c.l.b16 %v14022
    %v14126 = vunpack.c.l.b16 %v14023
    %v14127 = vunpack.c.l.b16 %v14024
    %v14128 = vunpack.c.l.b16 %v14025
    %v14129 = vunpack.c.l.b16 %v14026
    %v14130 = vunpack.c.l.b16 %v14027
    %v14131 = vunpack.c.l.b16 %v14028
    %v14132 = vunpack.c.l.b16 %v14029
    %v14133 = vunpack.c.l.b16 %v14030
    %v14134 = vunpack.c.l.b16 %v14031
    %v14135 = vunpack.c.l.b16 %v14032
    %v14136 = vunpack.c.l.b16 %v14033
    %v14137 = vunpack.c.l.b16 %v14034
    %v14138 = vunpack.c.l.b16 %v14035
    %v14139 = vunpack.c.l.b16 %v14036
    %v14140 = vunpack.c.l.b16 %v14037
    %v14141 = vunpack.c.l.b16 %v14038
    %v14142 = vunpack.c.l.b16 %v14039
    %v14143 = vunpack.c.l.b16 %v14040
    %v14144 = vunpack.c.l.b16 %v14041
    %v14145 = vunpack.c.l.b16 %v14042
    %v14146 = vunpack.c.l.b16 %v14043
    %v14147 = vunpack.c.l.b16 %v14044
    %v14148 = vunpack.c.l.b16 %v14045
    %v14149 = vunpack.c.l.b16 %v14046
    %v14150 = vunpack.c.l.b16 %v14047
    %v14151 = vunpack.c.l.b16 %v14048
    %v14152 = vunpack.c.l.b16 %v14049
    %v14153 = vunpack.c.l.b16 %v14050
    %v14154 = vunpack.c.l.b16 %v14051
    %v14155 = vunpack.c.l.b16 %v14052
    %v14156 = vunpack.c.l.b16 %v14053
    %v14157 = vunpack.c.l.b16 %v14054
    %v14158 = vunpack.c.l.b16 %v14055
    %v14159 = vunpack.c.l.b16 %v14056
    %v14160 = vunpack.c.l.b16 %v14057
    %v14161 = vunpack.c.l.b16 %v14058
    %v14162 = vunpack.c.l.b16 %v14059
    %v14163 = vunpack.c.l.b16 %v14060
    %v14164 = vpack.c.b16 %v14117, %v14116
    %v14165 = vpack.c.b16 %v14119, %v14118
    %v14166 = vpack.c.b16 %v14121, %v14120
    %v14167 = vpack.c.b16 %v14123, %v14122
    %v14168 = vpack.c.b16 %v14125, %v14124
    %v14169 = vpack.c.b16 %v14127, %v14126
    %v14170 = vpack.c.b16 %v14129, %v14128
    %v14171 = vpack.c.b16 %v14131, %v14130
    %v14172 = vpack.c.b16 %v14133, %v14132
    %v14173 = vpack.c.b16 %v14135, %v14134
    %v14174 = vpack.c.b16 %v14137, %v14136
    %v14175 = vpack.c.b16 %v14139, %v14138
    %v14176 = vpack.c.b16 %v14141, %v14140
    %v14177 = vpack.c.b16 %v14143, %v14142
    %v14178 = vpack.c.b16 %v14145, %v14144
    %v14179 = vpack.c.b16 %v14147, %v14146
    %v14180 = vpack.c.b16 %v14149, %v14148
    %v14181 = vpack.c.b16 %v14151, %v14150
    %v14182 = vpack.c.b16 %v14153, %v14152
    %v14183 = vpack.c.b16 %v14155, %v14154
    %v14184 = vpack.c.b16 %v14157, %v14156
    %v14185 = vpack.c.b16 %v14159, %v14158
    %v14186 = vpack.c.b16 %v14161, %v14160
    %v14187 = vpack.c.b16 %v14163, %v14162
    %14212 = vmatprep.subr.bf16.mxu0 0
    %14213 = vmatpush1.bf16.msra.mxu0 %v14171
    %14214 = vmatprep.subr.bf16.mxu0 0
    %14215 = vmatpush1.bf16.msra.mxu0 %v14170
    %14216 = vmatprep.subr.bf16.mxu0 0
    %14217 = vmatpush1.bf16.msra.mxu0 %v14169
    %14218 = vmatprep.subr.bf16.mxu0 0
    %14219 = vmatpush1.bf16.msra.mxu0 %v14168
    %14220 = vmatprep.subr.bf16.mxu0 0
    %14221 = vmatpush1.bf16.msra.mxu0 %v14167
    %14222 = vmatprep.subr.bf16.mxu0 0
    %14223 = vmatpush1.bf16.msra.mxu0 %v14166
    %14224 = vmatprep.subr.bf16.mxu0 0
    %14225 = vmatpush1.bf16.msra.mxu0 %v14165
    %14226 = vmatprep.subr.bf16.mxu0 0
    %14227 = vmatpush1.bf16.msra.mxu0 %v14164
    %14228 = vmatprep.subr.bf16.mxu0 0
    %14229 = vmatpush2.bf16.msra.mxu0 %v14179
    %14230 = vmatprep.subr.bf16.mxu0 0
    %14231 = vmatpush2.bf16.msra.mxu0 %v14178
    %14232 = vmatprep.subr.bf16.mxu0 0
    %14233 = vmatpush2.bf16.msra.mxu0 %v14177
    %14234 = vmatprep.subr.bf16.mxu0 0
    %14235 = vmatpush2.bf16.msra.mxu0 %v14176
    %14236 = vmatprep.subr.bf16.mxu0 0
    %14237 = vmatpush2.bf16.msra.mxu0 %v14175
    %14238 = vmatprep.subr.bf16.mxu0 0
    %14239 = vmatpush2.bf16.msra.mxu0 %v14174
    %14240 = vmatprep.subr.bf16.mxu0 0
    %14241 = vmatpush2.bf16.msra.mxu0 %v14173
    %14242 = vmatprep.subr.bf16.mxu0 0
    %14243 = vmatpush2.bf16.msra.mxu0 %v14172
    %14244 = vmatprep.mubr.bf16.mxu0 %v14011
    %14245 = vmatmul.mubr.bf16.gmra.mxu0 %v14010
    %v14246 = vpop.f32.mrf.mxu0
    %v14247 = vadd.f32 %v14066, %v14246
    %v14248 = vpop.f32.mrf.mxu0
    %v14249 = vpop.f32.mrf.mxu0
    %v14250 = vadd.f32 %v14066, %v14249
    %v14251 = vpop.f32.mrf.mxu0
    %14252 = vdwg.mxu0
    %14253 = vmatprep.subr.bf16.mxu0 0
    %14254 = vmatpush1.bf16.msra.mxu0 %v14187
    %14255 = vmatprep.subr.bf16.mxu0 0
    %14256 = vmatpush1.bf16.msra.mxu0 %v14186
    %14257 = vmatprep.subr.bf16.mxu0 0
    %14258 = vmatpush1.bf16.msra.mxu0 %v14185
    %14259 = vmatprep.subr.bf16.mxu0 0
    %14260 = vmatpush1.bf16.msra.mxu0 %v14184
    %14261 = vmatprep.subr.bf16.mxu0 0
    %14262 = vmatpush1.bf16.msra.mxu0 %v14183
    %14263 = vmatprep.subr.bf16.mxu0 0
    %14264 = vmatpush1.bf16.msra.mxu0 %v14182
    %14265 = vmatprep.subr.bf16.mxu0 0
    %14266 = vmatpush1.bf16.msra.mxu0 %v14181
    %14267 = vmatprep.subr.bf16.mxu0 0
    %14268 = vmatpush1.bf16.msra.mxu0 %v14180
    %14269 = vmatprep.subr.bf16.mxu0 0
    %14270 = vmatpush2.bf16.msra.mxu0 0
    %14271 = vmatprep.subr.bf16.mxu0 0
    %14272 = vmatpush2.bf16.msra.mxu0 0
    %14273 = vmatprep.subr.bf16.mxu0 0
    %14274 = vmatpush2.bf16.msra.mxu0 0
    %14275 = vmatprep.subr.bf16.mxu0 0
    %14276 = vmatpush2.bf16.msra.mxu0 0
    %14277 = vmatprep.subr.bf16.mxu0 0
    %14278 = vmatpush2.bf16.msra.mxu0 0
    %14279 = vmatprep.subr.bf16.mxu0 0
    %14280 = vmatpush2.bf16.msra.mxu0 0
    %14281 = vmatprep.subr.bf16.mxu0 0
    %14282 = vmatpush2.bf16.msra.mxu0 0
    %14283 = vmatprep.subr.bf16.mxu0 0
    %14284 = vmatpush2.bf16.msra.mxu0 0
    %14285 = vmatprep.mubr.bf16.mxu0 0
    %14286 = vmatmul.mubr.bf16.gmra.mxu0 %v14012
    %v14287 = vpop.f32.mrf.mxu0
    %v14288 = vadd.f32 %v14247, %v14287
    %v14289 = vpop.f32.mrf.mxu0
    %v14290 = vpop.f32.mrf.mxu0
    %v14291 = vadd.f32 %v14250, %v14290
    %v14292 = vpop.f32.mrf.mxu0
    %14293 = vdwg.mxu0
    %v14294 = vlaneseq
    %v14295 = vand.u32 %v14294, 127
    %vm14296 = vcmp.ge.s32.totalorder %v14295, 0
    %vm14297 = vcmp.lt.s32.totalorder %v14295, 2
    %vm14298 = vmand %vm14296, %vm14297
    %v14299 = vsel %vm14298, %v14288, -inf
    %v14300 = vsel %vm14298, %v14291, -inf
    %14301 = vmax.xlane.f32.xlu0 %v14299
    %v14302 = vpop.xlane.xlu0 %14301
    %14303 = vmax.xlane.f32.xlu0 %v14300
    %v14304 = vpop.xlane.xlu0 %14303
    %v14305 = vsub.f32 %v14288, %v14302
    %v14306 = vsub.f32 %v14291, %v14304
    %v14307 = vmul.f32 %v14305, 1.442695
    %v14308 = vpow.pop %v14307
    %v14309 = vmul.f32 %v14306, 1.442695
    %v14310 = vpow.pop %v14309
    %v14311 = vsel %vm14298, %v14308, 0.0
    %v14312 = vsel %vm14298, %v14310, 0.0
    %14313 = vadd.xlane.f32.xlu0 %v14311
    %v14314 = vpop.xlane.xlu0 %14313
    %14315 = vadd.xlane.f32.xlu0 %v14312
    %v14316 = vpop.xlane.xlu0 %14315
    %v14317 = vrcp.pop %v14314
    %v14318 = vrcp.pop %v14316
    %v14319 = vmul.f32 %v14311, %v14317
    %v14320 = vmul.f32 %v14312, %v14318
    %v14321 = vadd.f32 %v14319, 0.0
    %v14322 = vadd.f32 %v14320, 0.0
    %vm14323 = vcmp.ge.s32.totalorder %v14295, 2
    %vm14324 = vcmp.lt.s32.totalorder %v14295, 5
    %vm14325 = vmand %vm14323, %vm14324
    %v14326 = vsel %vm14325, %v14288, -inf
    %v14327 = vsel %vm14325, %v14291, -inf
    %14328 = vmax.xlane.f32.xlu0 %v14326
    %v14329 = vpop.xlane.xlu0 %14328
    %14330 = vmax.xlane.f32.xlu0 %v14327
    %v14331 = vpop.xlane.xlu0 %14330
    %v14332 = vsub.f32 %v14288, %v14329
    %v14333 = vsub.f32 %v14291, %v14331
    %v14334 = vmul.f32 %v14332, 1.442695
    %v14335 = vpow.pop %v14334
    %v14336 = vmul.f32 %v14333, 1.442695
    %v14337 = vpow.pop %v14336
    %v14338 = vsel %vm14325, %v14335, 0.0
    %v14339 = vsel %vm14325, %v14337, 0.0
    %14340 = vadd.xlane.f32.xlu0 %v14338
    %v14341 = vpop.xlane.xlu0 %14340
    %14342 = vadd.xlane.f32.xlu0 %v14339
    %v14343 = vpop.xlane.xlu0 %14342
    %v14344 = vrcp.pop %v14341
    %v14345 = vrcp.pop %v14343
    %v14346 = vmul.f32 %v14338, %v14344
    %v14347 = vmul.f32 %v14339, %v14345
    %v14348 = vadd.f32 %v14321, %v14346
    %v14349 = vadd.f32 %v14322, %v14347
    %vm14350 = vcmp.ge.s32.totalorder %v14295, 5
    %vm14351 = vcmp.lt.s32.totalorder %v14295, 8
    %vm14352 = vmand %vm14350, %vm14351
    %v14353 = vsel %vm14352, %v14288, -inf
    %v14354 = vsel %vm14352, %v14291, -inf
    %14355 = vmax.xlane.f32.xlu0 %v14353
    %v14356 = vpop.xlane.xlu0 %14355
    %14357 = vmax.xlane.f32.xlu0 %v14354
    %v14358 = vpop.xlane.xlu0 %14357
    %v14359 = vsub.f32 %v14288, %v14356
    %v14360 = vsub.f32 %v14291, %v14358
    %v14361 = vmul.f32 %v14359, 1.442695
    %v14362 = vpow.pop %v14361
    %v14363 = vmul.f32 %v14360, 1.442695
    %v14364 = vpow.pop %v14363
    %v14365 = vsel %vm14352, %v14362, 0.0
    %v14366 = vsel %vm14352, %v14364, 0.0
    %14367 = vadd.xlane.f32.xlu0 %v14365
    %v14368 = vpop.xlane.xlu0 %14367
    %14369 = vadd.xlane.f32.xlu0 %v14366
    %v14370 = vpop.xlane.xlu0 %14369
    %v14371 = vrcp.pop %v14368
    %v14372 = vrcp.pop %v14370
    %v14373 = vmul.f32 %v14365, %v14371
    %v14374 = vmul.f32 %v14366, %v14372
    %v14375 = vadd.f32 %v14348, %v14373
    %v14376 = vadd.f32 %v14349, %v14374
    %14377 = vst [vmem:[#allocation14] sm:$0xff] %v14375
    %14378 = vst [vmem:[#allocation14 + $0x8] sm:$0xff] %v14376
    // Predicated region
    $region58: #{tpu_custom_call.1} parent=1 // pred_check
      _
    $region59: #{tpu_custom_call.1} parent=1 // pred_check_branch
      %14380 = sbr.rel (0) target = $region61
    $region60: #{tpu_custom_call.1} parent=1 // pred_region
      %s14382 = ssub.s32 256, 256
      %14383 = vsyncadd [#allocation4], %s14382
      %s14384 = sshll.u32 [#allocation14], 4
      %s14385 = int_to_ptr.vmem [resolvable:$true] %s14384
      %14390 = dma.vmem_to_hbm [thread:$0]  %s14385, 256, %s7, [#allocation4], 128, 128, 8
    $region61: #{tpu_custom_call.1} parent=1 // pred_fallthru
      _
    // Predicated region
    $region62: #{tpu_custom_call.1} parent=1 // pred_check
      _
    $region63: #{tpu_custom_call.1} parent=1 // pred_check_branch
      %14392 = sbr.rel (0) target = $region65
    $region64: #{tpu_custom_call.1} parent=1 // pred_region
      %14393 = dma.done [#allocation4], 256
    $region65: #{tpu_custom_call.1} parent=1 // pred_fallthru
      _
    %14394 = vsyncpa [#allocation3], 1
    %14395 = vsyncpa [#allocation6], 1
    %14396 = vsyncpa [#allocation9], 1
    %14397 = vsyncpa [#allocation12], 1
    %14398 = vsyncpa [#allocation4], 1

</llo_original>
